<compile_context>
chip_gen: v7x
topology: tpu7x:2x2x1
jax: 0.10.0
libtpu: 0.0.40
codegen_flags: <defaults>
</compile_context>

<pallas_src>
import functools
import math

import jax
import jax.numpy as jnp
from jax.experimental import pallas as pl
from jax.experimental.pallas import tpu as pltpu


# ----------------------------------------------------------------------------
# Position + timestep sinusoid (plain JAX: pure parameter/table glue)
# ----------------------------------------------------------------------------
def _sinusoid(positions, dim):
    num_ts = dim // 2
    log_inc = math.log(1.0e4) / max(num_ts - 1, 1)
    inv_ts = jnp.exp(jnp.arange(num_ts, dtype=jnp.float32) * -log_inc)
    scaled = positions[:, None] * inv_ts[None, :]
    return jnp.concatenate([jnp.sin(scaled), jnp.cos(scaled)], axis=-1)


def coordinate_encoding(seq_len, dim, timestep):
    # TODO(synk): exact `add_position_and_timestep_sinusoid` source unavailable; using the
    # standard Universal-Transformer coordinate embedding (position sinusoid + timestep
    # sinusoid, sin||cos concatenation, base 1e4).
    pos = _sinusoid(jnp.arange(seq_len, dtype=jnp.float32), dim)       # (T, D)
    ts = _sinusoid(jnp.full((1,), float(timestep), jnp.float32), dim)  # (1, D)
    return pos + ts                                                     # (T, D)


# ----------------------------------------------------------------------------
# Kernel
# ----------------------------------------------------------------------------
def ut_enc_block_kernel(num_heads, head_dim, val_dim, d_model, eps,
                        x_ref, mask_ref, pe_ref,
                        wq_ref, bq_ref, wk_ref, bk_ref, wv_ref, bv_ref,
                        wo_ref, bo_ref, ln1g_ref, ln1b_ref,
                        wf1_ref, bf1_ref, wf2_ref, bf2_ref,
                        ln2g_ref, ln2b_ref, o_ref):
    bb, t, dp = x_ref.shape               # batch-block, padded seq, padded hidden
    f32, bf16 = jnp.float32, jnp.bfloat16

    # Lane mask selecting the real (unpadded) hidden columns; built once per step.
    lane = jax.lax.broadcasted_iota(jnp.int32, (1, dp), 1)
    dmask = (lane < d_model).astype(f32)

    def layer_norm(x, g, b):
        # AllenNLP-style LayerNorm: g * (x - mu) / (std + eps) + b (biased std), computed
        # only over the real d_model columns (padding columns are exact zeros).
        inv_d = 1.0 / d_model
        mu = jnp.sum(x * dmask, axis=-1, keepdims=True) * inv_d
        c = (x - mu) * dmask
        var = jnp.sum(c * c, axis=-1, keepdims=True) * inv_d
        inv_std = pl.reciprocal(jnp.sqrt(var) + eps, approx=False)     # EUP
        return g * c * inv_std + b        # padded cols: g = b = 0 -> 0

    # Coordinate (position + timestep) embedding add; flatten (bb, T) -> M for matmuls.
    xin = (x_ref[...] + pe_ref[...][None]).reshape(bb * t, dp)         # f32, padded cols 0
    xin_bf = xin.astype(bf16)

    # Q/K/V projections on the full (bb*T, Dp) slab (bf16 operands, f32 accumulation).
    # Cast to bf16 ONCE after the bias add (QK^T / PV run with bf16 operands anyway).
    q3 = (jnp.dot(xin_bf, wq_ref[...], preferred_element_type=f32)
          + bq_ref[...]).reshape(bb, t, -1).astype(bf16)
    k3 = (jnp.dot(xin_bf, wk_ref[...], preferred_element_type=f32)
          + bk_ref[...]).reshape(bb, t, -1).astype(bf16)
    v3 = (jnp.dot(xin_bf, wv_ref[...], preferred_element_type=f32)
          + bv_ref[...]).reshape(bb, t, -1).astype(bf16)

    scale = 1.0 / math.sqrt(head_dim)
    # Additive key mask stays (bb, 1, t); it broadcasts over the query dim inside the
    # score add (cheap VPU work hidden under MXU) instead of living as a (bb, t, t) buffer.
    neg = (mask_ref[...] - 1.0) * 1e9

    # TODO(synk): for production T (hundreds+), tile K/V along T with an online softmax
    # (flash-style) so per-head scores are (Tq_tile, Tk_tile) instead of (T, T).
    head_ctx = []
    for h in range(num_heads):            # static unroll (LLO visibility)
        qh = q3[:, :, h * head_dim:(h + 1) * head_dim]
        kh = k3[:, :, h * head_dim:(h + 1) * head_dim]
        vh = v3[:, :, h * val_dim:(h + 1) * val_dim]
        s = jnp.einsum("bqd,bkd->bqk", qh, kh,
                       preferred_element_type=f32) * scale + neg
        s = s - jnp.max(s, axis=-1, keepdims=True)
        p = jnp.exp(s)
        p = p * pl.reciprocal(jnp.sum(p, axis=-1, keepdims=True), approx=True)   # EUP
        head_ctx.append(jnp.einsum("bqk,bkd->bqd", p.astype(bf16), vh,
                                   preferred_element_type=f32))        # (bb, t, dv)

    # Output projection: lane-concat all heads and run ONE K = H*dv matmul through W_O
    # (full MXU depth, single RHS push / result drain instead of H small-K matmuls).
    val_tot = num_heads * val_dim
    ctx = jnp.concatenate(head_ctx, axis=-1).reshape(bb * t, val_tot)
    wo = wo_ref[...]
    if val_tot < wo.shape[0]:             # padded W_O rows beyond V are zeros -> drop them
        wo = wo[:val_tot, :]
    attn = jnp.dot(ctx.astype(bf16), wo, preferred_element_type=f32) + bo_ref[...]

    # residual (+ dropout = identity in eval) + LayerNorm
    h1 = attn + xin
    n1 = layer_norm(h1, ln1g_ref[...], ln1b_ref[...])

    # FeedForward: Linear -> ReLU -> (dropout identity) -> Linear, again on (bb*T, ·)
    f = jnp.dot(n1.astype(bf16), wf1_ref[...], preferred_element_type=f32) + bf1_ref[...]
    f = jnp.maximum(f, 0.0)
    f = jnp.dot(f.astype(bf16), wf2_ref[...], preferred_element_type=f32) + bf2_ref[...]

    out = layer_norm(f + n1, ln2g_ref[...], ln2b_ref[...])
    o_ref[...] = out.reshape(bb, t, dp)


# ----------------------------------------------------------------------------
# Wrapper
# ----------------------------------------------------------------------------
def _round_up(n, m):
    return (n + m - 1) // m * m


def _pad2(a, rows, cols):
    return jnp.pad(a, ((0, rows - a.shape[0]), (0, cols - a.shape[1])))


def _tpu_vmem_capacity_bytes():
    try:
        return int(pltpu.get_tpu_info().vmem_capacity_bytes)
    except Exception:
        return 64 * 1024 * 1024   # conservative (v7x-sized) fallback


def ut_enc_block(x, mask, timestep, params, num_heads, batch_block=None):
    B, T, D = x.shape
    A = params["wq"].shape[1]
    V = params["wv"].shape[1]
    F = params["wf1"].shape[1]
    head_dim = A // num_heads
    val_dim = V // num_heads

    # Lane-dense padding of feature dims (unmasked stores, full MXU result tiles) and
    # sublane padding of T (aligned (bb*T, ·) reshapes and per-head tiles).
    Dp, Ap, Vp, Fp = (_round_up(d, 128) for d in (D, A, V, F))
    Tp = _round_up(T, 8)

    f32, bf16 = jnp.float32, jnp.bfloat16
    pe = coordinate_encoding(Tp, D, timestep)                    # (Tp, D); rows >= T masked
    pe_p = _pad2(pe, Tp, Dp)                                     # (Tp, Dp)

    # Generation-aware budgets: v7x has 64 MiB VMEM per TensorCore, v5e/v6e have 128 MiB.
    vmem_cap = _tpu_vmem_capacity_bytes()
    vmem_limit = min((vmem_cap * 3) // 4, 100 * 1024 * 1024)     # ~48 MiB v7x, ~96 MiB v5e/v6e
    target_rows = 512 if vmem_cap >= 100 * 1024 * 1024 else 256  # bb*Tp rows per grid step

    # Batch block: fold several batch elements into the matmul M dimension per grid step.
    if batch_block is None:
        batch_block = max(1, target_rows // Tp)
    bb = max(1, min(batch_block, B))
    # Keep the parallel grid extent >= 2 when the whole batch would fit in one step and the
    # half blocks still carry a healthy M (v7x has 2 TensorCores to feed).
    if B > 1 and bb >= B and (B // 2) * Tp >= 256:
        bb = (B + 1) // 2
    # Pad B to a multiple of bb (padded rows are fully masked) instead of shrinking bb.
    # TODO(synk): on v7x, additionally prefer an even number of grid steps for the 2 TCs.
    Bp = _round_up(B, bb)
    nb = Bp // bb

    x_p = jnp.pad(x.astype(f32), ((0, Bp - B), (0, Tp - T), (0, Dp - D)))   # (Bp, Tp, Dp)
    mask_f = jnp.pad(mask.astype(f32), ((0, Bp - B), (0, Tp - T))).reshape(Bp, 1, Tp)

    # Weights in bf16 (MXU-native, half the resident VMEM); biases / LN params stay f32.
    # TODO(synk): on v7x, evaluate fp8 weights for the projection/FFN matmuls (accuracy check).
    # TODO(synk): on v5e, consider bf16 x/out streaming to halve HBM traffic if downstream allows.
    wp = {
        "wq": _pad2(params["wq"], Dp, Ap).astype(bf16), "bq": _pad2(params["bq"], 1, Ap).astype(f32),
        "wk": _pad2(params["wk"], Dp, Ap).astype(bf16), "bk": _pad2(params["bk"], 1, Ap).astype(f32),
        "wv": _pad2(params["wv"], Dp, Vp).astype(bf16), "bv": _pad2(params["bv"], 1, Vp).astype(f32),
        "wo": _pad2(params["wo"], Vp, Dp).astype(bf16), "bo": _pad2(params["bo"], 1, Dp).astype(f32),
        "ln1_g": _pad2(params["ln1_g"], 1, Dp).astype(f32),
        "ln1_b": _pad2(params["ln1_b"], 1, Dp).astype(f32),
        "wf1": _pad2(params["wf1"], Dp, Fp).astype(bf16), "bf1": _pad2(params["bf1"], 1, Fp).astype(f32),
        "wf2": _pad2(params["wf2"], Fp, Dp).astype(bf16), "bf2": _pad2(params["bf2"], 1, Dp).astype(f32),
        "ln2_g": _pad2(params["ln2_g"], 1, Dp).astype(f32),
        "ln2_b": _pad2(params["ln2_b"], 1, Dp).astype(f32),
    }
    param_order = ["wq", "bq", "wk", "bk", "wv", "bv", "wo", "bo",
                   "ln1_g", "ln1_b", "wf1", "bf1", "wf2", "bf2", "ln2_g", "ln2_b"]
    flat_params = [wp[n] for n in param_order]

    kern = functools.partial(ut_enc_block_kernel, num_heads, head_dim, val_dim, D, 1e-6)

    def run(single_buffer_weights):
        def const_spec(a):
            # Whole-array block with a constant index map: the tile never changes across the
            # grid, so single-buffer it (Buffered(1)) to halve its resident VMEM.
            zeros = (0,) * a.ndim
            idx = lambda b, _z=zeros: _z
            if single_buffer_weights:
                return pl.BlockSpec(a.shape, idx, pipeline_mode=pl.Buffered(1))
            return pl.BlockSpec(a.shape, idx)

        grid_spec = pltpu.PrefetchScalarGridSpec(
            num_scalar_prefetch=0,
            grid=(nb,),
            in_specs=[
                pl.BlockSpec((bb, Tp, Dp), lambda b: (b, 0, 0)),   # x (padded)
                pl.BlockSpec((bb, 1, Tp), lambda b: (b, 0, 0)),    # key mask
                const_spec(pe_p),                                  # coordinate embedding
            ] + [const_spec(p) for p in flat_params],
            out_specs=pl.BlockSpec((bb, Tp, Dp), lambda b: (b, 0, 0)),
        )
        return pl.pallas_call(
            kern,
            out_shape=jax.ShapeDtypeStruct((Bp, Tp, Dp), jnp.float32),
            grid_spec=grid_spec,
            compiler_params=pltpu.CompilerParams(
                dimension_semantics=("parallel",),
                vmem_limit_bytes=vmem_limit,
            ),
        )(x_p, mask_f, pe_p, *flat_params)

    try:
        out_p = run(True)
    except Exception:
        # Some jax builds reject pipeline_mode=Buffered(1) on input specs; fall back to the
        # default double-buffering (correctness-identical, just more resident VMEM).
        out_p = run(False)

    return out_p[:B, :T, :D]


# ----------------------------------------------------------------------------
# Pure-JAX reference mirroring the kernel math (bf16 matmul operands, f32 accumulation)
# ----------------------------------------------------------------------------
def _layer_norm_ref(x, g, b, eps=1e-6):
    mu = jnp.mean(x, axis=-1, keepdims=True)
    var = jnp.mean((x - mu) ** 2, axis=-1, keepdims=True)
    return g * (x - mu) / (jnp.sqrt(var) + eps) + b


def ut_enc_block_ref(x, mask, timestep, params, num_heads):
    B, T, D = x.shape
    A = params["wq"].shape[1]
    V = params["wv"].shape[1]
    dh, dv = A // num_heads, V // num_heads
    f32, bf16 = jnp.float32, jnp.bfloat16
    bf = lambda a: a.astype(bf16)
    mm = lambda a, w: jnp.dot(bf(a), bf(w), preferred_element_type=f32)

    pe = coordinate_encoding(T, D, timestep)
    xin = x + pe[None]
    q = mm(xin, params["wq"]) + params["bq"]
    k = mm(xin, params["wk"]) + params["bk"]
    v = mm(xin, params["wv"]) + params["bv"]
    qh = q.reshape(B, T, num_heads, dh)
    kh = k.reshape(B, T, num_heads, dh)
    vh = v.reshape(B, T, num_heads, dv)
    neg = (mask.astype(f32) - 1.0)[:, None, None, :] * 1e9
    s = jnp.einsum("bqhd,bkhd->bhqk", bf(qh), bf(kh),
                   preferred_element_type=f32) / math.sqrt(dh) + neg
    p = jax.nn.softmax(s, axis=-1)
    o = jnp.einsum("bhqk,bkhd->bqhd", bf(p), bf(vh), preferred_element_type=f32)
    attn = mm(o.reshape(B, T, -1), params["wo"]) + params["bo"]
    h1 = attn + xin
    n1 = _layer_norm_ref(h1, params["ln1_g"], params["ln1_b"])
    f = jnp.maximum(mm(n1, params["wf1"]) + params["bf1"], 0.0)
    f = mm(f, params["wf2"]) + params["bf2"]
    return _layer_norm_ref(f + n1, params["ln2_g"], params["ln2_b"])


# ----------------------------------------------------------------------------
def init_params(key, input_dim, num_heads, attention_dim=None, value_dim=None,
                feedforward_hidden_dim=None):
    hidden_dim = input_dim
    attention_dim = attention_dim or hidden_dim // num_heads
    value_dim = value_dim or hidden_dim // num_heads
    feedforward_hidden_dim = feedforward_hidden_dim or hidden_dim
    A = attention_dim * num_heads
    V = value_dim * num_heads
    F = feedforward_hidden_dim
    ks = jax.random.split(key, 6)
    w = lambda k, s: (0.02 * jax.random.normal(k, s)).astype(jnp.float32)
    return {
        "wq": w(ks[0], (hidden_dim, A)), "bq": jnp.zeros((1, A), jnp.float32),
        "wk": w(ks[1], (hidden_dim, A)), "bk": jnp.zeros((1, A), jnp.float32),
        "wv": w(ks[2], (hidden_dim, V)), "bv": jnp.zeros((1, V), jnp.float32),
        "wo": w(ks[3], (V, hidden_dim)), "bo": jnp.zeros((1, hidden_dim), jnp.float32),
        "ln1_g": jnp.ones((1, hidden_dim), jnp.float32),
        "ln1_b": jnp.zeros((1, hidden_dim), jnp.float32),
        "wf1": w(ks[4], (hidden_dim, F)), "bf1": jnp.zeros((1, F), jnp.float32),
        "wf2": w(ks[5], (F, hidden_dim)), "bf2": jnp.zeros((1, hidden_dim), jnp.float32),
        "ln2_g": jnp.ones((1, hidden_dim), jnp.float32),
        "ln2_b": jnp.zeros((1, hidden_dim), jnp.float32),
    }


if __name__ == "__main__":
    B, T, D, H = 2, 8, 32, 8
    timestep = 3

    key = jax.random.PRNGKey(0)
    kx, kp = jax.random.split(key)
    x = jax.random.normal(kx, (B, T, D), dtype=jnp.float32)
    mask = jnp.ones((B, T), dtype=jnp.int32).at[1, T - 2:].set(0)  # pad last 2 tokens of batch 1
    params = init_params(kp, input_dim=D, num_heads=H)

    out = ut_enc_block(x, mask, timestep, params, num_heads=H)
    out = jax.block_until_ready(out)

    ref = ut_enc_block_ref(x, mask, timestep, params, num_heads=H)
    assert out.shape == (B, T, D)
    assert bool(jnp.all(jnp.isfinite(out)))
    # Tolerance covers bf16 matmul operands + EUP approximate reciprocal in softmax.
    assert jnp.allclose(out, ref, rtol=1e-2, atol=1e-2), "Pallas output mismatch vs JAX reference"

    print("KERNEL_OK")
</pallas_src>

<mosaic_0001>
module attributes {stable_mosaic.version = 11 : i64} {
  func.func @ut_enc_block_kernel(%arg0: i32, %arg1: memref<2x8x128xf32, #tpu.memory_space<vmem>>, %arg2: memref<2x1x8xf32, #tpu.memory_space<vmem>>, %arg3: memref<8x128xf32, #tpu.memory_space<vmem>>, %arg4: memref<128x128xbf16, #tpu.memory_space<vmem>>, %arg5: memref<1x128xf32, #tpu.memory_space<vmem>>, %arg6: memref<128x128xbf16, #tpu.memory_space<vmem>>, %arg7: memref<1x128xf32, #tpu.memory_space<vmem>>, %arg8: memref<128x128xbf16, #tpu.memory_space<vmem>>, %arg9: memref<1x128xf32, #tpu.memory_space<vmem>>, %arg10: memref<128x128xbf16, #tpu.memory_space<vmem>>, %arg11: memref<1x128xf32, #tpu.memory_space<vmem>>, %arg12: memref<1x128xf32, #tpu.memory_space<vmem>>, %arg13: memref<1x128xf32, #tpu.memory_space<vmem>>, %arg14: memref<128x128xbf16, #tpu.memory_space<vmem>>, %arg15: memref<1x128xf32, #tpu.memory_space<vmem>>, %arg16: memref<128x128xbf16, #tpu.memory_space<vmem>>, %arg17: memref<1x128xf32, #tpu.memory_space<vmem>>, %arg18: memref<1x128xf32, #tpu.memory_space<vmem>>, %arg19: memref<1x128xf32, #tpu.memory_space<vmem>>, %arg20: memref<2x8x128xf32, #tpu.memory_space<vmem>>) attributes {dimension_semantics = [#tpu.dimension_semantics<parallel>], iteration_bounds = array<i64: 1>, scalar_prefetch = 0 : i64, scratch_operands = 0 : i64, tpu.core_type = #tpu.core_type<tc>, window_params = [{transform_indices = @transform_0, window_bounds = array<i64: 2, 8, 128>}, {transform_indices = @transform_1, window_bounds = array<i64: 2, 1, 8>}, {pipeline_mode = #tpu.pipeline_mode<synchronous>, transform_indices = @transform_2, window_bounds = array<i64: 8, 128>}, {pipeline_mode = #tpu.pipeline_mode<synchronous>, transform_indices = @transform_3, window_bounds = array<i64: 128, 128>}, {pipeline_mode = #tpu.pipeline_mode<synchronous>, transform_indices = @transform_4, window_bounds = array<i64: 1, 128>}, {pipeline_mode = #tpu.pipeline_mode<synchronous>, transform_indices = @transform_5, window_bounds = array<i64: 128, 128>}, {pipeline_mode = #tpu.pipeline_mode<synchronous>, transform_indices = @transform_6, window_bounds = array<i64: 1, 128>}, {pipeline_mode = #tpu.pipeline_mode<synchronous>, transform_indices = @transform_7, window_bounds = array<i64: 128, 128>}, {pipeline_mode = #tpu.pipeline_mode<synchronous>, transform_indices = @transform_8, window_bounds = array<i64: 1, 128>}, {pipeline_mode = #tpu.pipeline_mode<synchronous>, transform_indices = @transform_9, window_bounds = array<i64: 128, 128>}, {pipeline_mode = #tpu.pipeline_mode<synchronous>, transform_indices = @transform_10, window_bounds = array<i64: 1, 128>}, {pipeline_mode = #tpu.pipeline_mode<synchronous>, transform_indices = @transform_11, window_bounds = array<i64: 1, 128>}, {pipeline_mode = #tpu.pipeline_mode<synchronous>, transform_indices = @transform_12, window_bounds = array<i64: 1, 128>}, {pipeline_mode = #tpu.pipeline_mode<synchronous>, transform_indices = @transform_13, window_bounds = array<i64: 128, 128>}, {pipeline_mode = #tpu.pipeline_mode<synchronous>, transform_indices = @transform_14, window_bounds = array<i64: 1, 128>}, {pipeline_mode = #tpu.pipeline_mode<synchronous>, transform_indices = @transform_15, window_bounds = array<i64: 128, 128>}, {pipeline_mode = #tpu.pipeline_mode<synchronous>, transform_indices = @transform_16, window_bounds = array<i64: 1, 128>}, {pipeline_mode = #tpu.pipeline_mode<synchronous>, transform_indices = @transform_17, window_bounds = array<i64: 1, 128>}, {pipeline_mode = #tpu.pipeline_mode<synchronous>, transform_indices = @transform_18, window_bounds = array<i64: 1, 128>}, {transform_indices = @transform_19, window_bounds = array<i64: 2, 8, 128>}]} {
    %0 = tpu.iota {dimensions = array<i32: 1>} : vector<1x128xi32>
    %c32_i32 = arith.constant 32 : i32
    %1 = vector.broadcast %c32_i32 : i32 to vector<1x128xi32>
    %2 = arith.cmpi slt, %0, %1 : vector<1x128xi32>
    %3 = arith.extui %2 : vector<1x128xi1> to vector<1x128xi32>
    %4 = arith.sitofp %3 : vector<1x128xi32> to vector<1x128xf32>
    %c0 = arith.constant 0 : index
    %c0_0 = arith.constant 0 : index
    %c0_1 = arith.constant 0 : index
    %5 = vector.load %arg1[%c0, %c0_0, %c0_1] : memref<2x8x128xf32, #tpu.memory_space<vmem>>, vector<2x8x128xf32>
    %c0_2 = arith.constant 0 : index
    %c0_3 = arith.constant 0 : index
    %6 = vector.load %arg3[%c0_2, %c0_3] : memref<8x128xf32, #tpu.memory_space<vmem>>, vector<8x128xf32>
    %7 = vector.shape_cast %6 : vector<8x128xf32> to vector<1x8x128xf32>
    %8 = vector.broadcast %7 : vector<1x8x128xf32> to vector<2x8x128xf32>
    %9 = arith.addf %5, %8 : vector<2x8x128xf32>
    %10 = vector.shape_cast %9 : vector<2x8x128xf32> to vector<16x128xf32>
    %11 = arith.truncf %10 : vector<16x128xf32> to vector<16x128xbf16>
    %c0_4 = arith.constant 0 : index
    %c0_5 = arith.constant 0 : index
    %12 = vector.load %arg4[%c0_4, %c0_5] : memref<128x128xbf16, #tpu.memory_space<vmem>>, vector<128x128xbf16>
    %cst = arith.constant dense<0.000000e+00> : vector<16x128xf32>
    %13 = tpu.matmul %11, %12, %cst {dimension_numbers = #tpu.dot_dimension_numbers<[1], [0], [0], [1], [0, 0, 1, 1], [], []>} : vector<16x128xbf16>, vector<128x128xbf16>, vector<16x128xf32> -> vector<16x128xf32>
    %c0_6 = arith.constant 0 : index
    %c0_7 = arith.constant 0 : index
    %14 = vector.load %arg5[%c0_6, %c0_7] : memref<1x128xf32, #tpu.memory_space<vmem>>, vector<1x128xf32>
    %15 = vector.broadcast %14 : vector<1x128xf32> to vector<16x128xf32>
    %16 = arith.addf %13, %15 : vector<16x128xf32>
    %17 = vector.shape_cast %16 : vector<16x128xf32> to vector<2x8x128xf32>
    %18 = arith.truncf %17 : vector<2x8x128xf32> to vector<2x8x128xbf16>
    %c0_8 = arith.constant 0 : index
    %c0_9 = arith.constant 0 : index
    %19 = vector.load %arg6[%c0_8, %c0_9] : memref<128x128xbf16, #tpu.memory_space<vmem>>, vector<128x128xbf16>
    %cst_10 = arith.constant dense<0.000000e+00> : vector<16x128xf32>
    %20 = tpu.matmul %11, %19, %cst_10 {dimension_numbers = #tpu.dot_dimension_numbers<[1], [0], [0], [1], [0, 0, 1, 1], [], []>} : vector<16x128xbf16>, vector<128x128xbf16>, vector<16x128xf32> -> vector<16x128xf32>
    %c0_11 = arith.constant 0 : index
    %c0_12 = arith.constant 0 : index
    %21 = vector.load %arg7[%c0_11, %c0_12] : memref<1x128xf32, #tpu.memory_space<vmem>>, vector<1x128xf32>
    %22 = vector.broadcast %21 : vector<1x128xf32> to vector<16x128xf32>
    %23 = arith.addf %20, %22 : vector<16x128xf32>
    %24 = vector.shape_cast %23 : vector<16x128xf32> to vector<2x8x128xf32>
    %25 = arith.truncf %24 : vector<2x8x128xf32> to vector<2x8x128xbf16>
    %c0_13 = arith.constant 0 : index
    %c0_14 = arith.constant 0 : index
    %26 = vector.load %arg8[%c0_13, %c0_14] : memref<128x128xbf16, #tpu.memory_space<vmem>>, vector<128x128xbf16>
    %cst_15 = arith.constant dense<0.000000e+00> : vector<16x128xf32>
    %27 = tpu.matmul %11, %26, %cst_15 {dimension_numbers = #tpu.dot_dimension_numbers<[1], [0], [0], [1], [0, 0, 1, 1], [], []>} : vector<16x128xbf16>, vector<128x128xbf16>, vector<16x128xf32> -> vector<16x128xf32>
    %c0_16 = arith.constant 0 : index
    %c0_17 = arith.constant 0 : index
    %28 = vector.load %arg9[%c0_16, %c0_17] : memref<1x128xf32, #tpu.memory_space<vmem>>, vector<1x128xf32>
    %29 = vector.broadcast %28 : vector<1x128xf32> to vector<16x128xf32>
    %30 = arith.addf %27, %29 : vector<16x128xf32>
    %31 = vector.shape_cast %30 : vector<16x128xf32> to vector<2x8x128xf32>
    %32 = arith.truncf %31 : vector<2x8x128xf32> to vector<2x8x128xbf16>
    %c0_18 = arith.constant 0 : index
    %c0_19 = arith.constant 0 : index
    %c0_20 = arith.constant 0 : index
    %33 = vector.load %arg2[%c0_18, %c0_19, %c0_20] : memref<2x1x8xf32, #tpu.memory_space<vmem>>, vector<2x1x8xf32>
    %cst_21 = arith.constant 1.000000e+00 : f32
    %34 = vector.broadcast %cst_21 : f32 to vector<2x1x8xf32>
    %35 = arith.subf %33, %34 : vector<2x1x8xf32>
    %cst_22 = arith.constant 1.000000e+09 : f32
    %36 = vector.broadcast %cst_22 : f32 to vector<2x1x8xf32>
    %37 = arith.mulf %35, %36 : vector<2x1x8xf32>
    %38 = vector.extract_strided_slice %18 {offsets = [0, 0, 0], sizes = [2, 8, 4], strides = [1, 1, 1]} : vector<2x8x128xbf16> to vector<2x8x4xbf16>
    %39 = vector.extract_strided_slice %25 {offsets = [0, 0, 0], sizes = [2, 8, 4], strides = [1, 1, 1]} : vector<2x8x128xbf16> to vector<2x8x4xbf16>
    %40 = vector.extract_strided_slice %32 {offsets = [0, 0, 0], sizes = [2, 8, 4], strides = [1, 1, 1]} : vector<2x8x128xbf16> to vector<2x8x4xbf16>
    "tpu.trace_start"() <{level = 10 : i32, message = "bqd,bkd->bqk"}> : () -> ()
    %cst_23 = arith.constant dense<0.000000e+00> : vector<2x8x8xf32>
    %41 = tpu.matmul %38, %39, %cst_23 {dimension_numbers = #tpu.dot_dimension_numbers<[2], [2], [1], [1], [0, 0, 0, 1, 1, 1], [0], [0]>} : vector<2x8x4xbf16>, vector<2x8x4xbf16>, vector<2x8x8xf32> -> vector<2x8x8xf32>
    "tpu.trace_stop"() : () -> ()
    %cst_24 = arith.constant 5.000000e-01 : f32
    %42 = vector.broadcast %cst_24 : f32 to vector<2x8x8xf32>
    %43 = arith.mulf %41, %42 : vector<2x8x8xf32>
    %44 = vector.broadcast %37 : vector<2x1x8xf32> to vector<2x8x8xf32>
    %45 = arith.addf %43, %44 : vector<2x8x8xf32>
    %cst_25 = arith.constant dense<0xFF800000> : vector<2x8xf32>
    %46 = vector.multi_reduction <maximumf>, %45, %cst_25 [2] : vector<2x8x8xf32> to vector<2x8xf32>
    %47 = vector.shape_cast %46 : vector<2x8xf32> to vector<2x8x1xf32>
    %48 = vector.broadcast %47 : vector<2x8x1xf32> to vector<2x8x8xf32>
    %49 = arith.subf %45, %48 : vector<2x8x8xf32>
    %50 = math.exp %49 : vector<2x8x8xf32>
    %cst_26 = arith.constant dense<0.000000e+00> : vector<2x8xf32>
    %51 = vector.multi_reduction <add>, %50, %cst_26 [2] : vector<2x8x8xf32> to vector<2x8xf32>
    %52 = vector.shape_cast %51 : vector<2x8xf32> to vector<2x8x1xf32>
    %53 = tpu.reciprocal %52 {approx = true} : vector<2x8x1xf32> -> vector<2x8x1xf32>
    %54 = vector.broadcast %53 : vector<2x8x1xf32> to vector<2x8x8xf32>
    %55 = arith.mulf %50, %54 : vector<2x8x8xf32>
    %56 = arith.truncf %55 : vector<2x8x8xf32> to vector<2x8x8xbf16>
    "tpu.trace_start"() <{level = 10 : i32, message = "bqk,bkd->bqd"}> : () -> ()
    %cst_27 = arith.constant dense<0.000000e+00> : vector<2x8x4xf32>
    %57 = tpu.matmul %56, %40, %cst_27 {dimension_numbers = #tpu.dot_dimension_numbers<[2], [1], [1], [2], [0, 0, 0, 1, 1, 2], [0], [0]>} : vector<2x8x8xbf16>, vector<2x8x4xbf16>, vector<2x8x4xf32> -> vector<2x8x4xf32>
    "tpu.trace_stop"() : () -> ()
    %58 = vector.extract_strided_slice %18 {offsets = [0, 0, 4], sizes = [2, 8, 4], strides = [1, 1, 1]} : vector<2x8x128xbf16> to vector<2x8x4xbf16>
    %59 = vector.extract_strided_slice %25 {offsets = [0, 0, 4], sizes = [2, 8, 4], strides = [1, 1, 1]} : vector<2x8x128xbf16> to vector<2x8x4xbf16>
    %60 = vector.extract_strided_slice %32 {offsets = [0, 0, 4], sizes = [2, 8, 4], strides = [1, 1, 1]} : vector<2x8x128xbf16> to vector<2x8x4xbf16>
    "tpu.trace_start"() <{level = 10 : i32, message = "bqd,bkd->bqk"}> : () -> ()
    %cst_28 = arith.constant dense<0.000000e+00> : vector<2x8x8xf32>
    %61 = tpu.matmul %58, %59, %cst_28 {dimension_numbers = #tpu.dot_dimension_numbers<[2], [2], [1], [1], [0, 0, 0, 1, 1, 1], [0], [0]>} : vector<2x8x4xbf16>, vector<2x8x4xbf16>, vector<2x8x8xf32> -> vector<2x8x8xf32>
    "tpu.trace_stop"() : () -> ()
    %cst_29 = arith.constant 5.000000e-01 : f32
    %62 = vector.broadcast %cst_29 : f32 to vector<2x8x8xf32>
    %63 = arith.mulf %61, %62 : vector<2x8x8xf32>
    %64 = vector.broadcast %37 : vector<2x1x8xf32> to vector<2x8x8xf32>
    %65 = arith.addf %63, %64 : vector<2x8x8xf32>
    %cst_30 = arith.constant dense<0xFF800000> : vector<2x8xf32>
    %66 = vector.multi_reduction <maximumf>, %65, %cst_30 [2] : vector<2x8x8xf32> to vector<2x8xf32>
    %67 = vector.shape_cast %66 : vector<2x8xf32> to vector<2x8x1xf32>
    %68 = vector.broadcast %67 : vector<2x8x1xf32> to vector<2x8x8xf32>
    %69 = arith.subf %65, %68 : vector<2x8x8xf32>
    %70 = math.exp %69 : vector<2x8x8xf32>
    %cst_31 = arith.constant dense<0.000000e+00> : vector<2x8xf32>
    %71 = vector.multi_reduction <add>, %70, %cst_31 [2] : vector<2x8x8xf32> to vector<2x8xf32>
    %72 = vector.shape_cast %71 : vector<2x8xf32> to vector<2x8x1xf32>
    %73 = tpu.reciprocal %72 {approx = true} : vector<2x8x1xf32> -> vector<2x8x1xf32>
    %74 = vector.broadcast %73 : vector<2x8x1xf32> to vector<2x8x8xf32>
    %75 = arith.mulf %70, %74 : vector<2x8x8xf32>
    %76 = arith.truncf %75 : vector<2x8x8xf32> to vector<2x8x8xbf16>
    "tpu.trace_start"() <{level = 10 : i32, message = "bqk,bkd->bqd"}> : () -> ()
    %cst_32 = arith.constant dense<0.000000e+00> : vector<2x8x4xf32>
    %77 = tpu.matmul %76, %60, %cst_32 {dimension_numbers = #tpu.dot_dimension_numbers<[2], [1], [1], [2], [0, 0, 0, 1, 1, 2], [0], [0]>} : vector<2x8x8xbf16>, vector<2x8x4xbf16>, vector<2x8x4xf32> -> vector<2x8x4xf32>
    "tpu.trace_stop"() : () -> ()
    %78 = vector.extract_strided_slice %18 {offsets = [0, 0, 8], sizes = [2, 8, 4], strides = [1, 1, 1]} : vector<2x8x128xbf16> to vector<2x8x4xbf16>
    %79 = vector.extract_strided_slice %25 {offsets = [0, 0, 8], sizes = [2, 8, 4], strides = [1, 1, 1]} : vector<2x8x128xbf16> to vector<2x8x4xbf16>
    %80 = vector.extract_strided_slice %32 {offsets = [0, 0, 8], sizes = [2, 8, 4], strides = [1, 1, 1]} : vector<2x8x128xbf16> to vector<2x8x4xbf16>
    "tpu.trace_start"() <{level = 10 : i32, message = "bqd,bkd->bqk"}> : () -> ()
    %cst_33 = arith.constant dense<0.000000e+00> : vector<2x8x8xf32>
    %81 = tpu.matmul %78, %79, %cst_33 {dimension_numbers = #tpu.dot_dimension_numbers<[2], [2], [1], [1], [0, 0, 0, 1, 1, 1], [0], [0]>} : vector<2x8x4xbf16>, vector<2x8x4xbf16>, vector<2x8x8xf32> -> vector<2x8x8xf32>
    "tpu.trace_stop"() : () -> ()
    %cst_34 = arith.constant 5.000000e-01 : f32
    %82 = vector.broadcast %cst_34 : f32 to vector<2x8x8xf32>
    %83 = arith.mulf %81, %82 : vector<2x8x8xf32>
    %84 = vector.broadcast %37 : vector<2x1x8xf32> to vector<2x8x8xf32>
    %85 = arith.addf %83, %84 : vector<2x8x8xf32>
    %cst_35 = arith.constant dense<0xFF800000> : vector<2x8xf32>
    %86 = vector.multi_reduction <maximumf>, %85, %cst_35 [2] : vector<2x8x8xf32> to vector<2x8xf32>
    %87 = vector.shape_cast %86 : vector<2x8xf32> to vector<2x8x1xf32>
    %88 = vector.broadcast %87 : vector<2x8x1xf32> to vector<2x8x8xf32>
    %89 = arith.subf %85, %88 : vector<2x8x8xf32>
    %90 = math.exp %89 : vector<2x8x8xf32>
    %cst_36 = arith.constant dense<0.000000e+00> : vector<2x8xf32>
    %91 = vector.multi_reduction <add>, %90, %cst_36 [2] : vector<2x8x8xf32> to vector<2x8xf32>
    %92 = vector.shape_cast %91 : vector<2x8xf32> to vector<2x8x1xf32>
    %93 = tpu.reciprocal %92 {approx = true} : vector<2x8x1xf32> -> vector<2x8x1xf32>
    %94 = vector.broadcast %93 : vector<2x8x1xf32> to vector<2x8x8xf32>
    %95 = arith.mulf %90, %94 : vector<2x8x8xf32>
    %96 = arith.truncf %95 : vector<2x8x8xf32> to vector<2x8x8xbf16>
    "tpu.trace_start"() <{level = 10 : i32, message = "bqk,bkd->bqd"}> : () -> ()
    %cst_37 = arith.constant dense<0.000000e+00> : vector<2x8x4xf32>
    %97 = tpu.matmul %96, %80, %cst_37 {dimension_numbers = #tpu.dot_dimension_numbers<[2], [1], [1], [2], [0, 0, 0, 1, 1, 2], [0], [0]>} : vector<2x8x8xbf16>, vector<2x8x4xbf16>, vector<2x8x4xf32> -> vector<2x8x4xf32>
    "tpu.trace_stop"() : () -> ()
    %98 = vector.extract_strided_slice %18 {offsets = [0, 0, 12], sizes = [2, 8, 4], strides = [1, 1, 1]} : vector<2x8x128xbf16> to vector<2x8x4xbf16>
    %99 = vector.extract_strided_slice %25 {offsets = [0, 0, 12], sizes = [2, 8, 4], strides = [1, 1, 1]} : vector<2x8x128xbf16> to vector<2x8x4xbf16>
    %100 = vector.extract_strided_slice %32 {offsets = [0, 0, 12], sizes = [2, 8, 4], strides = [1, 1, 1]} : vector<2x8x128xbf16> to vector<2x8x4xbf16>
    "tpu.trace_start"() <{level = 10 : i32, message = "bqd,bkd->bqk"}> : () -> ()
    %cst_38 = arith.constant dense<0.000000e+00> : vector<2x8x8xf32>
    %101 = tpu.matmul %98, %99, %cst_38 {dimension_numbers = #tpu.dot_dimension_numbers<[2], [2], [1], [1], [0, 0, 0, 1, 1, 1], [0], [0]>} : vector<2x8x4xbf16>, vector<2x8x4xbf16>, vector<2x8x8xf32> -> vector<2x8x8xf32>
    "tpu.trace_stop"() : () -> ()
    %cst_39 = arith.constant 5.000000e-01 : f32
    %102 = vector.broadcast %cst_39 : f32 to vector<2x8x8xf32>
    %103 = arith.mulf %101, %102 : vector<2x8x8xf32>
    %104 = vector.broadcast %37 : vector<2x1x8xf32> to vector<2x8x8xf32>
    %105 = arith.addf %103, %104 : vector<2x8x8xf32>
    %cst_40 = arith.constant dense<0xFF800000> : vector<2x8xf32>
    %106 = vector.multi_reduction <maximumf>, %105, %cst_40 [2] : vector<2x8x8xf32> to vector<2x8xf32>
    %107 = vector.shape_cast %106 : vector<2x8xf32> to vector<2x8x1xf32>
    %108 = vector.broadcast %107 : vector<2x8x1xf32> to vector<2x8x8xf32>
    %109 = arith.subf %105, %108 : vector<2x8x8xf32>
    %110 = math.exp %109 : vector<2x8x8xf32>
    %cst_41 = arith.constant dense<0.000000e+00> : vector<2x8xf32>
    %111 = vector.multi_reduction <add>, %110, %cst_41 [2] : vector<2x8x8xf32> to vector<2x8xf32>
    %112 = vector.shape_cast %111 : vector<2x8xf32> to vector<2x8x1xf32>
    %113 = tpu.reciprocal %112 {approx = true} : vector<2x8x1xf32> -> vector<2x8x1xf32>
    %114 = vector.broadcast %113 : vector<2x8x1xf32> to vector<2x8x8xf32>
    %115 = arith.mulf %110, %114 : vector<2x8x8xf32>
    %116 = arith.truncf %115 : vector<2x8x8xf32> to vector<2x8x8xbf16>
    "tpu.trace_start"() <{level = 10 : i32, message = "bqk,bkd->bqd"}> : () -> ()
    %cst_42 = arith.constant dense<0.000000e+00> : vector<2x8x4xf32>
    %117 = tpu.matmul %116, %100, %cst_42 {dimension_numbers = #tpu.dot_dimension_numbers<[2], [1], [1], [2], [0, 0, 0, 1, 1, 2], [0], [0]>} : vector<2x8x8xbf16>, vector<2x8x4xbf16>, vector<2x8x4xf32> -> vector<2x8x4xf32>
    "tpu.trace_stop"() : () -> ()
    %118 = vector.extract_strided_slice %18 {offsets = [0, 0, 16], sizes = [2, 8, 4], strides = [1, 1, 1]} : vector<2x8x128xbf16> to vector<2x8x4xbf16>
    %119 = vector.extract_strided_slice %25 {offsets = [0, 0, 16], sizes = [2, 8, 4], strides = [1, 1, 1]} : vector<2x8x128xbf16> to vector<2x8x4xbf16>
    %120 = vector.extract_strided_slice %32 {offsets = [0, 0, 16], sizes = [2, 8, 4], strides = [1, 1, 1]} : vector<2x8x128xbf16> to vector<2x8x4xbf16>
    "tpu.trace_start"() <{level = 10 : i32, message = "bqd,bkd->bqk"}> : () -> ()
    %cst_43 = arith.constant dense<0.000000e+00> : vector<2x8x8xf32>
    %121 = tpu.matmul %118, %119, %cst_43 {dimension_numbers = #tpu.dot_dimension_numbers<[2], [2], [1], [1], [0, 0, 0, 1, 1, 1], [0], [0]>} : vector<2x8x4xbf16>, vector<2x8x4xbf16>, vector<2x8x8xf32> -> vector<2x8x8xf32>
    "tpu.trace_stop"() : () -> ()
    %cst_44 = arith.constant 5.000000e-01 : f32
    %122 = vector.broadcast %cst_44 : f32 to vector<2x8x8xf32>
    %123 = arith.mulf %121, %122 : vector<2x8x8xf32>
    %124 = vector.broadcast %37 : vector<2x1x8xf32> to vector<2x8x8xf32>
    %125 = arith.addf %123, %124 : vector<2x8x8xf32>
    %cst_45 = arith.constant dense<0xFF800000> : vector<2x8xf32>
    %126 = vector.multi_reduction <maximumf>, %125, %cst_45 [2] : vector<2x8x8xf32> to vector<2x8xf32>
    %127 = vector.shape_cast %126 : vector<2x8xf32> to vector<2x8x1xf32>
    %128 = vector.broadcast %127 : vector<2x8x1xf32> to vector<2x8x8xf32>
    %129 = arith.subf %125, %128 : vector<2x8x8xf32>
    %130 = math.exp %129 : vector<2x8x8xf32>
    %cst_46 = arith.constant dense<0.000000e+00> : vector<2x8xf32>
    %131 = vector.multi_reduction <add>, %130, %cst_46 [2] : vector<2x8x8xf32> to vector<2x8xf32>
    %132 = vector.shape_cast %131 : vector<2x8xf32> to vector<2x8x1xf32>
    %133 = tpu.reciprocal %132 {approx = true} : vector<2x8x1xf32> -> vector<2x8x1xf32>
    %134 = vector.broadcast %133 : vector<2x8x1xf32> to vector<2x8x8xf32>
    %135 = arith.mulf %130, %134 : vector<2x8x8xf32>
    %136 = arith.truncf %135 : vector<2x8x8xf32> to vector<2x8x8xbf16>
    "tpu.trace_start"() <{level = 10 : i32, message = "bqk,bkd->bqd"}> : () -> ()
    %cst_47 = arith.constant dense<0.000000e+00> : vector<2x8x4xf32>
    %137 = tpu.matmul %136, %120, %cst_47 {dimension_numbers = #tpu.dot_dimension_numbers<[2], [1], [1], [2], [0, 0, 0, 1, 1, 2], [0], [0]>} : vector<2x8x8xbf16>, vector<2x8x4xbf16>, vector<2x8x4xf32> -> vector<2x8x4xf32>
    "tpu.trace_stop"() : () -> ()
    %138 = vector.extract_strided_slice %18 {offsets = [0, 0, 20], sizes = [2, 8, 4], strides = [1, 1, 1]} : vector<2x8x128xbf16> to vector<2x8x4xbf16>
    %139 = vector.extract_strided_slice %25 {offsets = [0, 0, 20], sizes = [2, 8, 4], strides = [1, 1, 1]} : vector<2x8x128xbf16> to vector<2x8x4xbf16>
    %140 = vector.extract_strided_slice %32 {offsets = [0, 0, 20], sizes = [2, 8, 4], strides = [1, 1, 1]} : vector<2x8x128xbf16> to vector<2x8x4xbf16>
    "tpu.trace_start"() <{level = 10 : i32, message = "bqd,bkd->bqk"}> : () -> ()
    %cst_48 = arith.constant dense<0.000000e+00> : vector<2x8x8xf32>
    %141 = tpu.matmul %138, %139, %cst_48 {dimension_numbers = #tpu.dot_dimension_numbers<[2], [2], [1], [1], [0, 0, 0, 1, 1, 1], [0], [0]>} : vector<2x8x4xbf16>, vector<2x8x4xbf16>, vector<2x8x8xf32> -> vector<2x8x8xf32>
    "tpu.trace_stop"() : () -> ()
    %cst_49 = arith.constant 5.000000e-01 : f32
    %142 = vector.broadcast %cst_49 : f32 to vector<2x8x8xf32>
    %143 = arith.mulf %141, %142 : vector<2x8x8xf32>
    %144 = vector.broadcast %37 : vector<2x1x8xf32> to vector<2x8x8xf32>
    %145 = arith.addf %143, %144 : vector<2x8x8xf32>
    %cst_50 = arith.constant dense<0xFF800000> : vector<2x8xf32>
    %146 = vector.multi_reduction <maximumf>, %145, %cst_50 [2] : vector<2x8x8xf32> to vector<2x8xf32>
    %147 = vector.shape_cast %146 : vector<2x8xf32> to vector<2x8x1xf32>
    %148 = vector.broadcast %147 : vector<2x8x1xf32> to vector<2x8x8xf32>
    %149 = arith.subf %145, %148 : vector<2x8x8xf32>
    %150 = math.exp %149 : vector<2x8x8xf32>
    %cst_51 = arith.constant dense<0.000000e+00> : vector<2x8xf32>
    %151 = vector.multi_reduction <add>, %150, %cst_51 [2] : vector<2x8x8xf32> to vector<2x8xf32>
    %152 = vector.shape_cast %151 : vector<2x8xf32> to vector<2x8x1xf32>
    %153 = tpu.reciprocal %152 {approx = true} : vector<2x8x1xf32> -> vector<2x8x1xf32>
    %154 = vector.broadcast %153 : vector<2x8x1xf32> to vector<2x8x8xf32>
    %155 = arith.mulf %150, %154 : vector<2x8x8xf32>
    %156 = arith.truncf %155 : vector<2x8x8xf32> to vector<2x8x8xbf16>
    "tpu.trace_start"() <{level = 10 : i32, message = "bqk,bkd->bqd"}> : () -> ()
    %cst_52 = arith.constant dense<0.000000e+00> : vector<2x8x4xf32>
    %157 = tpu.matmul %156, %140, %cst_52 {dimension_numbers = #tpu.dot_dimension_numbers<[2], [1], [1], [2], [0, 0, 0, 1, 1, 2], [0], [0]>} : vector<2x8x8xbf16>, vector<2x8x4xbf16>, vector<2x8x4xf32> -> vector<2x8x4xf32>
    "tpu.trace_stop"() : () -> ()
    %158 = vector.extract_strided_slice %18 {offsets = [0, 0, 24], sizes = [2, 8, 4], strides = [1, 1, 1]} : vector<2x8x128xbf16> to vector<2x8x4xbf16>
    %159 = vector.extract_strided_slice %25 {offsets = [0, 0, 24], sizes = [2, 8, 4], strides = [1, 1, 1]} : vector<2x8x128xbf16> to vector<2x8x4xbf16>
    %160 = vector.extract_strided_slice %32 {offsets = [0, 0, 24], sizes = [2, 8, 4], strides = [1, 1, 1]} : vector<2x8x128xbf16> to vector<2x8x4xbf16>
    "tpu.trace_start"() <{level = 10 : i32, message = "bqd,bkd->bqk"}> : () -> ()
    %cst_53 = arith.constant dense<0.000000e+00> : vector<2x8x8xf32>
    %161 = tpu.matmul %158, %159, %cst_53 {dimension_numbers = #tpu.dot_dimension_numbers<[2], [2], [1], [1], [0, 0, 0, 1, 1, 1], [0], [0]>} : vector<2x8x4xbf16>, vector<2x8x4xbf16>, vector<2x8x8xf32> -> vector<2x8x8xf32>
    "tpu.trace_stop"() : () -> ()
    %cst_54 = arith.constant 5.000000e-01 : f32
    %162 = vector.broadcast %cst_54 : f32 to vector<2x8x8xf32>
    %163 = arith.mulf %161, %162 : vector<2x8x8xf32>
    %164 = vector.broadcast %37 : vector<2x1x8xf32> to vector<2x8x8xf32>
    %165 = arith.addf %163, %164 : vector<2x8x8xf32>
    %cst_55 = arith.constant dense<0xFF800000> : vector<2x8xf32>
    %166 = vector.multi_reduction <maximumf>, %165, %cst_55 [2] : vector<2x8x8xf32> to vector<2x8xf32>
    %167 = vector.shape_cast %166 : vector<2x8xf32> to vector<2x8x1xf32>
    %168 = vector.broadcast %167 : vector<2x8x1xf32> to vector<2x8x8xf32>
    %169 = arith.subf %165, %168 : vector<2x8x8xf32>
    %170 = math.exp %169 : vector<2x8x8xf32>
    %cst_56 = arith.constant dense<0.000000e+00> : vector<2x8xf32>
    %171 = vector.multi_reduction <add>, %170, %cst_56 [2] : vector<2x8x8xf32> to vector<2x8xf32>
    %172 = vector.shape_cast %171 : vector<2x8xf32> to vector<2x8x1xf32>
    %173 = tpu.reciprocal %172 {approx = true} : vector<2x8x1xf32> -> vector<2x8x1xf32>
    %174 = vector.broadcast %173 : vector<2x8x1xf32> to vector<2x8x8xf32>
    %175 = arith.mulf %170, %174 : vector<2x8x8xf32>
    %176 = arith.truncf %175 : vector<2x8x8xf32> to vector<2x8x8xbf16>
    "tpu.trace_start"() <{level = 10 : i32, message = "bqk,bkd->bqd"}> : () -> ()
    %cst_57 = arith.constant dense<0.000000e+00> : vector<2x8x4xf32>
    %177 = tpu.matmul %176, %160, %cst_57 {dimension_numbers = #tpu.dot_dimension_numbers<[2], [1], [1], [2], [0, 0, 0, 1, 1, 2], [0], [0]>} : vector<2x8x8xbf16>, vector<2x8x4xbf16>, vector<2x8x4xf32> -> vector<2x8x4xf32>
    "tpu.trace_stop"() : () -> ()
    %178 = vector.extract_strided_slice %18 {offsets = [0, 0, 28], sizes = [2, 8, 4], strides = [1, 1, 1]} : vector<2x8x128xbf16> to vector<2x8x4xbf16>
    %179 = vector.extract_strided_slice %25 {offsets = [0, 0, 28], sizes = [2, 8, 4], strides = [1, 1, 1]} : vector<2x8x128xbf16> to vector<2x8x4xbf16>
    %180 = vector.extract_strided_slice %32 {offsets = [0, 0, 28], sizes = [2, 8, 4], strides = [1, 1, 1]} : vector<2x8x128xbf16> to vector<2x8x4xbf16>
    "tpu.trace_start"() <{level = 10 : i32, message = "bqd,bkd->bqk"}> : () -> ()
    %cst_58 = arith.constant dense<0.000000e+00> : vector<2x8x8xf32>
    %181 = tpu.matmul %178, %179, %cst_58 {dimension_numbers = #tpu.dot_dimension_numbers<[2], [2], [1], [1], [0, 0, 0, 1, 1, 1], [0], [0]>} : vector<2x8x4xbf16>, vector<2x8x4xbf16>, vector<2x8x8xf32> -> vector<2x8x8xf32>
    "tpu.trace_stop"() : () -> ()
    %cst_59 = arith.constant 5.000000e-01 : f32
    %182 = vector.broadcast %cst_59 : f32 to vector<2x8x8xf32>
    %183 = arith.mulf %181, %182 : vector<2x8x8xf32>
    %184 = vector.broadcast %37 : vector<2x1x8xf32> to vector<2x8x8xf32>
    %185 = arith.addf %183, %184 : vector<2x8x8xf32>
    %cst_60 = arith.constant dense<0xFF800000> : vector<2x8xf32>
    %186 = vector.multi_reduction <maximumf>, %185, %cst_60 [2] : vector<2x8x8xf32> to vector<2x8xf32>
    %187 = vector.shape_cast %186 : vector<2x8xf32> to vector<2x8x1xf32>
    %188 = vector.broadcast %187 : vector<2x8x1xf32> to vector<2x8x8xf32>
    %189 = arith.subf %185, %188 : vector<2x8x8xf32>
    %190 = math.exp %189 : vector<2x8x8xf32>
    %cst_61 = arith.constant dense<0.000000e+00> : vector<2x8xf32>
    %191 = vector.multi_reduction <add>, %190, %cst_61 [2] : vector<2x8x8xf32> to vector<2x8xf32>
    %192 = vector.shape_cast %191 : vector<2x8xf32> to vector<2x8x1xf32>
    %193 = tpu.reciprocal %192 {approx = true} : vector<2x8x1xf32> -> vector<2x8x1xf32>
    %194 = vector.broadcast %193 : vector<2x8x1xf32> to vector<2x8x8xf32>
    %195 = arith.mulf %190, %194 : vector<2x8x8xf32>
    %196 = arith.truncf %195 : vector<2x8x8xf32> to vector<2x8x8xbf16>
    "tpu.trace_start"() <{level = 10 : i32, message = "bqk,bkd->bqd"}> : () -> ()
    %cst_62 = arith.constant dense<0.000000e+00> : vector<2x8x4xf32>
    %197 = tpu.matmul %196, %180, %cst_62 {dimension_numbers = #tpu.dot_dimension_numbers<[2], [1], [1], [2], [0, 0, 0, 1, 1, 2], [0], [0]>} : vector<2x8x8xbf16>, vector<2x8x4xbf16>, vector<2x8x4xf32> -> vector<2x8x4xf32>
    "tpu.trace_stop"() : () -> ()
    %198 = tpu.concatenate %57, %77, %97, %117, %137, %157, %177, %197 in 2 : vector<2x8x4xf32>, vector<2x8x4xf32>, vector<2x8x4xf32>, vector<2x8x4xf32>, vector<2x8x4xf32>, vector<2x8x4xf32>, vector<2x8x4xf32>, vector<2x8x4xf32> -> vector<2x8x32xf32>
    %199 = vector.shape_cast %198 : vector<2x8x32xf32> to vector<16x32xf32>
    %c0_63 = arith.constant 0 : index
    %c0_64 = arith.constant 0 : index
    %200 = vector.load %arg10[%c0_63, %c0_64] : memref<128x128xbf16, #tpu.memory_space<vmem>>, vector<128x128xbf16>
    %201 = vector.extract_strided_slice %200 {offsets = [0, 0], sizes = [32, 128], strides = [1, 1]} : vector<128x128xbf16> to vector<32x128xbf16>
    %202 = arith.truncf %199 : vector<16x32xf32> to vector<16x32xbf16>
    %cst_65 = arith.constant dense<0.000000e+00> : vector<16x128xf32>
    %203 = tpu.matmul %202, %201, %cst_65 {dimension_numbers = #tpu.dot_dimension_numbers<[1], [0], [0], [1], [0, 0, 1, 1], [], []>} : vector<16x32xbf16>, vector<32x128xbf16>, vector<16x128xf32> -> vector<16x128xf32>
    %c0_66 = arith.constant 0 : index
    %c0_67 = arith.constant 0 : index
    %204 = vector.load %arg11[%c0_66, %c0_67] : memref<1x128xf32, #tpu.memory_space<vmem>>, vector<1x128xf32>
    %205 = vector.broadcast %204 : vector<1x128xf32> to vector<16x128xf32>
    %206 = arith.addf %203, %205 : vector<16x128xf32>
    %207 = arith.addf %206, %10 : vector<16x128xf32>
    %c0_68 = arith.constant 0 : index
    %c0_69 = arith.constant 0 : index
    %208 = vector.load %arg12[%c0_68, %c0_69] : memref<1x128xf32, #tpu.memory_space<vmem>>, vector<1x128xf32>
    %c0_70 = arith.constant 0 : index
    %c0_71 = arith.constant 0 : index
    %209 = vector.load %arg13[%c0_70, %c0_71] : memref<1x128xf32, #tpu.memory_space<vmem>>, vector<1x128xf32>
    %210 = vector.broadcast %4 : vector<1x128xf32> to vector<16x128xf32>
    %211 = arith.mulf %207, %210 : vector<16x128xf32>
    %cst_72 = arith.constant dense<0.000000e+00> : vector<16xf32>
    %212 = vector.multi_reduction <add>, %211, %cst_72 [1] : vector<16x128xf32> to vector<16xf32>
    %213 = vector.shape_cast %212 : vector<16xf32> to vector<16x1xf32>
    %cst_73 = arith.constant 3.125000e-02 : f32
    %214 = vector.broadcast %cst_73 : f32 to vector<16x1xf32>
    %215 = arith.mulf %213, %214 : vector<16x1xf32>
    %216 = vector.broadcast %215 : vector<16x1xf32> to vector<16x128xf32>
    %217 = arith.subf %207, %216 : vector<16x128xf32>
    %218 = vector.broadcast %4 : vector<1x128xf32> to vector<16x128xf32>
    %219 = arith.mulf %217, %218 : vector<16x128xf32>
    %220 = arith.mulf %219, %219 : vector<16x128xf32>
    %cst_74 = arith.constant dense<0.000000e+00> : vector<16xf32>
    %221 = vector.multi_reduction <add>, %220, %cst_74 [1] : vector<16x128xf32> to vector<16xf32>
    %222 = vector.shape_cast %221 : vector<16xf32> to vector<16x1xf32>
    %cst_75 = arith.constant 3.125000e-02 : f32
    %223 = vector.broadcast %cst_75 : f32 to vector<16x1xf32>
    %224 = arith.mulf %222, %223 : vector<16x1xf32>
    %225 = math.sqrt %224 : vector<16x1xf32>
    %cst_76 = arith.constant 9.99999997E-7 : f32
    %226 = vector.broadcast %cst_76 : f32 to vector<16x1xf32>
    %227 = arith.addf %225, %226 : vector<16x1xf32>
    %228 = tpu.reciprocal %227 : vector<16x1xf32> -> vector<16x1xf32>
    %229 = vector.broadcast %208 : vector<1x128xf32> to vector<16x128xf32>
    %230 = arith.mulf %229, %219 : vector<16x128xf32>
    %231 = vector.broadcast %228 : vector<16x1xf32> to vector<16x128xf32>
    %232 = arith.mulf %230, %231 : vector<16x128xf32>
    %233 = vector.broadcast %209 : vector<1x128xf32> to vector<16x128xf32>
    %234 = arith.addf %232, %233 : vector<16x128xf32>
    %235 = arith.truncf %234 : vector<16x128xf32> to vector<16x128xbf16>
    %c0_77 = arith.constant 0 : index
    %c0_78 = arith.constant 0 : index
    %236 = vector.load %arg14[%c0_77, %c0_78] : memref<128x128xbf16, #tpu.memory_space<vmem>>, vector<128x128xbf16>
    %cst_79 = arith.constant dense<0.000000e+00> : vector<16x128xf32>
    %237 = tpu.matmul %235, %236, %cst_79 {dimension_numbers = #tpu.dot_dimension_numbers<[1], [0], [0], [1], [0, 0, 1, 1], [], []>} : vector<16x128xbf16>, vector<128x128xbf16>, vector<16x128xf32> -> vector<16x128xf32>
    %c0_80 = arith.constant 0 : index
    %c0_81 = arith.constant 0 : index
    %238 = vector.load %arg15[%c0_80, %c0_81] : memref<1x128xf32, #tpu.memory_space<vmem>>, vector<1x128xf32>
    %239 = vector.broadcast %238 : vector<1x128xf32> to vector<16x128xf32>
    %240 = arith.addf %237, %239 : vector<16x128xf32>
    %cst_82 = arith.constant 0.000000e+00 : f32
    %241 = vector.broadcast %cst_82 : f32 to vector<16x128xf32>
    %242 = arith.maximumf %240, %241 : vector<16x128xf32>
    %243 = arith.truncf %242 : vector<16x128xf32> to vector<16x128xbf16>
    %c0_83 = arith.constant 0 : index
    %c0_84 = arith.constant 0 : index
    %244 = vector.load %arg16[%c0_83, %c0_84] : memref<128x128xbf16, #tpu.memory_space<vmem>>, vector<128x128xbf16>
    %cst_85 = arith.constant dense<0.000000e+00> : vector<16x128xf32>
    %245 = tpu.matmul %243, %244, %cst_85 {dimension_numbers = #tpu.dot_dimension_numbers<[1], [0], [0], [1], [0, 0, 1, 1], [], []>} : vector<16x128xbf16>, vector<128x128xbf16>, vector<16x128xf32> -> vector<16x128xf32>
    %c0_86 = arith.constant 0 : index
    %c0_87 = arith.constant 0 : index
    %246 = vector.load %arg17[%c0_86, %c0_87] : memref<1x128xf32, #tpu.memory_space<vmem>>, vector<1x128xf32>
    %247 = vector.broadcast %246 : vector<1x128xf32> to vector<16x128xf32>
    %248 = arith.addf %245, %247 : vector<16x128xf32>
    %249 = arith.addf %248, %234 : vector<16x128xf32>
    %c0_88 = arith.constant 0 : index
    %c0_89 = arith.constant 0 : index
    %250 = vector.load %arg18[%c0_88, %c0_89] : memref<1x128xf32, #tpu.memory_space<vmem>>, vector<1x128xf32>
    %c0_90 = arith.constant 0 : index
    %c0_91 = arith.constant 0 : index
    %251 = vector.load %arg19[%c0_90, %c0_91] : memref<1x128xf32, #tpu.memory_space<vmem>>, vector<1x128xf32>
    %252 = vector.broadcast %4 : vector<1x128xf32> to vector<16x128xf32>
    %253 = arith.mulf %249, %252 : vector<16x128xf32>
    %cst_92 = arith.constant dense<0.000000e+00> : vector<16xf32>
    %254 = vector.multi_reduction <add>, %253, %cst_92 [1] : vector<16x128xf32> to vector<16xf32>
    %255 = vector.shape_cast %254 : vector<16xf32> to vector<16x1xf32>
    %cst_93 = arith.constant 3.125000e-02 : f32
    %256 = vector.broadcast %cst_93 : f32 to vector<16x1xf32>
    %257 = arith.mulf %255, %256 : vector<16x1xf32>
    %258 = vector.broadcast %257 : vector<16x1xf32> to vector<16x128xf32>
    %259 = arith.subf %249, %258 : vector<16x128xf32>
    %260 = vector.broadcast %4 : vector<1x128xf32> to vector<16x128xf32>
    %261 = arith.mulf %259, %260 : vector<16x128xf32>
    %262 = arith.mulf %261, %261 : vector<16x128xf32>
    %cst_94 = arith.constant dense<0.000000e+00> : vector<16xf32>
    %263 = vector.multi_reduction <add>, %262, %cst_94 [1] : vector<16x128xf32> to vector<16xf32>
    %264 = vector.shape_cast %263 : vector<16xf32> to vector<16x1xf32>
    %cst_95 = arith.constant 3.125000e-02 : f32
    %265 = vector.broadcast %cst_95 : f32 to vector<16x1xf32>
    %266 = arith.mulf %264, %265 : vector<16x1xf32>
    %267 = math.sqrt %266 : vector<16x1xf32>
    %cst_96 = arith.constant 9.99999997E-7 : f32
    %268 = vector.broadcast %cst_96 : f32 to vector<16x1xf32>
    %269 = arith.addf %267, %268 : vector<16x1xf32>
    %270 = tpu.reciprocal %269 : vector<16x1xf32> -> vector<16x1xf32>
    %271 = vector.broadcast %250 : vector<1x128xf32> to vector<16x128xf32>
    %272 = arith.mulf %271, %261 : vector<16x128xf32>
    %273 = vector.broadcast %270 : vector<16x1xf32> to vector<16x128xf32>
    %274 = arith.mulf %272, %273 : vector<16x128xf32>
    %275 = vector.broadcast %251 : vector<1x128xf32> to vector<16x128xf32>
    %276 = arith.addf %274, %275 : vector<16x128xf32>
    %277 = vector.shape_cast %276 : vector<16x128xf32> to vector<2x8x128xf32>
    %c0_97 = arith.constant 0 : index
    %c0_98 = arith.constant 0 : index
    %c0_99 = arith.constant 0 : index
    %278 = vector.load %arg20[%c0_97, %c0_98, %c0_99] : memref<2x8x128xf32, #tpu.memory_space<vmem>>, vector<2x8x128xf32>
    tpu.vector_store %arg20[%c0_97, %c0_98, %c0_99], %277 {strides = array<i32>} : memref<2x8x128xf32, #tpu.memory_space<vmem>>, vector<2x8x128xf32>,
    return
  }
  func.func @transform_0(%arg0: i32) -> (i32, i32, i32) {
    %c0_i32 = arith.constant 0 : i32
    %c0_i32_0 = arith.constant 0 : i32
    %c0_i32_1 = arith.constant 0 : i32
    return %arg0, %c0_i32, %c0_i32_0 : i32, i32, i32
  }
  func.func @transform_1(%arg0: i32) -> (i32, i32, i32) {
    %c0_i32 = arith.constant 0 : i32
    %c0_i32_0 = arith.constant 0 : i32
    %c0_i32_1 = arith.constant 0 : i32
    return %arg0, %c0_i32, %c0_i32_0 : i32, i32, i32
  }
  func.func @transform_2(%arg0: i32) -> (i32, i32) {
    %c0_i32 = arith.constant 0 : i32
    %c0_i32_0 = arith.constant 0 : i32
    %c0_i32_1 = arith.constant 0 : i32
    return %c0_i32, %c0_i32_0 : i32, i32
  }
  func.func @transform_3(%arg0: i32) -> (i32, i32) {
    %c0_i32 = arith.constant 0 : i32
    %c0_i32_0 = arith.constant 0 : i32
    %c0_i32_1 = arith.constant 0 : i32
    return %c0_i32, %c0_i32_0 : i32, i32
  }
  func.func @transform_4(%arg0: i32) -> (i32, i32) {
    %c0_i32 = arith.constant 0 : i32
    %c0_i32_0 = arith.constant 0 : i32
    %c0_i32_1 = arith.constant 0 : i32
    return %c0_i32, %c0_i32_0 : i32, i32
  }
  func.func @transform_5(%arg0: i32) -> (i32, i32) {
    %c0_i32 = arith.constant 0 : i32
    %c0_i32_0 = arith.constant 0 : i32
    %c0_i32_1 = arith.constant 0 : i32
    return %c0_i32, %c0_i32_0 : i32, i32
  }
  func.func @transform_6(%arg0: i32) -> (i32, i32) {
    %c0_i32 = arith.constant 0 : i32
    %c0_i32_0 = arith.constant 0 : i32
    %c0_i32_1 = arith.constant 0 : i32
    return %c0_i32, %c0_i32_0 : i32, i32
  }
  func.func @transform_7(%arg0: i32) -> (i32, i32) {
    %c0_i32 = arith.constant 0 : i32
    %c0_i32_0 = arith.constant 0 : i32
    %c0_i32_1 = arith.constant 0 : i32
    return %c0_i32, %c0_i32_0 : i32, i32
  }
  func.func @transform_8(%arg0: i32) -> (i32, i32) {
    %c0_i32 = arith.constant 0 : i32
    %c0_i32_0 = arith.constant 0 : i32
    %c0_i32_1 = arith.constant 0 : i32
    return %c0_i32, %c0_i32_0 : i32, i32
  }
  func.func @transform_9(%arg0: i32) -> (i32, i32) {
    %c0_i32 = arith.constant 0 : i32
    %c0_i32_0 = arith.constant 0 : i32
    %c0_i32_1 = arith.constant 0 : i32
    return %c0_i32, %c0_i32_0 : i32, i32
  }
  func.func @transform_10(%arg0: i32) -> (i32, i32) {
    %c0_i32 = arith.constant 0 : i32
    %c0_i32_0 = arith.constant 0 : i32
    %c0_i32_1 = arith.constant 0 : i32
    return %c0_i32, %c0_i32_0 : i32, i32
  }
  func.func @transform_11(%arg0: i32) -> (i32, i32) {
    %c0_i32 = arith.constant 0 : i32
    %c0_i32_0 = arith.constant 0 : i32
    %c0_i32_1 = arith.constant 0 : i32
    return %c0_i32, %c0_i32_0 : i32, i32
  }
  func.func @transform_12(%arg0: i32) -> (i32, i32) {
    %c0_i32 = arith.constant 0 : i32
    %c0_i32_0 = arith.constant 0 : i32
    %c0_i32_1 = arith.constant 0 : i32
    return %c0_i32, %c0_i32_0 : i32, i32
  }
  func.func @transform_13(%arg0: i32) -> (i32, i32) {
    %c0_i32 = arith.constant 0 : i32
    %c0_i32_0 = arith.constant 0 : i32
    %c0_i32_1 = arith.constant 0 : i32
    return %c0_i32, %c0_i32_0 : i32, i32
  }
  func.func @transform_14(%arg0: i32) -> (i32, i32) {
    %c0_i32 = arith.constant 0 : i32
    %c0_i32_0 = arith.constant 0 : i32
    %c0_i32_1 = arith.constant 0 : i32
    return %c0_i32, %c0_i32_0 : i32, i32
  }
  func.func @transform_15(%arg0: i32) -> (i32, i32) {
    %c0_i32 = arith.constant 0 : i32
    %c0_i32_0 = arith.constant 0 : i32
    %c0_i32_1 = arith.constant 0 : i32
    return %c0_i32, %c0_i32_0 : i32, i32
  }
  func.func @transform_16(%arg0: i32) -> (i32, i32) {
    %c0_i32 = arith.constant 0 : i32
    %c0_i32_0 = arith.constant 0 : i32
    %c0_i32_1 = arith.constant 0 : i32
    return %c0_i32, %c0_i32_0 : i32, i32
  }
  func.func @transform_17(%arg0: i32) -> (i32, i32) {
    %c0_i32 = arith.constant 0 : i32
    %c0_i32_0 = arith.constant 0 : i32
    %c0_i32_1 = arith.constant 0 : i32
    return %c0_i32, %c0_i32_0 : i32, i32
  }
  func.func @transform_18(%arg0: i32) -> (i32, i32) {
    %c0_i32 = arith.constant 0 : i32
    %c0_i32_0 = arith.constant 0 : i32
    %c0_i32_1 = arith.constant 0 : i32
    return %c0_i32, %c0_i32_0 : i32, i32
  }
  func.func @transform_19(%arg0: i32) -> (i32, i32, i32) {
    %c0_i32 = arith.constant 0 : i32
    %c0_i32_0 = arith.constant 0 : i32
    %c0_i32_1 = arith.constant 0 : i32
    return %arg0, %c0_i32, %c0_i32_0 : i32, i32, i32
  }
}

module attributes {stable_mosaic.version = 11 : i64} {
  func.func @ut_enc_block_kernel(%arg0: i32, %arg1: memref<2x8x128xf32, #tpu.memory_space<vmem>>, %arg2: memref<2x1x8xf32, #tpu.memory_space<vmem>>, %arg3: memref<8x128xf32, #tpu.memory_space<vmem>>, %arg4: memref<128x128xbf16, #tpu.memory_space<vmem>>, %arg5: memref<1x128xf32, #tpu.memory_space<vmem>>, %arg6: memref<128x128xbf16, #tpu.memory_space<vmem>>, %arg7: memref<1x128xf32, #tpu.memory_space<vmem>>, %arg8: memref<128x128xbf16, #tpu.memory_space<vmem>>, %arg9: memref<1x128xf32, #tpu.memory_space<vmem>>, %arg10: memref<128x128xbf16, #tpu.memory_space<vmem>>, %arg11: memref<1x128xf32, #tpu.memory_space<vmem>>, %arg12: memref<1x128xf32, #tpu.memory_space<vmem>>, %arg13: memref<1x128xf32, #tpu.memory_space<vmem>>, %arg14: memref<128x128xbf16, #tpu.memory_space<vmem>>, %arg15: memref<1x128xf32, #tpu.memory_space<vmem>>, %arg16: memref<128x128xbf16, #tpu.memory_space<vmem>>, %arg17: memref<1x128xf32, #tpu.memory_space<vmem>>, %arg18: memref<1x128xf32, #tpu.memory_space<vmem>>, %arg19: memref<1x128xf32, #tpu.memory_space<vmem>>, %arg20: memref<2x8x128xf32, #tpu.memory_space<vmem>>) attributes {dimension_semantics = [#tpu.dimension_semantics<parallel>], iteration_bounds = array<i64: 1>, scalar_prefetch = 0 : i64, scratch_operands = 0 : i64, tpu.core_type = #tpu.core_type<tc>, window_params = [{transform_indices = @transform_0, window_bounds = array<i64: 2, 8, 128>}, {transform_indices = @transform_1, window_bounds = array<i64: 2, 1, 8>}, {pipeline_mode = #tpu.pipeline_mode<synchronous>, transform_indices = @transform_2, window_bounds = array<i64: 8, 128>}, {pipeline_mode = #tpu.pipeline_mode<synchronous>, transform_indices = @transform_3, window_bounds = array<i64: 128, 128>}, {pipeline_mode = #tpu.pipeline_mode<synchronous>, transform_indices = @transform_4, window_bounds = array<i64: 1, 128>}, {pipeline_mode = #tpu.pipeline_mode<synchronous>, transform_indices = @transform_5, window_bounds = array<i64: 128, 128>}, {pipeline_mode = #tpu.pipeline_mode<synchronous>, transform_indices = @transform_6, window_bounds = array<i64: 1, 128>}, {pipeline_mode = #tpu.pipeline_mode<synchronous>, transform_indices = @transform_7, window_bounds = array<i64: 128, 128>}, {pipeline_mode = #tpu.pipeline_mode<synchronous>, transform_indices = @transform_8, window_bounds = array<i64: 1, 128>}, {pipeline_mode = #tpu.pipeline_mode<synchronous>, transform_indices = @transform_9, window_bounds = array<i64: 128, 128>}, {pipeline_mode = #tpu.pipeline_mode<synchronous>, transform_indices = @transform_10, window_bounds = array<i64: 1, 128>}, {pipeline_mode = #tpu.pipeline_mode<synchronous>, transform_indices = @transform_11, window_bounds = array<i64: 1, 128>}, {pipeline_mode = #tpu.pipeline_mode<synchronous>, transform_indices = @transform_12, window_bounds = array<i64: 1, 128>}, {pipeline_mode = #tpu.pipeline_mode<synchronous>, transform_indices = @transform_13, window_bounds = array<i64: 128, 128>}, {pipeline_mode = #tpu.pipeline_mode<synchronous>, transform_indices = @transform_14, window_bounds = array<i64: 1, 128>}, {pipeline_mode = #tpu.pipeline_mode<synchronous>, transform_indices = @transform_15, window_bounds = array<i64: 128, 128>}, {pipeline_mode = #tpu.pipeline_mode<synchronous>, transform_indices = @transform_16, window_bounds = array<i64: 1, 128>}, {pipeline_mode = #tpu.pipeline_mode<synchronous>, transform_indices = @transform_17, window_bounds = array<i64: 1, 128>}, {pipeline_mode = #tpu.pipeline_mode<synchronous>, transform_indices = @transform_18, window_bounds = array<i64: 1, 128>}, {transform_indices = @transform_19, window_bounds = array<i64: 2, 8, 128>}]} {
    %0 = tpu.iota {dimensions = array<i32: 1>} : vector<1x128xi32>
    %c32_i32 = arith.constant 32 : i32
    %1 = vector.broadcast %c32_i32 : i32 to vector<1x128xi32>
    %2 = arith.cmpi slt, %0, %1 : vector<1x128xi32>
    %3 = arith.extui %2 : vector<1x128xi1> to vector<1x128xi32>
    %4 = arith.sitofp %3 : vector<1x128xi32> to vector<1x128xf32>
    %c0 = arith.constant 0 : index
    %c0_0 = arith.constant 0 : index
    %c0_1 = arith.constant 0 : index
    %5 = vector.load %arg1[%c0, %c0_0, %c0_1] : memref<2x8x128xf32, #tpu.memory_space<vmem>>, vector<2x8x128xf32>
    %c0_2 = arith.constant 0 : index
    %c0_3 = arith.constant 0 : index
    %6 = vector.load %arg3[%c0_2, %c0_3] : memref<8x128xf32, #tpu.memory_space<vmem>>, vector<8x128xf32>
    %7 = vector.shape_cast %6 : vector<8x128xf32> to vector<1x8x128xf32>
    %8 = vector.broadcast %7 : vector<1x8x128xf32> to vector<2x8x128xf32>
    %9 = arith.addf %5, %8 : vector<2x8x128xf32>
    %10 = vector.shape_cast %9 : vector<2x8x128xf32> to vector<16x128xf32>
    %11 = arith.truncf %10 : vector<16x128xf32> to vector<16x128xbf16>
    %c0_4 = arith.constant 0 : index
    %c0_5 = arith.constant 0 : index
    %12 = vector.load %arg4[%c0_4, %c0_5] : memref<128x128xbf16, #tpu.memory_space<vmem>>, vector<128x128xbf16>
    %cst = arith.constant dense<0.000000e+00> : vector<16x128xf32>
    %13 = tpu.matmul %11, %12, %cst {dimension_numbers = #tpu.dot_dimension_numbers<[1], [0], [0], [1], [0, 0, 1, 1], [], []>} : vector<16x128xbf16>, vector<128x128xbf16>, vector<16x128xf32> -> vector<16x128xf32>
    %c0_6 = arith.constant 0 : index
    %c0_7 = arith.constant 0 : index
    %14 = vector.load %arg5[%c0_6, %c0_7] : memref<1x128xf32, #tpu.memory_space<vmem>>, vector<1x128xf32>
    %15 = vector.broadcast %14 : vector<1x128xf32> to vector<16x128xf32>
    %16 = arith.addf %13, %15 : vector<16x128xf32>
    %17 = vector.shape_cast %16 : vector<16x128xf32> to vector<2x8x128xf32>
    %18 = arith.truncf %17 : vector<2x8x128xf32> to vector<2x8x128xbf16>
    %c0_8 = arith.constant 0 : index
    %c0_9 = arith.constant 0 : index
    %19 = vector.load %arg6[%c0_8, %c0_9] : memref<128x128xbf16, #tpu.memory_space<vmem>>, vector<128x128xbf16>
    %cst_10 = arith.constant dense<0.000000e+00> : vector<16x128xf32>
    %20 = tpu.matmul %11, %19, %cst_10 {dimension_numbers = #tpu.dot_dimension_numbers<[1], [0], [0], [1], [0, 0, 1, 1], [], []>} : vector<16x128xbf16>, vector<128x128xbf16>, vector<16x128xf32> -> vector<16x128xf32>
    %c0_11 = arith.constant 0 : index
    %c0_12 = arith.constant 0 : index
    %21 = vector.load %arg7[%c0_11, %c0_12] : memref<1x128xf32, #tpu.memory_space<vmem>>, vector<1x128xf32>
    %22 = vector.broadcast %21 : vector<1x128xf32> to vector<16x128xf32>
    %23 = arith.addf %20, %22 : vector<16x128xf32>
    %24 = vector.shape_cast %23 : vector<16x128xf32> to vector<2x8x128xf32>
    %25 = arith.truncf %24 : vector<2x8x128xf32> to vector<2x8x128xbf16>
    %c0_13 = arith.constant 0 : index
    %c0_14 = arith.constant 0 : index
    %26 = vector.load %arg8[%c0_13, %c0_14] : memref<128x128xbf16, #tpu.memory_space<vmem>>, vector<128x128xbf16>
    %cst_15 = arith.constant dense<0.000000e+00> : vector<16x128xf32>
    %27 = tpu.matmul %11, %26, %cst_15 {dimension_numbers = #tpu.dot_dimension_numbers<[1], [0], [0], [1], [0, 0, 1, 1], [], []>} : vector<16x128xbf16>, vector<128x128xbf16>, vector<16x128xf32> -> vector<16x128xf32>
    %c0_16 = arith.constant 0 : index
    %c0_17 = arith.constant 0 : index
    %28 = vector.load %arg9[%c0_16, %c0_17] : memref<1x128xf32, #tpu.memory_space<vmem>>, vector<1x128xf32>
    %29 = vector.broadcast %28 : vector<1x128xf32> to vector<16x128xf32>
    %30 = arith.addf %27, %29 : vector<16x128xf32>
    %31 = vector.shape_cast %30 : vector<16x128xf32> to vector<2x8x128xf32>
    %32 = arith.truncf %31 : vector<2x8x128xf32> to vector<2x8x128xbf16>
    %c0_18 = arith.constant 0 : index
    %c0_19 = arith.constant 0 : index
    %c0_20 = arith.constant 0 : index
    %33 = vector.load %arg2[%c0_18, %c0_19, %c0_20] : memref<2x1x8xf32, #tpu.memory_space<vmem>>, vector<2x1x8xf32>
    %cst_21 = arith.constant 1.000000e+00 : f32
    %34 = vector.broadcast %cst_21 : f32 to vector<2x1x8xf32>
    %35 = arith.subf %33, %34 : vector<2x1x8xf32>
    %cst_22 = arith.constant 1.000000e+09 : f32
    %36 = vector.broadcast %cst_22 : f32 to vector<2x1x8xf32>
    %37 = arith.mulf %35, %36 : vector<2x1x8xf32>
    %38 = vector.extract_strided_slice %18 {offsets = [0, 0, 0], sizes = [2, 8, 4], strides = [1, 1, 1]} : vector<2x8x128xbf16> to vector<2x8x4xbf16>
    %39 = vector.extract_strided_slice %25 {offsets = [0, 0, 0], sizes = [2, 8, 4], strides = [1, 1, 1]} : vector<2x8x128xbf16> to vector<2x8x4xbf16>
    %40 = vector.extract_strided_slice %32 {offsets = [0, 0, 0], sizes = [2, 8, 4], strides = [1, 1, 1]} : vector<2x8x128xbf16> to vector<2x8x4xbf16>
    "tpu.trace_start"() <{level = 10 : i32, message = "bqd,bkd->bqk"}> : () -> ()
    %cst_23 = arith.constant dense<0.000000e+00> : vector<2x8x8xf32>
    %41 = tpu.matmul %38, %39, %cst_23 {dimension_numbers = #tpu.dot_dimension_numbers<[2], [2], [1], [1], [0, 0, 0, 1, 1, 1], [0], [0]>} : vector<2x8x4xbf16>, vector<2x8x4xbf16>, vector<2x8x8xf32> -> vector<2x8x8xf32>
    "tpu.trace_stop"() : () -> ()
    %cst_24 = arith.constant 5.000000e-01 : f32
    %42 = vector.broadcast %cst_24 : f32 to vector<2x8x8xf32>
    %43 = arith.mulf %41, %42 : vector<2x8x8xf32>
    %44 = vector.broadcast %37 : vector<2x1x8xf32> to vector<2x8x8xf32>
    %45 = arith.addf %43, %44 : vector<2x8x8xf32>
    %cst_25 = arith.constant dense<0xFF800000> : vector<2x8xf32>
    %46 = vector.multi_reduction <maximumf>, %45, %cst_25 [2] : vector<2x8x8xf32> to vector<2x8xf32>
    %47 = vector.shape_cast %46 : vector<2x8xf32> to vector<2x8x1xf32>
    %48 = vector.broadcast %47 : vector<2x8x1xf32> to vector<2x8x8xf32>
    %49 = arith.subf %45, %48 : vector<2x8x8xf32>
    %50 = math.exp %49 : vector<2x8x8xf32>
    %cst_26 = arith.constant dense<0.000000e+00> : vector<2x8xf32>
    %51 = vector.multi_reduction <add>, %50, %cst_26 [2] : vector<2x8x8xf32> to vector<2x8xf32>
    %52 = vector.shape_cast %51 : vector<2x8xf32> to vector<2x8x1xf32>
    %53 = tpu.reciprocal %52 {approx = true} : vector<2x8x1xf32> -> vector<2x8x1xf32>
    %54 = vector.broadcast %53 : vector<2x8x1xf32> to vector<2x8x8xf32>
    %55 = arith.mulf %50, %54 : vector<2x8x8xf32>
    %56 = arith.truncf %55 : vector<2x8x8xf32> to vector<2x8x8xbf16>
    "tpu.trace_start"() <{level = 10 : i32, message = "bqk,bkd->bqd"}> : () -> ()
    %cst_27 = arith.constant dense<0.000000e+00> : vector<2x8x4xf32>
    %57 = tpu.matmul %56, %40, %cst_27 {dimension_numbers = #tpu.dot_dimension_numbers<[2], [1], [1], [2], [0, 0, 0, 1, 1, 2], [0], [0]>} : vector<2x8x8xbf16>, vector<2x8x4xbf16>, vector<2x8x4xf32> -> vector<2x8x4xf32>
    "tpu.trace_stop"() : () -> ()
    %58 = vector.extract_strided_slice %18 {offsets = [0, 0, 4], sizes = [2, 8, 4], strides = [1, 1, 1]} : vector<2x8x128xbf16> to vector<2x8x4xbf16>
    %59 = vector.extract_strided_slice %25 {offsets = [0, 0, 4], sizes = [2, 8, 4], strides = [1, 1, 1]} : vector<2x8x128xbf16> to vector<2x8x4xbf16>
    %60 = vector.extract_strided_slice %32 {offsets = [0, 0, 4], sizes = [2, 8, 4], strides = [1, 1, 1]} : vector<2x8x128xbf16> to vector<2x8x4xbf16>
    "tpu.trace_start"() <{level = 10 : i32, message = "bqd,bkd->bqk"}> : () -> ()
    %cst_28 = arith.constant dense<0.000000e+00> : vector<2x8x8xf32>
    %61 = tpu.matmul %58, %59, %cst_28 {dimension_numbers = #tpu.dot_dimension_numbers<[2], [2], [1], [1], [0, 0, 0, 1, 1, 1], [0], [0]>} : vector<2x8x4xbf16>, vector<2x8x4xbf16>, vector<2x8x8xf32> -> vector<2x8x8xf32>
    "tpu.trace_stop"() : () -> ()
    %cst_29 = arith.constant 5.000000e-01 : f32
    %62 = vector.broadcast %cst_29 : f32 to vector<2x8x8xf32>
    %63 = arith.mulf %61, %62 : vector<2x8x8xf32>
    %64 = vector.broadcast %37 : vector<2x1x8xf32> to vector<2x8x8xf32>
    %65 = arith.addf %63, %64 : vector<2x8x8xf32>
    %cst_30 = arith.constant dense<0xFF800000> : vector<2x8xf32>
    %66 = vector.multi_reduction <maximumf>, %65, %cst_30 [2] : vector<2x8x8xf32> to vector<2x8xf32>
    %67 = vector.shape_cast %66 : vector<2x8xf32> to vector<2x8x1xf32>
    %68 = vector.broadcast %67 : vector<2x8x1xf32> to vector<2x8x8xf32>
    %69 = arith.subf %65, %68 : vector<2x8x8xf32>
    %70 = math.exp %69 : vector<2x8x8xf32>
    %cst_31 = arith.constant dense<0.000000e+00> : vector<2x8xf32>
    %71 = vector.multi_reduction <add>, %70, %cst_31 [2] : vector<2x8x8xf32> to vector<2x8xf32>
    %72 = vector.shape_cast %71 : vector<2x8xf32> to vector<2x8x1xf32>
    %73 = tpu.reciprocal %72 {approx = true} : vector<2x8x1xf32> -> vector<2x8x1xf32>
    %74 = vector.broadcast %73 : vector<2x8x1xf32> to vector<2x8x8xf32>
    %75 = arith.mulf %70, %74 : vector<2x8x8xf32>
    %76 = arith.truncf %75 : vector<2x8x8xf32> to vector<2x8x8xbf16>
    "tpu.trace_start"() <{level = 10 : i32, message = "bqk,bkd->bqd"}> : () -> ()
    %cst_32 = arith.constant dense<0.000000e+00> : vector<2x8x4xf32>
    %77 = tpu.matmul %76, %60, %cst_32 {dimension_numbers = #tpu.dot_dimension_numbers<[2], [1], [1], [2], [0, 0, 0, 1, 1, 2], [0], [0]>} : vector<2x8x8xbf16>, vector<2x8x4xbf16>, vector<2x8x4xf32> -> vector<2x8x4xf32>
    "tpu.trace_stop"() : () -> ()
    %78 = vector.extract_strided_slice %18 {offsets = [0, 0, 8], sizes = [2, 8, 4], strides = [1, 1, 1]} : vector<2x8x128xbf16> to vector<2x8x4xbf16>
    %79 = vector.extract_strided_slice %25 {offsets = [0, 0, 8], sizes = [2, 8, 4], strides = [1, 1, 1]} : vector<2x8x128xbf16> to vector<2x8x4xbf16>
    %80 = vector.extract_strided_slice %32 {offsets = [0, 0, 8], sizes = [2, 8, 4], strides = [1, 1, 1]} : vector<2x8x128xbf16> to vector<2x8x4xbf16>
    "tpu.trace_start"() <{level = 10 : i32, message = "bqd,bkd->bqk"}> : () -> ()
    %cst_33 = arith.constant dense<0.000000e+00> : vector<2x8x8xf32>
    %81 = tpu.matmul %78, %79, %cst_33 {dimension_numbers = #tpu.dot_dimension_numbers<[2], [2], [1], [1], [0, 0, 0, 1, 1, 1], [0], [0]>} : vector<2x8x4xbf16>, vector<2x8x4xbf16>, vector<2x8x8xf32> -> vector<2x8x8xf32>
    "tpu.trace_stop"() : () -> ()
    %cst_34 = arith.constant 5.000000e-01 : f32
    %82 = vector.broadcast %cst_34 : f32 to vector<2x8x8xf32>
    %83 = arith.mulf %81, %82 : vector<2x8x8xf32>
    %84 = vector.broadcast %37 : vector<2x1x8xf32> to vector<2x8x8xf32>
    %85 = arith.addf %83, %84 : vector<2x8x8xf32>
    %cst_35 = arith.constant dense<0xFF800000> : vector<2x8xf32>
    %86 = vector.multi_reduction <maximumf>, %85, %cst_35 [2] : vector<2x8x8xf32> to vector<2x8xf32>
    %87 = vector.shape_cast %86 : vector<2x8xf32> to vector<2x8x1xf32>
    %88 = vector.broadcast %87 : vector<2x8x1xf32> to vector<2x8x8xf32>
    %89 = arith.subf %85, %88 : vector<2x8x8xf32>
    %90 = math.exp %89 : vector<2x8x8xf32>
    %cst_36 = arith.constant dense<0.000000e+00> : vector<2x8xf32>
    %91 = vector.multi_reduction <add>, %90, %cst_36 [2] : vector<2x8x8xf32> to vector<2x8xf32>
    %92 = vector.shape_cast %91 : vector<2x8xf32> to vector<2x8x1xf32>
    %93 = tpu.reciprocal %92 {approx = true} : vector<2x8x1xf32> -> vector<2x8x1xf32>
    %94 = vector.broadcast %93 : vector<2x8x1xf32> to vector<2x8x8xf32>
    %95 = arith.mulf %90, %94 : vector<2x8x8xf32>
    %96 = arith.truncf %95 : vector<2x8x8xf32> to vector<2x8x8xbf16>
    "tpu.trace_start"() <{level = 10 : i32, message = "bqk,bkd->bqd"}> : () -> ()
    %cst_37 = arith.constant dense<0.000000e+00> : vector<2x8x4xf32>
    %97 = tpu.matmul %96, %80, %cst_37 {dimension_numbers = #tpu.dot_dimension_numbers<[2], [1], [1], [2], [0, 0, 0, 1, 1, 2], [0], [0]>} : vector<2x8x8xbf16>, vector<2x8x4xbf16>, vector<2x8x4xf32> -> vector<2x8x4xf32>
    "tpu.trace_stop"() : () -> ()
    %98 = vector.extract_strided_slice %18 {offsets = [0, 0, 12], sizes = [2, 8, 4], strides = [1, 1, 1]} : vector<2x8x128xbf16> to vector<2x8x4xbf16>
    %99 = vector.extract_strided_slice %25 {offsets = [0, 0, 12], sizes = [2, 8, 4], strides = [1, 1, 1]} : vector<2x8x128xbf16> to vector<2x8x4xbf16>
    %100 = vector.extract_strided_slice %32 {offsets = [0, 0, 12], sizes = [2, 8, 4], strides = [1, 1, 1]} : vector<2x8x128xbf16> to vector<2x8x4xbf16>
    "tpu.trace_start"() <{level = 10 : i32, message = "bqd,bkd->bqk"}> : () -> ()
    %cst_38 = arith.constant dense<0.000000e+00> : vector<2x8x8xf32>
    %101 = tpu.matmul %98, %99, %cst_38 {dimension_numbers = #tpu.dot_dimension_numbers<[2], [2], [1], [1], [0, 0, 0, 1, 1, 1], [0], [0]>} : vector<2x8x4xbf16>, vector<2x8x4xbf16>, vector<2x8x8xf32> -> vector<2x8x8xf32>
    "tpu.trace_stop"() : () -> ()
    %cst_39 = arith.constant 5.000000e-01 : f32
    %102 = vector.broadcast %cst_39 : f32 to vector<2x8x8xf32>
    %103 = arith.mulf %101, %102 : vector<2x8x8xf32>
    %104 = vector.broadcast %37 : vector<2x1x8xf32> to vector<2x8x8xf32>
    %105 = arith.addf %103, %104 : vector<2x8x8xf32>
    %cst_40 = arith.constant dense<0xFF800000> : vector<2x8xf32>
    %106 = vector.multi_reduction <maximumf>, %105, %cst_40 [2] : vector<2x8x8xf32> to vector<2x8xf32>
    %107 = vector.shape_cast %106 : vector<2x8xf32> to vector<2x8x1xf32>
    %108 = vector.broadcast %107 : vector<2x8x1xf32> to vector<2x8x8xf32>
    %109 = arith.subf %105, %108 : vector<2x8x8xf32>
    %110 = math.exp %109 : vector<2x8x8xf32>
    %cst_41 = arith.constant dense<0.000000e+00> : vector<2x8xf32>
    %111 = vector.multi_reduction <add>, %110, %cst_41 [2] : vector<2x8x8xf32> to vector<2x8xf32>
    %112 = vector.shape_cast %111 : vector<2x8xf32> to vector<2x8x1xf32>
    %113 = tpu.reciprocal %112 {approx = true} : vector<2x8x1xf32> -> vector<2x8x1xf32>
    %114 = vector.broadcast %113 : vector<2x8x1xf32> to vector<2x8x8xf32>
    %115 = arith.mulf %110, %114 : vector<2x8x8xf32>
    %116 = arith.truncf %115 : vector<2x8x8xf32> to vector<2x8x8xbf16>
    "tpu.trace_start"() <{level = 10 : i32, message = "bqk,bkd->bqd"}> : () -> ()
    %cst_42 = arith.constant dense<0.000000e+00> : vector<2x8x4xf32>
    %117 = tpu.matmul %116, %100, %cst_42 {dimension_numbers = #tpu.dot_dimension_numbers<[2], [1], [1], [2], [0, 0, 0, 1, 1, 2], [0], [0]>} : vector<2x8x8xbf16>, vector<2x8x4xbf16>, vector<2x8x4xf32> -> vector<2x8x4xf32>
    "tpu.trace_stop"() : () -> ()
    %118 = vector.extract_strided_slice %18 {offsets = [0, 0, 16], sizes = [2, 8, 4], strides = [1, 1, 1]} : vector<2x8x128xbf16> to vector<2x8x4xbf16>
    %119 = vector.extract_strided_slice %25 {offsets = [0, 0, 16], sizes = [2, 8, 4], strides = [1, 1, 1]} : vector<2x8x128xbf16> to vector<2x8x4xbf16>
    %120 = vector.extract_strided_slice %32 {offsets = [0, 0, 16], sizes = [2, 8, 4], strides = [1, 1, 1]} : vector<2x8x128xbf16> to vector<2x8x4xbf16>
    "tpu.trace_start"() <{level = 10 : i32, message = "bqd,bkd->bqk"}> : () -> ()
    %cst_43 = arith.constant dense<0.000000e+00> : vector<2x8x8xf32>
    %121 = tpu.matmul %118, %119, %cst_43 {dimension_numbers = #tpu.dot_dimension_numbers<[2], [2], [1], [1], [0, 0, 0, 1, 1, 1], [0], [0]>} : vector<2x8x4xbf16>, vector<2x8x4xbf16>, vector<2x8x8xf32> -> vector<2x8x8xf32>
    "tpu.trace_stop"() : () -> ()
    %cst_44 = arith.constant 5.000000e-01 : f32
    %122 = vector.broadcast %cst_44 : f32 to vector<2x8x8xf32>
    %123 = arith.mulf %121, %122 : vector<2x8x8xf32>
    %124 = vector.broadcast %37 : vector<2x1x8xf32> to vector<2x8x8xf32>
    %125 = arith.addf %123, %124 : vector<2x8x8xf32>
    %cst_45 = arith.constant dense<0xFF800000> : vector<2x8xf32>
    %126 = vector.multi_reduction <maximumf>, %125, %cst_45 [2] : vector<2x8x8xf32> to vector<2x8xf32>
    %127 = vector.shape_cast %126 : vector<2x8xf32> to vector<2x8x1xf32>
    %128 = vector.broadcast %127 : vector<2x8x1xf32> to vector<2x8x8xf32>
    %129 = arith.subf %125, %128 : vector<2x8x8xf32>
    %130 = math.exp %129 : vector<2x8x8xf32>
    %cst_46 = arith.constant dense<0.000000e+00> : vector<2x8xf32>
    %131 = vector.multi_reduction <add>, %130, %cst_46 [2] : vector<2x8x8xf32> to vector<2x8xf32>
    %132 = vector.shape_cast %131 : vector<2x8xf32> to vector<2x8x1xf32>
    %133 = tpu.reciprocal %132 {approx = true} : vector<2x8x1xf32> -> vector<2x8x1xf32>
    %134 = vector.broadcast %133 : vector<2x8x1xf32> to vector<2x8x8xf32>
    %135 = arith.mulf %130, %134 : vector<2x8x8xf32>
    %136 = arith.truncf %135 : vector<2x8x8xf32> to vector<2x8x8xbf16>
    "tpu.trace_start"() <{level = 10 : i32, message = "bqk,bkd->bqd"}> : () -> ()
    %cst_47 = arith.constant dense<0.000000e+00> : vector<2x8x4xf32>
    %137 = tpu.matmul %136, %120, %cst_47 {dimension_numbers = #tpu.dot_dimension_numbers<[2], [1], [1], [2], [0, 0, 0, 1, 1, 2], [0], [0]>} : vector<2x8x8xbf16>, vector<2x8x4xbf16>, vector<2x8x4xf32> -> vector<2x8x4xf32>
    "tpu.trace_stop"() : () -> ()
    %138 = vector.extract_strided_slice %18 {offsets = [0, 0, 20], sizes = [2, 8, 4], strides = [1, 1, 1]} : vector<2x8x128xbf16> to vector<2x8x4xbf16>
    %139 = vector.extract_strided_slice %25 {offsets = [0, 0, 20], sizes = [2, 8, 4], strides = [1, 1, 1]} : vector<2x8x128xbf16> to vector<2x8x4xbf16>
    %140 = vector.extract_strided_slice %32 {offsets = [0, 0, 20], sizes = [2, 8, 4], strides = [1, 1, 1]} : vector<2x8x128xbf16> to vector<2x8x4xbf16>
    "tpu.trace_start"() <{level = 10 : i32, message = "bqd,bkd->bqk"}> : () -> ()
    %cst_48 = arith.constant dense<0.000000e+00> : vector<2x8x8xf32>
    %141 = tpu.matmul %138, %139, %cst_48 {dimension_numbers = #tpu.dot_dimension_numbers<[2], [2], [1], [1], [0, 0, 0, 1, 1, 1], [0], [0]>} : vector<2x8x4xbf16>, vector<2x8x4xbf16>, vector<2x8x8xf32> -> vector<2x8x8xf32>
    "tpu.trace_stop"() : () -> ()
    %cst_49 = arith.constant 5.000000e-01 : f32
    %142 = vector.broadcast %cst_49 : f32 to vector<2x8x8xf32>
    %143 = arith.mulf %141, %142 : vector<2x8x8xf32>
    %144 = vector.broadcast %37 : vector<2x1x8xf32> to vector<2x8x8xf32>
    %145 = arith.addf %143, %144 : vector<2x8x8xf32>
    %cst_50 = arith.constant dense<0xFF800000> : vector<2x8xf32>
    %146 = vector.multi_reduction <maximumf>, %145, %cst_50 [2] : vector<2x8x8xf32> to vector<2x8xf32>
    %147 = vector.shape_cast %146 : vector<2x8xf32> to vector<2x8x1xf32>
    %148 = vector.broadcast %147 : vector<2x8x1xf32> to vector<2x8x8xf32>
    %149 = arith.subf %145, %148 : vector<2x8x8xf32>
    %150 = math.exp %149 : vector<2x8x8xf32>
    %cst_51 = arith.constant dense<0.000000e+00> : vector<2x8xf32>
    %151 = vector.multi_reduction <add>, %150, %cst_51 [2] : vector<2x8x8xf32> to vector<2x8xf32>
    %152 = vector.shape_cast %151 : vector<2x8xf32> to vector<2x8x1xf32>
    %153 = tpu.reciprocal %152 {approx = true} : vector<2x8x1xf32> -> vector<2x8x1xf32>
    %154 = vector.broadcast %153 : vector<2x8x1xf32> to vector<2x8x8xf32>
    %155 = arith.mulf %150, %154 : vector<2x8x8xf32>
    %156 = arith.truncf %155 : vector<2x8x8xf32> to vector<2x8x8xbf16>
    "tpu.trace_start"() <{level = 10 : i32, message = "bqk,bkd->bqd"}> : () -> ()
    %cst_52 = arith.constant dense<0.000000e+00> : vector<2x8x4xf32>
    %157 = tpu.matmul %156, %140, %cst_52 {dimension_numbers = #tpu.dot_dimension_numbers<[2], [1], [1], [2], [0, 0, 0, 1, 1, 2], [0], [0]>} : vector<2x8x8xbf16>, vector<2x8x4xbf16>, vector<2x8x4xf32> -> vector<2x8x4xf32>
    "tpu.trace_stop"() : () -> ()
    %158 = vector.extract_strided_slice %18 {offsets = [0, 0, 24], sizes = [2, 8, 4], strides = [1, 1, 1]} : vector<2x8x128xbf16> to vector<2x8x4xbf16>
    %159 = vector.extract_strided_slice %25 {offsets = [0, 0, 24], sizes = [2, 8, 4], strides = [1, 1, 1]} : vector<2x8x128xbf16> to vector<2x8x4xbf16>
    %160 = vector.extract_strided_slice %32 {offsets = [0, 0, 24], sizes = [2, 8, 4], strides = [1, 1, 1]} : vector<2x8x128xbf16> to vector<2x8x4xbf16>
    "tpu.trace_start"() <{level = 10 : i32, message = "bqd,bkd->bqk"}> : () -> ()
    %cst_53 = arith.constant dense<0.000000e+00> : vector<2x8x8xf32>
    %161 = tpu.matmul %158, %159, %cst_53 {dimension_numbers = #tpu.dot_dimension_numbers<[2], [2], [1], [1], [0, 0, 0, 1, 1, 1], [0], [0]>} : vector<2x8x4xbf16>, vector<2x8x4xbf16>, vector<2x8x8xf32> -> vector<2x8x8xf32>
    "tpu.trace_stop"() : () -> ()
    %cst_54 = arith.constant 5.000000e-01 : f32
    %162 = vector.broadcast %cst_54 : f32 to vector<2x8x8xf32>
    %163 = arith.mulf %161, %162 : vector<2x8x8xf32>
    %164 = vector.broadcast %37 : vector<2x1x8xf32> to vector<2x8x8xf32>
    %165 = arith.addf %163, %164 : vector<2x8x8xf32>
    %cst_55 = arith.constant dense<0xFF800000> : vector<2x8xf32>
    %166 = vector.multi_reduction <maximumf>, %165, %cst_55 [2] : vector<2x8x8xf32> to vector<2x8xf32>
    %167 = vector.shape_cast %166 : vector<2x8xf32> to vector<2x8x1xf32>
    %168 = vector.broadcast %167 : vector<2x8x1xf32> to vector<2x8x8xf32>
    %169 = arith.subf %165, %168 : vector<2x8x8xf32>
    %170 = math.exp %169 : vector<2x8x8xf32>
    %cst_56 = arith.constant dense<0.000000e+00> : vector<2x8xf32>
    %171 = vector.multi_reduction <add>, %170, %cst_56 [2] : vector<2x8x8xf32> to vector<2x8xf32>
    %172 = vector.shape_cast %171 : vector<2x8xf32> to vector<2x8x1xf32>
    %173 = tpu.reciprocal %172 {approx = true} : vector<2x8x1xf32> -> vector<2x8x1xf32>
    %174 = vector.broadcast %173 : vector<2x8x1xf32> to vector<2x8x8xf32>
    %175 = arith.mulf %170, %174 : vector<2x8x8xf32>
    %176 = arith.truncf %175 : vector<2x8x8xf32> to vector<2x8x8xbf16>
    "tpu.trace_start"() <{level = 10 : i32, message = "bqk,bkd->bqd"}> : () -> ()
    %cst_57 = arith.constant dense<0.000000e+00> : vector<2x8x4xf32>
    %177 = tpu.matmul %176, %160, %cst_57 {dimension_numbers = #tpu.dot_dimension_numbers<[2], [1], [1], [2], [0, 0, 0, 1, 1, 2], [0], [0]>} : vector<2x8x8xbf16>, vector<2x8x4xbf16>, vector<2x8x4xf32> -> vector<2x8x4xf32>
    "tpu.trace_stop"() : () -> ()
    %178 = vector.extract_strided_slice %18 {offsets = [0, 0, 28], sizes = [2, 8, 4], strides = [1, 1, 1]} : vector<2x8x128xbf16> to vector<2x8x4xbf16>
    %179 = vector.extract_strided_slice %25 {offsets = [0, 0, 28], sizes = [2, 8, 4], strides = [1, 1, 1]} : vector<2x8x128xbf16> to vector<2x8x4xbf16>
    %180 = vector.extract_strided_slice %32 {offsets = [0, 0, 28], sizes = [2, 8, 4], strides = [1, 1, 1]} : vector<2x8x128xbf16> to vector<2x8x4xbf16>
    "tpu.trace_start"() <{level = 10 : i32, message = "bqd,bkd->bqk"}> : () -> ()
    %cst_58 = arith.constant dense<0.000000e+00> : vector<2x8x8xf32>
    %181 = tpu.matmul %178, %179, %cst_58 {dimension_numbers = #tpu.dot_dimension_numbers<[2], [2], [1], [1], [0, 0, 0, 1, 1, 1], [0], [0]>} : vector<2x8x4xbf16>, vector<2x8x4xbf16>, vector<2x8x8xf32> -> vector<2x8x8xf32>
    "tpu.trace_stop"() : () -> ()
    %cst_59 = arith.constant 5.000000e-01 : f32
    %182 = vector.broadcast %cst_59 : f32 to vector<2x8x8xf32>
    %183 = arith.mulf %181, %182 : vector<2x8x8xf32>
    %184 = vector.broadcast %37 : vector<2x1x8xf32> to vector<2x8x8xf32>
    %185 = arith.addf %183, %184 : vector<2x8x8xf32>
    %cst_60 = arith.constant dense<0xFF800000> : vector<2x8xf32>
    %186 = vector.multi_reduction <maximumf>, %185, %cst_60 [2] : vector<2x8x8xf32> to vector<2x8xf32>
    %187 = vector.shape_cast %186 : vector<2x8xf32> to vector<2x8x1xf32>
    %188 = vector.broadcast %187 : vector<2x8x1xf32> to vector<2x8x8xf32>
    %189 = arith.subf %185, %188 : vector<2x8x8xf32>
    %190 = math.exp %189 : vector<2x8x8xf32>
    %cst_61 = arith.constant dense<0.000000e+00> : vector<2x8xf32>
    %191 = vector.multi_reduction <add>, %190, %cst_61 [2] : vector<2x8x8xf32> to vector<2x8xf32>
    %192 = vector.shape_cast %191 : vector<2x8xf32> to vector<2x8x1xf32>
    %193 = tpu.reciprocal %192 {approx = true} : vector<2x8x1xf32> -> vector<2x8x1xf32>
    %194 = vector.broadcast %193 : vector<2x8x1xf32> to vector<2x8x8xf32>
    %195 = arith.mulf %190, %194 : vector<2x8x8xf32>
    %196 = arith.truncf %195 : vector<2x8x8xf32> to vector<2x8x8xbf16>
    "tpu.trace_start"() <{level = 10 : i32, message = "bqk,bkd->bqd"}> : () -> ()
    %cst_62 = arith.constant dense<0.000000e+00> : vector<2x8x4xf32>
    %197 = tpu.matmul %196, %180, %cst_62 {dimension_numbers = #tpu.dot_dimension_numbers<[2], [1], [1], [2], [0, 0, 0, 1, 1, 2], [0], [0]>} : vector<2x8x8xbf16>, vector<2x8x4xbf16>, vector<2x8x4xf32> -> vector<2x8x4xf32>
    "tpu.trace_stop"() : () -> ()
    %198 = tpu.concatenate %57, %77, %97, %117, %137, %157, %177, %197 in 2 : vector<2x8x4xf32>, vector<2x8x4xf32>, vector<2x8x4xf32>, vector<2x8x4xf32>, vector<2x8x4xf32>, vector<2x8x4xf32>, vector<2x8x4xf32>, vector<2x8x4xf32> -> vector<2x8x32xf32>
    %199 = vector.shape_cast %198 : vector<2x8x32xf32> to vector<16x32xf32>
    %c0_63 = arith.constant 0 : index
    %c0_64 = arith.constant 0 : index
    %200 = vector.load %arg10[%c0_63, %c0_64] : memref<128x128xbf16, #tpu.memory_space<vmem>>, vector<128x128xbf16>
    %201 = vector.extract_strided_slice %200 {offsets = [0, 0], sizes = [32, 128], strides = [1, 1]} : vector<128x128xbf16> to vector<32x128xbf16>
    %202 = arith.truncf %199 : vector<16x32xf32> to vector<16x32xbf16>
    %cst_65 = arith.constant dense<0.000000e+00> : vector<16x128xf32>
    %203 = tpu.matmul %202, %201, %cst_65 {dimension_numbers = #tpu.dot_dimension_numbers<[1], [0], [0], [1], [0, 0, 1, 1], [], []>} : vector<16x32xbf16>, vector<32x128xbf16>, vector<16x128xf32> -> vector<16x128xf32>
    %c0_66 = arith.constant 0 : index
    %c0_67 = arith.constant 0 : index
    %204 = vector.load %arg11[%c0_66, %c0_67] : memref<1x128xf32, #tpu.memory_space<vmem>>, vector<1x128xf32>
    %205 = vector.broadcast %204 : vector<1x128xf32> to vector<16x128xf32>
    %206 = arith.addf %203, %205 : vector<16x128xf32>
    %207 = arith.addf %206, %10 : vector<16x128xf32>
    %c0_68 = arith.constant 0 : index
    %c0_69 = arith.constant 0 : index
    %208 = vector.load %arg12[%c0_68, %c0_69] : memref<1x128xf32, #tpu.memory_space<vmem>>, vector<1x128xf32>
    %c0_70 = arith.constant 0 : index
    %c0_71 = arith.constant 0 : index
    %209 = vector.load %arg13[%c0_70, %c0_71] : memref<1x128xf32, #tpu.memory_space<vmem>>, vector<1x128xf32>
    %210 = vector.broadcast %4 : vector<1x128xf32> to vector<16x128xf32>
    %211 = arith.mulf %207, %210 : vector<16x128xf32>
    %cst_72 = arith.constant dense<0.000000e+00> : vector<16xf32>
    %212 = vector.multi_reduction <add>, %211, %cst_72 [1] : vector<16x128xf32> to vector<16xf32>
    %213 = vector.shape_cast %212 : vector<16xf32> to vector<16x1xf32>
    %cst_73 = arith.constant 3.125000e-02 : f32
    %214 = vector.broadcast %cst_73 : f32 to vector<16x1xf32>
    %215 = arith.mulf %213, %214 : vector<16x1xf32>
    %216 = vector.broadcast %215 : vector<16x1xf32> to vector<16x128xf32>
    %217 = arith.subf %207, %216 : vector<16x128xf32>
    %218 = vector.broadcast %4 : vector<1x128xf32> to vector<16x128xf32>
    %219 = arith.mulf %217, %218 : vector<16x128xf32>
    %220 = arith.mulf %219, %219 : vector<16x128xf32>
    %cst_74 = arith.constant dense<0.000000e+00> : vector<16xf32>
    %221 = vector.multi_reduction <add>, %220, %cst_74 [1] : vector<16x128xf32> to vector<16xf32>
    %222 = vector.shape_cast %221 : vector<16xf32> to vector<16x1xf32>
    %cst_75 = arith.constant 3.125000e-02 : f32
    %223 = vector.broadcast %cst_75 : f32 to vector<16x1xf32>
    %224 = arith.mulf %222, %223 : vector<16x1xf32>
    %225 = math.sqrt %224 : vector<16x1xf32>
    %cst_76 = arith.constant 9.99999997E-7 : f32
    %226 = vector.broadcast %cst_76 : f32 to vector<16x1xf32>
    %227 = arith.addf %225, %226 : vector<16x1xf32>
    %228 = tpu.reciprocal %227 : vector<16x1xf32> -> vector<16x1xf32>
    %229 = vector.broadcast %208 : vector<1x128xf32> to vector<16x128xf32>
    %230 = arith.mulf %229, %219 : vector<16x128xf32>
    %231 = vector.broadcast %228 : vector<16x1xf32> to vector<16x128xf32>
    %232 = arith.mulf %230, %231 : vector<16x128xf32>
    %233 = vector.broadcast %209 : vector<1x128xf32> to vector<16x128xf32>
    %234 = arith.addf %232, %233 : vector<16x128xf32>
    %235 = arith.truncf %234 : vector<16x128xf32> to vector<16x128xbf16>
    %c0_77 = arith.constant 0 : index
    %c0_78 = arith.constant 0 : index
    %236 = vector.load %arg14[%c0_77, %c0_78] : memref<128x128xbf16, #tpu.memory_space<vmem>>, vector<128x128xbf16>
    %cst_79 = arith.constant dense<0.000000e+00> : vector<16x128xf32>
    %237 = tpu.matmul %235, %236, %cst_79 {dimension_numbers = #tpu.dot_dimension_numbers<[1], [0], [0], [1], [0, 0, 1, 1], [], []>} : vector<16x128xbf16>, vector<128x128xbf16>, vector<16x128xf32> -> vector<16x128xf32>
    %c0_80 = arith.constant 0 : index
    %c0_81 = arith.constant 0 : index
    %238 = vector.load %arg15[%c0_80, %c0_81] : memref<1x128xf32, #tpu.memory_space<vmem>>, vector<1x128xf32>
    %239 = vector.broadcast %238 : vector<1x128xf32> to vector<16x128xf32>
    %240 = arith.addf %237, %239 : vector<16x128xf32>
    %cst_82 = arith.constant 0.000000e+00 : f32
    %241 = vector.broadcast %cst_82 : f32 to vector<16x128xf32>
    %242 = arith.maximumf %240, %241 : vector<16x128xf32>
    %243 = arith.truncf %242 : vector<16x128xf32> to vector<16x128xbf16>
    %c0_83 = arith.constant 0 : index
    %c0_84 = arith.constant 0 : index
    %244 = vector.load %arg16[%c0_83, %c0_84] : memref<128x128xbf16, #tpu.memory_space<vmem>>, vector<128x128xbf16>
    %cst_85 = arith.constant dense<0.000000e+00> : vector<16x128xf32>
    %245 = tpu.matmul %243, %244, %cst_85 {dimension_numbers = #tpu.dot_dimension_numbers<[1], [0], [0], [1], [0, 0, 1, 1], [], []>} : vector<16x128xbf16>, vector<128x128xbf16>, vector<16x128xf32> -> vector<16x128xf32>
    %c0_86 = arith.constant 0 : index
    %c0_87 = arith.constant 0 : index
    %246 = vector.load %arg17[%c0_86, %c0_87] : memref<1x128xf32, #tpu.memory_space<vmem>>, vector<1x128xf32>
    %247 = vector.broadcast %246 : vector<1x128xf32> to vector<16x128xf32>
    %248 = arith.addf %245, %247 : vector<16x128xf32>
    %249 = arith.addf %248, %234 : vector<16x128xf32>
    %c0_88 = arith.constant 0 : index
    %c0_89 = arith.constant 0 : index
    %250 = vector.load %arg18[%c0_88, %c0_89] : memref<1x128xf32, #tpu.memory_space<vmem>>, vector<1x128xf32>
    %c0_90 = arith.constant 0 : index
    %c0_91 = arith.constant 0 : index
    %251 = vector.load %arg19[%c0_90, %c0_91] : memref<1x128xf32, #tpu.memory_space<vmem>>, vector<1x128xf32>
    %252 = vector.broadcast %4 : vector<1x128xf32> to vector<16x128xf32>
    %253 = arith.mulf %249, %252 : vector<16x128xf32>
    %cst_92 = arith.constant dense<0.000000e+00> : vector<16xf32>
    %254 = vector.multi_reduction <add>, %253, %cst_92 [1] : vector<16x128xf32> to vector<16xf32>
    %255 = vector.shape_cast %254 : vector<16xf32> to vector<16x1xf32>
    %cst_93 = arith.constant 3.125000e-02 : f32
    %256 = vector.broadcast %cst_93 : f32 to vector<16x1xf32>
    %257 = arith.mulf %255, %256 : vector<16x1xf32>
    %258 = vector.broadcast %257 : vector<16x1xf32> to vector<16x128xf32>
    %259 = arith.subf %249, %258 : vector<16x128xf32>
    %260 = vector.broadcast %4 : vector<1x128xf32> to vector<16x128xf32>
    %261 = arith.mulf %259, %260 : vector<16x128xf32>
    %262 = arith.mulf %261, %261 : vector<16x128xf32>
    %cst_94 = arith.constant dense<0.000000e+00> : vector<16xf32>
    %263 = vector.multi_reduction <add>, %262, %cst_94 [1] : vector<16x128xf32> to vector<16xf32>
    %264 = vector.shape_cast %263 : vector<16xf32> to vector<16x1xf32>
    %cst_95 = arith.constant 3.125000e-02 : f32
    %265 = vector.broadcast %cst_95 : f32 to vector<16x1xf32>
    %266 = arith.mulf %264, %265 : vector<16x1xf32>
    %267 = math.sqrt %266 : vector<16x1xf32>
    %cst_96 = arith.constant 9.99999997E-7 : f32
    %268 = vector.broadcast %cst_96 : f32 to vector<16x1xf32>
    %269 = arith.addf %267, %268 : vector<16x1xf32>
    %270 = tpu.reciprocal %269 : vector<16x1xf32> -> vector<16x1xf32>
    %271 = vector.broadcast %250 : vector<1x128xf32> to vector<16x128xf32>
    %272 = arith.mulf %271, %261 : vector<16x128xf32>
    %273 = vector.broadcast %270 : vector<16x1xf32> to vector<16x128xf32>
    %274 = arith.mulf %272, %273 : vector<16x128xf32>
    %275 = vector.broadcast %251 : vector<1x128xf32> to vector<16x128xf32>
    %276 = arith.addf %274, %275 : vector<16x128xf32>
    %277 = vector.shape_cast %276 : vector<16x128xf32> to vector<2x8x128xf32>
    %c0_97 = arith.constant 0 : index
    %c0_98 = arith.constant 0 : index
    %c0_99 = arith.constant 0 : index
    %278 = vector.load %arg20[%c0_97, %c0_98, %c0_99] : memref<2x8x128xf32, #tpu.memory_space<vmem>>, vector<2x8x128xf32>
    tpu.vector_store %arg20[%c0_97, %c0_98, %c0_99], %277 {strides = array<i32>} : memref<2x8x128xf32, #tpu.memory_space<vmem>>, vector<2x8x128xf32>,
    return
  }
  func.func @transform_0(%arg0: i32) -> (i32, i32, i32) {
    %c0_i32 = arith.constant 0 : i32
    %c0_i32_0 = arith.constant 0 : i32
    %c0_i32_1 = arith.constant 0 : i32
    return %arg0, %c0_i32, %c0_i32_0 : i32, i32, i32
  }
  func.func @transform_1(%arg0: i32) -> (i32, i32, i32) {
    %c0_i32 = arith.constant 0 : i32
    %c0_i32_0 = arith.constant 0 : i32
    %c0_i32_1 = arith.constant 0 : i32
    return %arg0, %c0_i32, %c0_i32_0 : i32, i32, i32
  }
  func.func @transform_2(%arg0: i32) -> (i32, i32) {
    %c0_i32 = arith.constant 0 : i32
    %c0_i32_0 = arith.constant 0 : i32
    %c0_i32_1 = arith.constant 0 : i32
    return %c0_i32, %c0_i32_0 : i32, i32
  }
  func.func @transform_3(%arg0: i32) -> (i32, i32) {
    %c0_i32 = arith.constant 0 : i32
    %c0_i32_0 = arith.constant 0 : i32
    %c0_i32_1 = arith.constant 0 : i32
    return %c0_i32, %c0_i32_0 : i32, i32
  }
  func.func @transform_4(%arg0: i32) -> (i32, i32) {
    %c0_i32 = arith.constant 0 : i32
    %c0_i32_0 = arith.constant 0 : i32
    %c0_i32_1 = arith.constant 0 : i32
    return %c0_i32, %c0_i32_0 : i32, i32
  }
  func.func @transform_5(%arg0: i32) -> (i32, i32) {
    %c0_i32 = arith.constant 0 : i32
    %c0_i32_0 = arith.constant 0 : i32
    %c0_i32_1 = arith.constant 0 : i32
    return %c0_i32, %c0_i32_0 : i32, i32
  }
  func.func @transform_6(%arg0: i32) -> (i32, i32) {
    %c0_i32 = arith.constant 0 : i32
    %c0_i32_0 = arith.constant 0 : i32
    %c0_i32_1 = arith.constant 0 : i32
    return %c0_i32, %c0_i32_0 : i32, i32
  }
  func.func @transform_7(%arg0: i32) -> (i32, i32) {
    %c0_i32 = arith.constant 0 : i32
    %c0_i32_0 = arith.constant 0 : i32
    %c0_i32_1 = arith.constant 0 : i32
    return %c0_i32, %c0_i32_0 : i32, i32
  }
  func.func @transform_8(%arg0: i32) -> (i32, i32) {
    %c0_i32 = arith.constant 0 : i32
    %c0_i32_0 = arith.constant 0 : i32
    %c0_i32_1 = arith.constant 0 : i32
    return %c0_i32, %c0_i32_0 : i32, i32
  }
  func.func @transform_9(%arg0: i32) -> (i32, i32) {
    %c0_i32 = arith.constant 0 : i32
    %c0_i32_0 = arith.constant 0 : i32
    %c0_i32_1 = arith.constant 0 : i32
    return %c0_i32, %c0_i32_0 : i32, i32
  }
  func.func @transform_10(%arg0: i32) -> (i32, i32) {
    %c0_i32 = arith.constant 0 : i32
    %c0_i32_0 = arith.constant 0 : i32
    %c0_i32_1 = arith.constant 0 : i32
    return %c0_i32, %c0_i32_0 : i32, i32
  }
  func.func @transform_11(%arg0: i32) -> (i32, i32) {
    %c0_i32 = arith.constant 0 : i32
    %c0_i32_0 = arith.constant 0 : i32
    %c0_i32_1 = arith.constant 0 : i32
    return %c0_i32, %c0_i32_0 : i32, i32
  }
  func.func @transform_12(%arg0: i32) -> (i32, i32) {
    %c0_i32 = arith.constant 0 : i32
    %c0_i32_0 = arith.constant 0 : i32
    %c0_i32_1 = arith.constant 0 : i32
    return %c0_i32, %c0_i32_0 : i32, i32
  }
  func.func @transform_13(%arg0: i32) -> (i32, i32) {
    %c0_i32 = arith.constant 0 : i32
    %c0_i32_0 = arith.constant 0 : i32
    %c0_i32_1 = arith.constant 0 : i32
    return %c0_i32, %c0_i32_0 : i32, i32
  }
  func.func @transform_14(%arg0: i32) -> (i32, i32) {
    %c0_i32 = arith.constant 0 : i32
    %c0_i32_0 = arith.constant 0 : i32
    %c0_i32_1 = arith.constant 0 : i32
    return %c0_i32, %c0_i32_0 : i32, i32
  }
  func.func @transform_15(%arg0: i32) -> (i32, i32) {
    %c0_i32 = arith.constant 0 : i32
    %c0_i32_0 = arith.constant 0 : i32
    %c0_i32_1 = arith.constant 0 : i32
    return %c0_i32, %c0_i32_0 : i32, i32
  }
  func.func @transform_16(%arg0: i32) -> (i32, i32) {
    %c0_i32 = arith.constant 0 : i32
    %c0_i32_0 = arith.constant 0 : i32
    %c0_i32_1 = arith.constant 0 : i32
    return %c0_i32, %c0_i32_0 : i32, i32
  }
  func.func @transform_17(%arg0: i32) -> (i32, i32) {
    %c0_i32 = arith.constant 0 : i32
    %c0_i32_0 = arith.constant 0 : i32
    %c0_i32_1 = arith.constant 0 : i32
    return %c0_i32, %c0_i32_0 : i32, i32
  }
  func.func @transform_18(%arg0: i32) -> (i32, i32) {
    %c0_i32 = arith.constant 0 : i32
    %c0_i32_0 = arith.constant 0 : i32
    %c0_i32_1 = arith.constant 0 : i32
    return %c0_i32, %c0_i32_0 : i32, i32
  }
  func.func @transform_19(%arg0: i32) -> (i32, i32, i32) {
    %c0_i32 = arith.constant 0 : i32
    %c0_i32_0 = arith.constant 0 : i32
    %c0_i32_1 = arith.constant 0 : i32
    return %arg0, %c0_i32, %c0_i32_0 : i32, i32, i32
  }
}

</mosaic_0001>

<llo_original>
// kernel: tpu_custom_call.1
$region0: #{tpu_custom_call.1}
  #allocation0 [shape = 'u32[]', space=smem, size = 0x4, offset = 0x4, fixed_abs, tag = 'smem constant byte address 0x4 - core index']
  #allocation1 [shape = 'u32[144,128]{1,0:T(1,128)}', space=vmem, size = 0x12000, scoped, tag = 'internal scratch']
  %s0 = inlined_call_operand.hbm [shape: f32[2,8,128], index: 0, kind: input, shape index: {}]
  %s1 = inlined_call_operand.vmem [shape: f32[2,1,8], index: 1, kind: input, shape index: {}]
  %s2 = inlined_call_operand.hbm [shape: f32[8,128], index: 2, kind: input, shape index: {}]
  %s3 = inlined_call_operand.hbm [shape: bf16[128,128], index: 3, kind: input, shape index: {}]
  %s4 = inlined_call_operand.vmem [shape: f32[1,128], index: 4, kind: input, shape index: {}]
  %s5 = inlined_call_operand.hbm [shape: bf16[128,128], index: 5, kind: input, shape index: {}]
  %s6 = inlined_call_operand.vmem [shape: f32[1,128], index: 6, kind: input, shape index: {}]
  %s7 = inlined_call_operand.hbm [shape: bf16[128,128], index: 7, kind: input, shape index: {}]
  %s8 = inlined_call_operand.vmem [shape: f32[1,128], index: 8, kind: input, shape index: {}]
  %s9 = inlined_call_operand.hbm [shape: bf16[128,128], index: 9, kind: input, shape index: {}]
  %s10 = inlined_call_operand.vmem [shape: f32[1,128], index: 10, kind: input, shape index: {}]
  %s11 = inlined_call_operand.vmem [shape: f32[1,128], index: 11, kind: input, shape index: {}]
  %s12 = inlined_call_operand.vmem [shape: f32[1,128], index: 12, kind: input, shape index: {}]
  %s13 = inlined_call_operand.hbm [shape: bf16[128,128], index: 13, kind: input, shape index: {}]
  %s14 = inlined_call_operand.vmem [shape: f32[1,128], index: 14, kind: input, shape index: {}]
  %s15 = inlined_call_operand.hbm [shape: bf16[128,128], index: 15, kind: input, shape index: {}]
  %s16 = inlined_call_operand.vmem [shape: f32[1,128], index: 16, kind: input, shape index: {}]
  %s17 = inlined_call_operand.vmem [shape: f32[1,128], index: 17, kind: input, shape index: {}]
  %s18 = inlined_call_operand.vmem [shape: f32[1,128], index: 18, kind: input, shape index: {}]
  %s19 = inlined_call_operand.hbm [shape: f32[2,8,128], index: 19, kind: output, shape index: {}]
  %s20 = sld [smem:[#allocation0]]
  $region118: #{tpu_custom_call.1} parent=0
    _
  %s22 = ssub.s32 1, %s20
  %s23 = scalar_select 0, %s22, %s20
  $region1: #{tpu_custom_call.1} parent=0
    #allocation2 [shape = 'u8[8192]{0}', space=vmem, size = 0x2000, scoped, tag = 'input window, operand 0, single buffered']
    #allocation3 [shape = 's32[1]{0}', space=sflag, size = 0x4, scoped, tag = 'scoped memory for tpu_custom_call.1']
    #allocation4 [shape = 's32[1]{0}', space=sflag, size = 0x4, scoped, tag = 'scoped memory for tpu_custom_call.1']
    #allocation5 [shape = 'u8[4096]{0}', space=vmem, size = 0x1000, scoped, tag = 'input window, operand 2, single buffered']
    #allocation6 [shape = 's32[1]{0}', space=sflag, size = 0x4, scoped, tag = 'scoped memory for tpu_custom_call.1']
    #allocation7 [shape = 'u8[32768]{0}', space=vmem, size = 0x8000, scoped, tag = 'input window, operand 3, single buffered']
    #allocation8 [shape = 'u8[32768]{0}', space=vmem, size = 0x8000, scoped, tag = 'input window, operand 5, single buffered']
    #allocation9 [shape = 's32[1]{0}', space=sflag, size = 0x4, scoped, tag = 'scoped memory for tpu_custom_call.1']
    #allocation10 [shape = 'u8[32768]{0}', space=vmem, size = 0x8000, scoped, tag = 'input window, operand 7, single buffered']
    #allocation11 [shape = 'u8[32768]{0}', space=vmem, size = 0x8000, scoped, tag = 'input window, operand 9, single buffered']
    #allocation12 [shape = 's32[1]{0}', space=sflag, size = 0x4, scoped, tag = 'scoped memory for tpu_custom_call.1']
    #allocation13 [shape = 'u8[32768]{0}', space=vmem, size = 0x8000, scoped, tag = 'input window, operand 13, single buffered']
    #allocation14 [shape = 'u8[32768]{0}', space=vmem, size = 0x8000, scoped, tag = 'input window, operand 15, single buffered']
    #allocation15 [shape = 's32[1]{0}', space=sflag, size = 0x4, scoped, tag = 'scoped memory for tpu_custom_call.1']
    #allocation16 [shape = 'u8[8192]{0}', space=vmem, size = 0x2000, scoped, tag = 'output window, operand 0, single buffered']
    %24 = vsyncpa [#allocation3], 0
    %25 = vsyncpa [#allocation6], 0
    %26 = vsyncpa [#allocation9], 0
    %27 = vsyncpa [#allocation12], 0
    %28 = vsyncpa [#allocation15], 0
    %29 = vsyncpa [#allocation4], 0
    // Predicated region
    $region2: #{tpu_custom_call.1} parent=1 // pred_check
      _
    $region3: #{tpu_custom_call.1} parent=1 // pred_check_branch
      %31 = sbr.rel (0) target = $region5
    $region4: #{tpu_custom_call.1} parent=1 // pred_region
      %s33 = ssub.s32 256, 256
      %34 = vsyncadd [#allocation3], %s33
      %s35 = sshll.u32 [#allocation2], 4
      %s36 = int_to_ptr.vmem [resolvable:$true] %s35
      %41 = dma.hbm_to_vmem [thread:$0]  %s0, 256, %s36, [#allocation3], 128, 128, 8
    $region5: #{tpu_custom_call.1} parent=1 // pred_fallthru
      _
    // Predicated region
    $region6: #{tpu_custom_call.1} parent=1 // pred_check
      _
    $region7: #{tpu_custom_call.1} parent=1 // pred_check_branch
      %43 = sbr.rel (0) target = $region9
    $region8: #{tpu_custom_call.1} parent=1 // pred_region
      _
    $region9: #{tpu_custom_call.1} parent=1 // pred_fallthru
      _
    // Predicated region
    $region10: #{tpu_custom_call.1} parent=1 // pred_check
      _
    $region11: #{tpu_custom_call.1} parent=1 // pred_check_branch
      %45 = sbr.rel (0) target = $region13
    $region12: #{tpu_custom_call.1} parent=1 // pred_region
      %s47 = ssub.s32 128, 128
      %48 = vsyncadd [#allocation6], %s47
      %s50 = sshll.u32 [#allocation5], 4
      %s51 = int_to_ptr.vmem [resolvable:$true] %s50
      %53 = dma.hbm_to_vmem [thread:$0]  %s2, 128, %s51, [#allocation6]
    $region13: #{tpu_custom_call.1} parent=1 // pred_fallthru
      _
    // Predicated region
    $region14: #{tpu_custom_call.1} parent=1 // pred_check
      _
    $region15: #{tpu_custom_call.1} parent=1 // pred_check_branch
      %55 = sbr.rel (0) target = $region17
    $region16: #{tpu_custom_call.1} parent=1 // pred_region
      %s57 = ssub.s32 1024, 1024
      %58 = vsyncadd [#allocation6], %s57
      %s59 = sshll.u32 [#allocation7], 4
      %s60 = int_to_ptr.vmem [resolvable:$true] %s59
      %65 = dma.hbm_to_vmem [thread:$0]  %s3, 1024, %s60, [#allocation6], 64, 64, 4
    $region17: #{tpu_custom_call.1} parent=1 // pred_fallthru
      _
    // Predicated region
    $region18: #{tpu_custom_call.1} parent=1 // pred_check
      _
    $region19: #{tpu_custom_call.1} parent=1 // pred_check_branch
      %67 = sbr.rel (0) target = $region21
    $region20: #{tpu_custom_call.1} parent=1 // pred_region
      _
    $region21: #{tpu_custom_call.1} parent=1 // pred_fallthru
      _
    // Predicated region
    $region22: #{tpu_custom_call.1} parent=1 // pred_check
      _
    $region23: #{tpu_custom_call.1} parent=1 // pred_check_branch
      %69 = sbr.rel (0) target = $region25
    $region24: #{tpu_custom_call.1} parent=1 // pred_region
      %s71 = ssub.s32 1024, 1024
      %72 = vsyncadd [#allocation9], %s71
      %s73 = sshll.u32 [#allocation8], 4
      %s74 = int_to_ptr.vmem [resolvable:$true] %s73
      %79 = dma.hbm_to_vmem [thread:$0]  %s5, 1024, %s74, [#allocation9], 64, 64, 4
    $region25: #{tpu_custom_call.1} parent=1 // pred_fallthru
      _
    // Predicated region
    $region26: #{tpu_custom_call.1} parent=1 // pred_check
      _
    $region27: #{tpu_custom_call.1} parent=1 // pred_check_branch
      %81 = sbr.rel (0) target = $region29
    $region28: #{tpu_custom_call.1} parent=1 // pred_region
      _
    $region29: #{tpu_custom_call.1} parent=1 // pred_fallthru
      _
    // Predicated region
    $region30: #{tpu_custom_call.1} parent=1 // pred_check
      _
    $region31: #{tpu_custom_call.1} parent=1 // pred_check_branch
      %83 = sbr.rel (0) target = $region33
    $region32: #{tpu_custom_call.1} parent=1 // pred_region
      %s85 = ssub.s32 1024, 1024
      %86 = vsyncadd [#allocation9], %s85
      %s87 = sshll.u32 [#allocation10], 4
      %s88 = int_to_ptr.vmem [resolvable:$true] %s87
      %93 = dma.hbm_to_vmem [thread:$0]  %s7, 1024, %s88, [#allocation9], 64, 64, 4
    $region33: #{tpu_custom_call.1} parent=1 // pred_fallthru
      _
    // Predicated region
    $region34: #{tpu_custom_call.1} parent=1 // pred_check
      _
    $region35: #{tpu_custom_call.1} parent=1 // pred_check_branch
      %95 = sbr.rel (0) target = $region37
    $region36: #{tpu_custom_call.1} parent=1 // pred_region
      _
    $region37: #{tpu_custom_call.1} parent=1 // pred_fallthru
      _
    // Predicated region
    $region38: #{tpu_custom_call.1} parent=1 // pred_check
      _
    $region39: #{tpu_custom_call.1} parent=1 // pred_check_branch
      %97 = sbr.rel (0) target = $region41
    $region40: #{tpu_custom_call.1} parent=1 // pred_region
      %s99 = ssub.s32 1024, 1024
      %100 = vsyncadd [#allocation12], %s99
      %s101 = sshll.u32 [#allocation11], 4
      %s102 = int_to_ptr.vmem [resolvable:$true] %s101
      %107 = dma.hbm_to_vmem [thread:$0]  %s9, 1024, %s102, [#allocation12], 64, 64, 4
    $region41: #{tpu_custom_call.1} parent=1 // pred_fallthru
      _
    // Predicated region
    $region42: #{tpu_custom_call.1} parent=1 // pred_check
      _
    $region43: #{tpu_custom_call.1} parent=1 // pred_check_branch
      %109 = sbr.rel (0) target = $region45
    $region44: #{tpu_custom_call.1} parent=1 // pred_region
      _
    $region45: #{tpu_custom_call.1} parent=1 // pred_fallthru
      _
    // Predicated region
    $region46: #{tpu_custom_call.1} parent=1 // pred_check
      _
    $region47: #{tpu_custom_call.1} parent=1 // pred_check_branch
      %111 = sbr.rel (0) target = $region49
    $region48: #{tpu_custom_call.1} parent=1 // pred_region
      _
    $region49: #{tpu_custom_call.1} parent=1 // pred_fallthru
      _
    // Predicated region
    $region50: #{tpu_custom_call.1} parent=1 // pred_check
      _
    $region51: #{tpu_custom_call.1} parent=1 // pred_check_branch
      %113 = sbr.rel (0) target = $region53
    $region52: #{tpu_custom_call.1} parent=1 // pred_region
      _
    $region53: #{tpu_custom_call.1} parent=1 // pred_fallthru
      _
    // Predicated region
    $region54: #{tpu_custom_call.1} parent=1 // pred_check
      _
    $region55: #{tpu_custom_call.1} parent=1 // pred_check_branch
      %115 = sbr.rel (0) target = $region57
    $region56: #{tpu_custom_call.1} parent=1 // pred_region
      %s117 = ssub.s32 1024, 1024
      %118 = vsyncadd [#allocation12], %s117
      %s119 = sshll.u32 [#allocation13], 4
      %s120 = int_to_ptr.vmem [resolvable:$true] %s119
      %125 = dma.hbm_to_vmem [thread:$0]  %s13, 1024, %s120, [#allocation12], 64, 64, 4
    $region57: #{tpu_custom_call.1} parent=1 // pred_fallthru
      _
    // Predicated region
    $region58: #{tpu_custom_call.1} parent=1 // pred_check
      _
    $region59: #{tpu_custom_call.1} parent=1 // pred_check_branch
      %127 = sbr.rel (0) target = $region61
    $region60: #{tpu_custom_call.1} parent=1 // pred_region
      _
    $region61: #{tpu_custom_call.1} parent=1 // pred_fallthru
      _
    // Predicated region
    $region62: #{tpu_custom_call.1} parent=1 // pred_check
      _
    $region63: #{tpu_custom_call.1} parent=1 // pred_check_branch
      %129 = sbr.rel (0) target = $region65
    $region64: #{tpu_custom_call.1} parent=1 // pred_region
      %s131 = ssub.s32 1024, 1024
      %132 = vsyncadd [#allocation15], %s131
      %s133 = sshll.u32 [#allocation14], 4
      %s134 = int_to_ptr.vmem [resolvable:$true] %s133
      %139 = dma.hbm_to_vmem [thread:$0]  %s15, 1024, %s134, [#allocation15], 64, 64, 4
    $region65: #{tpu_custom_call.1} parent=1 // pred_fallthru
      _
    // Predicated region
    $region66: #{tpu_custom_call.1} parent=1 // pred_check
      _
    $region67: #{tpu_custom_call.1} parent=1 // pred_check_branch
      %141 = sbr.rel (0) target = $region69
    $region68: #{tpu_custom_call.1} parent=1 // pred_region
      _
    $region69: #{tpu_custom_call.1} parent=1 // pred_fallthru
      _
    // Predicated region
    $region70: #{tpu_custom_call.1} parent=1 // pred_check
      _
    $region71: #{tpu_custom_call.1} parent=1 // pred_check_branch
      %143 = sbr.rel (0) target = $region73
    $region72: #{tpu_custom_call.1} parent=1 // pred_region
      _
    $region73: #{tpu_custom_call.1} parent=1 // pred_fallthru
      _
    // Predicated region
    $region74: #{tpu_custom_call.1} parent=1 // pred_check
      _
    $region75: #{tpu_custom_call.1} parent=1 // pred_check_branch
      %145 = sbr.rel (0) target = $region77
    $region76: #{tpu_custom_call.1} parent=1 // pred_region
      _
    $region77: #{tpu_custom_call.1} parent=1 // pred_fallthru
      _
    // Predicated region
    $region78: #{tpu_custom_call.1} parent=1 // pred_check
      _
    $region79: #{tpu_custom_call.1} parent=1 // pred_check_branch
      %147 = sbr.rel (0) target = $region81
    $region80: #{tpu_custom_call.1} parent=1 // pred_region
      %148 = dma.done [#allocation3], 256
    $region81: #{tpu_custom_call.1} parent=1 // pred_fallthru
      _
    // Predicated region
    $region82: #{tpu_custom_call.1} parent=1 // pred_check
      _
    $region83: #{tpu_custom_call.1} parent=1 // pred_check_branch
      %150 = sbr.rel (0) target = $region85
    $region84: #{tpu_custom_call.1} parent=1 // pred_region
      %151 = dma.done [#allocation6], 128
    $region85: #{tpu_custom_call.1} parent=1 // pred_fallthru
      _
    // Predicated region
    $region86: #{tpu_custom_call.1} parent=1 // pred_check
      _
    $region87: #{tpu_custom_call.1} parent=1 // pred_check_branch
      %153 = sbr.rel (0) target = $region89
    $region88: #{tpu_custom_call.1} parent=1 // pred_region
      %154 = dma.done [#allocation6], 1024
    $region89: #{tpu_custom_call.1} parent=1 // pred_fallthru
      _
    // Predicated region
    $region90: #{tpu_custom_call.1} parent=1 // pred_check
      _
    $region91: #{tpu_custom_call.1} parent=1 // pred_check_branch
      %156 = sbr.rel (0) target = $region93
    $region92: #{tpu_custom_call.1} parent=1 // pred_region
      %157 = dma.done [#allocation9], 1024
    $region93: #{tpu_custom_call.1} parent=1 // pred_fallthru
      _
    // Predicated region
    $region94: #{tpu_custom_call.1} parent=1 // pred_check
      _
    $region95: #{tpu_custom_call.1} parent=1 // pred_check_branch
      %159 = sbr.rel (0) target = $region97
    $region96: #{tpu_custom_call.1} parent=1 // pred_region
      %160 = dma.done [#allocation9], 1024
    $region97: #{tpu_custom_call.1} parent=1 // pred_fallthru
      _
    // Predicated region
    $region98: #{tpu_custom_call.1} parent=1 // pred_check
      _
    $region99: #{tpu_custom_call.1} parent=1 // pred_check_branch
      %162 = sbr.rel (0) target = $region101
    $region100: #{tpu_custom_call.1} parent=1 // pred_region
      %163 = dma.done [#allocation12], 1024
    $region101: #{tpu_custom_call.1} parent=1 // pred_fallthru
      _
    // Predicated region
    $region102: #{tpu_custom_call.1} parent=1 // pred_check
      _
    $region103: #{tpu_custom_call.1} parent=1 // pred_check_branch
      %165 = sbr.rel (0) target = $region105
    $region104: #{tpu_custom_call.1} parent=1 // pred_region
      %166 = dma.done [#allocation12], 1024
    $region105: #{tpu_custom_call.1} parent=1 // pred_fallthru
      _
    // Predicated region
    $region106: #{tpu_custom_call.1} parent=1 // pred_check
      _
    $region107: #{tpu_custom_call.1} parent=1 // pred_check_branch
      %168 = sbr.rel (0) target = $region109
    $region108: #{tpu_custom_call.1} parent=1 // pred_region
      %169 = dma.done [#allocation15], 1024
    $region109: #{tpu_custom_call.1} parent=1 // pred_fallthru
      _
    %v171 = vlaneseq
    %v172 = vand.u32 %v171, 127
    %vm173 = vcmp.lt.s32.totalorder %v172, 32
    %v174 = vsel %vm173, 1, 0
    %v175 = vcvt.s32.f32 %v174
    %v176 = vld [vmem:[#allocation2] sm:$0xff]
    %v177 = vld [vmem:[#allocation2 + $0x8] sm:$0xff]
    %v178 = vld [vmem:[#allocation5] sm:$0xff]
    %v179 = vadd.f32 %v176, %v178
    %v180 = vadd.f32 %v177, %v178
    %v181 = vpack.c.bf16 %v180, %v179
    %v182 = vld [vmem:[#allocation7] sm:$0xf]
    %v183 = vld [vmem:[#allocation7 + $0x4] sm:$0xf]
    %v184 = vld [vmem:[#allocation7 + $0x8] sm:$0xf]
    %v185 = vld [vmem:[#allocation7 + $0xc] sm:$0xf]
    %v186 = vld [vmem:[#allocation7 + $0x10] sm:$0xf]
    %v187 = vld [vmem:[#allocation7 + $0x14] sm:$0xf]
    %v188 = vld [vmem:[#allocation7 + $0x18] sm:$0xf]
    %v189 = vld [vmem:[#allocation7 + $0x1c] sm:$0xf]
    %v190 = vld [vmem:[#allocation7 + $0x20] sm:$0xf]
    %v191 = vld [vmem:[#allocation7 + $0x24] sm:$0xf]
    %v192 = vld [vmem:[#allocation7 + $0x28] sm:$0xf]
    %v193 = vld [vmem:[#allocation7 + $0x2c] sm:$0xf]
    %v194 = vld [vmem:[#allocation7 + $0x30] sm:$0xf]
    %v195 = vld [vmem:[#allocation7 + $0x34] sm:$0xf]
    %v196 = vld [vmem:[#allocation7 + $0x38] sm:$0xf]
    %v197 = vld [vmem:[#allocation7 + $0x3c] sm:$0xf]
    %v198 = vld [vmem:[%s4] sm:$0x1]
    %v200 = vlaneseq
    %v201 = vshrl.u32 %v200, 7
    %v202 = vsub.s32 0, %v201
    %v203 = vrot.slane %v198, %v202
    %v221 = vunpack.c.l.b16 %v182
    %v222 = vunpack.c.l.b16 %v183
    %v223 = vunpack.c.l.b16 %v184
    %v224 = vunpack.c.l.b16 %v185
    %v225 = vunpack.c.l.b16 %v186
    %v226 = vunpack.c.l.b16 %v187
    %v227 = vunpack.c.l.b16 %v188
    %v228 = vunpack.c.l.b16 %v189
    %v229 = vunpack.c.l.b16 %v190
    %v230 = vunpack.c.l.b16 %v191
    %v231 = vunpack.c.l.b16 %v192
    %v232 = vunpack.c.l.b16 %v193
    %v233 = vunpack.c.l.b16 %v194
    %v234 = vunpack.c.l.b16 %v195
    %v235 = vunpack.c.l.b16 %v196
    %v236 = vunpack.c.l.b16 %v197
    %v237 = vpack.c.b16 %v222, %v221
    %v238 = vpack.c.b16 %v224, %v223
    %v239 = vpack.c.b16 %v226, %v225
    %v240 = vpack.c.b16 %v228, %v227
    %v241 = vpack.c.b16 %v230, %v229
    %v242 = vpack.c.b16 %v232, %v231
    %v243 = vpack.c.b16 %v234, %v233
    %v244 = vpack.c.b16 %v236, %v235
    %253 = vmatprep.subr.bf16.mxu0 0
    %254 = vmatpush1.bf16.msra.mxu0 %v237
    %255 = vmatprep.subr.bf16.mxu0 0
    %256 = vmatpush1.bf16.msra.mxu0 %v238
    %257 = vmatprep.subr.bf16.mxu0 0
    %258 = vmatpush1.bf16.msra.mxu0 %v239
    %259 = vmatprep.subr.bf16.mxu0 0
    %260 = vmatpush1.bf16.msra.mxu0 %v240
    %261 = vmatprep.subr.bf16.mxu0 0
    %262 = vmatpush1.bf16.msra.mxu0 %v241
    %263 = vmatprep.subr.bf16.mxu0 0
    %264 = vmatpush1.bf16.msra.mxu0 %v242
    %265 = vmatprep.subr.bf16.mxu0 0
    %266 = vmatpush1.bf16.msra.mxu0 %v243
    %267 = vmatprep.subr.bf16.mxu0 0
    %268 = vmatpush1.bf16.msra.mxu0 %v244
    %269 = vmatprep.subr.bf16.mxu0 0
    %270 = vmatpush1.bf16.msra.mxu0 0
    %271 = vmatprep.subr.bf16.mxu0 0
    %272 = vmatpush1.bf16.msra.mxu0 0
    %273 = vmatprep.subr.bf16.mxu0 0
    %274 = vmatpush1.bf16.msra.mxu0 0
    %275 = vmatprep.subr.bf16.mxu0 0
    %276 = vmatpush1.bf16.msra.mxu0 0
    %277 = vmatprep.subr.bf16.mxu0 0
    %278 = vmatpush1.bf16.msra.mxu0 0
    %279 = vmatprep.subr.bf16.mxu0 0
    %280 = vmatpush1.bf16.msra.mxu0 0
    %281 = vmatprep.subr.bf16.mxu0 0
    %282 = vmatpush1.bf16.msra.mxu0 0
    %283 = vmatprep.subr.bf16.mxu0 0
    %284 = vmatpush1.bf16.msra.mxu0 0
    %285 = vmatprep.mubr.bf16.mxu0 0
    %286 = vmatmul.mubr.bf16.gmra.mrb[0].mxu0 %v181
    %v287 = vpop.f32.mrb[0].mxu0
    %v288 = vadd.f32 %v203, %v287
    %v289 = vpop.f32.mrb[0].mxu0
    %v290 = vpop.f32.mrb[0].mxu0
    %v291 = vadd.f32 %v203, %v290
    %v292 = vpop.f32.mrb[0].mxu0
    %293 = vdwg.mxu0
    %v294 = vpack.c.bf16 %v288, %v288
    %v295 = vpack.c.bf16 %v291, %v291
    %v296 = vld [vmem:[#allocation8] sm:$0xf]
    %v297 = vld [vmem:[#allocation8 + $0x4] sm:$0xf]
    %v298 = vld [vmem:[#allocation8 + $0x8] sm:$0xf]
    %v299 = vld [vmem:[#allocation8 + $0xc] sm:$0xf]
    %v300 = vld [vmem:[#allocation8 + $0x10] sm:$0xf]
    %v301 = vld [vmem:[#allocation8 + $0x14] sm:$0xf]
    %v302 = vld [vmem:[#allocation8 + $0x18] sm:$0xf]
    %v303 = vld [vmem:[#allocation8 + $0x1c] sm:$0xf]
    %v304 = vld [vmem:[#allocation8 + $0x20] sm:$0xf]
    %v305 = vld [vmem:[#allocation8 + $0x24] sm:$0xf]
    %v306 = vld [vmem:[#allocation8 + $0x28] sm:$0xf]
    %v307 = vld [vmem:[#allocation8 + $0x2c] sm:$0xf]
    %v308 = vld [vmem:[#allocation8 + $0x30] sm:$0xf]
    %v309 = vld [vmem:[#allocation8 + $0x34] sm:$0xf]
    %v310 = vld [vmem:[#allocation8 + $0x38] sm:$0xf]
    %v311 = vld [vmem:[#allocation8 + $0x3c] sm:$0xf]
    %v312 = vld [vmem:[%s6] sm:$0x1]
    %v314 = vlaneseq
    %v315 = vshrl.u32 %v314, 7
    %v316 = vsub.s32 0, %v315
    %v317 = vrot.slane %v312, %v316
    %v335 = vunpack.c.l.b16 %v296
    %v336 = vunpack.c.l.b16 %v297
    %v337 = vunpack.c.l.b16 %v298
    %v338 = vunpack.c.l.b16 %v299
    %v339 = vunpack.c.l.b16 %v300
    %v340 = vunpack.c.l.b16 %v301
    %v341 = vunpack.c.l.b16 %v302
    %v342 = vunpack.c.l.b16 %v303
    %v343 = vunpack.c.l.b16 %v304
    %v344 = vunpack.c.l.b16 %v305
    %v345 = vunpack.c.l.b16 %v306
    %v346 = vunpack.c.l.b16 %v307
    %v347 = vunpack.c.l.b16 %v308
    %v348 = vunpack.c.l.b16 %v309
    %v349 = vunpack.c.l.b16 %v310
    %v350 = vunpack.c.l.b16 %v311
    %v351 = vpack.c.b16 %v336, %v335
    %v352 = vpack.c.b16 %v338, %v337
    %v353 = vpack.c.b16 %v340, %v339
    %v354 = vpack.c.b16 %v342, %v341
    %v355 = vpack.c.b16 %v344, %v343
    %v356 = vpack.c.b16 %v346, %v345
    %v357 = vpack.c.b16 %v348, %v347
    %v358 = vpack.c.b16 %v350, %v349
    %367 = vmatprep.subr.bf16.mxu0 0
    %368 = vmatpush1.bf16.msra.mxu0 %v351
    %369 = vmatprep.subr.bf16.mxu0 0
    %370 = vmatpush1.bf16.msra.mxu0 %v352
    %371 = vmatprep.subr.bf16.mxu0 0
    %372 = vmatpush1.bf16.msra.mxu0 %v353
    %373 = vmatprep.subr.bf16.mxu0 0
    %374 = vmatpush1.bf16.msra.mxu0 %v354
    %375 = vmatprep.subr.bf16.mxu0 0
    %376 = vmatpush1.bf16.msra.mxu0 %v355
    %377 = vmatprep.subr.bf16.mxu0 0
    %378 = vmatpush1.bf16.msra.mxu0 %v356
    %379 = vmatprep.subr.bf16.mxu0 0
    %380 = vmatpush1.bf16.msra.mxu0 %v357
    %381 = vmatprep.subr.bf16.mxu0 0
    %382 = vmatpush1.bf16.msra.mxu0 %v358
    %383 = vmatprep.subr.bf16.mxu0 0
    %384 = vmatpush1.bf16.msra.mxu0 0
    %385 = vmatprep.subr.bf16.mxu0 0
    %386 = vmatpush1.bf16.msra.mxu0 0
    %387 = vmatprep.subr.bf16.mxu0 0
    %388 = vmatpush1.bf16.msra.mxu0 0
    %389 = vmatprep.subr.bf16.mxu0 0
    %390 = vmatpush1.bf16.msra.mxu0 0
    %391 = vmatprep.subr.bf16.mxu0 0
    %392 = vmatpush1.bf16.msra.mxu0 0
    %393 = vmatprep.subr.bf16.mxu0 0
    %394 = vmatpush1.bf16.msra.mxu0 0
    %395 = vmatprep.subr.bf16.mxu0 0
    %396 = vmatpush1.bf16.msra.mxu0 0
    %397 = vmatprep.subr.bf16.mxu0 0
    %398 = vmatpush1.bf16.msra.mxu0 0
    %399 = vmatprep.mubr.bf16.mxu0 0
    %400 = vmatmul.mubr.bf16.gmra.mrb[0].mxu0 %v181
    %v401 = vpop.f32.mrb[0].mxu0
    %v402 = vadd.f32 %v317, %v401
    %v403 = vpop.f32.mrb[0].mxu0
    %v404 = vpop.f32.mrb[0].mxu0
    %v405 = vadd.f32 %v317, %v404
    %v406 = vpop.f32.mrb[0].mxu0
    %407 = vdwg.mxu0
    %v408 = vpack.c.bf16 %v402, %v402
    %v409 = vpack.c.bf16 %v405, %v405
    %v410 = vld [vmem:[#allocation10] sm:$0xf]
    %v411 = vld [vmem:[#allocation10 + $0x4] sm:$0xf]
    %v412 = vld [vmem:[#allocation10 + $0x8] sm:$0xf]
    %v413 = vld [vmem:[#allocation10 + $0xc] sm:$0xf]
    %v414 = vld [vmem:[#allocation10 + $0x10] sm:$0xf]
    %v415 = vld [vmem:[#allocation10 + $0x14] sm:$0xf]
    %v416 = vld [vmem:[#allocation10 + $0x18] sm:$0xf]
    %v417 = vld [vmem:[#allocation10 + $0x1c] sm:$0xf]
    %v418 = vld [vmem:[#allocation10 + $0x20] sm:$0xf]
    %v419 = vld [vmem:[#allocation10 + $0x24] sm:$0xf]
    %v420 = vld [vmem:[#allocation10 + $0x28] sm:$0xf]
    %v421 = vld [vmem:[#allocation10 + $0x2c] sm:$0xf]
    %v422 = vld [vmem:[#allocation10 + $0x30] sm:$0xf]
    %v423 = vld [vmem:[#allocation10 + $0x34] sm:$0xf]
    %v424 = vld [vmem:[#allocation10 + $0x38] sm:$0xf]
    %v425 = vld [vmem:[#allocation10 + $0x3c] sm:$0xf]
    %v426 = vld [vmem:[%s8] sm:$0x1]
    %v428 = vlaneseq
    %v429 = vshrl.u32 %v428, 7
    %v430 = vsub.s32 0, %v429
    %v431 = vrot.slane %v426, %v430
    %v449 = vunpack.c.l.b16 %v410
    %v450 = vunpack.c.l.b16 %v411
    %v451 = vunpack.c.l.b16 %v412
    %v452 = vunpack.c.l.b16 %v413
    %v453 = vunpack.c.l.b16 %v414
    %v454 = vunpack.c.l.b16 %v415
    %v455 = vunpack.c.l.b16 %v416
    %v456 = vunpack.c.l.b16 %v417
    %v457 = vunpack.c.l.b16 %v418
    %v458 = vunpack.c.l.b16 %v419
    %v459 = vunpack.c.l.b16 %v420
    %v460 = vunpack.c.l.b16 %v421
    %v461 = vunpack.c.l.b16 %v422
    %v462 = vunpack.c.l.b16 %v423
    %v463 = vunpack.c.l.b16 %v424
    %v464 = vunpack.c.l.b16 %v425
    %v465 = vpack.c.b16 %v450, %v449
    %v466 = vpack.c.b16 %v452, %v451
    %v467 = vpack.c.b16 %v454, %v453
    %v468 = vpack.c.b16 %v456, %v455
    %v469 = vpack.c.b16 %v458, %v457
    %v470 = vpack.c.b16 %v460, %v459
    %v471 = vpack.c.b16 %v462, %v461
    %v472 = vpack.c.b16 %v464, %v463
    %481 = vmatprep.subr.bf16.mxu0 0
    %482 = vmatpush1.bf16.msra.mxu0 %v465
    %483 = vmatprep.subr.bf16.mxu0 0
    %484 = vmatpush1.bf16.msra.mxu0 %v466
    %485 = vmatprep.subr.bf16.mxu0 0
    %486 = vmatpush1.bf16.msra.mxu0 %v467
    %487 = vmatprep.subr.bf16.mxu0 0
    %488 = vmatpush1.bf16.msra.mxu0 %v468
    %489 = vmatprep.subr.bf16.mxu0 0
    %490 = vmatpush1.bf16.msra.mxu0 %v469
    %491 = vmatprep.subr.bf16.mxu0 0
    %492 = vmatpush1.bf16.msra.mxu0 %v470
    %493 = vmatprep.subr.bf16.mxu0 0
    %494 = vmatpush1.bf16.msra.mxu0 %v471
    %495 = vmatprep.subr.bf16.mxu0 0
    %496 = vmatpush1.bf16.msra.mxu0 %v472
    %497 = vmatprep.subr.bf16.mxu0 0
    %498 = vmatpush1.bf16.msra.mxu0 0
    %499 = vmatprep.subr.bf16.mxu0 0
    %500 = vmatpush1.bf16.msra.mxu0 0
    %501 = vmatprep.subr.bf16.mxu0 0
    %502 = vmatpush1.bf16.msra.mxu0 0
    %503 = vmatprep.subr.bf16.mxu0 0
    %504 = vmatpush1.bf16.msra.mxu0 0
    %505 = vmatprep.subr.bf16.mxu0 0
    %506 = vmatpush1.bf16.msra.mxu0 0
    %507 = vmatprep.subr.bf16.mxu0 0
    %508 = vmatpush1.bf16.msra.mxu0 0
    %509 = vmatprep.subr.bf16.mxu0 0
    %510 = vmatpush1.bf16.msra.mxu0 0
    %511 = vmatprep.subr.bf16.mxu0 0
    %512 = vmatpush1.bf16.msra.mxu0 0
    %513 = vmatprep.mubr.bf16.mxu0 0
    %514 = vmatmul.mubr.bf16.gmra.mrb[0].mxu0 %v181
    %v515 = vpop.f32.mrb[0].mxu0
    %v516 = vadd.f32 %v431, %v515
    %v517 = vpop.f32.mrb[0].mxu0
    %v518 = vpop.f32.mrb[0].mxu0
    %v519 = vadd.f32 %v431, %v518
    %v520 = vpop.f32.mrb[0].mxu0
    %521 = vdwg.mxu0
    %v522 = vpack.c.bf16 %v516, %v516
    %v523 = vpack.c.bf16 %v519, %v519
    %v524 = vld [vmem:[%s1] sm:$0x1]
    %v525 = vld [vmem:[%s1 + $0x1] sm:$0x1]
    %v526 = vsub.f32 %v524, 1.0
    %v527 = vsub.f32 %v525, 1.0
    %v528 = vmul.f32 %v526, 1e+09
    %v529 = vmul.f32 %v527, 1e+09
    %vm530 = vcmask 31744
    %v532 = vsel %vm530, %v294, 0
    %v535 = vsel %vm530, %v408, 0
    %537 = vmatprep.subr.bf16.mxu0 0
    %538 = vmatpush1.bf16.xpose.msra.mxu0 %v535
    %539 = vmatprep.subr.bf16.mxu0 0
    %540 = vmatpush1.bf16.xpose.msra.mxu0 0
    %541 = vmatprep.subr.bf16.mxu0 0
    %542 = vmatpush1.bf16.xpose.msra.mxu0 0
    %543 = vmatprep.subr.bf16.mxu0 0
    %544 = vmatpush1.bf16.xpose.msra.mxu0 0
    %545 = vmatprep.subr.bf16.mxu0 0
    %546 = vmatpush1.bf16.xpose.msra.mxu0 0
    %547 = vmatprep.subr.bf16.mxu0 0
    %548 = vmatpush1.bf16.xpose.msra.mxu0 0
    %549 = vmatprep.subr.bf16.mxu0 0
    %550 = vmatpush1.bf16.xpose.msra.mxu0 0
    %551 = vmatprep.subr.bf16.mxu0 0
    %552 = vmatpush1.bf16.xpose.msra.mxu0 0
    %553 = vmatprep.subr.bf16.mxu0 0
    %554 = vmatpush1.bf16.xpose.msra.mxu0 0
    %555 = vmatprep.subr.bf16.mxu0 0
    %556 = vmatpush1.bf16.xpose.msra.mxu0 0
    %557 = vmatprep.subr.bf16.mxu0 0
    %558 = vmatpush1.bf16.xpose.msra.mxu0 0
    %559 = vmatprep.subr.bf16.mxu0 0
    %560 = vmatpush1.bf16.xpose.msra.mxu0 0
    %561 = vmatprep.subr.bf16.mxu0 0
    %562 = vmatpush1.bf16.xpose.msra.mxu0 0
    %563 = vmatprep.subr.bf16.mxu0 0
    %564 = vmatpush1.bf16.xpose.msra.mxu0 0
    %565 = vmatprep.subr.bf16.mxu0 0
    %566 = vmatpush1.bf16.xpose.msra.mxu0 0
    %567 = vmatprep.subr.bf16.mxu0 0
    %568 = vmatpush1.bf16.xpose.msra.mxu0 0
    %569 = vmatprep.mubr.bf16.mxu0 0
    %570 = vmatmul.mubr.bf16.gmra.mrb[0].mxu0 %v532
    %v571 = vpop.f32.mrb[0].mxu0
    %v572 = vadd.f32 0.0, %v571
    %v573 = vpop.f32.mrb[0].mxu0
    %v574 = vpop.f32.mrb[0].mxu0
    %v575 = vpop.f32.mrb[0].mxu0
    %576 = vdwg.mxu0
    %v578 = vsel %vm530, %v295, 0
    %v581 = vsel %vm530, %v409, 0
    %583 = vmatprep.subr.bf16.mxu0 0
    %584 = vmatpush1.bf16.xpose.msra.mxu0 %v581
    %585 = vmatprep.subr.bf16.mxu0 0
    %586 = vmatpush1.bf16.xpose.msra.mxu0 0
    %587 = vmatprep.subr.bf16.mxu0 0
    %588 = vmatpush1.bf16.xpose.msra.mxu0 0
    %589 = vmatprep.subr.bf16.mxu0 0
    %590 = vmatpush1.bf16.xpose.msra.mxu0 0
    %591 = vmatprep.subr.bf16.mxu0 0
    %592 = vmatpush1.bf16.xpose.msra.mxu0 0
    %593 = vmatprep.subr.bf16.mxu0 0
    %594 = vmatpush1.bf16.xpose.msra.mxu0 0
    %595 = vmatprep.subr.bf16.mxu0 0
    %596 = vmatpush1.bf16.xpose.msra.mxu0 0
    %597 = vmatprep.subr.bf16.mxu0 0
    %598 = vmatpush1.bf16.xpose.msra.mxu0 0
    %599 = vmatprep.subr.bf16.mxu0 0
    %600 = vmatpush1.bf16.xpose.msra.mxu0 0
    %601 = vmatprep.subr.bf16.mxu0 0
    %602 = vmatpush1.bf16.xpose.msra.mxu0 0
    %603 = vmatprep.subr.bf16.mxu0 0
    %604 = vmatpush1.bf16.xpose.msra.mxu0 0
    %605 = vmatprep.subr.bf16.mxu0 0
    %606 = vmatpush1.bf16.xpose.msra.mxu0 0
    %607 = vmatprep.subr.bf16.mxu0 0
    %608 = vmatpush1.bf16.xpose.msra.mxu0 0
    %609 = vmatprep.subr.bf16.mxu0 0
    %610 = vmatpush1.bf16.xpose.msra.mxu0 0
    %611 = vmatprep.subr.bf16.mxu0 0
    %612 = vmatpush1.bf16.xpose.msra.mxu0 0
    %613 = vmatprep.subr.bf16.mxu0 0
    %614 = vmatpush1.bf16.xpose.msra.mxu0 0
    %615 = vmatprep.mubr.bf16.mxu0 0
    %616 = vmatmul.mubr.bf16.gmra.mrb[0].mxu0 %v578
    %v617 = vpop.f32.mrb[0].mxu0
    %v618 = vadd.f32 0.0, %v617
    %v619 = vpop.f32.mrb[0].mxu0
    %v620 = vpop.f32.mrb[0].mxu0
    %v621 = vpop.f32.mrb[0].mxu0
    %622 = vdwg.mxu0
    %v623 = vmul.f32 %v572, 0.5
    %v624 = vmul.f32 %v618, 0.5
    %v627 = vlaneseq
    %v628 = vshrl.u32 %v627, 7
    %v629 = vsub.s32 0, %v628
    %v630 = vrot.slane %v528, %v629
    %v631 = vlaneseq
    %v632 = vshrl.u32 %v631, 7
    %v633 = vsub.s32 0, %v632
    %v634 = vrot.slane %v529, %v633
    %v637 = vadd.f32 %v623, %v630
    %v638 = vadd.f32 %v624, %v634
    %vm639 = vcmask 64512
    %v640 = vsel %vm639, %v637, -inf
    %641 = vmax.xlane.f32.xlu0 %v640
    %v642 = vpop.xlane.xlu0 %641
    %v643 = vsel %vm639, %v638, -inf
    %644 = vmax.xlane.f32.xlu0 %v643
    %v645 = vpop.xlane.xlu0 %644
    %v646 = vsub.f32 %v637, %v642
    %v647 = vsub.f32 %v638, %v645
    %v648 = vmul.f32 %v646, 1.442695
    %v649 = vpow.pop %v648
    %v650 = vmul.f32 %v647, 1.442695
    %v651 = vpow.pop %v650
    %v652 = vsel %vm639, %v649, 0.0
    %653 = vadd.xlane.f32.xlu0 %v652
    %v654 = vpop.xlane.xlu0 %653
    %v655 = vsel %vm639, %v651, 0.0
    %656 = vadd.xlane.f32.xlu0 %v655
    %v657 = vpop.xlane.xlu0 %656
    %v658 = vrcp.pop %v654
    %v659 = vrcp.pop %v657
    %v660 = vmul.f32 %v649, %v658
    %v661 = vmul.f32 %v651, %v659
    %v662 = vpack.c.bf16 %v660, %v660
    %v663 = vpack.c.bf16 %v661, %v661
    %v665 = vsel %vm639, %v662, 0
    %vm667 = vcmask 1043456
    %v669 = vsel %vm667, %v522, 0
    %671 = vmatprep.subr.bf16.mxu0 0
    %672 = vmatpush1.bf16.msra.mxu0 %v669
    %673 = vmatprep.subr.bf16.mxu0 0
    %674 = vmatpush1.bf16.msra.mxu0 0
    %675 = vmatprep.subr.bf16.mxu0 0
    %676 = vmatpush1.bf16.msra.mxu0 0
    %677 = vmatprep.subr.bf16.mxu0 0
    %678 = vmatpush1.bf16.msra.mxu0 0
    %679 = vmatprep.subr.bf16.mxu0 0
    %680 = vmatpush1.bf16.msra.mxu0 0
    %681 = vmatprep.subr.bf16.mxu0 0
    %682 = vmatpush1.bf16.msra.mxu0 0
    %683 = vmatprep.subr.bf16.mxu0 0
    %684 = vmatpush1.bf16.msra.mxu0 0
    %685 = vmatprep.subr.bf16.mxu0 0
    %686 = vmatpush1.bf16.msra.mxu0 0
    %687 = vmatprep.subr.bf16.mxu0 0
    %688 = vmatpush1.bf16.msra.mxu0 0
    %689 = vmatprep.subr.bf16.mxu0 0
    %690 = vmatpush1.bf16.msra.mxu0 0
    %691 = vmatprep.subr.bf16.mxu0 0
    %692 = vmatpush1.bf16.msra.mxu0 0
    %693 = vmatprep.subr.bf16.mxu0 0
    %694 = vmatpush1.bf16.msra.mxu0 0
    %695 = vmatprep.subr.bf16.mxu0 0
    %696 = vmatpush1.bf16.msra.mxu0 0
    %697 = vmatprep.subr.bf16.mxu0 0
    %698 = vmatpush1.bf16.msra.mxu0 0
    %699 = vmatprep.subr.bf16.mxu0 0
    %700 = vmatpush1.bf16.msra.mxu0 0
    %701 = vmatprep.subr.bf16.mxu0 0
    %702 = vmatpush1.bf16.msra.mxu0 0
    %703 = vmatprep.mubr.bf16.mxu0 0
    %704 = vmatmul.mubr.bf16.gmra.mrb[0].mxu0 %v665
    %v705 = vpop.f32.mrb[0].mxu0
    %v706 = vadd.f32 0.0, %v705
    %v707 = vpop.f32.mrb[0].mxu0
    %v708 = vpop.f32.mrb[0].mxu0
    %v709 = vpop.f32.mrb[0].mxu0
    %710 = vdwg.mxu0
    %v712 = vsel %vm639, %v663, 0
    %v715 = vsel %vm667, %v523, 0
    %717 = vmatprep.subr.bf16.mxu0 0
    %718 = vmatpush1.bf16.msra.mxu0 %v715
    %719 = vmatprep.subr.bf16.mxu0 0
    %720 = vmatpush1.bf16.msra.mxu0 0
    %721 = vmatprep.subr.bf16.mxu0 0
    %722 = vmatpush1.bf16.msra.mxu0 0
    %723 = vmatprep.subr.bf16.mxu0 0
    %724 = vmatpush1.bf16.msra.mxu0 0
    %725 = vmatprep.subr.bf16.mxu0 0
    %726 = vmatpush1.bf16.msra.mxu0 0
    %727 = vmatprep.subr.bf16.mxu0 0
    %728 = vmatpush1.bf16.msra.mxu0 0
    %729 = vmatprep.subr.bf16.mxu0 0
    %730 = vmatpush1.bf16.msra.mxu0 0
    %731 = vmatprep.subr.bf16.mxu0 0
    %732 = vmatpush1.bf16.msra.mxu0 0
    %733 = vmatprep.subr.bf16.mxu0 0
    %734 = vmatpush1.bf16.msra.mxu0 0
    %735 = vmatprep.subr.bf16.mxu0 0
    %736 = vmatpush1.bf16.msra.mxu0 0
    %737 = vmatprep.subr.bf16.mxu0 0
    %738 = vmatpush1.bf16.msra.mxu0 0
    %739 = vmatprep.subr.bf16.mxu0 0
    %740 = vmatpush1.bf16.msra.mxu0 0
    %741 = vmatprep.subr.bf16.mxu0 0
    %742 = vmatpush1.bf16.msra.mxu0 0
    %743 = vmatprep.subr.bf16.mxu0 0
    %744 = vmatpush1.bf16.msra.mxu0 0
    %745 = vmatprep.subr.bf16.mxu0 0
    %746 = vmatpush1.bf16.msra.mxu0 0
    %747 = vmatprep.subr.bf16.mxu0 0
    %748 = vmatpush1.bf16.msra.mxu0 0
    %749 = vmatprep.mubr.bf16.mxu0 0
    %750 = vmatmul.mubr.bf16.gmra.mrb[0].mxu0 %v712
    %v751 = vpop.f32.mrb[0].mxu0
    %v752 = vadd.f32 0.0, %v751
    %v753 = vpop.f32.mrb[0].mxu0
    %v754 = vpop.f32.mrb[0].mxu0
    %v755 = vpop.f32.mrb[0].mxu0
    %756 = vdwg.mxu0
    %758 = vrot.lane.b32.xlu0 %v294, 124
    %v759 = vpop.permute.xlu0 %758
    %761 = vrot.lane.b32.xlu0 %v408, 124
    %v762 = vpop.permute.xlu0 %761
    %v764 = vsel %vm530, %v759, 0
    %v767 = vsel %vm530, %v762, 0
    %769 = vmatprep.subr.bf16.mxu0 0
    %770 = vmatpush1.bf16.xpose.msra.mxu0 %v767
    %771 = vmatprep.subr.bf16.mxu0 0
    %772 = vmatpush1.bf16.xpose.msra.mxu0 0
    %773 = vmatprep.subr.bf16.mxu0 0
    %774 = vmatpush1.bf16.xpose.msra.mxu0 0
    %775 = vmatprep.subr.bf16.mxu0 0
    %776 = vmatpush1.bf16.xpose.msra.mxu0 0
    %777 = vmatprep.subr.bf16.mxu0 0
    %778 = vmatpush1.bf16.xpose.msra.mxu0 0
    %779 = vmatprep.subr.bf16.mxu0 0
    %780 = vmatpush1.bf16.xpose.msra.mxu0 0
    %781 = vmatprep.subr.bf16.mxu0 0
    %782 = vmatpush1.bf16.xpose.msra.mxu0 0
    %783 = vmatprep.subr.bf16.mxu0 0
    %784 = vmatpush1.bf16.xpose.msra.mxu0 0
    %785 = vmatprep.subr.bf16.mxu0 0
    %786 = vmatpush1.bf16.xpose.msra.mxu0 0
    %787 = vmatprep.subr.bf16.mxu0 0
    %788 = vmatpush1.bf16.xpose.msra.mxu0 0
    %789 = vmatprep.subr.bf16.mxu0 0
    %790 = vmatpush1.bf16.xpose.msra.mxu0 0
    %791 = vmatprep.subr.bf16.mxu0 0
    %792 = vmatpush1.bf16.xpose.msra.mxu0 0
    %793 = vmatprep.subr.bf16.mxu0 0
    %794 = vmatpush1.bf16.xpose.msra.mxu0 0
    %795 = vmatprep.subr.bf16.mxu0 0
    %796 = vmatpush1.bf16.xpose.msra.mxu0 0
    %797 = vmatprep.subr.bf16.mxu0 0
    %798 = vmatpush1.bf16.xpose.msra.mxu0 0
    %799 = vmatprep.subr.bf16.mxu0 0
    %800 = vmatpush1.bf16.xpose.msra.mxu0 0
    %801 = vmatprep.mubr.bf16.mxu0 0
    %802 = vmatmul.mubr.bf16.gmra.mrb[0].mxu0 %v764
    %v803 = vpop.f32.mrb[0].mxu0
    %v804 = vadd.f32 0.0, %v803
    %v805 = vpop.f32.mrb[0].mxu0
    %v806 = vpop.f32.mrb[0].mxu0
    %v807 = vpop.f32.mrb[0].mxu0
    %808 = vdwg.mxu0
    %810 = vrot.lane.b32.xlu0 %v295, 124
    %v811 = vpop.permute.xlu0 %810
    %813 = vrot.lane.b32.xlu0 %v409, 124
    %v814 = vpop.permute.xlu0 %813
    %v816 = vsel %vm530, %v811, 0
    %v819 = vsel %vm530, %v814, 0
    %821 = vmatprep.subr.bf16.mxu0 0
    %822 = vmatpush1.bf16.xpose.msra.mxu0 %v819
    %823 = vmatprep.subr.bf16.mxu0 0
    %824 = vmatpush1.bf16.xpose.msra.mxu0 0
    %825 = vmatprep.subr.bf16.mxu0 0
    %826 = vmatpush1.bf16.xpose.msra.mxu0 0
    %827 = vmatprep.subr.bf16.mxu0 0
    %828 = vmatpush1.bf16.xpose.msra.mxu0 0
    %829 = vmatprep.subr.bf16.mxu0 0
    %830 = vmatpush1.bf16.xpose.msra.mxu0 0
    %831 = vmatprep.subr.bf16.mxu0 0
    %832 = vmatpush1.bf16.xpose.msra.mxu0 0
    %833 = vmatprep.subr.bf16.mxu0 0
    %834 = vmatpush1.bf16.xpose.msra.mxu0 0
    %835 = vmatprep.subr.bf16.mxu0 0
    %836 = vmatpush1.bf16.xpose.msra.mxu0 0
    %837 = vmatprep.subr.bf16.mxu0 0
    %838 = vmatpush1.bf16.xpose.msra.mxu0 0
    %839 = vmatprep.subr.bf16.mxu0 0
    %840 = vmatpush1.bf16.xpose.msra.mxu0 0
    %841 = vmatprep.subr.bf16.mxu0 0
    %842 = vmatpush1.bf16.xpose.msra.mxu0 0
    %843 = vmatprep.subr.bf16.mxu0 0
    %844 = vmatpush1.bf16.xpose.msra.mxu0 0
    %845 = vmatprep.subr.bf16.mxu0 0
    %846 = vmatpush1.bf16.xpose.msra.mxu0 0
    %847 = vmatprep.subr.bf16.mxu0 0
    %848 = vmatpush1.bf16.xpose.msra.mxu0 0
    %849 = vmatprep.subr.bf16.mxu0 0
    %850 = vmatpush1.bf16.xpose.msra.mxu0 0
    %851 = vmatprep.subr.bf16.mxu0 0
    %852 = vmatpush1.bf16.xpose.msra.mxu0 0
    %853 = vmatprep.mubr.bf16.mxu0 0
    %854 = vmatmul.mubr.bf16.gmra.mrb[0].mxu0 %v816
    %v855 = vpop.f32.mrb[0].mxu0
    %v856 = vadd.f32 0.0, %v855
    %v857 = vpop.f32.mrb[0].mxu0
    %v858 = vpop.f32.mrb[0].mxu0
    %v859 = vpop.f32.mrb[0].mxu0
    %860 = vdwg.mxu0
    %v861 = vmul.f32 %v804, 0.5
    %v862 = vmul.f32 %v856, 0.5
    %v863 = vadd.f32 %v861, %v630
    %v864 = vadd.f32 %v862, %v634
    %v865 = vsel %vm639, %v863, -inf
    %866 = vmax.xlane.f32.xlu0 %v865
    %v867 = vpop.xlane.xlu0 %866
    %v868 = vsel %vm639, %v864, -inf
    %869 = vmax.xlane.f32.xlu0 %v868
    %v870 = vpop.xlane.xlu0 %869
    %v871 = vsub.f32 %v863, %v867
    %v872 = vsub.f32 %v864, %v870
    %v873 = vmul.f32 %v871, 1.442695
    %v874 = vpow.pop %v873
    %v875 = vmul.f32 %v872, 1.442695
    %v876 = vpow.pop %v875
    %v877 = vsel %vm639, %v874, 0.0
    %878 = vadd.xlane.f32.xlu0 %v877
    %v879 = vpop.xlane.xlu0 %878
    %v880 = vsel %vm639, %v876, 0.0
    %881 = vadd.xlane.f32.xlu0 %v880
    %v882 = vpop.xlane.xlu0 %881
    %v883 = vrcp.pop %v879
    %v884 = vrcp.pop %v882
    %v885 = vmul.f32 %v874, %v883
    %v886 = vmul.f32 %v876, %v884
    %v887 = vpack.c.bf16 %v885, %v885
    %v888 = vpack.c.bf16 %v886, %v886
    %890 = vrot.lane.b32.xlu0 %v522, 124
    %v891 = vpop.permute.xlu0 %890
    %v893 = vsel %vm639, %v887, 0
    %v896 = vsel %vm667, %v891, 0
    %898 = vmatprep.subr.bf16.mxu0 0
    %899 = vmatpush1.bf16.msra.mxu0 %v896
    %900 = vmatprep.subr.bf16.mxu0 0
    %901 = vmatpush1.bf16.msra.mxu0 0
    %902 = vmatprep.subr.bf16.mxu0 0
    %903 = vmatpush1.bf16.msra.mxu0 0
    %904 = vmatprep.subr.bf16.mxu0 0
    %905 = vmatpush1.bf16.msra.mxu0 0
    %906 = vmatprep.subr.bf16.mxu0 0
    %907 = vmatpush1.bf16.msra.mxu0 0
    %908 = vmatprep.subr.bf16.mxu0 0
    %909 = vmatpush1.bf16.msra.mxu0 0
    %910 = vmatprep.subr.bf16.mxu0 0
    %911 = vmatpush1.bf16.msra.mxu0 0
    %912 = vmatprep.subr.bf16.mxu0 0
    %913 = vmatpush1.bf16.msra.mxu0 0
    %914 = vmatprep.subr.bf16.mxu0 0
    %915 = vmatpush1.bf16.msra.mxu0 0
    %916 = vmatprep.subr.bf16.mxu0 0
    %917 = vmatpush1.bf16.msra.mxu0 0
    %918 = vmatprep.subr.bf16.mxu0 0
    %919 = vmatpush1.bf16.msra.mxu0 0
    %920 = vmatprep.subr.bf16.mxu0 0
    %921 = vmatpush1.bf16.msra.mxu0 0
    %922 = vmatprep.subr.bf16.mxu0 0
    %923 = vmatpush1.bf16.msra.mxu0 0
    %924 = vmatprep.subr.bf16.mxu0 0
    %925 = vmatpush1.bf16.msra.mxu0 0
    %926 = vmatprep.subr.bf16.mxu0 0
    %927 = vmatpush1.bf16.msra.mxu0 0
    %928 = vmatprep.subr.bf16.mxu0 0
    %929 = vmatpush1.bf16.msra.mxu0 0
    %930 = vmatprep.mubr.bf16.mxu0 0
    %931 = vmatmul.mubr.bf16.gmra.mrb[0].mxu0 %v893
    %v932 = vpop.f32.mrb[0].mxu0
    %v933 = vadd.f32 0.0, %v932
    %v934 = vpop.f32.mrb[0].mxu0
    %v935 = vpop.f32.mrb[0].mxu0
    %v936 = vpop.f32.mrb[0].mxu0
    %937 = vdwg.mxu0
    %939 = vrot.lane.b32.xlu0 %v523, 124
    %v940 = vpop.permute.xlu0 %939
    %v942 = vsel %vm639, %v888, 0
    %v945 = vsel %vm667, %v940, 0
    %947 = vmatprep.subr.bf16.mxu0 0
    %948 = vmatpush1.bf16.msra.mxu0 %v945
    %949 = vmatprep.subr.bf16.mxu0 0
    %950 = vmatpush1.bf16.msra.mxu0 0
    %951 = vmatprep.subr.bf16.mxu0 0
    %952 = vmatpush1.bf16.msra.mxu0 0
    %953 = vmatprep.subr.bf16.mxu0 0
    %954 = vmatpush1.bf16.msra.mxu0 0
    %955 = vmatprep.subr.bf16.mxu0 0
    %956 = vmatpush1.bf16.msra.mxu0 0
    %957 = vmatprep.subr.bf16.mxu0 0
    %958 = vmatpush1.bf16.msra.mxu0 0
    %959 = vmatprep.subr.bf16.mxu0 0
    %960 = vmatpush1.bf16.msra.mxu0 0
    %961 = vmatprep.subr.bf16.mxu0 0
    %962 = vmatpush1.bf16.msra.mxu0 0
    %963 = vmatprep.subr.bf16.mxu0 0
    %964 = vmatpush1.bf16.msra.mxu0 0
    %965 = vmatprep.subr.bf16.mxu0 0
    %966 = vmatpush1.bf16.msra.mxu0 0
    %967 = vmatprep.subr.bf16.mxu0 0
    %968 = vmatpush1.bf16.msra.mxu0 0
    %969 = vmatprep.subr.bf16.mxu0 0
    %970 = vmatpush1.bf16.msra.mxu0 0
    %971 = vmatprep.subr.bf16.mxu0 0
    %972 = vmatpush1.bf16.msra.mxu0 0
    %973 = vmatprep.subr.bf16.mxu0 0
    %974 = vmatpush1.bf16.msra.mxu0 0
    %975 = vmatprep.subr.bf16.mxu0 0
    %976 = vmatpush1.bf16.msra.mxu0 0
    %977 = vmatprep.subr.bf16.mxu0 0
    %978 = vmatpush1.bf16.msra.mxu0 0
    %979 = vmatprep.mubr.bf16.mxu0 0
    %980 = vmatmul.mubr.bf16.gmra.mrb[0].mxu0 %v942
    %v981 = vpop.f32.mrb[0].mxu0
    %v982 = vadd.f32 0.0, %v981
    %v983 = vpop.f32.mrb[0].mxu0
    %v984 = vpop.f32.mrb[0].mxu0
    %v985 = vpop.f32.mrb[0].mxu0
    %986 = vdwg.mxu0
    %987 = vrot.lane.b32.xlu0 %v294, 120
    %v988 = vpop.permute.xlu0 %987
    %989 = vrot.lane.b32.xlu0 %v408, 120
    %v990 = vpop.permute.xlu0 %989
    %v992 = vsel %vm530, %v988, 0
    %v995 = vsel %vm530, %v990, 0
    %997 = vmatprep.subr.bf16.mxu0 0
    %998 = vmatpush1.bf16.xpose.msra.mxu0 %v995
    %999 = vmatprep.subr.bf16.mxu0 0
    %1000 = vmatpush1.bf16.xpose.msra.mxu0 0
    %1001 = vmatprep.subr.bf16.mxu0 0
    %1002 = vmatpush1.bf16.xpose.msra.mxu0 0
    %1003 = vmatprep.subr.bf16.mxu0 0
    %1004 = vmatpush1.bf16.xpose.msra.mxu0 0
    %1005 = vmatprep.subr.bf16.mxu0 0
    %1006 = vmatpush1.bf16.xpose.msra.mxu0 0
    %1007 = vmatprep.subr.bf16.mxu0 0
    %1008 = vmatpush1.bf16.xpose.msra.mxu0 0
    %1009 = vmatprep.subr.bf16.mxu0 0
    %1010 = vmatpush1.bf16.xpose.msra.mxu0 0
    %1011 = vmatprep.subr.bf16.mxu0 0
    %1012 = vmatpush1.bf16.xpose.msra.mxu0 0
    %1013 = vmatprep.subr.bf16.mxu0 0
    %1014 = vmatpush1.bf16.xpose.msra.mxu0 0
    %1015 = vmatprep.subr.bf16.mxu0 0
    %1016 = vmatpush1.bf16.xpose.msra.mxu0 0
    %1017 = vmatprep.subr.bf16.mxu0 0
    %1018 = vmatpush1.bf16.xpose.msra.mxu0 0
    %1019 = vmatprep.subr.bf16.mxu0 0
    %1020 = vmatpush1.bf16.xpose.msra.mxu0 0
    %1021 = vmatprep.subr.bf16.mxu0 0
    %1022 = vmatpush1.bf16.xpose.msra.mxu0 0
    %1023 = vmatprep.subr.bf16.mxu0 0
    %1024 = vmatpush1.bf16.xpose.msra.mxu0 0
    %1025 = vmatprep.subr.bf16.mxu0 0
    %1026 = vmatpush1.bf16.xpose.msra.mxu0 0
    %1027 = vmatprep.subr.bf16.mxu0 0
    %1028 = vmatpush1.bf16.xpose.msra.mxu0 0
    %1029 = vmatprep.mubr.bf16.mxu0 0
    %1030 = vmatmul.mubr.bf16.gmra.mrb[0].mxu0 %v992
    %v1031 = vpop.f32.mrb[0].mxu0
    %v1032 = vadd.f32 0.0, %v1031
    %v1033 = vpop.f32.mrb[0].mxu0
    %v1034 = vpop.f32.mrb[0].mxu0
    %v1035 = vpop.f32.mrb[0].mxu0
    %1036 = vdwg.mxu0
    %1037 = vrot.lane.b32.xlu0 %v295, 120
    %v1038 = vpop.permute.xlu0 %1037
    %1039 = vrot.lane.b32.xlu0 %v409, 120
    %v1040 = vpop.permute.xlu0 %1039
    %v1042 = vsel %vm530, %v1038, 0
    %v1045 = vsel %vm530, %v1040, 0
    %1047 = vmatprep.subr.bf16.mxu0 0
    %1048 = vmatpush1.bf16.xpose.msra.mxu0 %v1045
    %1049 = vmatprep.subr.bf16.mxu0 0
    %1050 = vmatpush1.bf16.xpose.msra.mxu0 0
    %1051 = vmatprep.subr.bf16.mxu0 0
    %1052 = vmatpush1.bf16.xpose.msra.mxu0 0
    %1053 = vmatprep.subr.bf16.mxu0 0
    %1054 = vmatpush1.bf16.xpose.msra.mxu0 0
    %1055 = vmatprep.subr.bf16.mxu0 0
    %1056 = vmatpush1.bf16.xpose.msra.mxu0 0
    %1057 = vmatprep.subr.bf16.mxu0 0
    %1058 = vmatpush1.bf16.xpose.msra.mxu0 0
    %1059 = vmatprep.subr.bf16.mxu0 0
    %1060 = vmatpush1.bf16.xpose.msra.mxu0 0
    %1061 = vmatprep.subr.bf16.mxu0 0
    %1062 = vmatpush1.bf16.xpose.msra.mxu0 0
    %1063 = vmatprep.subr.bf16.mxu0 0
    %1064 = vmatpush1.bf16.xpose.msra.mxu0 0
    %1065 = vmatprep.subr.bf16.mxu0 0
    %1066 = vmatpush1.bf16.xpose.msra.mxu0 0
    %1067 = vmatprep.subr.bf16.mxu0 0
    %1068 = vmatpush1.bf16.xpose.msra.mxu0 0
    %1069 = vmatprep.subr.bf16.mxu0 0
    %1070 = vmatpush1.bf16.xpose.msra.mxu0 0
    %1071 = vmatprep.subr.bf16.mxu0 0
    %1072 = vmatpush1.bf16.xpose.msra.mxu0 0
    %1073 = vmatprep.subr.bf16.mxu0 0
    %1074 = vmatpush1.bf16.xpose.msra.mxu0 0
    %1075 = vmatprep.subr.bf16.mxu0 0
    %1076 = vmatpush1.bf16.xpose.msra.mxu0 0
    %1077 = vmatprep.subr.bf16.mxu0 0
    %1078 = vmatpush1.bf16.xpose.msra.mxu0 0
    %1079 = vmatprep.mubr.bf16.mxu0 0
    %1080 = vmatmul.mubr.bf16.gmra.mrb[0].mxu0 %v1042
    %v1081 = vpop.f32.mrb[0].mxu0
    %v1082 = vadd.f32 0.0, %v1081
    %v1083 = vpop.f32.mrb[0].mxu0
    %v1084 = vpop.f32.mrb[0].mxu0
    %v1085 = vpop.f32.mrb[0].mxu0
    %1086 = vdwg.mxu0
    %v1087 = vmul.f32 %v1032, 0.5
    %v1088 = vmul.f32 %v1082, 0.5
    %v1089 = vadd.f32 %v1087, %v630
    %v1090 = vadd.f32 %v1088, %v634
    %v1091 = vsel %vm639, %v1089, -inf
    %1092 = vmax.xlane.f32.xlu0 %v1091
    %v1093 = vpop.xlane.xlu0 %1092
    %v1094 = vsel %vm639, %v1090, -inf
    %1095 = vmax.xlane.f32.xlu0 %v1094
    %v1096 = vpop.xlane.xlu0 %1095
    %v1097 = vsub.f32 %v1089, %v1093
    %v1098 = vsub.f32 %v1090, %v1096
    %v1099 = vmul.f32 %v1097, 1.442695
    %v1100 = vpow.pop %v1099
    %v1101 = vmul.f32 %v1098, 1.442695
    %v1102 = vpow.pop %v1101
    %v1103 = vsel %vm639, %v1100, 0.0
    %1104 = vadd.xlane.f32.xlu0 %v1103
    %v1105 = vpop.xlane.xlu0 %1104
    %v1106 = vsel %vm639, %v1102, 0.0
    %1107 = vadd.xlane.f32.xlu0 %v1106
    %v1108 = vpop.xlane.xlu0 %1107
    %v1109 = vrcp.pop %v1105
    %v1110 = vrcp.pop %v1108
    %v1111 = vmul.f32 %v1100, %v1109
    %v1112 = vmul.f32 %v1102, %v1110
    %v1113 = vpack.c.bf16 %v1111, %v1111
    %v1114 = vpack.c.bf16 %v1112, %v1112
    %1115 = vrot.lane.b32.xlu0 %v522, 120
    %v1116 = vpop.permute.xlu0 %1115
    %v1118 = vsel %vm639, %v1113, 0
    %v1121 = vsel %vm667, %v1116, 0
    %1123 = vmatprep.subr.bf16.mxu0 0
    %1124 = vmatpush1.bf16.msra.mxu0 %v1121
    %1125 = vmatprep.subr.bf16.mxu0 0
    %1126 = vmatpush1.bf16.msra.mxu0 0
    %1127 = vmatprep.subr.bf16.mxu0 0
    %1128 = vmatpush1.bf16.msra.mxu0 0
    %1129 = vmatprep.subr.bf16.mxu0 0
    %1130 = vmatpush1.bf16.msra.mxu0 0
    %1131 = vmatprep.subr.bf16.mxu0 0
    %1132 = vmatpush1.bf16.msra.mxu0 0
    %1133 = vmatprep.subr.bf16.mxu0 0
    %1134 = vmatpush1.bf16.msra.mxu0 0
    %1135 = vmatprep.subr.bf16.mxu0 0
    %1136 = vmatpush1.bf16.msra.mxu0 0
    %1137 = vmatprep.subr.bf16.mxu0 0
    %1138 = vmatpush1.bf16.msra.mxu0 0
    %1139 = vmatprep.subr.bf16.mxu0 0
    %1140 = vmatpush1.bf16.msra.mxu0 0
    %1141 = vmatprep.subr.bf16.mxu0 0
    %1142 = vmatpush1.bf16.msra.mxu0 0
    %1143 = vmatprep.subr.bf16.mxu0 0
    %1144 = vmatpush1.bf16.msra.mxu0 0
    %1145 = vmatprep.subr.bf16.mxu0 0
    %1146 = vmatpush1.bf16.msra.mxu0 0
    %1147 = vmatprep.subr.bf16.mxu0 0
    %1148 = vmatpush1.bf16.msra.mxu0 0
    %1149 = vmatprep.subr.bf16.mxu0 0
    %1150 = vmatpush1.bf16.msra.mxu0 0
    %1151 = vmatprep.subr.bf16.mxu0 0
    %1152 = vmatpush1.bf16.msra.mxu0 0
    %1153 = vmatprep.subr.bf16.mxu0 0
    %1154 = vmatpush1.bf16.msra.mxu0 0
    %1155 = vmatprep.mubr.bf16.mxu0 0
    %1156 = vmatmul.mubr.bf16.gmra.mrb[0].mxu0 %v1118
    %v1157 = vpop.f32.mrb[0].mxu0
    %v1158 = vadd.f32 0.0, %v1157
    %v1159 = vpop.f32.mrb[0].mxu0
    %v1160 = vpop.f32.mrb[0].mxu0
    %v1161 = vpop.f32.mrb[0].mxu0
    %1162 = vdwg.mxu0
    %1163 = vrot.lane.b32.xlu0 %v523, 120
    %v1164 = vpop.permute.xlu0 %1163
    %v1166 = vsel %vm639, %v1114, 0
    %v1169 = vsel %vm667, %v1164, 0
    %1171 = vmatprep.subr.bf16.mxu0 0
    %1172 = vmatpush1.bf16.msra.mxu0 %v1169
    %1173 = vmatprep.subr.bf16.mxu0 0
    %1174 = vmatpush1.bf16.msra.mxu0 0
    %1175 = vmatprep.subr.bf16.mxu0 0
    %1176 = vmatpush1.bf16.msra.mxu0 0
    %1177 = vmatprep.subr.bf16.mxu0 0
    %1178 = vmatpush1.bf16.msra.mxu0 0
    %1179 = vmatprep.subr.bf16.mxu0 0
    %1180 = vmatpush1.bf16.msra.mxu0 0
    %1181 = vmatprep.subr.bf16.mxu0 0
    %1182 = vmatpush1.bf16.msra.mxu0 0
    %1183 = vmatprep.subr.bf16.mxu0 0
    %1184 = vmatpush1.bf16.msra.mxu0 0
    %1185 = vmatprep.subr.bf16.mxu0 0
    %1186 = vmatpush1.bf16.msra.mxu0 0
    %1187 = vmatprep.subr.bf16.mxu0 0
    %1188 = vmatpush1.bf16.msra.mxu0 0
    %1189 = vmatprep.subr.bf16.mxu0 0
    %1190 = vmatpush1.bf16.msra.mxu0 0
    %1191 = vmatprep.subr.bf16.mxu0 0
    %1192 = vmatpush1.bf16.msra.mxu0 0
    %1193 = vmatprep.subr.bf16.mxu0 0
    %1194 = vmatpush1.bf16.msra.mxu0 0
    %1195 = vmatprep.subr.bf16.mxu0 0
    %1196 = vmatpush1.bf16.msra.mxu0 0
    %1197 = vmatprep.subr.bf16.mxu0 0
    %1198 = vmatpush1.bf16.msra.mxu0 0
    %1199 = vmatprep.subr.bf16.mxu0 0
    %1200 = vmatpush1.bf16.msra.mxu0 0
    %1201 = vmatprep.subr.bf16.mxu0 0
    %1202 = vmatpush1.bf16.msra.mxu0 0
    %1203 = vmatprep.mubr.bf16.mxu0 0
    %1204 = vmatmul.mubr.bf16.gmra.mrb[0].mxu0 %v1166
    %v1205 = vpop.f32.mrb[0].mxu0
    %v1206 = vadd.f32 0.0, %v1205
    %v1207 = vpop.f32.mrb[0].mxu0
    %v1208 = vpop.f32.mrb[0].mxu0
    %v1209 = vpop.f32.mrb[0].mxu0
    %1210 = vdwg.mxu0
    %1211 = vrot.lane.b32.xlu0 %v294, 116
    %v1212 = vpop.permute.xlu0 %1211
    %1213 = vrot.lane.b32.xlu0 %v408, 116
    %v1214 = vpop.permute.xlu0 %1213
    %v1216 = vsel %vm530, %v1212, 0
    %v1219 = vsel %vm530, %v1214, 0
    %1221 = vmatprep.subr.bf16.mxu0 0
    %1222 = vmatpush1.bf16.xpose.msra.mxu0 %v1219
    %1223 = vmatprep.subr.bf16.mxu0 0
    %1224 = vmatpush1.bf16.xpose.msra.mxu0 0
    %1225 = vmatprep.subr.bf16.mxu0 0
    %1226 = vmatpush1.bf16.xpose.msra.mxu0 0
    %1227 = vmatprep.subr.bf16.mxu0 0
    %1228 = vmatpush1.bf16.xpose.msra.mxu0 0
    %1229 = vmatprep.subr.bf16.mxu0 0
    %1230 = vmatpush1.bf16.xpose.msra.mxu0 0
    %1231 = vmatprep.subr.bf16.mxu0 0
    %1232 = vmatpush1.bf16.xpose.msra.mxu0 0
    %1233 = vmatprep.subr.bf16.mxu0 0
    %1234 = vmatpush1.bf16.xpose.msra.mxu0 0
    %1235 = vmatprep.subr.bf16.mxu0 0
    %1236 = vmatpush1.bf16.xpose.msra.mxu0 0
    %1237 = vmatprep.subr.bf16.mxu0 0
    %1238 = vmatpush1.bf16.xpose.msra.mxu0 0
    %1239 = vmatprep.subr.bf16.mxu0 0
    %1240 = vmatpush1.bf16.xpose.msra.mxu0 0
    %1241 = vmatprep.subr.bf16.mxu0 0
    %1242 = vmatpush1.bf16.xpose.msra.mxu0 0
    %1243 = vmatprep.subr.bf16.mxu0 0
    %1244 = vmatpush1.bf16.xpose.msra.mxu0 0
    %1245 = vmatprep.subr.bf16.mxu0 0
    %1246 = vmatpush1.bf16.xpose.msra.mxu0 0
    %1247 = vmatprep.subr.bf16.mxu0 0
    %1248 = vmatpush1.bf16.xpose.msra.mxu0 0
    %1249 = vmatprep.subr.bf16.mxu0 0
    %1250 = vmatpush1.bf16.xpose.msra.mxu0 0
    %1251 = vmatprep.subr.bf16.mxu0 0
    %1252 = vmatpush1.bf16.xpose.msra.mxu0 0
    %1253 = vmatprep.mubr.bf16.mxu0 0
    %1254 = vmatmul.mubr.bf16.gmra.mrb[0].mxu0 %v1216
    %v1255 = vpop.f32.mrb[0].mxu0
    %v1256 = vadd.f32 0.0, %v1255
    %v1257 = vpop.f32.mrb[0].mxu0
    %v1258 = vpop.f32.mrb[0].mxu0
    %v1259 = vpop.f32.mrb[0].mxu0
    %1260 = vdwg.mxu0
    %1261 = vrot.lane.b32.xlu0 %v295, 116
    %v1262 = vpop.permute.xlu0 %1261
    %1263 = vrot.lane.b32.xlu0 %v409, 116
    %v1264 = vpop.permute.xlu0 %1263
    %v1266 = vsel %vm530, %v1262, 0
    %v1269 = vsel %vm530, %v1264, 0
    %1271 = vmatprep.subr.bf16.mxu0 0
    %1272 = vmatpush1.bf16.xpose.msra.mxu0 %v1269
    %1273 = vmatprep.subr.bf16.mxu0 0
    %1274 = vmatpush1.bf16.xpose.msra.mxu0 0
    %1275 = vmatprep.subr.bf16.mxu0 0
    %1276 = vmatpush1.bf16.xpose.msra.mxu0 0
    %1277 = vmatprep.subr.bf16.mxu0 0
    %1278 = vmatpush1.bf16.xpose.msra.mxu0 0
    %1279 = vmatprep.subr.bf16.mxu0 0
    %1280 = vmatpush1.bf16.xpose.msra.mxu0 0
    %1281 = vmatprep.subr.bf16.mxu0 0
    %1282 = vmatpush1.bf16.xpose.msra.mxu0 0
    %1283 = vmatprep.subr.bf16.mxu0 0
    %1284 = vmatpush1.bf16.xpose.msra.mxu0 0
    %1285 = vmatprep.subr.bf16.mxu0 0
    %1286 = vmatpush1.bf16.xpose.msra.mxu0 0
    %1287 = vmatprep.subr.bf16.mxu0 0
    %1288 = vmatpush1.bf16.xpose.msra.mxu0 0
    %1289 = vmatprep.subr.bf16.mxu0 0
    %1290 = vmatpush1.bf16.xpose.msra.mxu0 0
    %1291 = vmatprep.subr.bf16.mxu0 0
    %1292 = vmatpush1.bf16.xpose.msra.mxu0 0
    %1293 = vmatprep.subr.bf16.mxu0 0
    %1294 = vmatpush1.bf16.xpose.msra.mxu0 0
    %1295 = vmatprep.subr.bf16.mxu0 0
    %1296 = vmatpush1.bf16.xpose.msra.mxu0 0
    %1297 = vmatprep.subr.bf16.mxu0 0
    %1298 = vmatpush1.bf16.xpose.msra.mxu0 0
    %1299 = vmatprep.subr.bf16.mxu0 0
    %1300 = vmatpush1.bf16.xpose.msra.mxu0 0
    %1301 = vmatprep.subr.bf16.mxu0 0
    %1302 = vmatpush1.bf16.xpose.msra.mxu0 0
    %1303 = vmatprep.mubr.bf16.mxu0 0
    %1304 = vmatmul.mubr.bf16.gmra.mrb[0].mxu0 %v1266
    %v1305 = vpop.f32.mrb[0].mxu0
    %v1306 = vadd.f32 0.0, %v1305
    %v1307 = vpop.f32.mrb[0].mxu0
    %v1308 = vpop.f32.mrb[0].mxu0
    %v1309 = vpop.f32.mrb[0].mxu0
    %1310 = vdwg.mxu0
    %v1311 = vmul.f32 %v1256, 0.5
    %v1312 = vmul.f32 %v1306, 0.5
    %v1313 = vadd.f32 %v1311, %v630
    %v1314 = vadd.f32 %v1312, %v634
    %v1315 = vsel %vm639, %v1313, -inf
    %1316 = vmax.xlane.f32.xlu0 %v1315
    %v1317 = vpop.xlane.xlu0 %1316
    %v1318 = vsel %vm639, %v1314, -inf
    %1319 = vmax.xlane.f32.xlu0 %v1318
    %v1320 = vpop.xlane.xlu0 %1319
    %v1321 = vsub.f32 %v1313, %v1317
    %v1322 = vsub.f32 %v1314, %v1320
    %v1323 = vmul.f32 %v1321, 1.442695
    %v1324 = vpow.pop %v1323
    %v1325 = vmul.f32 %v1322, 1.442695
    %v1326 = vpow.pop %v1325
    %v1327 = vsel %vm639, %v1324, 0.0
    %1328 = vadd.xlane.f32.xlu0 %v1327
    %v1329 = vpop.xlane.xlu0 %1328
    %v1330 = vsel %vm639, %v1326, 0.0
    %1331 = vadd.xlane.f32.xlu0 %v1330
    %v1332 = vpop.xlane.xlu0 %1331
    %v1333 = vrcp.pop %v1329
    %v1334 = vrcp.pop %v1332
    %v1335 = vmul.f32 %v1324, %v1333
    %v1336 = vmul.f32 %v1326, %v1334
    %v1337 = vpack.c.bf16 %v1335, %v1335
    %v1338 = vpack.c.bf16 %v1336, %v1336
    %1339 = vrot.lane.b32.xlu0 %v522, 116
    %v1340 = vpop.permute.xlu0 %1339
    %v1342 = vsel %vm639, %v1337, 0
    %v1345 = vsel %vm667, %v1340, 0
    %1347 = vmatprep.subr.bf16.mxu0 0
    %1348 = vmatpush1.bf16.msra.mxu0 %v1345
    %1349 = vmatprep.subr.bf16.mxu0 0
    %1350 = vmatpush1.bf16.msra.mxu0 0
    %1351 = vmatprep.subr.bf16.mxu0 0
    %1352 = vmatpush1.bf16.msra.mxu0 0
    %1353 = vmatprep.subr.bf16.mxu0 0
    %1354 = vmatpush1.bf16.msra.mxu0 0
    %1355 = vmatprep.subr.bf16.mxu0 0
    %1356 = vmatpush1.bf16.msra.mxu0 0
    %1357 = vmatprep.subr.bf16.mxu0 0
    %1358 = vmatpush1.bf16.msra.mxu0 0
    %1359 = vmatprep.subr.bf16.mxu0 0
    %1360 = vmatpush1.bf16.msra.mxu0 0
    %1361 = vmatprep.subr.bf16.mxu0 0
    %1362 = vmatpush1.bf16.msra.mxu0 0
    %1363 = vmatprep.subr.bf16.mxu0 0
    %1364 = vmatpush1.bf16.msra.mxu0 0
    %1365 = vmatprep.subr.bf16.mxu0 0
    %1366 = vmatpush1.bf16.msra.mxu0 0
    %1367 = vmatprep.subr.bf16.mxu0 0
    %1368 = vmatpush1.bf16.msra.mxu0 0
    %1369 = vmatprep.subr.bf16.mxu0 0
    %1370 = vmatpush1.bf16.msra.mxu0 0
    %1371 = vmatprep.subr.bf16.mxu0 0
    %1372 = vmatpush1.bf16.msra.mxu0 0
    %1373 = vmatprep.subr.bf16.mxu0 0
    %1374 = vmatpush1.bf16.msra.mxu0 0
    %1375 = vmatprep.subr.bf16.mxu0 0
    %1376 = vmatpush1.bf16.msra.mxu0 0
    %1377 = vmatprep.subr.bf16.mxu0 0
    %1378 = vmatpush1.bf16.msra.mxu0 0
    %1379 = vmatprep.mubr.bf16.mxu0 0
    %1380 = vmatmul.mubr.bf16.gmra.mrb[0].mxu0 %v1342
    %v1381 = vpop.f32.mrb[0].mxu0
    %v1382 = vadd.f32 0.0, %v1381
    %v1383 = vpop.f32.mrb[0].mxu0
    %v1384 = vpop.f32.mrb[0].mxu0
    %v1385 = vpop.f32.mrb[0].mxu0
    %1386 = vdwg.mxu0
    %1387 = vrot.lane.b32.xlu0 %v523, 116
    %v1388 = vpop.permute.xlu0 %1387
    %v1390 = vsel %vm639, %v1338, 0
    %v1393 = vsel %vm667, %v1388, 0
    %1395 = vmatprep.subr.bf16.mxu0 0
    %1396 = vmatpush1.bf16.msra.mxu0 %v1393
    %1397 = vmatprep.subr.bf16.mxu0 0
    %1398 = vmatpush1.bf16.msra.mxu0 0
    %1399 = vmatprep.subr.bf16.mxu0 0
    %1400 = vmatpush1.bf16.msra.mxu0 0
    %1401 = vmatprep.subr.bf16.mxu0 0
    %1402 = vmatpush1.bf16.msra.mxu0 0
    %1403 = vmatprep.subr.bf16.mxu0 0
    %1404 = vmatpush1.bf16.msra.mxu0 0
    %1405 = vmatprep.subr.bf16.mxu0 0
    %1406 = vmatpush1.bf16.msra.mxu0 0
    %1407 = vmatprep.subr.bf16.mxu0 0
    %1408 = vmatpush1.bf16.msra.mxu0 0
    %1409 = vmatprep.subr.bf16.mxu0 0
    %1410 = vmatpush1.bf16.msra.mxu0 0
    %1411 = vmatprep.subr.bf16.mxu0 0
    %1412 = vmatpush1.bf16.msra.mxu0 0
    %1413 = vmatprep.subr.bf16.mxu0 0
    %1414 = vmatpush1.bf16.msra.mxu0 0
    %1415 = vmatprep.subr.bf16.mxu0 0
    %1416 = vmatpush1.bf16.msra.mxu0 0
    %1417 = vmatprep.subr.bf16.mxu0 0
    %1418 = vmatpush1.bf16.msra.mxu0 0
    %1419 = vmatprep.subr.bf16.mxu0 0
    %1420 = vmatpush1.bf16.msra.mxu0 0
    %1421 = vmatprep.subr.bf16.mxu0 0
    %1422 = vmatpush1.bf16.msra.mxu0 0
    %1423 = vmatprep.subr.bf16.mxu0 0
    %1424 = vmatpush1.bf16.msra.mxu0 0
    %1425 = vmatprep.subr.bf16.mxu0 0
    %1426 = vmatpush1.bf16.msra.mxu0 0
    %1427 = vmatprep.mubr.bf16.mxu0 0
    %1428 = vmatmul.mubr.bf16.gmra.mrb[0].mxu0 %v1390
    %v1429 = vpop.f32.mrb[0].mxu0
    %v1430 = vadd.f32 0.0, %v1429
    %v1431 = vpop.f32.mrb[0].mxu0
    %v1432 = vpop.f32.mrb[0].mxu0
    %v1433 = vpop.f32.mrb[0].mxu0
    %1434 = vdwg.mxu0
    %1435 = vrot.lane.b32.xlu0 %v294, 112
    %v1436 = vpop.permute.xlu0 %1435
    %1437 = vrot.lane.b32.xlu0 %v408, 112
    %v1438 = vpop.permute.xlu0 %1437
    %v1440 = vsel %vm530, %v1436, 0
    %v1443 = vsel %vm530, %v1438, 0
    %1445 = vmatprep.subr.bf16.mxu0 0
    %1446 = vmatpush1.bf16.xpose.msra.mxu0 %v1443
    %1447 = vmatprep.subr.bf16.mxu0 0
    %1448 = vmatpush1.bf16.xpose.msra.mxu0 0
    %1449 = vmatprep.subr.bf16.mxu0 0
    %1450 = vmatpush1.bf16.xpose.msra.mxu0 0
    %1451 = vmatprep.subr.bf16.mxu0 0
    %1452 = vmatpush1.bf16.xpose.msra.mxu0 0
    %1453 = vmatprep.subr.bf16.mxu0 0
    %1454 = vmatpush1.bf16.xpose.msra.mxu0 0
    %1455 = vmatprep.subr.bf16.mxu0 0
    %1456 = vmatpush1.bf16.xpose.msra.mxu0 0
    %1457 = vmatprep.subr.bf16.mxu0 0
    %1458 = vmatpush1.bf16.xpose.msra.mxu0 0
    %1459 = vmatprep.subr.bf16.mxu0 0
    %1460 = vmatpush1.bf16.xpose.msra.mxu0 0
    %1461 = vmatprep.subr.bf16.mxu0 0
    %1462 = vmatpush1.bf16.xpose.msra.mxu0 0
    %1463 = vmatprep.subr.bf16.mxu0 0
    %1464 = vmatpush1.bf16.xpose.msra.mxu0 0
    %1465 = vmatprep.subr.bf16.mxu0 0
    %1466 = vmatpush1.bf16.xpose.msra.mxu0 0
    %1467 = vmatprep.subr.bf16.mxu0 0
    %1468 = vmatpush1.bf16.xpose.msra.mxu0 0
    %1469 = vmatprep.subr.bf16.mxu0 0
    %1470 = vmatpush1.bf16.xpose.msra.mxu0 0
    %1471 = vmatprep.subr.bf16.mxu0 0
    %1472 = vmatpush1.bf16.xpose.msra.mxu0 0
    %1473 = vmatprep.subr.bf16.mxu0 0
    %1474 = vmatpush1.bf16.xpose.msra.mxu0 0
    %1475 = vmatprep.subr.bf16.mxu0 0
    %1476 = vmatpush1.bf16.xpose.msra.mxu0 0
    %1477 = vmatprep.mubr.bf16.mxu0 0
    %1478 = vmatmul.mubr.bf16.gmra.mrb[0].mxu0 %v1440
    %v1479 = vpop.f32.mrb[0].mxu0
    %v1480 = vadd.f32 0.0, %v1479
    %v1481 = vpop.f32.mrb[0].mxu0
    %v1482 = vpop.f32.mrb[0].mxu0
    %v1483 = vpop.f32.mrb[0].mxu0
    %1484 = vdwg.mxu0
    %1485 = vrot.lane.b32.xlu0 %v295, 112
    %v1486 = vpop.permute.xlu0 %1485
    %1487 = vrot.lane.b32.xlu0 %v409, 112
    %v1488 = vpop.permute.xlu0 %1487
    %v1490 = vsel %vm530, %v1486, 0
    %v1493 = vsel %vm530, %v1488, 0
    %1495 = vmatprep.subr.bf16.mxu0 0
    %1496 = vmatpush1.bf16.xpose.msra.mxu0 %v1493
    %1497 = vmatprep.subr.bf16.mxu0 0
    %1498 = vmatpush1.bf16.xpose.msra.mxu0 0
    %1499 = vmatprep.subr.bf16.mxu0 0
    %1500 = vmatpush1.bf16.xpose.msra.mxu0 0
    %1501 = vmatprep.subr.bf16.mxu0 0
    %1502 = vmatpush1.bf16.xpose.msra.mxu0 0
    %1503 = vmatprep.subr.bf16.mxu0 0
    %1504 = vmatpush1.bf16.xpose.msra.mxu0 0
    %1505 = vmatprep.subr.bf16.mxu0 0
    %1506 = vmatpush1.bf16.xpose.msra.mxu0 0
    %1507 = vmatprep.subr.bf16.mxu0 0
    %1508 = vmatpush1.bf16.xpose.msra.mxu0 0
    %1509 = vmatprep.subr.bf16.mxu0 0
    %1510 = vmatpush1.bf16.xpose.msra.mxu0 0
    %1511 = vmatprep.subr.bf16.mxu0 0
    %1512 = vmatpush1.bf16.xpose.msra.mxu0 0
    %1513 = vmatprep.subr.bf16.mxu0 0
    %1514 = vmatpush1.bf16.xpose.msra.mxu0 0
    %1515 = vmatprep.subr.bf16.mxu0 0
    %1516 = vmatpush1.bf16.xpose.msra.mxu0 0
    %1517 = vmatprep.subr.bf16.mxu0 0
    %1518 = vmatpush1.bf16.xpose.msra.mxu0 0
    %1519 = vmatprep.subr.bf16.mxu0 0
    %1520 = vmatpush1.bf16.xpose.msra.mxu0 0
    %1521 = vmatprep.subr.bf16.mxu0 0
    %1522 = vmatpush1.bf16.xpose.msra.mxu0 0
    %1523 = vmatprep.subr.bf16.mxu0 0
    %1524 = vmatpush1.bf16.xpose.msra.mxu0 0
    %1525 = vmatprep.subr.bf16.mxu0 0
    %1526 = vmatpush1.bf16.xpose.msra.mxu0 0
    %1527 = vmatprep.mubr.bf16.mxu0 0
    %1528 = vmatmul.mubr.bf16.gmra.mrb[0].mxu0 %v1490
    %v1529 = vpop.f32.mrb[0].mxu0
    %v1530 = vadd.f32 0.0, %v1529
    %v1531 = vpop.f32.mrb[0].mxu0
    %v1532 = vpop.f32.mrb[0].mxu0
    %v1533 = vpop.f32.mrb[0].mxu0
    %1534 = vdwg.mxu0
    %v1535 = vmul.f32 %v1480, 0.5
    %v1536 = vmul.f32 %v1530, 0.5
    %v1537 = vadd.f32 %v1535, %v630
    %v1538 = vadd.f32 %v1536, %v634
    %v1539 = vsel %vm639, %v1537, -inf
    %1540 = vmax.xlane.f32.xlu0 %v1539
    %v1541 = vpop.xlane.xlu0 %1540
    %v1542 = vsel %vm639, %v1538, -inf
    %1543 = vmax.xlane.f32.xlu0 %v1542
    %v1544 = vpop.xlane.xlu0 %1543
    %v1545 = vsub.f32 %v1537, %v1541
    %v1546 = vsub.f32 %v1538, %v1544
    %v1547 = vmul.f32 %v1545, 1.442695
    %v1548 = vpow.pop %v1547
    %v1549 = vmul.f32 %v1546, 1.442695
    %v1550 = vpow.pop %v1549
    %v1551 = vsel %vm639, %v1548, 0.0
    %1552 = vadd.xlane.f32.xlu0 %v1551
    %v1553 = vpop.xlane.xlu0 %1552
    %v1554 = vsel %vm639, %v1550, 0.0
    %1555 = vadd.xlane.f32.xlu0 %v1554
    %v1556 = vpop.xlane.xlu0 %1555
    %v1557 = vrcp.pop %v1553
    %v1558 = vrcp.pop %v1556
    %v1559 = vmul.f32 %v1548, %v1557
    %v1560 = vmul.f32 %v1550, %v1558
    %v1561 = vpack.c.bf16 %v1559, %v1559
    %v1562 = vpack.c.bf16 %v1560, %v1560
    %1563 = vrot.lane.b32.xlu0 %v522, 112
    %v1564 = vpop.permute.xlu0 %1563
    %v1566 = vsel %vm639, %v1561, 0
    %v1569 = vsel %vm667, %v1564, 0
    %1571 = vmatprep.subr.bf16.mxu0 0
    %1572 = vmatpush1.bf16.msra.mxu0 %v1569
    %1573 = vmatprep.subr.bf16.mxu0 0
    %1574 = vmatpush1.bf16.msra.mxu0 0
    %1575 = vmatprep.subr.bf16.mxu0 0
    %1576 = vmatpush1.bf16.msra.mxu0 0
    %1577 = vmatprep.subr.bf16.mxu0 0
    %1578 = vmatpush1.bf16.msra.mxu0 0
    %1579 = vmatprep.subr.bf16.mxu0 0
    %1580 = vmatpush1.bf16.msra.mxu0 0
    %1581 = vmatprep.subr.bf16.mxu0 0
    %1582 = vmatpush1.bf16.msra.mxu0 0
    %1583 = vmatprep.subr.bf16.mxu0 0
    %1584 = vmatpush1.bf16.msra.mxu0 0
    %1585 = vmatprep.subr.bf16.mxu0 0
    %1586 = vmatpush1.bf16.msra.mxu0 0
    %1587 = vmatprep.subr.bf16.mxu0 0
    %1588 = vmatpush1.bf16.msra.mxu0 0
    %1589 = vmatprep.subr.bf16.mxu0 0
    %1590 = vmatpush1.bf16.msra.mxu0 0
    %1591 = vmatprep.subr.bf16.mxu0 0
    %1592 = vmatpush1.bf16.msra.mxu0 0
    %1593 = vmatprep.subr.bf16.mxu0 0
    %1594 = vmatpush1.bf16.msra.mxu0 0
    %1595 = vmatprep.subr.bf16.mxu0 0
    %1596 = vmatpush1.bf16.msra.mxu0 0
    %1597 = vmatprep.subr.bf16.mxu0 0
    %1598 = vmatpush1.bf16.msra.mxu0 0
    %1599 = vmatprep.subr.bf16.mxu0 0
    %1600 = vmatpush1.bf16.msra.mxu0 0
    %1601 = vmatprep.subr.bf16.mxu0 0
    %1602 = vmatpush1.bf16.msra.mxu0 0
    %1603 = vmatprep.mubr.bf16.mxu0 0
    %1604 = vmatmul.mubr.bf16.gmra.mrb[0].mxu0 %v1566
    %v1605 = vpop.f32.mrb[0].mxu0
    %v1606 = vadd.f32 0.0, %v1605
    %v1607 = vpop.f32.mrb[0].mxu0
    %v1608 = vpop.f32.mrb[0].mxu0
    %v1609 = vpop.f32.mrb[0].mxu0
    %1610 = vdwg.mxu0
    %1611 = vrot.lane.b32.xlu0 %v523, 112
    %v1612 = vpop.permute.xlu0 %1611
    %v1614 = vsel %vm639, %v1562, 0
    %v1617 = vsel %vm667, %v1612, 0
    %1619 = vmatprep.subr.bf16.mxu0 0
    %1620 = vmatpush1.bf16.msra.mxu0 %v1617
    %1621 = vmatprep.subr.bf16.mxu0 0
    %1622 = vmatpush1.bf16.msra.mxu0 0
    %1623 = vmatprep.subr.bf16.mxu0 0
    %1624 = vmatpush1.bf16.msra.mxu0 0
    %1625 = vmatprep.subr.bf16.mxu0 0
    %1626 = vmatpush1.bf16.msra.mxu0 0
    %1627 = vmatprep.subr.bf16.mxu0 0
    %1628 = vmatpush1.bf16.msra.mxu0 0
    %1629 = vmatprep.subr.bf16.mxu0 0
    %1630 = vmatpush1.bf16.msra.mxu0 0
    %1631 = vmatprep.subr.bf16.mxu0 0
    %1632 = vmatpush1.bf16.msra.mxu0 0
    %1633 = vmatprep.subr.bf16.mxu0 0
    %1634 = vmatpush1.bf16.msra.mxu0 0
    %1635 = vmatprep.subr.bf16.mxu0 0
    %1636 = vmatpush1.bf16.msra.mxu0 0
    %1637 = vmatprep.subr.bf16.mxu0 0
    %1638 = vmatpush1.bf16.msra.mxu0 0
    %1639 = vmatprep.subr.bf16.mxu0 0
    %1640 = vmatpush1.bf16.msra.mxu0 0
    %1641 = vmatprep.subr.bf16.mxu0 0
    %1642 = vmatpush1.bf16.msra.mxu0 0
    %1643 = vmatprep.subr.bf16.mxu0 0
    %1644 = vmatpush1.bf16.msra.mxu0 0
    %1645 = vmatprep.subr.bf16.mxu0 0
    %1646 = vmatpush1.bf16.msra.mxu0 0
    %1647 = vmatprep.subr.bf16.mxu0 0
    %1648 = vmatpush1.bf16.msra.mxu0 0
    %1649 = vmatprep.subr.bf16.mxu0 0
    %1650 = vmatpush1.bf16.msra.mxu0 0
    %1651 = vmatprep.mubr.bf16.mxu0 0
    %1652 = vmatmul.mubr.bf16.gmra.mrb[0].mxu0 %v1614
    %v1653 = vpop.f32.mrb[0].mxu0
    %v1654 = vadd.f32 0.0, %v1653
    %v1655 = vpop.f32.mrb[0].mxu0
    %v1656 = vpop.f32.mrb[0].mxu0
    %v1657 = vpop.f32.mrb[0].mxu0
    %1658 = vdwg.mxu0
    %1659 = vrot.lane.b32.xlu0 %v294, 108
    %v1660 = vpop.permute.xlu0 %1659
    %1661 = vrot.lane.b32.xlu0 %v408, 108
    %v1662 = vpop.permute.xlu0 %1661
    %v1664 = vsel %vm530, %v1660, 0
    %v1667 = vsel %vm530, %v1662, 0
    %1669 = vmatprep.subr.bf16.mxu0 0
    %1670 = vmatpush1.bf16.xpose.msra.mxu0 %v1667
    %1671 = vmatprep.subr.bf16.mxu0 0
    %1672 = vmatpush1.bf16.xpose.msra.mxu0 0
    %1673 = vmatprep.subr.bf16.mxu0 0
    %1674 = vmatpush1.bf16.xpose.msra.mxu0 0
    %1675 = vmatprep.subr.bf16.mxu0 0
    %1676 = vmatpush1.bf16.xpose.msra.mxu0 0
    %1677 = vmatprep.subr.bf16.mxu0 0
    %1678 = vmatpush1.bf16.xpose.msra.mxu0 0
    %1679 = vmatprep.subr.bf16.mxu0 0
    %1680 = vmatpush1.bf16.xpose.msra.mxu0 0
    %1681 = vmatprep.subr.bf16.mxu0 0
    %1682 = vmatpush1.bf16.xpose.msra.mxu0 0
    %1683 = vmatprep.subr.bf16.mxu0 0
    %1684 = vmatpush1.bf16.xpose.msra.mxu0 0
    %1685 = vmatprep.subr.bf16.mxu0 0
    %1686 = vmatpush1.bf16.xpose.msra.mxu0 0
    %1687 = vmatprep.subr.bf16.mxu0 0
    %1688 = vmatpush1.bf16.xpose.msra.mxu0 0
    %1689 = vmatprep.subr.bf16.mxu0 0
    %1690 = vmatpush1.bf16.xpose.msra.mxu0 0
    %1691 = vmatprep.subr.bf16.mxu0 0
    %1692 = vmatpush1.bf16.xpose.msra.mxu0 0
    %1693 = vmatprep.subr.bf16.mxu0 0
    %1694 = vmatpush1.bf16.xpose.msra.mxu0 0
    %1695 = vmatprep.subr.bf16.mxu0 0
    %1696 = vmatpush1.bf16.xpose.msra.mxu0 0
    %1697 = vmatprep.subr.bf16.mxu0 0
    %1698 = vmatpush1.bf16.xpose.msra.mxu0 0
    %1699 = vmatprep.subr.bf16.mxu0 0
    %1700 = vmatpush1.bf16.xpose.msra.mxu0 0
    %1701 = vmatprep.mubr.bf16.mxu0 0
    %1702 = vmatmul.mubr.bf16.gmra.mrb[0].mxu0 %v1664
    %v1703 = vpop.f32.mrb[0].mxu0
    %v1704 = vadd.f32 0.0, %v1703
    %v1705 = vpop.f32.mrb[0].mxu0
    %v1706 = vpop.f32.mrb[0].mxu0
    %v1707 = vpop.f32.mrb[0].mxu0
    %1708 = vdwg.mxu0
    %1709 = vrot.lane.b32.xlu0 %v295, 108
    %v1710 = vpop.permute.xlu0 %1709
    %1711 = vrot.lane.b32.xlu0 %v409, 108
    %v1712 = vpop.permute.xlu0 %1711
    %v1714 = vsel %vm530, %v1710, 0
    %v1717 = vsel %vm530, %v1712, 0
    %1719 = vmatprep.subr.bf16.mxu0 0
    %1720 = vmatpush1.bf16.xpose.msra.mxu0 %v1717
    %1721 = vmatprep.subr.bf16.mxu0 0
    %1722 = vmatpush1.bf16.xpose.msra.mxu0 0
    %1723 = vmatprep.subr.bf16.mxu0 0
    %1724 = vmatpush1.bf16.xpose.msra.mxu0 0
    %1725 = vmatprep.subr.bf16.mxu0 0
    %1726 = vmatpush1.bf16.xpose.msra.mxu0 0
    %1727 = vmatprep.subr.bf16.mxu0 0
    %1728 = vmatpush1.bf16.xpose.msra.mxu0 0
    %1729 = vmatprep.subr.bf16.mxu0 0
    %1730 = vmatpush1.bf16.xpose.msra.mxu0 0
    %1731 = vmatprep.subr.bf16.mxu0 0
    %1732 = vmatpush1.bf16.xpose.msra.mxu0 0
    %1733 = vmatprep.subr.bf16.mxu0 0
    %1734 = vmatpush1.bf16.xpose.msra.mxu0 0
    %1735 = vmatprep.subr.bf16.mxu0 0
    %1736 = vmatpush1.bf16.xpose.msra.mxu0 0
    %1737 = vmatprep.subr.bf16.mxu0 0
    %1738 = vmatpush1.bf16.xpose.msra.mxu0 0
    %1739 = vmatprep.subr.bf16.mxu0 0
    %1740 = vmatpush1.bf16.xpose.msra.mxu0 0
    %1741 = vmatprep.subr.bf16.mxu0 0
    %1742 = vmatpush1.bf16.xpose.msra.mxu0 0
    %1743 = vmatprep.subr.bf16.mxu0 0
    %1744 = vmatpush1.bf16.xpose.msra.mxu0 0
    %1745 = vmatprep.subr.bf16.mxu0 0
    %1746 = vmatpush1.bf16.xpose.msra.mxu0 0
    %1747 = vmatprep.subr.bf16.mxu0 0
    %1748 = vmatpush1.bf16.xpose.msra.mxu0 0
    %1749 = vmatprep.subr.bf16.mxu0 0
    %1750 = vmatpush1.bf16.xpose.msra.mxu0 0
    %1751 = vmatprep.mubr.bf16.mxu0 0
    %1752 = vmatmul.mubr.bf16.gmra.mrb[0].mxu0 %v1714
    %v1753 = vpop.f32.mrb[0].mxu0
    %v1754 = vadd.f32 0.0, %v1753
    %v1755 = vpop.f32.mrb[0].mxu0
    %v1756 = vpop.f32.mrb[0].mxu0
    %v1757 = vpop.f32.mrb[0].mxu0
    %1758 = vdwg.mxu0
    %v1759 = vmul.f32 %v1704, 0.5
    %v1760 = vmul.f32 %v1754, 0.5
    %v1761 = vadd.f32 %v1759, %v630
    %v1762 = vadd.f32 %v1760, %v634
    %v1763 = vsel %vm639, %v1761, -inf
    %1764 = vmax.xlane.f32.xlu0 %v1763
    %v1765 = vpop.xlane.xlu0 %1764
    %v1766 = vsel %vm639, %v1762, -inf
    %1767 = vmax.xlane.f32.xlu0 %v1766
    %v1768 = vpop.xlane.xlu0 %1767
    %v1769 = vsub.f32 %v1761, %v1765
    %v1770 = vsub.f32 %v1762, %v1768
    %v1771 = vmul.f32 %v1769, 1.442695
    %v1772 = vpow.pop %v1771
    %v1773 = vmul.f32 %v1770, 1.442695
    %v1774 = vpow.pop %v1773
    %v1775 = vsel %vm639, %v1772, 0.0
    %1776 = vadd.xlane.f32.xlu0 %v1775
    %v1777 = vpop.xlane.xlu0 %1776
    %v1778 = vsel %vm639, %v1774, 0.0
    %1779 = vadd.xlane.f32.xlu0 %v1778
    %v1780 = vpop.xlane.xlu0 %1779
    %v1781 = vrcp.pop %v1777
    %v1782 = vrcp.pop %v1780
    %v1783 = vmul.f32 %v1772, %v1781
    %v1784 = vmul.f32 %v1774, %v1782
    %v1785 = vpack.c.bf16 %v1783, %v1783
    %v1786 = vpack.c.bf16 %v1784, %v1784
    %1787 = vrot.lane.b32.xlu0 %v522, 108
    %v1788 = vpop.permute.xlu0 %1787
    %v1790 = vsel %vm639, %v1785, 0
    %v1793 = vsel %vm667, %v1788, 0
    %1795 = vmatprep.subr.bf16.mxu0 0
    %1796 = vmatpush1.bf16.msra.mxu0 %v1793
    %1797 = vmatprep.subr.bf16.mxu0 0
    %1798 = vmatpush1.bf16.msra.mxu0 0
    %1799 = vmatprep.subr.bf16.mxu0 0
    %1800 = vmatpush1.bf16.msra.mxu0 0
    %1801 = vmatprep.subr.bf16.mxu0 0
    %1802 = vmatpush1.bf16.msra.mxu0 0
    %1803 = vmatprep.subr.bf16.mxu0 0
    %1804 = vmatpush1.bf16.msra.mxu0 0
    %1805 = vmatprep.subr.bf16.mxu0 0
    %1806 = vmatpush1.bf16.msra.mxu0 0
    %1807 = vmatprep.subr.bf16.mxu0 0
    %1808 = vmatpush1.bf16.msra.mxu0 0
    %1809 = vmatprep.subr.bf16.mxu0 0
    %1810 = vmatpush1.bf16.msra.mxu0 0
    %1811 = vmatprep.subr.bf16.mxu0 0
    %1812 = vmatpush1.bf16.msra.mxu0 0
    %1813 = vmatprep.subr.bf16.mxu0 0
    %1814 = vmatpush1.bf16.msra.mxu0 0
    %1815 = vmatprep.subr.bf16.mxu0 0
    %1816 = vmatpush1.bf16.msra.mxu0 0
    %1817 = vmatprep.subr.bf16.mxu0 0
    %1818 = vmatpush1.bf16.msra.mxu0 0
    %1819 = vmatprep.subr.bf16.mxu0 0
    %1820 = vmatpush1.bf16.msra.mxu0 0
    %1821 = vmatprep.subr.bf16.mxu0 0
    %1822 = vmatpush1.bf16.msra.mxu0 0
    %1823 = vmatprep.subr.bf16.mxu0 0
    %1824 = vmatpush1.bf16.msra.mxu0 0
    %1825 = vmatprep.subr.bf16.mxu0 0
    %1826 = vmatpush1.bf16.msra.mxu0 0
    %1827 = vmatprep.mubr.bf16.mxu0 0
    %1828 = vmatmul.mubr.bf16.gmra.mrb[0].mxu0 %v1790
    %v1829 = vpop.f32.mrb[0].mxu0
    %v1830 = vadd.f32 0.0, %v1829
    %v1831 = vpop.f32.mrb[0].mxu0
    %v1832 = vpop.f32.mrb[0].mxu0
    %v1833 = vpop.f32.mrb[0].mxu0
    %1834 = vdwg.mxu0
    %1835 = vrot.lane.b32.xlu0 %v523, 108
    %v1836 = vpop.permute.xlu0 %1835
    %v1838 = vsel %vm639, %v1786, 0
    %v1841 = vsel %vm667, %v1836, 0
    %1843 = vmatprep.subr.bf16.mxu0 0
    %1844 = vmatpush1.bf16.msra.mxu0 %v1841
    %1845 = vmatprep.subr.bf16.mxu0 0
    %1846 = vmatpush1.bf16.msra.mxu0 0
    %1847 = vmatprep.subr.bf16.mxu0 0
    %1848 = vmatpush1.bf16.msra.mxu0 0
    %1849 = vmatprep.subr.bf16.mxu0 0
    %1850 = vmatpush1.bf16.msra.mxu0 0
    %1851 = vmatprep.subr.bf16.mxu0 0
    %1852 = vmatpush1.bf16.msra.mxu0 0
    %1853 = vmatprep.subr.bf16.mxu0 0
    %1854 = vmatpush1.bf16.msra.mxu0 0
    %1855 = vmatprep.subr.bf16.mxu0 0
    %1856 = vmatpush1.bf16.msra.mxu0 0
    %1857 = vmatprep.subr.bf16.mxu0 0
    %1858 = vmatpush1.bf16.msra.mxu0 0
    %1859 = vmatprep.subr.bf16.mxu0 0
    %1860 = vmatpush1.bf16.msra.mxu0 0
    %1861 = vmatprep.subr.bf16.mxu0 0
    %1862 = vmatpush1.bf16.msra.mxu0 0
    %1863 = vmatprep.subr.bf16.mxu0 0
    %1864 = vmatpush1.bf16.msra.mxu0 0
    %1865 = vmatprep.subr.bf16.mxu0 0
    %1866 = vmatpush1.bf16.msra.mxu0 0
    %1867 = vmatprep.subr.bf16.mxu0 0
    %1868 = vmatpush1.bf16.msra.mxu0 0
    %1869 = vmatprep.subr.bf16.mxu0 0
    %1870 = vmatpush1.bf16.msra.mxu0 0
    %1871 = vmatprep.subr.bf16.mxu0 0
    %1872 = vmatpush1.bf16.msra.mxu0 0
    %1873 = vmatprep.subr.bf16.mxu0 0
    %1874 = vmatpush1.bf16.msra.mxu0 0
    %1875 = vmatprep.mubr.bf16.mxu0 0
    %1876 = vmatmul.mubr.bf16.gmra.mrb[0].mxu0 %v1838
    %v1877 = vpop.f32.mrb[0].mxu0
    %v1878 = vadd.f32 0.0, %v1877
    %v1879 = vpop.f32.mrb[0].mxu0
    %v1880 = vpop.f32.mrb[0].mxu0
    %v1881 = vpop.f32.mrb[0].mxu0
    %1882 = vdwg.mxu0
    %1883 = vrot.lane.b32.xlu0 %v294, 104
    %v1884 = vpop.permute.xlu0 %1883
    %1885 = vrot.lane.b32.xlu0 %v408, 104
    %v1886 = vpop.permute.xlu0 %1885
    %v1888 = vsel %vm530, %v1884, 0
    %v1891 = vsel %vm530, %v1886, 0
    %1893 = vmatprep.subr.bf16.mxu0 0
    %1894 = vmatpush1.bf16.xpose.msra.mxu0 %v1891
    %1895 = vmatprep.subr.bf16.mxu0 0
    %1896 = vmatpush1.bf16.xpose.msra.mxu0 0
    %1897 = vmatprep.subr.bf16.mxu0 0
    %1898 = vmatpush1.bf16.xpose.msra.mxu0 0
    %1899 = vmatprep.subr.bf16.mxu0 0
    %1900 = vmatpush1.bf16.xpose.msra.mxu0 0
    %1901 = vmatprep.subr.bf16.mxu0 0
    %1902 = vmatpush1.bf16.xpose.msra.mxu0 0
    %1903 = vmatprep.subr.bf16.mxu0 0
    %1904 = vmatpush1.bf16.xpose.msra.mxu0 0
    %1905 = vmatprep.subr.bf16.mxu0 0
    %1906 = vmatpush1.bf16.xpose.msra.mxu0 0
    %1907 = vmatprep.subr.bf16.mxu0 0
    %1908 = vmatpush1.bf16.xpose.msra.mxu0 0
    %1909 = vmatprep.subr.bf16.mxu0 0
    %1910 = vmatpush1.bf16.xpose.msra.mxu0 0
    %1911 = vmatprep.subr.bf16.mxu0 0
    %1912 = vmatpush1.bf16.xpose.msra.mxu0 0
    %1913 = vmatprep.subr.bf16.mxu0 0
    %1914 = vmatpush1.bf16.xpose.msra.mxu0 0
    %1915 = vmatprep.subr.bf16.mxu0 0
    %1916 = vmatpush1.bf16.xpose.msra.mxu0 0
    %1917 = vmatprep.subr.bf16.mxu0 0
    %1918 = vmatpush1.bf16.xpose.msra.mxu0 0
    %1919 = vmatprep.subr.bf16.mxu0 0
    %1920 = vmatpush1.bf16.xpose.msra.mxu0 0
    %1921 = vmatprep.subr.bf16.mxu0 0
    %1922 = vmatpush1.bf16.xpose.msra.mxu0 0
    %1923 = vmatprep.subr.bf16.mxu0 0
    %1924 = vmatpush1.bf16.xpose.msra.mxu0 0
    %1925 = vmatprep.mubr.bf16.mxu0 0
    %1926 = vmatmul.mubr.bf16.gmra.mrb[0].mxu0 %v1888
    %v1927 = vpop.f32.mrb[0].mxu0
    %v1928 = vadd.f32 0.0, %v1927
    %v1929 = vpop.f32.mrb[0].mxu0
    %v1930 = vpop.f32.mrb[0].mxu0
    %v1931 = vpop.f32.mrb[0].mxu0
    %1932 = vdwg.mxu0
    %1933 = vrot.lane.b32.xlu0 %v295, 104
    %v1934 = vpop.permute.xlu0 %1933
    %1935 = vrot.lane.b32.xlu0 %v409, 104
    %v1936 = vpop.permute.xlu0 %1935
    %v1938 = vsel %vm530, %v1934, 0
    %v1941 = vsel %vm530, %v1936, 0
    %1943 = vmatprep.subr.bf16.mxu0 0
    %1944 = vmatpush1.bf16.xpose.msra.mxu0 %v1941
    %1945 = vmatprep.subr.bf16.mxu0 0
    %1946 = vmatpush1.bf16.xpose.msra.mxu0 0
    %1947 = vmatprep.subr.bf16.mxu0 0
    %1948 = vmatpush1.bf16.xpose.msra.mxu0 0
    %1949 = vmatprep.subr.bf16.mxu0 0
    %1950 = vmatpush1.bf16.xpose.msra.mxu0 0
    %1951 = vmatprep.subr.bf16.mxu0 0
    %1952 = vmatpush1.bf16.xpose.msra.mxu0 0
    %1953 = vmatprep.subr.bf16.mxu0 0
    %1954 = vmatpush1.bf16.xpose.msra.mxu0 0
    %1955 = vmatprep.subr.bf16.mxu0 0
    %1956 = vmatpush1.bf16.xpose.msra.mxu0 0
    %1957 = vmatprep.subr.bf16.mxu0 0
    %1958 = vmatpush1.bf16.xpose.msra.mxu0 0
    %1959 = vmatprep.subr.bf16.mxu0 0
    %1960 = vmatpush1.bf16.xpose.msra.mxu0 0
    %1961 = vmatprep.subr.bf16.mxu0 0
    %1962 = vmatpush1.bf16.xpose.msra.mxu0 0
    %1963 = vmatprep.subr.bf16.mxu0 0
    %1964 = vmatpush1.bf16.xpose.msra.mxu0 0
    %1965 = vmatprep.subr.bf16.mxu0 0
    %1966 = vmatpush1.bf16.xpose.msra.mxu0 0
    %1967 = vmatprep.subr.bf16.mxu0 0
    %1968 = vmatpush1.bf16.xpose.msra.mxu0 0
    %1969 = vmatprep.subr.bf16.mxu0 0
    %1970 = vmatpush1.bf16.xpose.msra.mxu0 0
    %1971 = vmatprep.subr.bf16.mxu0 0
    %1972 = vmatpush1.bf16.xpose.msra.mxu0 0
    %1973 = vmatprep.subr.bf16.mxu0 0
    %1974 = vmatpush1.bf16.xpose.msra.mxu0 0
    %1975 = vmatprep.mubr.bf16.mxu0 0
    %1976 = vmatmul.mubr.bf16.gmra.mrb[0].mxu0 %v1938
    %v1977 = vpop.f32.mrb[0].mxu0
    %v1978 = vadd.f32 0.0, %v1977
    %v1979 = vpop.f32.mrb[0].mxu0
    %v1980 = vpop.f32.mrb[0].mxu0
    %v1981 = vpop.f32.mrb[0].mxu0
    %1982 = vdwg.mxu0
    %v1983 = vmul.f32 %v1928, 0.5
    %v1984 = vmul.f32 %v1978, 0.5
    %v1985 = vadd.f32 %v1983, %v630
    %v1986 = vadd.f32 %v1984, %v634
    %v1987 = vsel %vm639, %v1985, -inf
    %1988 = vmax.xlane.f32.xlu0 %v1987
    %v1989 = vpop.xlane.xlu0 %1988
    %v1990 = vsel %vm639, %v1986, -inf
    %1991 = vmax.xlane.f32.xlu0 %v1990
    %v1992 = vpop.xlane.xlu0 %1991
    %v1993 = vsub.f32 %v1985, %v1989
    %v1994 = vsub.f32 %v1986, %v1992
    %v1995 = vmul.f32 %v1993, 1.442695
    %v1996 = vpow.pop %v1995
    %v1997 = vmul.f32 %v1994, 1.442695
    %v1998 = vpow.pop %v1997
    %v1999 = vsel %vm639, %v1996, 0.0
    %2000 = vadd.xlane.f32.xlu0 %v1999
    %v2001 = vpop.xlane.xlu0 %2000
    %v2002 = vsel %vm639, %v1998, 0.0
    %2003 = vadd.xlane.f32.xlu0 %v2002
    %v2004 = vpop.xlane.xlu0 %2003
    %v2005 = vrcp.pop %v2001
    %v2006 = vrcp.pop %v2004
    %v2007 = vmul.f32 %v1996, %v2005
    %v2008 = vmul.f32 %v1998, %v2006
    %v2009 = vpack.c.bf16 %v2007, %v2007
    %v2010 = vpack.c.bf16 %v2008, %v2008
    %2011 = vrot.lane.b32.xlu0 %v522, 104
    %v2012 = vpop.permute.xlu0 %2011
    %v2014 = vsel %vm639, %v2009, 0
    %v2017 = vsel %vm667, %v2012, 0
    %2019 = vmatprep.subr.bf16.mxu0 0
    %2020 = vmatpush1.bf16.msra.mxu0 %v2017
    %2021 = vmatprep.subr.bf16.mxu0 0
    %2022 = vmatpush1.bf16.msra.mxu0 0
    %2023 = vmatprep.subr.bf16.mxu0 0
    %2024 = vmatpush1.bf16.msra.mxu0 0
    %2025 = vmatprep.subr.bf16.mxu0 0
    %2026 = vmatpush1.bf16.msra.mxu0 0
    %2027 = vmatprep.subr.bf16.mxu0 0
    %2028 = vmatpush1.bf16.msra.mxu0 0
    %2029 = vmatprep.subr.bf16.mxu0 0
    %2030 = vmatpush1.bf16.msra.mxu0 0
    %2031 = vmatprep.subr.bf16.mxu0 0
    %2032 = vmatpush1.bf16.msra.mxu0 0
    %2033 = vmatprep.subr.bf16.mxu0 0
    %2034 = vmatpush1.bf16.msra.mxu0 0
    %2035 = vmatprep.subr.bf16.mxu0 0
    %2036 = vmatpush1.bf16.msra.mxu0 0
    %2037 = vmatprep.subr.bf16.mxu0 0
    %2038 = vmatpush1.bf16.msra.mxu0 0
    %2039 = vmatprep.subr.bf16.mxu0 0
    %2040 = vmatpush1.bf16.msra.mxu0 0
    %2041 = vmatprep.subr.bf16.mxu0 0
    %2042 = vmatpush1.bf16.msra.mxu0 0
    %2043 = vmatprep.subr.bf16.mxu0 0
    %2044 = vmatpush1.bf16.msra.mxu0 0
    %2045 = vmatprep.subr.bf16.mxu0 0
    %2046 = vmatpush1.bf16.msra.mxu0 0
    %2047 = vmatprep.subr.bf16.mxu0 0
    %2048 = vmatpush1.bf16.msra.mxu0 0
    %2049 = vmatprep.subr.bf16.mxu0 0
    %2050 = vmatpush1.bf16.msra.mxu0 0
    %2051 = vmatprep.mubr.bf16.mxu0 0
    %2052 = vmatmul.mubr.bf16.gmra.mrb[0].mxu0 %v2014
    %v2053 = vpop.f32.mrb[0].mxu0
    %v2054 = vadd.f32 0.0, %v2053
    %v2055 = vpop.f32.mrb[0].mxu0
    %v2056 = vpop.f32.mrb[0].mxu0
    %v2057 = vpop.f32.mrb[0].mxu0
    %2058 = vdwg.mxu0
    %2059 = vrot.lane.b32.xlu0 %v523, 104
    %v2060 = vpop.permute.xlu0 %2059
    %v2062 = vsel %vm639, %v2010, 0
    %v2065 = vsel %vm667, %v2060, 0
    %2067 = vmatprep.subr.bf16.mxu0 0
    %2068 = vmatpush1.bf16.msra.mxu0 %v2065
    %2069 = vmatprep.subr.bf16.mxu0 0
    %2070 = vmatpush1.bf16.msra.mxu0 0
    %2071 = vmatprep.subr.bf16.mxu0 0
    %2072 = vmatpush1.bf16.msra.mxu0 0
    %2073 = vmatprep.subr.bf16.mxu0 0
    %2074 = vmatpush1.bf16.msra.mxu0 0
    %2075 = vmatprep.subr.bf16.mxu0 0
    %2076 = vmatpush1.bf16.msra.mxu0 0
    %2077 = vmatprep.subr.bf16.mxu0 0
    %2078 = vmatpush1.bf16.msra.mxu0 0
    %2079 = vmatprep.subr.bf16.mxu0 0
    %2080 = vmatpush1.bf16.msra.mxu0 0
    %2081 = vmatprep.subr.bf16.mxu0 0
    %2082 = vmatpush1.bf16.msra.mxu0 0
    %2083 = vmatprep.subr.bf16.mxu0 0
    %2084 = vmatpush1.bf16.msra.mxu0 0
    %2085 = vmatprep.subr.bf16.mxu0 0
    %2086 = vmatpush1.bf16.msra.mxu0 0
    %2087 = vmatprep.subr.bf16.mxu0 0
    %2088 = vmatpush1.bf16.msra.mxu0 0
    %2089 = vmatprep.subr.bf16.mxu0 0
    %2090 = vmatpush1.bf16.msra.mxu0 0
    %2091 = vmatprep.subr.bf16.mxu0 0
    %2092 = vmatpush1.bf16.msra.mxu0 0
    %2093 = vmatprep.subr.bf16.mxu0 0
    %2094 = vmatpush1.bf16.msra.mxu0 0
    %2095 = vmatprep.subr.bf16.mxu0 0
    %2096 = vmatpush1.bf16.msra.mxu0 0
    %2097 = vmatprep.subr.bf16.mxu0 0
    %2098 = vmatpush1.bf16.msra.mxu0 0
    %2099 = vmatprep.mubr.bf16.mxu0 0
    %2100 = vmatmul.mubr.bf16.gmra.mrb[0].mxu0 %v2062
    %v2101 = vpop.f32.mrb[0].mxu0
    %v2102 = vadd.f32 0.0, %v2101
    %v2103 = vpop.f32.mrb[0].mxu0
    %v2104 = vpop.f32.mrb[0].mxu0
    %v2105 = vpop.f32.mrb[0].mxu0
    %2106 = vdwg.mxu0
    %2107 = vrot.lane.b32.xlu0 %v294, 100
    %v2108 = vpop.permute.xlu0 %2107
    %2109 = vrot.lane.b32.xlu0 %v408, 100
    %v2110 = vpop.permute.xlu0 %2109
    %v2112 = vsel %vm530, %v2108, 0
    %v2115 = vsel %vm530, %v2110, 0
    %2117 = vmatprep.subr.bf16.mxu0 0
    %2118 = vmatpush1.bf16.xpose.msra.mxu0 %v2115
    %2119 = vmatprep.subr.bf16.mxu0 0
    %2120 = vmatpush1.bf16.xpose.msra.mxu0 0
    %2121 = vmatprep.subr.bf16.mxu0 0
    %2122 = vmatpush1.bf16.xpose.msra.mxu0 0
    %2123 = vmatprep.subr.bf16.mxu0 0
    %2124 = vmatpush1.bf16.xpose.msra.mxu0 0
    %2125 = vmatprep.subr.bf16.mxu0 0
    %2126 = vmatpush1.bf16.xpose.msra.mxu0 0
    %2127 = vmatprep.subr.bf16.mxu0 0
    %2128 = vmatpush1.bf16.xpose.msra.mxu0 0
    %2129 = vmatprep.subr.bf16.mxu0 0
    %2130 = vmatpush1.bf16.xpose.msra.mxu0 0
    %2131 = vmatprep.subr.bf16.mxu0 0
    %2132 = vmatpush1.bf16.xpose.msra.mxu0 0
    %2133 = vmatprep.subr.bf16.mxu0 0
    %2134 = vmatpush1.bf16.xpose.msra.mxu0 0
    %2135 = vmatprep.subr.bf16.mxu0 0
    %2136 = vmatpush1.bf16.xpose.msra.mxu0 0
    %2137 = vmatprep.subr.bf16.mxu0 0
    %2138 = vmatpush1.bf16.xpose.msra.mxu0 0
    %2139 = vmatprep.subr.bf16.mxu0 0
    %2140 = vmatpush1.bf16.xpose.msra.mxu0 0
    %2141 = vmatprep.subr.bf16.mxu0 0
    %2142 = vmatpush1.bf16.xpose.msra.mxu0 0
    %2143 = vmatprep.subr.bf16.mxu0 0
    %2144 = vmatpush1.bf16.xpose.msra.mxu0 0
    %2145 = vmatprep.subr.bf16.mxu0 0
    %2146 = vmatpush1.bf16.xpose.msra.mxu0 0
    %2147 = vmatprep.subr.bf16.mxu0 0
    %2148 = vmatpush1.bf16.xpose.msra.mxu0 0
    %2149 = vmatprep.mubr.bf16.mxu0 0
    %2150 = vmatmul.mubr.bf16.gmra.mrb[0].mxu0 %v2112
    %v2151 = vpop.f32.mrb[0].mxu0
    %v2152 = vadd.f32 0.0, %v2151
    %v2153 = vpop.f32.mrb[0].mxu0
    %v2154 = vpop.f32.mrb[0].mxu0
    %v2155 = vpop.f32.mrb[0].mxu0
    %2156 = vdwg.mxu0
    %2157 = vrot.lane.b32.xlu0 %v295, 100
    %v2158 = vpop.permute.xlu0 %2157
    %2159 = vrot.lane.b32.xlu0 %v409, 100
    %v2160 = vpop.permute.xlu0 %2159
    %v2162 = vsel %vm530, %v2158, 0
    %v2165 = vsel %vm530, %v2160, 0
    %2167 = vmatprep.subr.bf16.mxu0 0
    %2168 = vmatpush1.bf16.xpose.msra.mxu0 %v2165
    %2169 = vmatprep.subr.bf16.mxu0 0
    %2170 = vmatpush1.bf16.xpose.msra.mxu0 0
    %2171 = vmatprep.subr.bf16.mxu0 0
    %2172 = vmatpush1.bf16.xpose.msra.mxu0 0
    %2173 = vmatprep.subr.bf16.mxu0 0
    %2174 = vmatpush1.bf16.xpose.msra.mxu0 0
    %2175 = vmatprep.subr.bf16.mxu0 0
    %2176 = vmatpush1.bf16.xpose.msra.mxu0 0
    %2177 = vmatprep.subr.bf16.mxu0 0
    %2178 = vmatpush1.bf16.xpose.msra.mxu0 0
    %2179 = vmatprep.subr.bf16.mxu0 0
    %2180 = vmatpush1.bf16.xpose.msra.mxu0 0
    %2181 = vmatprep.subr.bf16.mxu0 0
    %2182 = vmatpush1.bf16.xpose.msra.mxu0 0
    %2183 = vmatprep.subr.bf16.mxu0 0
    %2184 = vmatpush1.bf16.xpose.msra.mxu0 0
    %2185 = vmatprep.subr.bf16.mxu0 0
    %2186 = vmatpush1.bf16.xpose.msra.mxu0 0
    %2187 = vmatprep.subr.bf16.mxu0 0
    %2188 = vmatpush1.bf16.xpose.msra.mxu0 0
    %2189 = vmatprep.subr.bf16.mxu0 0
    %2190 = vmatpush1.bf16.xpose.msra.mxu0 0
    %2191 = vmatprep.subr.bf16.mxu0 0
    %2192 = vmatpush1.bf16.xpose.msra.mxu0 0
    %2193 = vmatprep.subr.bf16.mxu0 0
    %2194 = vmatpush1.bf16.xpose.msra.mxu0 0
    %2195 = vmatprep.subr.bf16.mxu0 0
    %2196 = vmatpush1.bf16.xpose.msra.mxu0 0
    %2197 = vmatprep.subr.bf16.mxu0 0
    %2198 = vmatpush1.bf16.xpose.msra.mxu0 0
    %2199 = vmatprep.mubr.bf16.mxu0 0
    %2200 = vmatmul.mubr.bf16.gmra.mrb[0].mxu0 %v2162
    %v2201 = vpop.f32.mrb[0].mxu0
    %v2202 = vadd.f32 0.0, %v2201
    %v2203 = vpop.f32.mrb[0].mxu0
    %v2204 = vpop.f32.mrb[0].mxu0
    %v2205 = vpop.f32.mrb[0].mxu0
    %2206 = vdwg.mxu0
    %v2207 = vmul.f32 %v2152, 0.5
    %v2208 = vmul.f32 %v2202, 0.5
    %v2209 = vadd.f32 %v2207, %v630
    %v2210 = vadd.f32 %v2208, %v634
    %v2211 = vsel %vm639, %v2209, -inf
    %2212 = vmax.xlane.f32.xlu0 %v2211
    %v2213 = vpop.xlane.xlu0 %2212
    %v2214 = vsel %vm639, %v2210, -inf
    %2215 = vmax.xlane.f32.xlu0 %v2214
    %v2216 = vpop.xlane.xlu0 %2215
    %v2217 = vsub.f32 %v2209, %v2213
    %v2218 = vsub.f32 %v2210, %v2216
    %v2219 = vmul.f32 %v2217, 1.442695
    %v2220 = vpow.pop %v2219
    %v2221 = vmul.f32 %v2218, 1.442695
    %v2222 = vpow.pop %v2221
    %v2223 = vsel %vm639, %v2220, 0.0
    %2224 = vadd.xlane.f32.xlu0 %v2223
    %v2225 = vpop.xlane.xlu0 %2224
    %v2226 = vsel %vm639, %v2222, 0.0
    %2227 = vadd.xlane.f32.xlu0 %v2226
    %v2228 = vpop.xlane.xlu0 %2227
    %v2229 = vrcp.pop %v2225
    %v2230 = vrcp.pop %v2228
    %v2231 = vmul.f32 %v2220, %v2229
    %v2232 = vmul.f32 %v2222, %v2230
    %v2233 = vpack.c.bf16 %v2231, %v2231
    %v2234 = vpack.c.bf16 %v2232, %v2232
    %2235 = vrot.lane.b32.xlu0 %v522, 100
    %v2236 = vpop.permute.xlu0 %2235
    %v2238 = vsel %vm639, %v2233, 0
    %v2241 = vsel %vm667, %v2236, 0
    %2243 = vmatprep.subr.bf16.mxu0 0
    %2244 = vmatpush1.bf16.msra.mxu0 %v2241
    %2245 = vmatprep.subr.bf16.mxu0 0
    %2246 = vmatpush1.bf16.msra.mxu0 0
    %2247 = vmatprep.subr.bf16.mxu0 0
    %2248 = vmatpush1.bf16.msra.mxu0 0
    %2249 = vmatprep.subr.bf16.mxu0 0
    %2250 = vmatpush1.bf16.msra.mxu0 0
    %2251 = vmatprep.subr.bf16.mxu0 0
    %2252 = vmatpush1.bf16.msra.mxu0 0
    %2253 = vmatprep.subr.bf16.mxu0 0
    %2254 = vmatpush1.bf16.msra.mxu0 0
    %2255 = vmatprep.subr.bf16.mxu0 0
    %2256 = vmatpush1.bf16.msra.mxu0 0
    %2257 = vmatprep.subr.bf16.mxu0 0
    %2258 = vmatpush1.bf16.msra.mxu0 0
    %2259 = vmatprep.subr.bf16.mxu0 0
    %2260 = vmatpush1.bf16.msra.mxu0 0
    %2261 = vmatprep.subr.bf16.mxu0 0
    %2262 = vmatpush1.bf16.msra.mxu0 0
    %2263 = vmatprep.subr.bf16.mxu0 0
    %2264 = vmatpush1.bf16.msra.mxu0 0
    %2265 = vmatprep.subr.bf16.mxu0 0
    %2266 = vmatpush1.bf16.msra.mxu0 0
    %2267 = vmatprep.subr.bf16.mxu0 0
    %2268 = vmatpush1.bf16.msra.mxu0 0
    %2269 = vmatprep.subr.bf16.mxu0 0
    %2270 = vmatpush1.bf16.msra.mxu0 0
    %2271 = vmatprep.subr.bf16.mxu0 0
    %2272 = vmatpush1.bf16.msra.mxu0 0
    %2273 = vmatprep.subr.bf16.mxu0 0
    %2274 = vmatpush1.bf16.msra.mxu0 0
    %2275 = vmatprep.mubr.bf16.mxu0 0
    %2276 = vmatmul.mubr.bf16.gmra.mrb[0].mxu0 %v2238
    %v2277 = vpop.f32.mrb[0].mxu0
    %v2278 = vadd.f32 0.0, %v2277
    %v2279 = vpop.f32.mrb[0].mxu0
    %v2280 = vpop.f32.mrb[0].mxu0
    %v2281 = vpop.f32.mrb[0].mxu0
    %2282 = vdwg.mxu0
    %2283 = vrot.lane.b32.xlu0 %v523, 100
    %v2284 = vpop.permute.xlu0 %2283
    %v2286 = vsel %vm639, %v2234, 0
    %v2289 = vsel %vm667, %v2284, 0
    %2291 = vmatprep.subr.bf16.mxu0 0
    %2292 = vmatpush1.bf16.msra.mxu0 %v2289
    %2293 = vmatprep.subr.bf16.mxu0 0
    %2294 = vmatpush1.bf16.msra.mxu0 0
    %2295 = vmatprep.subr.bf16.mxu0 0
    %2296 = vmatpush1.bf16.msra.mxu0 0
    %2297 = vmatprep.subr.bf16.mxu0 0
    %2298 = vmatpush1.bf16.msra.mxu0 0
    %2299 = vmatprep.subr.bf16.mxu0 0
    %2300 = vmatpush1.bf16.msra.mxu0 0
    %2301 = vmatprep.subr.bf16.mxu0 0
    %2302 = vmatpush1.bf16.msra.mxu0 0
    %2303 = vmatprep.subr.bf16.mxu0 0
    %2304 = vmatpush1.bf16.msra.mxu0 0
    %2305 = vmatprep.subr.bf16.mxu0 0
    %2306 = vmatpush1.bf16.msra.mxu0 0
    %2307 = vmatprep.subr.bf16.mxu0 0
    %2308 = vmatpush1.bf16.msra.mxu0 0
    %2309 = vmatprep.subr.bf16.mxu0 0
    %2310 = vmatpush1.bf16.msra.mxu0 0
    %2311 = vmatprep.subr.bf16.mxu0 0
    %2312 = vmatpush1.bf16.msra.mxu0 0
    %2313 = vmatprep.subr.bf16.mxu0 0
    %2314 = vmatpush1.bf16.msra.mxu0 0
    %2315 = vmatprep.subr.bf16.mxu0 0
    %2316 = vmatpush1.bf16.msra.mxu0 0
    %2317 = vmatprep.subr.bf16.mxu0 0
    %2318 = vmatpush1.bf16.msra.mxu0 0
    %2319 = vmatprep.subr.bf16.mxu0 0
    %2320 = vmatpush1.bf16.msra.mxu0 0
    %2321 = vmatprep.subr.bf16.mxu0 0
    %2322 = vmatpush1.bf16.msra.mxu0 0
    %2323 = vmatprep.mubr.bf16.mxu0 0
    %2324 = vmatmul.mubr.bf16.gmra.mrb[0].mxu0 %v2286
    %v2325 = vpop.f32.mrb[0].mxu0
    %v2326 = vadd.f32 0.0, %v2325
    %v2327 = vpop.f32.mrb[0].mxu0
    %v2328 = vpop.f32.mrb[0].mxu0
    %v2329 = vpop.f32.mrb[0].mxu0
    %2330 = vdwg.mxu0
    %2333 = vrot.lane.b32.xlu0 %v933, 4
    %v2334 = vpop.permute.xlu0 %2333
    %2335 = vrot.lane.b32.xlu0 %v982, 4
    %v2336 = vpop.permute.xlu0 %2335
    %2341 = vrot.lane.b32.xlu0 %v1158, 8
    %v2342 = vpop.permute.xlu0 %2341
    %2343 = vrot.lane.b32.xlu0 %v1206, 8
    %v2344 = vpop.permute.xlu0 %2343
    %2349 = vrot.lane.b32.xlu0 %v1382, 12
    %v2350 = vpop.permute.xlu0 %2349
    %2351 = vrot.lane.b32.xlu0 %v1430, 12
    %v2352 = vpop.permute.xlu0 %2351
    %2357 = vrot.lane.b32.xlu0 %v1606, 16
    %v2358 = vpop.permute.xlu0 %2357
    %2359 = vrot.lane.b32.xlu0 %v1654, 16
    %v2360 = vpop.permute.xlu0 %2359
    %2365 = vrot.lane.b32.xlu0 %v1830, 20
    %v2366 = vpop.permute.xlu0 %2365
    %2367 = vrot.lane.b32.xlu0 %v1878, 20
    %v2368 = vpop.permute.xlu0 %2367
    %2373 = vrot.lane.b32.xlu0 %v2054, 24
    %v2374 = vpop.permute.xlu0 %2373
    %2375 = vrot.lane.b32.xlu0 %v2102, 24
    %v2376 = vpop.permute.xlu0 %2375
    %2381 = vrot.lane.b32.xlu0 %v2278, 28
    %v2382 = vpop.permute.xlu0 %2381
    %2383 = vrot.lane.b32.xlu0 %v2326, 28
    %v2384 = vpop.permute.xlu0 %2383
    %v2387 = vsel %vm530, %v706, %v2334
    %v2388 = vsel %vm530, %v752, %v2336
    %v2389 = vsel %vm639, %v2387, %v2342
    %v2390 = vsel %vm639, %v2388, %v2344
    %vm2391 = vcmask 97280
    %v2392 = vsel %vm2391, %v2389, %v2350
    %v2393 = vsel %vm2391, %v2390, %v2352
    %vm2394 = vcmask 130048
    %v2395 = vsel %vm2394, %v2392, %v2358
    %v2396 = vsel %vm2394, %v2393, %v2360
    %vm2397 = vcmask 162816
    %v2398 = vsel %vm2397, %v2395, %v2366
    %v2399 = vsel %vm2397, %v2396, %v2368
    %vm2400 = vcmask 195584
    %v2401 = vsel %vm2400, %v2398, %v2374
    %v2402 = vsel %vm2400, %v2399, %v2376
    %vm2403 = vcmask 228352
    %v2404 = vsel %vm2403, %v2401, %v2382
    %v2405 = vsel %vm2403, %v2402, %v2384
    %v2406 = vld [vmem:[#allocation11] sm:$0xf]
    %v2407 = vld [vmem:[#allocation11 + $0x4] sm:$0xf]
    %v2408 = vld [vmem:[#allocation11 + $0x8] sm:$0xf]
    %v2409 = vld [vmem:[#allocation11 + $0xc] sm:$0xf]
    %v2410 = vpack.c.bf16 %v2405, %v2404
    %v2411 = vld [vmem:[%s10] sm:$0x1]
    %v2413 = vlaneseq
    %v2414 = vshrl.u32 %v2413, 7
    %v2415 = vsub.s32 0, %v2414
    %v2416 = vrot.slane %v2411, %v2415
    %v2422 = vunpack.c.l.b16 %v2406
    %v2423 = vunpack.c.l.b16 %v2407
    %v2424 = vunpack.c.l.b16 %v2408
    %v2425 = vunpack.c.l.b16 %v2409
    %v2426 = vpack.c.b16 %v2423, %v2422
    %v2427 = vpack.c.b16 %v2425, %v2424
    %vm2430 = vcmask 261120
    %v2432 = vsel %vm2430, %v2410, 0
    %2434 = vmatprep.subr.bf16.mxu0 0
    %2435 = vmatpush1.bf16.msra.mxu0 %v2426
    %2436 = vmatprep.subr.bf16.mxu0 0
    %2437 = vmatpush1.bf16.msra.mxu0 %v2427
    %2438 = vmatprep.subr.bf16.mxu0 0
    %2439 = vmatpush1.bf16.msra.mxu0 0
    %2440 = vmatprep.subr.bf16.mxu0 0
    %2441 = vmatpush1.bf16.msra.mxu0 0
    %2442 = vmatprep.subr.bf16.mxu0 0
    %2443 = vmatpush1.bf16.msra.mxu0 0
    %2444 = vmatprep.subr.bf16.mxu0 0
    %2445 = vmatpush1.bf16.msra.mxu0 0
    %2446 = vmatprep.subr.bf16.mxu0 0
    %2447 = vmatpush1.bf16.msra.mxu0 0
    %2448 = vmatprep.subr.bf16.mxu0 0
    %2449 = vmatpush1.bf16.msra.mxu0 0
    %2450 = vmatprep.subr.bf16.mxu0 0
    %2451 = vmatpush1.bf16.msra.mxu0 0
    %2452 = vmatprep.subr.bf16.mxu0 0
    %2453 = vmatpush1.bf16.msra.mxu0 0
    %2454 = vmatprep.subr.bf16.mxu0 0
    %2455 = vmatpush1.bf16.msra.mxu0 0
    %2456 = vmatprep.subr.bf16.mxu0 0
    %2457 = vmatpush1.bf16.msra.mxu0 0
    %2458 = vmatprep.subr.bf16.mxu0 0
    %2459 = vmatpush1.bf16.msra.mxu0 0
    %2460 = vmatprep.subr.bf16.mxu0 0
    %2461 = vmatpush1.bf16.msra.mxu0 0
    %2462 = vmatprep.subr.bf16.mxu0 0
    %2463 = vmatpush1.bf16.msra.mxu0 0
    %2464 = vmatprep.subr.bf16.mxu0 0
    %2465 = vmatpush1.bf16.msra.mxu0 0
    %2466 = vmatprep.mubr.bf16.mxu0 0
    %2467 = vmatmul.mubr.bf16.gmra.mrb[0].mxu0 %v2432
    %v2468 = vpop.f32.mrb[0].mxu0
    %v2469 = vadd.f32 %v2416, %v2468
    %v2470 = vpop.f32.mrb[0].mxu0
    %v2471 = vpop.f32.mrb[0].mxu0
    %v2472 = vadd.f32 %v2416, %v2471
    %v2473 = vpop.f32.mrb[0].mxu0
    %2474 = vdwg.mxu0
    %v2475 = vadd.f32 %v2469, %v179
    %v2476 = vadd.f32 %v2472, %v180
    %v2477 = vld [vmem:[%s11] sm:$0x1]
    %v2478 = vld [vmem:[%s12] sm:$0x1]
    %v2479 = vmul.f32 %v2475, %v175
    %v2480 = vmul.f32 %v2476, %v175
    %2481 = vadd.xlane.f32.xlu0 %v2479
    %v2482 = vpop.xlane.xlu0 %2481
    %2483 = vadd.xlane.f32.xlu0 %v2480
    %v2484 = vpop.xlane.xlu0 %2483
    %v2485 = vmul.f32 %v2482, 0.03125
    %v2486 = vmul.f32 %v2484, 0.03125
    %v2487 = vsub.f32 %v2475, %v2485
    %v2488 = vsub.f32 %v2476, %v2486
    %v2489 = vmul.f32 %v2487, %v175
    %v2490 = vmul.f32 %v2488, %v175
    %v2491 = vmul.f32 %v2489, %v2489
    %v2492 = vmul.f32 %v2490, %v2490
    %2493 = vadd.xlane.f32.xlu0 %v2491
    %v2494 = vpop.xlane.xlu0 %2493
    %2495 = vadd.xlane.f32.xlu0 %v2492
    %v2496 = vpop.xlane.xlu0 %2495
    %v2497 = vmul.f32 %v2494, 0.03125
    %v2498 = vmul.f32 %v2496, 0.03125
    %v2499 = vrsqrt.pop %v2497
    %v2500 = vmul.f32 %v2497, %v2499
    %vm2501 = vcmp.eq.f32.partialorder %v2497, inf
    %v2502 = vsel %vm2501, %v2497, %v2500
    %vm2503 = vcmp.eq.f32.partialorder %v2497, 0.0
    %v2504 = vand.u32 %v2497, 2147483648
    %v2505 = vsel %vm2503, %v2504, %v2502
    %v2506 = vrsqrt.pop %v2498
    %v2507 = vmul.f32 %v2498, %v2506
    %vm2508 = vcmp.eq.f32.partialorder %v2498, inf
    %v2509 = vsel %vm2508, %v2498, %v2507
    %vm2510 = vcmp.eq.f32.partialorder %v2498, 0.0
    %v2511 = vand.u32 %v2498, 2147483648
    %v2512 = vsel %vm2510, %v2511, %v2509
    %v2513 = vadd.f32 %v2505, 1e-06
    %v2514 = vadd.f32 %v2512, 1e-06
    %v2515 = vrcp.pop %v2513
    %v2516 = vrcp.pop %v2514
    %v2518 = vlaneseq
    %v2519 = vshrl.u32 %v2518, 7
    %v2520 = vsub.s32 0, %v2519
    %v2521 = vrot.slane %v2477, %v2520
    %v2523 = vmul.f32 %v2521, %v2489
    %v2524 = vmul.f32 %v2521, %v2490
    %v2525 = vmul.f32 %v2523, %v2515
    %v2526 = vmul.f32 %v2524, %v2516
    %v2528 = vlaneseq
    %v2529 = vshrl.u32 %v2528, 7
    %v2530 = vsub.s32 0, %v2529
    %v2531 = vrot.slane %v2478, %v2530
    %v2533 = vadd.f32 %v2525, %v2531
    %v2534 = vadd.f32 %v2526, %v2531
    %v2535 = vpack.c.bf16 %v2534, %v2533
    %v2536 = vld [vmem:[#allocation13] sm:$0xf]
    %v2537 = vld [vmem:[#allocation13 + $0x4] sm:$0xf]
    %v2538 = vld [vmem:[#allocation13 + $0x8] sm:$0xf]
    %v2539 = vld [vmem:[#allocation13 + $0xc] sm:$0xf]
    %v2540 = vld [vmem:[#allocation13 + $0x10] sm:$0xf]
    %v2541 = vld [vmem:[#allocation13 + $0x14] sm:$0xf]
    %v2542 = vld [vmem:[#allocation13 + $0x18] sm:$0xf]
    %v2543 = vld [vmem:[#allocation13 + $0x1c] sm:$0xf]
    %v2544 = vld [vmem:[#allocation13 + $0x20] sm:$0xf]
    %v2545 = vld [vmem:[#allocation13 + $0x24] sm:$0xf]
    %v2546 = vld [vmem:[#allocation13 + $0x28] sm:$0xf]
    %v2547 = vld [vmem:[#allocation13 + $0x2c] sm:$0xf]
    %v2548 = vld [vmem:[#allocation13 + $0x30] sm:$0xf]
    %v2549 = vld [vmem:[#allocation13 + $0x34] sm:$0xf]
    %v2550 = vld [vmem:[#allocation13 + $0x38] sm:$0xf]
    %v2551 = vld [vmem:[#allocation13 + $0x3c] sm:$0xf]
    %v2552 = vld [vmem:[%s14] sm:$0x1]
    %v2554 = vlaneseq
    %v2555 = vshrl.u32 %v2554, 7
    %v2556 = vsub.s32 0, %v2555
    %v2557 = vrot.slane %v2552, %v2556
    %v2575 = vunpack.c.l.b16 %v2536
    %v2576 = vunpack.c.l.b16 %v2537
    %v2577 = vunpack.c.l.b16 %v2538
    %v2578 = vunpack.c.l.b16 %v2539
    %v2579 = vunpack.c.l.b16 %v2540
    %v2580 = vunpack.c.l.b16 %v2541
    %v2581 = vunpack.c.l.b16 %v2542
    %v2582 = vunpack.c.l.b16 %v2543
    %v2583 = vunpack.c.l.b16 %v2544
    %v2584 = vunpack.c.l.b16 %v2545
    %v2585 = vunpack.c.l.b16 %v2546
    %v2586 = vunpack.c.l.b16 %v2547
    %v2587 = vunpack.c.l.b16 %v2548
    %v2588 = vunpack.c.l.b16 %v2549
    %v2589 = vunpack.c.l.b16 %v2550
    %v2590 = vunpack.c.l.b16 %v2551
    %v2591 = vpack.c.b16 %v2576, %v2575
    %v2592 = vpack.c.b16 %v2578, %v2577
    %v2593 = vpack.c.b16 %v2580, %v2579
    %v2594 = vpack.c.b16 %v2582, %v2581
    %v2595 = vpack.c.b16 %v2584, %v2583
    %v2596 = vpack.c.b16 %v2586, %v2585
    %v2597 = vpack.c.b16 %v2588, %v2587
    %v2598 = vpack.c.b16 %v2590, %v2589
    %2607 = vmatprep.subr.bf16.mxu0 0
    %2608 = vmatpush1.bf16.msra.mxu0 %v2591
    %2609 = vmatprep.subr.bf16.mxu0 0
    %2610 = vmatpush1.bf16.msra.mxu0 %v2592
    %2611 = vmatprep.subr.bf16.mxu0 0
    %2612 = vmatpush1.bf16.msra.mxu0 %v2593
    %2613 = vmatprep.subr.bf16.mxu0 0
    %2614 = vmatpush1.bf16.msra.mxu0 %v2594
    %2615 = vmatprep.subr.bf16.mxu0 0
    %2616 = vmatpush1.bf16.msra.mxu0 %v2595
    %2617 = vmatprep.subr.bf16.mxu0 0
    %2618 = vmatpush1.bf16.msra.mxu0 %v2596
    %2619 = vmatprep.subr.bf16.mxu0 0
    %2620 = vmatpush1.bf16.msra.mxu0 %v2597
    %2621 = vmatprep.subr.bf16.mxu0 0
    %2622 = vmatpush1.bf16.msra.mxu0 %v2598
    %2623 = vmatprep.subr.bf16.mxu0 0
    %2624 = vmatpush1.bf16.msra.mxu0 0
    %2625 = vmatprep.subr.bf16.mxu0 0
    %2626 = vmatpush1.bf16.msra.mxu0 0
    %2627 = vmatprep.subr.bf16.mxu0 0
    %2628 = vmatpush1.bf16.msra.mxu0 0
    %2629 = vmatprep.subr.bf16.mxu0 0
    %2630 = vmatpush1.bf16.msra.mxu0 0
    %2631 = vmatprep.subr.bf16.mxu0 0
    %2632 = vmatpush1.bf16.msra.mxu0 0
    %2633 = vmatprep.subr.bf16.mxu0 0
    %2634 = vmatpush1.bf16.msra.mxu0 0
    %2635 = vmatprep.subr.bf16.mxu0 0
    %2636 = vmatpush1.bf16.msra.mxu0 0
    %2637 = vmatprep.subr.bf16.mxu0 0
    %2638 = vmatpush1.bf16.msra.mxu0 0
    %2639 = vmatprep.mubr.bf16.mxu0 0
    %2640 = vmatmul.mubr.bf16.gmra.mrb[0].mxu0 %v2535
    %v2641 = vpop.f32.mrb[0].mxu0
    %v2642 = vadd.f32 %v2557, %v2641
    %v2643 = vpop.f32.mrb[0].mxu0
    %v2644 = vpop.f32.mrb[0].mxu0
    %v2645 = vadd.f32 %v2557, %v2644
    %v2646 = vpop.f32.mrb[0].mxu0
    %2647 = vdwg.mxu0
    %v2648 = vmax.f32 %v2642, 0.0
    %v2649 = vmax.f32 %v2645, 0.0
    %v2650 = vpack.c.bf16 %v2649, %v2648
    %v2651 = vld [vmem:[#allocation14] sm:$0xf]
    %v2652 = vld [vmem:[#allocation14 + $0x4] sm:$0xf]
    %v2653 = vld [vmem:[#allocation14 + $0x8] sm:$0xf]
    %v2654 = vld [vmem:[#allocation14 + $0xc] sm:$0xf]
    %v2655 = vld [vmem:[#allocation14 + $0x10] sm:$0xf]
    %v2656 = vld [vmem:[#allocation14 + $0x14] sm:$0xf]
    %v2657 = vld [vmem:[#allocation14 + $0x18] sm:$0xf]
    %v2658 = vld [vmem:[#allocation14 + $0x1c] sm:$0xf]
    %v2659 = vld [vmem:[#allocation14 + $0x20] sm:$0xf]
    %v2660 = vld [vmem:[#allocation14 + $0x24] sm:$0xf]
    %v2661 = vld [vmem:[#allocation14 + $0x28] sm:$0xf]
    %v2662 = vld [vmem:[#allocation14 + $0x2c] sm:$0xf]
    %v2663 = vld [vmem:[#allocation14 + $0x30] sm:$0xf]
    %v2664 = vld [vmem:[#allocation14 + $0x34] sm:$0xf]
    %v2665 = vld [vmem:[#allocation14 + $0x38] sm:$0xf]
    %v2666 = vld [vmem:[#allocation14 + $0x3c] sm:$0xf]
    %v2667 = vld [vmem:[%s16] sm:$0x1]
    %v2669 = vlaneseq
    %v2670 = vshrl.u32 %v2669, 7
    %v2671 = vsub.s32 0, %v2670
    %v2672 = vrot.slane %v2667, %v2671
    %v2690 = vunpack.c.l.b16 %v2651
    %v2691 = vunpack.c.l.b16 %v2652
    %v2692 = vunpack.c.l.b16 %v2653
    %v2693 = vunpack.c.l.b16 %v2654
    %v2694 = vunpack.c.l.b16 %v2655
    %v2695 = vunpack.c.l.b16 %v2656
    %v2696 = vunpack.c.l.b16 %v2657
    %v2697 = vunpack.c.l.b16 %v2658
    %v2698 = vunpack.c.l.b16 %v2659
    %v2699 = vunpack.c.l.b16 %v2660
    %v2700 = vunpack.c.l.b16 %v2661
    %v2701 = vunpack.c.l.b16 %v2662
    %v2702 = vunpack.c.l.b16 %v2663
    %v2703 = vunpack.c.l.b16 %v2664
    %v2704 = vunpack.c.l.b16 %v2665
    %v2705 = vunpack.c.l.b16 %v2666
    %v2706 = vpack.c.b16 %v2691, %v2690
    %v2707 = vpack.c.b16 %v2693, %v2692
    %v2708 = vpack.c.b16 %v2695, %v2694
    %v2709 = vpack.c.b16 %v2697, %v2696
    %v2710 = vpack.c.b16 %v2699, %v2698
    %v2711 = vpack.c.b16 %v2701, %v2700
    %v2712 = vpack.c.b16 %v2703, %v2702
    %v2713 = vpack.c.b16 %v2705, %v2704
    %2722 = vmatprep.subr.bf16.mxu0 0
    %2723 = vmatpush1.bf16.msra.mxu0 %v2706
    %2724 = vmatprep.subr.bf16.mxu0 0
    %2725 = vmatpush1.bf16.msra.mxu0 %v2707
    %2726 = vmatprep.subr.bf16.mxu0 0
    %2727 = vmatpush1.bf16.msra.mxu0 %v2708
    %2728 = vmatprep.subr.bf16.mxu0 0
    %2729 = vmatpush1.bf16.msra.mxu0 %v2709
    %2730 = vmatprep.subr.bf16.mxu0 0
    %2731 = vmatpush1.bf16.msra.mxu0 %v2710
    %2732 = vmatprep.subr.bf16.mxu0 0
    %2733 = vmatpush1.bf16.msra.mxu0 %v2711
    %2734 = vmatprep.subr.bf16.mxu0 0
    %2735 = vmatpush1.bf16.msra.mxu0 %v2712
    %2736 = vmatprep.subr.bf16.mxu0 0
    %2737 = vmatpush1.bf16.msra.mxu0 %v2713
    %2738 = vmatprep.subr.bf16.mxu0 0
    %2739 = vmatpush1.bf16.msra.mxu0 0
    %2740 = vmatprep.subr.bf16.mxu0 0
    %2741 = vmatpush1.bf16.msra.mxu0 0
    %2742 = vmatprep.subr.bf16.mxu0 0
    %2743 = vmatpush1.bf16.msra.mxu0 0
    %2744 = vmatprep.subr.bf16.mxu0 0
    %2745 = vmatpush1.bf16.msra.mxu0 0
    %2746 = vmatprep.subr.bf16.mxu0 0
    %2747 = vmatpush1.bf16.msra.mxu0 0
    %2748 = vmatprep.subr.bf16.mxu0 0
    %2749 = vmatpush1.bf16.msra.mxu0 0
    %2750 = vmatprep.subr.bf16.mxu0 0
    %2751 = vmatpush1.bf16.msra.mxu0 0
    %2752 = vmatprep.subr.bf16.mxu0 0
    %2753 = vmatpush1.bf16.msra.mxu0 0
    %2754 = vmatprep.mubr.bf16.mxu0 0
    %2755 = vmatmul.mubr.bf16.gmra.mrb[0].mxu0 %v2650
    %v2756 = vpop.f32.mrb[0].mxu0
    %v2757 = vadd.f32 %v2672, %v2756
    %v2758 = vpop.f32.mrb[0].mxu0
    %v2759 = vpop.f32.mrb[0].mxu0
    %v2760 = vadd.f32 %v2672, %v2759
    %v2761 = vpop.f32.mrb[0].mxu0
    %2762 = vdwg.mxu0
    %v2763 = vadd.f32 %v2757, %v2533
    %v2764 = vadd.f32 %v2760, %v2534
    %v2765 = vld [vmem:[%s17] sm:$0x1]
    %v2766 = vld [vmem:[%s18] sm:$0x1]
    %v2767 = vmul.f32 %v2763, %v175
    %v2768 = vmul.f32 %v2764, %v175
    %2769 = vadd.xlane.f32.xlu0 %v2767
    %v2770 = vpop.xlane.xlu0 %2769
    %2771 = vadd.xlane.f32.xlu0 %v2768
    %v2772 = vpop.xlane.xlu0 %2771
    %v2773 = vmul.f32 %v2770, 0.03125
    %v2774 = vmul.f32 %v2772, 0.03125
    %v2775 = vsub.f32 %v2763, %v2773
    %v2776 = vsub.f32 %v2764, %v2774
    %v2777 = vmul.f32 %v2775, %v175
    %v2778 = vmul.f32 %v2776, %v175
    %v2779 = vmul.f32 %v2777, %v2777
    %v2780 = vmul.f32 %v2778, %v2778
    %2781 = vadd.xlane.f32.xlu0 %v2779
    %v2782 = vpop.xlane.xlu0 %2781
    %2783 = vadd.xlane.f32.xlu0 %v2780
    %v2784 = vpop.xlane.xlu0 %2783
    %v2785 = vmul.f32 %v2782, 0.03125
    %v2786 = vmul.f32 %v2784, 0.03125
    %v2787 = vrsqrt.pop %v2785
    %v2788 = vmul.f32 %v2785, %v2787
    %vm2789 = vcmp.eq.f32.partialorder %v2785, inf
    %v2790 = vsel %vm2789, %v2785, %v2788
    %vm2791 = vcmp.eq.f32.partialorder %v2785, 0.0
    %v2792 = vand.u32 %v2785, 2147483648
    %v2793 = vsel %vm2791, %v2792, %v2790
    %v2794 = vrsqrt.pop %v2786
    %v2795 = vmul.f32 %v2786, %v2794
    %vm2796 = vcmp.eq.f32.partialorder %v2786, inf
    %v2797 = vsel %vm2796, %v2786, %v2795
    %vm2798 = vcmp.eq.f32.partialorder %v2786, 0.0
    %v2799 = vand.u32 %v2786, 2147483648
    %v2800 = vsel %vm2798, %v2799, %v2797
    %v2801 = vadd.f32 %v2793, 1e-06
    %v2802 = vadd.f32 %v2800, 1e-06
    %v2803 = vrcp.pop %v2801
    %v2804 = vrcp.pop %v2802
    %v2806 = vlaneseq
    %v2807 = vshrl.u32 %v2806, 7
    %v2808 = vsub.s32 0, %v2807
    %v2809 = vrot.slane %v2765, %v2808
    %v2811 = vmul.f32 %v2809, %v2777
    %v2812 = vmul.f32 %v2809, %v2778
    %v2813 = vmul.f32 %v2811, %v2803
    %v2814 = vmul.f32 %v2812, %v2804
    %v2816 = vlaneseq
    %v2817 = vshrl.u32 %v2816, 7
    %v2818 = vsub.s32 0, %v2817
    %v2819 = vrot.slane %v2766, %v2818
    %v2821 = vadd.f32 %v2813, %v2819
    %v2822 = vadd.f32 %v2814, %v2819
    %2823 = vst [vmem:[#allocation16] sm:$0xff] %v2821
    %2824 = vst [vmem:[#allocation16 + $0x8] sm:$0xff] %v2822
    // Predicated region
    $region110: #{tpu_custom_call.1} parent=1 // pred_check
      _
    $region111: #{tpu_custom_call.1} parent=1 // pred_check_branch
      %2826 = sbr.rel (0) target = $region113
    $region112: #{tpu_custom_call.1} parent=1 // pred_region
      %s2828 = ssub.s32 256, 256
      %2829 = vsyncadd [#allocation4], %s2828
      %s2830 = sshll.u32 [#allocation16], 4
      %s2831 = int_to_ptr.vmem [resolvable:$true] %s2830
      %2836 = dma.vmem_to_hbm [thread:$0]  %s2831, 256, %s19, [#allocation4], 128, 128, 8
    $region113: #{tpu_custom_call.1} parent=1 // pred_fallthru
      _
    // Predicated region
    $region114: #{tpu_custom_call.1} parent=1 // pred_check
      _
    $region115: #{tpu_custom_call.1} parent=1 // pred_check_branch
      %2838 = sbr.rel (0) target = $region117
    $region116: #{tpu_custom_call.1} parent=1 // pred_region
      %2839 = dma.done [#allocation4], 256
    $region117: #{tpu_custom_call.1} parent=1 // pred_fallthru
      _
    %2840 = vsyncpa [#allocation3], 1
    %2841 = vsyncpa [#allocation6], 1
    %2842 = vsyncpa [#allocation9], 1
    %2843 = vsyncpa [#allocation12], 1
    %2844 = vsyncpa [#allocation15], 1
    %2845 = vsyncpa [#allocation4], 1

// kernel: tpu_custom_call.1
$region0: #{tpu_custom_call.1}
  #allocation0 [shape = 'u32[]', space=smem, size = 0x4, offset = 0x4, fixed_abs, tag = 'smem constant byte address 0x4 - core index']
  #allocation1 [shape = 'u32[144,128]{1,0:T(1,128)}', space=vmem, size = 0x12000, scoped, tag = 'internal scratch']
  %s0 = inlined_call_operand.hbm [shape: f32[2,8,128], index: 0, kind: input, shape index: {}]
  %s1 = inlined_call_operand.vmem [shape: f32[2,1,8], index: 1, kind: input, shape index: {}]
  %s2 = inlined_call_operand.hbm [shape: f32[8,128], index: 2, kind: input, shape index: {}]
  %s3 = inlined_call_operand.hbm [shape: bf16[128,128], index: 3, kind: input, shape index: {}]
  %s4 = inlined_call_operand.vmem [shape: f32[1,128], index: 4, kind: input, shape index: {}]
  %s5 = inlined_call_operand.hbm [shape: bf16[128,128], index: 5, kind: input, shape index: {}]
  %s6 = inlined_call_operand.vmem [shape: f32[1,128], index: 6, kind: input, shape index: {}]
  %s7 = inlined_call_operand.hbm [shape: bf16[128,128], index: 7, kind: input, shape index: {}]
  %s8 = inlined_call_operand.vmem [shape: f32[1,128], index: 8, kind: input, shape index: {}]
  %s9 = inlined_call_operand.hbm [shape: bf16[128,128], index: 9, kind: input, shape index: {}]
  %s10 = inlined_call_operand.vmem [shape: f32[1,128], index: 10, kind: input, shape index: {}]
  %s11 = inlined_call_operand.vmem [shape: f32[1,128], index: 11, kind: input, shape index: {}]
  %s12 = inlined_call_operand.vmem [shape: f32[1,128], index: 12, kind: input, shape index: {}]
  %s13 = inlined_call_operand.hbm [shape: bf16[128,128], index: 13, kind: input, shape index: {}]
  %s14 = inlined_call_operand.vmem [shape: f32[1,128], index: 14, kind: input, shape index: {}]
  %s15 = inlined_call_operand.hbm [shape: bf16[128,128], index: 15, kind: input, shape index: {}]
  %s16 = inlined_call_operand.vmem [shape: f32[1,128], index: 16, kind: input, shape index: {}]
  %s17 = inlined_call_operand.vmem [shape: f32[1,128], index: 17, kind: input, shape index: {}]
  %s18 = inlined_call_operand.vmem [shape: f32[1,128], index: 18, kind: input, shape index: {}]
  %s19 = inlined_call_operand.hbm [shape: f32[2,8,128], index: 19, kind: output, shape index: {}]
  %s20 = sld [smem:[#allocation0]]
  $region118: #{tpu_custom_call.1} parent=0
    _
  %s22 = ssub.s32 1, %s20
  %s23 = scalar_select 0, %s22, %s20
  $region1: #{tpu_custom_call.1} parent=0
    #allocation2 [shape = 'u8[8192]{0}', space=vmem, size = 0x2000, scoped, tag = 'input window, operand 0, single buffered']
    #allocation3 [shape = 's32[1]{0}', space=sflag, size = 0x4, scoped, tag = 'scoped memory for tpu_custom_call.1']
    #allocation4 [shape = 's32[1]{0}', space=sflag, size = 0x4, scoped, tag = 'scoped memory for tpu_custom_call.1']
    #allocation5 [shape = 'u8[4096]{0}', space=vmem, size = 0x1000, scoped, tag = 'input window, operand 2, single buffered']
    #allocation6 [shape = 's32[1]{0}', space=sflag, size = 0x4, scoped, tag = 'scoped memory for tpu_custom_call.1']
    #allocation7 [shape = 'u8[32768]{0}', space=vmem, size = 0x8000, scoped, tag = 'input window, operand 3, single buffered']
    #allocation8 [shape = 'u8[32768]{0}', space=vmem, size = 0x8000, scoped, tag = 'input window, operand 5, single buffered']
    #allocation9 [shape = 's32[1]{0}', space=sflag, size = 0x4, scoped, tag = 'scoped memory for tpu_custom_call.1']
    #allocation10 [shape = 'u8[32768]{0}', space=vmem, size = 0x8000, scoped, tag = 'input window, operand 7, single buffered']
    #allocation11 [shape = 'u8[32768]{0}', space=vmem, size = 0x8000, scoped, tag = 'input window, operand 9, single buffered']
    #allocation12 [shape = 's32[1]{0}', space=sflag, size = 0x4, scoped, tag = 'scoped memory for tpu_custom_call.1']
    #allocation13 [shape = 'u8[32768]{0}', space=vmem, size = 0x8000, scoped, tag = 'input window, operand 13, single buffered']
    #allocation14 [shape = 'u8[32768]{0}', space=vmem, size = 0x8000, scoped, tag = 'input window, operand 15, single buffered']
    #allocation15 [shape = 's32[1]{0}', space=sflag, size = 0x4, scoped, tag = 'scoped memory for tpu_custom_call.1']
    #allocation16 [shape = 'u8[8192]{0}', space=vmem, size = 0x2000, scoped, tag = 'output window, operand 0, single buffered']
    %24 = vsyncpa [#allocation3], 0
    %25 = vsyncpa [#allocation6], 0
    %26 = vsyncpa [#allocation9], 0
    %27 = vsyncpa [#allocation12], 0
    %28 = vsyncpa [#allocation15], 0
    %29 = vsyncpa [#allocation4], 0
    // Predicated region
    $region2: #{tpu_custom_call.1} parent=1 // pred_check
      _
    $region3: #{tpu_custom_call.1} parent=1 // pred_check_branch
      %31 = sbr.rel (0) target = $region5
    $region4: #{tpu_custom_call.1} parent=1 // pred_region
      %s33 = ssub.s32 256, 256
      %34 = vsyncadd [#allocation3], %s33
      %s35 = sshll.u32 [#allocation2], 4
      %s36 = int_to_ptr.vmem [resolvable:$true] %s35
      %41 = dma.hbm_to_vmem [thread:$0]  %s0, 256, %s36, [#allocation3], 128, 128, 8
    $region5: #{tpu_custom_call.1} parent=1 // pred_fallthru
      _
    // Predicated region
    $region6: #{tpu_custom_call.1} parent=1 // pred_check
      _
    $region7: #{tpu_custom_call.1} parent=1 // pred_check_branch
      %43 = sbr.rel (0) target = $region9
    $region8: #{tpu_custom_call.1} parent=1 // pred_region
      _
    $region9: #{tpu_custom_call.1} parent=1 // pred_fallthru
      _
    // Predicated region
    $region10: #{tpu_custom_call.1} parent=1 // pred_check
      _
    $region11: #{tpu_custom_call.1} parent=1 // pred_check_branch
      %45 = sbr.rel (0) target = $region13
    $region12: #{tpu_custom_call.1} parent=1 // pred_region
      %s47 = ssub.s32 128, 128
      %48 = vsyncadd [#allocation6], %s47
      %s50 = sshll.u32 [#allocation5], 4
      %s51 = int_to_ptr.vmem [resolvable:$true] %s50
      %53 = dma.hbm_to_vmem [thread:$0]  %s2, 128, %s51, [#allocation6]
    $region13: #{tpu_custom_call.1} parent=1 // pred_fallthru
      _
    // Predicated region
    $region14: #{tpu_custom_call.1} parent=1 // pred_check
      _
    $region15: #{tpu_custom_call.1} parent=1 // pred_check_branch
      %55 = sbr.rel (0) target = $region17
    $region16: #{tpu_custom_call.1} parent=1 // pred_region
      %s57 = ssub.s32 1024, 1024
      %58 = vsyncadd [#allocation6], %s57
      %s59 = sshll.u32 [#allocation7], 4
      %s60 = int_to_ptr.vmem [resolvable:$true] %s59
      %65 = dma.hbm_to_vmem [thread:$0]  %s3, 1024, %s60, [#allocation6], 64, 64, 4
    $region17: #{tpu_custom_call.1} parent=1 // pred_fallthru
      _
    // Predicated region
    $region18: #{tpu_custom_call.1} parent=1 // pred_check
      _
    $region19: #{tpu_custom_call.1} parent=1 // pred_check_branch
      %67 = sbr.rel (0) target = $region21
    $region20: #{tpu_custom_call.1} parent=1 // pred_region
      _
    $region21: #{tpu_custom_call.1} parent=1 // pred_fallthru
      _
    // Predicated region
    $region22: #{tpu_custom_call.1} parent=1 // pred_check
      _
    $region23: #{tpu_custom_call.1} parent=1 // pred_check_branch
      %69 = sbr.rel (0) target = $region25
    $region24: #{tpu_custom_call.1} parent=1 // pred_region
      %s71 = ssub.s32 1024, 1024
      %72 = vsyncadd [#allocation9], %s71
      %s73 = sshll.u32 [#allocation8], 4
      %s74 = int_to_ptr.vmem [resolvable:$true] %s73
      %79 = dma.hbm_to_vmem [thread:$0]  %s5, 1024, %s74, [#allocation9], 64, 64, 4
    $region25: #{tpu_custom_call.1} parent=1 // pred_fallthru
      _
    // Predicated region
    $region26: #{tpu_custom_call.1} parent=1 // pred_check
      _
    $region27: #{tpu_custom_call.1} parent=1 // pred_check_branch
      %81 = sbr.rel (0) target = $region29
    $region28: #{tpu_custom_call.1} parent=1 // pred_region
      _
    $region29: #{tpu_custom_call.1} parent=1 // pred_fallthru
      _
    // Predicated region
    $region30: #{tpu_custom_call.1} parent=1 // pred_check
      _
    $region31: #{tpu_custom_call.1} parent=1 // pred_check_branch
      %83 = sbr.rel (0) target = $region33
    $region32: #{tpu_custom_call.1} parent=1 // pred_region
      %s85 = ssub.s32 1024, 1024
      %86 = vsyncadd [#allocation9], %s85
      %s87 = sshll.u32 [#allocation10], 4
      %s88 = int_to_ptr.vmem [resolvable:$true] %s87
      %93 = dma.hbm_to_vmem [thread:$0]  %s7, 1024, %s88, [#allocation9], 64, 64, 4
    $region33: #{tpu_custom_call.1} parent=1 // pred_fallthru
      _
    // Predicated region
    $region34: #{tpu_custom_call.1} parent=1 // pred_check
      _
    $region35: #{tpu_custom_call.1} parent=1 // pred_check_branch
      %95 = sbr.rel (0) target = $region37
    $region36: #{tpu_custom_call.1} parent=1 // pred_region
      _
    $region37: #{tpu_custom_call.1} parent=1 // pred_fallthru
      _
    // Predicated region
    $region38: #{tpu_custom_call.1} parent=1 // pred_check
      _
    $region39: #{tpu_custom_call.1} parent=1 // pred_check_branch
      %97 = sbr.rel (0) target = $region41
    $region40: #{tpu_custom_call.1} parent=1 // pred_region
      %s99 = ssub.s32 1024, 1024
      %100 = vsyncadd [#allocation12], %s99
      %s101 = sshll.u32 [#allocation11], 4
      %s102 = int_to_ptr.vmem [resolvable:$true] %s101
      %107 = dma.hbm_to_vmem [thread:$0]  %s9, 1024, %s102, [#allocation12], 64, 64, 4
    $region41: #{tpu_custom_call.1} parent=1 // pred_fallthru
      _
    // Predicated region
    $region42: #{tpu_custom_call.1} parent=1 // pred_check
      _
    $region43: #{tpu_custom_call.1} parent=1 // pred_check_branch
      %109 = sbr.rel (0) target = $region45
    $region44: #{tpu_custom_call.1} parent=1 // pred_region
      _
    $region45: #{tpu_custom_call.1} parent=1 // pred_fallthru
      _
    // Predicated region
    $region46: #{tpu_custom_call.1} parent=1 // pred_check
      _
    $region47: #{tpu_custom_call.1} parent=1 // pred_check_branch
      %111 = sbr.rel (0) target = $region49
    $region48: #{tpu_custom_call.1} parent=1 // pred_region
      _
    $region49: #{tpu_custom_call.1} parent=1 // pred_fallthru
      _
    // Predicated region
    $region50: #{tpu_custom_call.1} parent=1 // pred_check
      _
    $region51: #{tpu_custom_call.1} parent=1 // pred_check_branch
      %113 = sbr.rel (0) target = $region53
    $region52: #{tpu_custom_call.1} parent=1 // pred_region
      _
    $region53: #{tpu_custom_call.1} parent=1 // pred_fallthru
      _
    // Predicated region
    $region54: #{tpu_custom_call.1} parent=1 // pred_check
      _
    $region55: #{tpu_custom_call.1} parent=1 // pred_check_branch
      %115 = sbr.rel (0) target = $region57
    $region56: #{tpu_custom_call.1} parent=1 // pred_region
      %s117 = ssub.s32 1024, 1024
      %118 = vsyncadd [#allocation12], %s117
      %s119 = sshll.u32 [#allocation13], 4
      %s120 = int_to_ptr.vmem [resolvable:$true] %s119
      %125 = dma.hbm_to_vmem [thread:$0]  %s13, 1024, %s120, [#allocation12], 64, 64, 4
    $region57: #{tpu_custom_call.1} parent=1 // pred_fallthru
      _
    // Predicated region
    $region58: #{tpu_custom_call.1} parent=1 // pred_check
      _
    $region59: #{tpu_custom_call.1} parent=1 // pred_check_branch
      %127 = sbr.rel (0) target = $region61
    $region60: #{tpu_custom_call.1} parent=1 // pred_region
      _
    $region61: #{tpu_custom_call.1} parent=1 // pred_fallthru
      _
    // Predicated region
    $region62: #{tpu_custom_call.1} parent=1 // pred_check
      _
    $region63: #{tpu_custom_call.1} parent=1 // pred_check_branch
      %129 = sbr.rel (0) target = $region65
    $region64: #{tpu_custom_call.1} parent=1 // pred_region
      %s131 = ssub.s32 1024, 1024
      %132 = vsyncadd [#allocation15], %s131
      %s133 = sshll.u32 [#allocation14], 4
      %s134 = int_to_ptr.vmem [resolvable:$true] %s133
      %139 = dma.hbm_to_vmem [thread:$0]  %s15, 1024, %s134, [#allocation15], 64, 64, 4
    $region65: #{tpu_custom_call.1} parent=1 // pred_fallthru
      _
    // Predicated region
    $region66: #{tpu_custom_call.1} parent=1 // pred_check
      _
    $region67: #{tpu_custom_call.1} parent=1 // pred_check_branch
      %141 = sbr.rel (0) target = $region69
    $region68: #{tpu_custom_call.1} parent=1 // pred_region
      _
    $region69: #{tpu_custom_call.1} parent=1 // pred_fallthru
      _
    // Predicated region
    $region70: #{tpu_custom_call.1} parent=1 // pred_check
      _
    $region71: #{tpu_custom_call.1} parent=1 // pred_check_branch
      %143 = sbr.rel (0) target = $region73
    $region72: #{tpu_custom_call.1} parent=1 // pred_region
      _
    $region73: #{tpu_custom_call.1} parent=1 // pred_fallthru
      _
    // Predicated region
    $region74: #{tpu_custom_call.1} parent=1 // pred_check
      _
    $region75: #{tpu_custom_call.1} parent=1 // pred_check_branch
      %145 = sbr.rel (0) target = $region77
    $region76: #{tpu_custom_call.1} parent=1 // pred_region
      _
    $region77: #{tpu_custom_call.1} parent=1 // pred_fallthru
      _
    // Predicated region
    $region78: #{tpu_custom_call.1} parent=1 // pred_check
      _
    $region79: #{tpu_custom_call.1} parent=1 // pred_check_branch
      %147 = sbr.rel (0) target = $region81
    $region80: #{tpu_custom_call.1} parent=1 // pred_region
      %148 = dma.done [#allocation3], 256
    $region81: #{tpu_custom_call.1} parent=1 // pred_fallthru
      _
    // Predicated region
    $region82: #{tpu_custom_call.1} parent=1 // pred_check
      _
    $region83: #{tpu_custom_call.1} parent=1 // pred_check_branch
      %150 = sbr.rel (0) target = $region85
    $region84: #{tpu_custom_call.1} parent=1 // pred_region
      %151 = dma.done [#allocation6], 128
    $region85: #{tpu_custom_call.1} parent=1 // pred_fallthru
      _
    // Predicated region
    $region86: #{tpu_custom_call.1} parent=1 // pred_check
      _
    $region87: #{tpu_custom_call.1} parent=1 // pred_check_branch
      %153 = sbr.rel (0) target = $region89
    $region88: #{tpu_custom_call.1} parent=1 // pred_region
      %154 = dma.done [#allocation6], 1024
    $region89: #{tpu_custom_call.1} parent=1 // pred_fallthru
      _
    // Predicated region
    $region90: #{tpu_custom_call.1} parent=1 // pred_check
      _
    $region91: #{tpu_custom_call.1} parent=1 // pred_check_branch
      %156 = sbr.rel (0) target = $region93
    $region92: #{tpu_custom_call.1} parent=1 // pred_region
      %157 = dma.done [#allocation9], 1024
    $region93: #{tpu_custom_call.1} parent=1 // pred_fallthru
      _
    // Predicated region
    $region94: #{tpu_custom_call.1} parent=1 // pred_check
      _
    $region95: #{tpu_custom_call.1} parent=1 // pred_check_branch
      %159 = sbr.rel (0) target = $region97
    $region96: #{tpu_custom_call.1} parent=1 // pred_region
      %160 = dma.done [#allocation9], 1024
    $region97: #{tpu_custom_call.1} parent=1 // pred_fallthru
      _
    // Predicated region
    $region98: #{tpu_custom_call.1} parent=1 // pred_check
      _
    $region99: #{tpu_custom_call.1} parent=1 // pred_check_branch
      %162 = sbr.rel (0) target = $region101
    $region100: #{tpu_custom_call.1} parent=1 // pred_region
      %163 = dma.done [#allocation12], 1024
    $region101: #{tpu_custom_call.1} parent=1 // pred_fallthru
      _
    // Predicated region
    $region102: #{tpu_custom_call.1} parent=1 // pred_check
      _
    $region103: #{tpu_custom_call.1} parent=1 // pred_check_branch
      %165 = sbr.rel (0) target = $region105
    $region104: #{tpu_custom_call.1} parent=1 // pred_region
      %166 = dma.done [#allocation12], 1024
    $region105: #{tpu_custom_call.1} parent=1 // pred_fallthru
      _
    // Predicated region
    $region106: #{tpu_custom_call.1} parent=1 // pred_check
      _
    $region107: #{tpu_custom_call.1} parent=1 // pred_check_branch
      %168 = sbr.rel (0) target = $region109
    $region108: #{tpu_custom_call.1} parent=1 // pred_region
      %169 = dma.done [#allocation15], 1024
    $region109: #{tpu_custom_call.1} parent=1 // pred_fallthru
      _
    %v171 = vlaneseq
    %v172 = vand.u32 %v171, 127
    %vm173 = vcmp.lt.s32.totalorder %v172, 32
    %v174 = vsel %vm173, 1, 0
    %v175 = vcvt.s32.f32 %v174
    %v176 = vld [vmem:[#allocation2] sm:$0xff]
    %v177 = vld [vmem:[#allocation2 + $0x8] sm:$0xff]
    %v178 = vld [vmem:[#allocation5] sm:$0xff]
    %v179 = vadd.f32 %v176, %v178
    %v180 = vadd.f32 %v177, %v178
    %v181 = vpack.c.bf16 %v180, %v179
    %v182 = vld [vmem:[#allocation7] sm:$0xf]
    %v183 = vld [vmem:[#allocation7 + $0x4] sm:$0xf]
    %v184 = vld [vmem:[#allocation7 + $0x8] sm:$0xf]
    %v185 = vld [vmem:[#allocation7 + $0xc] sm:$0xf]
    %v186 = vld [vmem:[#allocation7 + $0x10] sm:$0xf]
    %v187 = vld [vmem:[#allocation7 + $0x14] sm:$0xf]
    %v188 = vld [vmem:[#allocation7 + $0x18] sm:$0xf]
    %v189 = vld [vmem:[#allocation7 + $0x1c] sm:$0xf]
    %v190 = vld [vmem:[#allocation7 + $0x20] sm:$0xf]
    %v191 = vld [vmem:[#allocation7 + $0x24] sm:$0xf]
    %v192 = vld [vmem:[#allocation7 + $0x28] sm:$0xf]
    %v193 = vld [vmem:[#allocation7 + $0x2c] sm:$0xf]
    %v194 = vld [vmem:[#allocation7 + $0x30] sm:$0xf]
    %v195 = vld [vmem:[#allocation7 + $0x34] sm:$0xf]
    %v196 = vld [vmem:[#allocation7 + $0x38] sm:$0xf]
    %v197 = vld [vmem:[#allocation7 + $0x3c] sm:$0xf]
    %v198 = vld [vmem:[%s4] sm:$0x1]
    %v200 = vlaneseq
    %v201 = vshrl.u32 %v200, 7
    %v202 = vsub.s32 0, %v201
    %v203 = vrot.slane %v198, %v202
    %v221 = vunpack.c.l.b16 %v182
    %v222 = vunpack.c.l.b16 %v183
    %v223 = vunpack.c.l.b16 %v184
    %v224 = vunpack.c.l.b16 %v185
    %v225 = vunpack.c.l.b16 %v186
    %v226 = vunpack.c.l.b16 %v187
    %v227 = vunpack.c.l.b16 %v188
    %v228 = vunpack.c.l.b16 %v189
    %v229 = vunpack.c.l.b16 %v190
    %v230 = vunpack.c.l.b16 %v191
    %v231 = vunpack.c.l.b16 %v192
    %v232 = vunpack.c.l.b16 %v193
    %v233 = vunpack.c.l.b16 %v194
    %v234 = vunpack.c.l.b16 %v195
    %v235 = vunpack.c.l.b16 %v196
    %v236 = vunpack.c.l.b16 %v197
    %v237 = vpack.c.b16 %v222, %v221
    %v238 = vpack.c.b16 %v224, %v223
    %v239 = vpack.c.b16 %v226, %v225
    %v240 = vpack.c.b16 %v228, %v227
    %v241 = vpack.c.b16 %v230, %v229
    %v242 = vpack.c.b16 %v232, %v231
    %v243 = vpack.c.b16 %v234, %v233
    %v244 = vpack.c.b16 %v236, %v235
    %253 = vmatprep.subr.bf16.mxu0 0
    %254 = vmatpush1.bf16.msra.mxu0 %v237
    %255 = vmatprep.subr.bf16.mxu0 0
    %256 = vmatpush1.bf16.msra.mxu0 %v238
    %257 = vmatprep.subr.bf16.mxu0 0
    %258 = vmatpush1.bf16.msra.mxu0 %v239
    %259 = vmatprep.subr.bf16.mxu0 0
    %260 = vmatpush1.bf16.msra.mxu0 %v240
    %261 = vmatprep.subr.bf16.mxu0 0
    %262 = vmatpush1.bf16.msra.mxu0 %v241
    %263 = vmatprep.subr.bf16.mxu0 0
    %264 = vmatpush1.bf16.msra.mxu0 %v242
    %265 = vmatprep.subr.bf16.mxu0 0
    %266 = vmatpush1.bf16.msra.mxu0 %v243
    %267 = vmatprep.subr.bf16.mxu0 0
    %268 = vmatpush1.bf16.msra.mxu0 %v244
    %269 = vmatprep.subr.bf16.mxu0 0
    %270 = vmatpush1.bf16.msra.mxu0 0
    %271 = vmatprep.subr.bf16.mxu0 0
    %272 = vmatpush1.bf16.msra.mxu0 0
    %273 = vmatprep.subr.bf16.mxu0 0
    %274 = vmatpush1.bf16.msra.mxu0 0
    %275 = vmatprep.subr.bf16.mxu0 0
    %276 = vmatpush1.bf16.msra.mxu0 0
    %277 = vmatprep.subr.bf16.mxu0 0
    %278 = vmatpush1.bf16.msra.mxu0 0
    %279 = vmatprep.subr.bf16.mxu0 0
    %280 = vmatpush1.bf16.msra.mxu0 0
    %281 = vmatprep.subr.bf16.mxu0 0
    %282 = vmatpush1.bf16.msra.mxu0 0
    %283 = vmatprep.subr.bf16.mxu0 0
    %284 = vmatpush1.bf16.msra.mxu0 0
    %285 = vmatprep.mubr.bf16.mxu0 0
    %286 = vmatmul.mubr.bf16.gmra.mrb[0].mxu0 %v181
    %v287 = vpop.f32.mrb[0].mxu0
    %v288 = vadd.f32 %v203, %v287
    %v289 = vpop.f32.mrb[0].mxu0
    %v290 = vpop.f32.mrb[0].mxu0
    %v291 = vadd.f32 %v203, %v290
    %v292 = vpop.f32.mrb[0].mxu0
    %293 = vdwg.mxu0
    %v294 = vpack.c.bf16 %v288, %v288
    %v295 = vpack.c.bf16 %v291, %v291
    %v296 = vld [vmem:[#allocation8] sm:$0xf]
    %v297 = vld [vmem:[#allocation8 + $0x4] sm:$0xf]
    %v298 = vld [vmem:[#allocation8 + $0x8] sm:$0xf]
    %v299 = vld [vmem:[#allocation8 + $0xc] sm:$0xf]
    %v300 = vld [vmem:[#allocation8 + $0x10] sm:$0xf]
    %v301 = vld [vmem:[#allocation8 + $0x14] sm:$0xf]
    %v302 = vld [vmem:[#allocation8 + $0x18] sm:$0xf]
    %v303 = vld [vmem:[#allocation8 + $0x1c] sm:$0xf]
    %v304 = vld [vmem:[#allocation8 + $0x20] sm:$0xf]
    %v305 = vld [vmem:[#allocation8 + $0x24] sm:$0xf]
    %v306 = vld [vmem:[#allocation8 + $0x28] sm:$0xf]
    %v307 = vld [vmem:[#allocation8 + $0x2c] sm:$0xf]
    %v308 = vld [vmem:[#allocation8 + $0x30] sm:$0xf]
    %v309 = vld [vmem:[#allocation8 + $0x34] sm:$0xf]
    %v310 = vld [vmem:[#allocation8 + $0x38] sm:$0xf]
    %v311 = vld [vmem:[#allocation8 + $0x3c] sm:$0xf]
    %v312 = vld [vmem:[%s6] sm:$0x1]
    %v314 = vlaneseq
    %v315 = vshrl.u32 %v314, 7
    %v316 = vsub.s32 0, %v315
    %v317 = vrot.slane %v312, %v316
    %v335 = vunpack.c.l.b16 %v296
    %v336 = vunpack.c.l.b16 %v297
    %v337 = vunpack.c.l.b16 %v298
    %v338 = vunpack.c.l.b16 %v299
    %v339 = vunpack.c.l.b16 %v300
    %v340 = vunpack.c.l.b16 %v301
    %v341 = vunpack.c.l.b16 %v302
    %v342 = vunpack.c.l.b16 %v303
    %v343 = vunpack.c.l.b16 %v304
    %v344 = vunpack.c.l.b16 %v305
    %v345 = vunpack.c.l.b16 %v306
    %v346 = vunpack.c.l.b16 %v307
    %v347 = vunpack.c.l.b16 %v308
    %v348 = vunpack.c.l.b16 %v309
    %v349 = vunpack.c.l.b16 %v310
    %v350 = vunpack.c.l.b16 %v311
    %v351 = vpack.c.b16 %v336, %v335
    %v352 = vpack.c.b16 %v338, %v337
    %v353 = vpack.c.b16 %v340, %v339
    %v354 = vpack.c.b16 %v342, %v341
    %v355 = vpack.c.b16 %v344, %v343
    %v356 = vpack.c.b16 %v346, %v345
    %v357 = vpack.c.b16 %v348, %v347
    %v358 = vpack.c.b16 %v350, %v349
    %367 = vmatprep.subr.bf16.mxu0 0
    %368 = vmatpush1.bf16.msra.mxu0 %v351
    %369 = vmatprep.subr.bf16.mxu0 0
    %370 = vmatpush1.bf16.msra.mxu0 %v352
    %371 = vmatprep.subr.bf16.mxu0 0
    %372 = vmatpush1.bf16.msra.mxu0 %v353
    %373 = vmatprep.subr.bf16.mxu0 0
    %374 = vmatpush1.bf16.msra.mxu0 %v354
    %375 = vmatprep.subr.bf16.mxu0 0
    %376 = vmatpush1.bf16.msra.mxu0 %v355
    %377 = vmatprep.subr.bf16.mxu0 0
    %378 = vmatpush1.bf16.msra.mxu0 %v356
    %379 = vmatprep.subr.bf16.mxu0 0
    %380 = vmatpush1.bf16.msra.mxu0 %v357
    %381 = vmatprep.subr.bf16.mxu0 0
    %382 = vmatpush1.bf16.msra.mxu0 %v358
    %383 = vmatprep.subr.bf16.mxu0 0
    %384 = vmatpush1.bf16.msra.mxu0 0
    %385 = vmatprep.subr.bf16.mxu0 0
    %386 = vmatpush1.bf16.msra.mxu0 0
    %387 = vmatprep.subr.bf16.mxu0 0
    %388 = vmatpush1.bf16.msra.mxu0 0
    %389 = vmatprep.subr.bf16.mxu0 0
    %390 = vmatpush1.bf16.msra.mxu0 0
    %391 = vmatprep.subr.bf16.mxu0 0
    %392 = vmatpush1.bf16.msra.mxu0 0
    %393 = vmatprep.subr.bf16.mxu0 0
    %394 = vmatpush1.bf16.msra.mxu0 0
    %395 = vmatprep.subr.bf16.mxu0 0
    %396 = vmatpush1.bf16.msra.mxu0 0
    %397 = vmatprep.subr.bf16.mxu0 0
    %398 = vmatpush1.bf16.msra.mxu0 0
    %399 = vmatprep.mubr.bf16.mxu0 0
    %400 = vmatmul.mubr.bf16.gmra.mrb[0].mxu0 %v181
    %v401 = vpop.f32.mrb[0].mxu0
    %v402 = vadd.f32 %v317, %v401
    %v403 = vpop.f32.mrb[0].mxu0
    %v404 = vpop.f32.mrb[0].mxu0
    %v405 = vadd.f32 %v317, %v404
    %v406 = vpop.f32.mrb[0].mxu0
    %407 = vdwg.mxu0
    %v408 = vpack.c.bf16 %v402, %v402
    %v409 = vpack.c.bf16 %v405, %v405
    %v410 = vld [vmem:[#allocation10] sm:$0xf]
    %v411 = vld [vmem:[#allocation10 + $0x4] sm:$0xf]
    %v412 = vld [vmem:[#allocation10 + $0x8] sm:$0xf]
    %v413 = vld [vmem:[#allocation10 + $0xc] sm:$0xf]
    %v414 = vld [vmem:[#allocation10 + $0x10] sm:$0xf]
    %v415 = vld [vmem:[#allocation10 + $0x14] sm:$0xf]
    %v416 = vld [vmem:[#allocation10 + $0x18] sm:$0xf]
    %v417 = vld [vmem:[#allocation10 + $0x1c] sm:$0xf]
    %v418 = vld [vmem:[#allocation10 + $0x20] sm:$0xf]
    %v419 = vld [vmem:[#allocation10 + $0x24] sm:$0xf]
    %v420 = vld [vmem:[#allocation10 + $0x28] sm:$0xf]
    %v421 = vld [vmem:[#allocation10 + $0x2c] sm:$0xf]
    %v422 = vld [vmem:[#allocation10 + $0x30] sm:$0xf]
    %v423 = vld [vmem:[#allocation10 + $0x34] sm:$0xf]
    %v424 = vld [vmem:[#allocation10 + $0x38] sm:$0xf]
    %v425 = vld [vmem:[#allocation10 + $0x3c] sm:$0xf]
    %v426 = vld [vmem:[%s8] sm:$0x1]
    %v428 = vlaneseq
    %v429 = vshrl.u32 %v428, 7
    %v430 = vsub.s32 0, %v429
    %v431 = vrot.slane %v426, %v430
    %v449 = vunpack.c.l.b16 %v410
    %v450 = vunpack.c.l.b16 %v411
    %v451 = vunpack.c.l.b16 %v412
    %v452 = vunpack.c.l.b16 %v413
    %v453 = vunpack.c.l.b16 %v414
    %v454 = vunpack.c.l.b16 %v415
    %v455 = vunpack.c.l.b16 %v416
    %v456 = vunpack.c.l.b16 %v417
    %v457 = vunpack.c.l.b16 %v418
    %v458 = vunpack.c.l.b16 %v419
    %v459 = vunpack.c.l.b16 %v420
    %v460 = vunpack.c.l.b16 %v421
    %v461 = vunpack.c.l.b16 %v422
    %v462 = vunpack.c.l.b16 %v423
    %v463 = vunpack.c.l.b16 %v424
    %v464 = vunpack.c.l.b16 %v425
    %v465 = vpack.c.b16 %v450, %v449
    %v466 = vpack.c.b16 %v452, %v451
    %v467 = vpack.c.b16 %v454, %v453
    %v468 = vpack.c.b16 %v456, %v455
    %v469 = vpack.c.b16 %v458, %v457
    %v470 = vpack.c.b16 %v460, %v459
    %v471 = vpack.c.b16 %v462, %v461
    %v472 = vpack.c.b16 %v464, %v463
    %481 = vmatprep.subr.bf16.mxu0 0
    %482 = vmatpush1.bf16.msra.mxu0 %v465
    %483 = vmatprep.subr.bf16.mxu0 0
    %484 = vmatpush1.bf16.msra.mxu0 %v466
    %485 = vmatprep.subr.bf16.mxu0 0
    %486 = vmatpush1.bf16.msra.mxu0 %v467
    %487 = vmatprep.subr.bf16.mxu0 0
    %488 = vmatpush1.bf16.msra.mxu0 %v468
    %489 = vmatprep.subr.bf16.mxu0 0
    %490 = vmatpush1.bf16.msra.mxu0 %v469
    %491 = vmatprep.subr.bf16.mxu0 0
    %492 = vmatpush1.bf16.msra.mxu0 %v470
    %493 = vmatprep.subr.bf16.mxu0 0
    %494 = vmatpush1.bf16.msra.mxu0 %v471
    %495 = vmatprep.subr.bf16.mxu0 0
    %496 = vmatpush1.bf16.msra.mxu0 %v472
    %497 = vmatprep.subr.bf16.mxu0 0
    %498 = vmatpush1.bf16.msra.mxu0 0
    %499 = vmatprep.subr.bf16.mxu0 0
    %500 = vmatpush1.bf16.msra.mxu0 0
    %501 = vmatprep.subr.bf16.mxu0 0
    %502 = vmatpush1.bf16.msra.mxu0 0
    %503 = vmatprep.subr.bf16.mxu0 0
    %504 = vmatpush1.bf16.msra.mxu0 0
    %505 = vmatprep.subr.bf16.mxu0 0
    %506 = vmatpush1.bf16.msra.mxu0 0
    %507 = vmatprep.subr.bf16.mxu0 0
    %508 = vmatpush1.bf16.msra.mxu0 0
    %509 = vmatprep.subr.bf16.mxu0 0
    %510 = vmatpush1.bf16.msra.mxu0 0
    %511 = vmatprep.subr.bf16.mxu0 0
    %512 = vmatpush1.bf16.msra.mxu0 0
    %513 = vmatprep.mubr.bf16.mxu0 0
    %514 = vmatmul.mubr.bf16.gmra.mrb[0].mxu0 %v181
    %v515 = vpop.f32.mrb[0].mxu0
    %v516 = vadd.f32 %v431, %v515
    %v517 = vpop.f32.mrb[0].mxu0
    %v518 = vpop.f32.mrb[0].mxu0
    %v519 = vadd.f32 %v431, %v518
    %v520 = vpop.f32.mrb[0].mxu0
    %521 = vdwg.mxu0
    %v522 = vpack.c.bf16 %v516, %v516
    %v523 = vpack.c.bf16 %v519, %v519
    %v524 = vld [vmem:[%s1] sm:$0x1]
    %v525 = vld [vmem:[%s1 + $0x1] sm:$0x1]
    %v526 = vsub.f32 %v524, 1.0
    %v527 = vsub.f32 %v525, 1.0
    %v528 = vmul.f32 %v526, 1e+09
    %v529 = vmul.f32 %v527, 1e+09
    %vm530 = vcmask 31744
    %v532 = vsel %vm530, %v294, 0
    %v535 = vsel %vm530, %v408, 0
    %537 = vmatprep.subr.bf16.mxu0 0
    %538 = vmatpush1.bf16.xpose.msra.mxu0 %v535
    %539 = vmatprep.subr.bf16.mxu0 0
    %540 = vmatpush1.bf16.xpose.msra.mxu0 0
    %541 = vmatprep.subr.bf16.mxu0 0
    %542 = vmatpush1.bf16.xpose.msra.mxu0 0
    %543 = vmatprep.subr.bf16.mxu0 0
    %544 = vmatpush1.bf16.xpose.msra.mxu0 0
    %545 = vmatprep.subr.bf16.mxu0 0
    %546 = vmatpush1.bf16.xpose.msra.mxu0 0
    %547 = vmatprep.subr.bf16.mxu0 0
    %548 = vmatpush1.bf16.xpose.msra.mxu0 0
    %549 = vmatprep.subr.bf16.mxu0 0
    %550 = vmatpush1.bf16.xpose.msra.mxu0 0
    %551 = vmatprep.subr.bf16.mxu0 0
    %552 = vmatpush1.bf16.xpose.msra.mxu0 0
    %553 = vmatprep.subr.bf16.mxu0 0
    %554 = vmatpush1.bf16.xpose.msra.mxu0 0
    %555 = vmatprep.subr.bf16.mxu0 0
    %556 = vmatpush1.bf16.xpose.msra.mxu0 0
    %557 = vmatprep.subr.bf16.mxu0 0
    %558 = vmatpush1.bf16.xpose.msra.mxu0 0
    %559 = vmatprep.subr.bf16.mxu0 0
    %560 = vmatpush1.bf16.xpose.msra.mxu0 0
    %561 = vmatprep.subr.bf16.mxu0 0
    %562 = vmatpush1.bf16.xpose.msra.mxu0 0
    %563 = vmatprep.subr.bf16.mxu0 0
    %564 = vmatpush1.bf16.xpose.msra.mxu0 0
    %565 = vmatprep.subr.bf16.mxu0 0
    %566 = vmatpush1.bf16.xpose.msra.mxu0 0
    %567 = vmatprep.subr.bf16.mxu0 0
    %568 = vmatpush1.bf16.xpose.msra.mxu0 0
    %569 = vmatprep.mubr.bf16.mxu0 0
    %570 = vmatmul.mubr.bf16.gmra.mrb[0].mxu0 %v532
    %v571 = vpop.f32.mrb[0].mxu0
    %v572 = vadd.f32 0.0, %v571
    %v573 = vpop.f32.mrb[0].mxu0
    %v574 = vpop.f32.mrb[0].mxu0
    %v575 = vpop.f32.mrb[0].mxu0
    %576 = vdwg.mxu0
    %v578 = vsel %vm530, %v295, 0
    %v581 = vsel %vm530, %v409, 0
    %583 = vmatprep.subr.bf16.mxu0 0
    %584 = vmatpush1.bf16.xpose.msra.mxu0 %v581
    %585 = vmatprep.subr.bf16.mxu0 0
    %586 = vmatpush1.bf16.xpose.msra.mxu0 0
    %587 = vmatprep.subr.bf16.mxu0 0
    %588 = vmatpush1.bf16.xpose.msra.mxu0 0
    %589 = vmatprep.subr.bf16.mxu0 0
    %590 = vmatpush1.bf16.xpose.msra.mxu0 0
    %591 = vmatprep.subr.bf16.mxu0 0
    %592 = vmatpush1.bf16.xpose.msra.mxu0 0
    %593 = vmatprep.subr.bf16.mxu0 0
    %594 = vmatpush1.bf16.xpose.msra.mxu0 0
    %595 = vmatprep.subr.bf16.mxu0 0
    %596 = vmatpush1.bf16.xpose.msra.mxu0 0
    %597 = vmatprep.subr.bf16.mxu0 0
    %598 = vmatpush1.bf16.xpose.msra.mxu0 0
    %599 = vmatprep.subr.bf16.mxu0 0
    %600 = vmatpush1.bf16.xpose.msra.mxu0 0
    %601 = vmatprep.subr.bf16.mxu0 0
    %602 = vmatpush1.bf16.xpose.msra.mxu0 0
    %603 = vmatprep.subr.bf16.mxu0 0
    %604 = vmatpush1.bf16.xpose.msra.mxu0 0
    %605 = vmatprep.subr.bf16.mxu0 0
    %606 = vmatpush1.bf16.xpose.msra.mxu0 0
    %607 = vmatprep.subr.bf16.mxu0 0
    %608 = vmatpush1.bf16.xpose.msra.mxu0 0
    %609 = vmatprep.subr.bf16.mxu0 0
    %610 = vmatpush1.bf16.xpose.msra.mxu0 0
    %611 = vmatprep.subr.bf16.mxu0 0
    %612 = vmatpush1.bf16.xpose.msra.mxu0 0
    %613 = vmatprep.subr.bf16.mxu0 0
    %614 = vmatpush1.bf16.xpose.msra.mxu0 0
    %615 = vmatprep.mubr.bf16.mxu0 0
    %616 = vmatmul.mubr.bf16.gmra.mrb[0].mxu0 %v578
    %v617 = vpop.f32.mrb[0].mxu0
    %v618 = vadd.f32 0.0, %v617
    %v619 = vpop.f32.mrb[0].mxu0
    %v620 = vpop.f32.mrb[0].mxu0
    %v621 = vpop.f32.mrb[0].mxu0
    %622 = vdwg.mxu0
    %v623 = vmul.f32 %v572, 0.5
    %v624 = vmul.f32 %v618, 0.5
    %v627 = vlaneseq
    %v628 = vshrl.u32 %v627, 7
    %v629 = vsub.s32 0, %v628
    %v630 = vrot.slane %v528, %v629
    %v631 = vlaneseq
    %v632 = vshrl.u32 %v631, 7
    %v633 = vsub.s32 0, %v632
    %v634 = vrot.slane %v529, %v633
    %v637 = vadd.f32 %v623, %v630
    %v638 = vadd.f32 %v624, %v634
    %vm639 = vcmask 64512
    %v640 = vsel %vm639, %v637, -inf
    %641 = vmax.xlane.f32.xlu0 %v640
    %v642 = vpop.xlane.xlu0 %641
    %v643 = vsel %vm639, %v638, -inf
    %644 = vmax.xlane.f32.xlu0 %v643
    %v645 = vpop.xlane.xlu0 %644
    %v646 = vsub.f32 %v637, %v642
    %v647 = vsub.f32 %v638, %v645
    %v648 = vmul.f32 %v646, 1.442695
    %v649 = vpow.pop %v648
    %v650 = vmul.f32 %v647, 1.442695
    %v651 = vpow.pop %v650
    %v652 = vsel %vm639, %v649, 0.0
    %653 = vadd.xlane.f32.xlu0 %v652
    %v654 = vpop.xlane.xlu0 %653
    %v655 = vsel %vm639, %v651, 0.0
    %656 = vadd.xlane.f32.xlu0 %v655
    %v657 = vpop.xlane.xlu0 %656
    %v658 = vrcp.pop %v654
    %v659 = vrcp.pop %v657
    %v660 = vmul.f32 %v649, %v658
    %v661 = vmul.f32 %v651, %v659
    %v662 = vpack.c.bf16 %v660, %v660
    %v663 = vpack.c.bf16 %v661, %v661
    %v665 = vsel %vm639, %v662, 0
    %vm667 = vcmask 1043456
    %v669 = vsel %vm667, %v522, 0
    %671 = vmatprep.subr.bf16.mxu0 0
    %672 = vmatpush1.bf16.msra.mxu0 %v669
    %673 = vmatprep.subr.bf16.mxu0 0
    %674 = vmatpush1.bf16.msra.mxu0 0
    %675 = vmatprep.subr.bf16.mxu0 0
    %676 = vmatpush1.bf16.msra.mxu0 0
    %677 = vmatprep.subr.bf16.mxu0 0
    %678 = vmatpush1.bf16.msra.mxu0 0
    %679 = vmatprep.subr.bf16.mxu0 0
    %680 = vmatpush1.bf16.msra.mxu0 0
    %681 = vmatprep.subr.bf16.mxu0 0
    %682 = vmatpush1.bf16.msra.mxu0 0
    %683 = vmatprep.subr.bf16.mxu0 0
    %684 = vmatpush1.bf16.msra.mxu0 0
    %685 = vmatprep.subr.bf16.mxu0 0
    %686 = vmatpush1.bf16.msra.mxu0 0
    %687 = vmatprep.subr.bf16.mxu0 0
    %688 = vmatpush1.bf16.msra.mxu0 0
    %689 = vmatprep.subr.bf16.mxu0 0
    %690 = vmatpush1.bf16.msra.mxu0 0
    %691 = vmatprep.subr.bf16.mxu0 0
    %692 = vmatpush1.bf16.msra.mxu0 0
    %693 = vmatprep.subr.bf16.mxu0 0
    %694 = vmatpush1.bf16.msra.mxu0 0
    %695 = vmatprep.subr.bf16.mxu0 0
    %696 = vmatpush1.bf16.msra.mxu0 0
    %697 = vmatprep.subr.bf16.mxu0 0
    %698 = vmatpush1.bf16.msra.mxu0 0
    %699 = vmatprep.subr.bf16.mxu0 0
    %700 = vmatpush1.bf16.msra.mxu0 0
    %701 = vmatprep.subr.bf16.mxu0 0
    %702 = vmatpush1.bf16.msra.mxu0 0
    %703 = vmatprep.mubr.bf16.mxu0 0
    %704 = vmatmul.mubr.bf16.gmra.mrb[0].mxu0 %v665
    %v705 = vpop.f32.mrb[0].mxu0
    %v706 = vadd.f32 0.0, %v705
    %v707 = vpop.f32.mrb[0].mxu0
    %v708 = vpop.f32.mrb[0].mxu0
    %v709 = vpop.f32.mrb[0].mxu0
    %710 = vdwg.mxu0
    %v712 = vsel %vm639, %v663, 0
    %v715 = vsel %vm667, %v523, 0
    %717 = vmatprep.subr.bf16.mxu0 0
    %718 = vmatpush1.bf16.msra.mxu0 %v715
    %719 = vmatprep.subr.bf16.mxu0 0
    %720 = vmatpush1.bf16.msra.mxu0 0
    %721 = vmatprep.subr.bf16.mxu0 0
    %722 = vmatpush1.bf16.msra.mxu0 0
    %723 = vmatprep.subr.bf16.mxu0 0
    %724 = vmatpush1.bf16.msra.mxu0 0
    %725 = vmatprep.subr.bf16.mxu0 0
    %726 = vmatpush1.bf16.msra.mxu0 0
    %727 = vmatprep.subr.bf16.mxu0 0
    %728 = vmatpush1.bf16.msra.mxu0 0
    %729 = vmatprep.subr.bf16.mxu0 0
    %730 = vmatpush1.bf16.msra.mxu0 0
    %731 = vmatprep.subr.bf16.mxu0 0
    %732 = vmatpush1.bf16.msra.mxu0 0
    %733 = vmatprep.subr.bf16.mxu0 0
    %734 = vmatpush1.bf16.msra.mxu0 0
    %735 = vmatprep.subr.bf16.mxu0 0
    %736 = vmatpush1.bf16.msra.mxu0 0
    %737 = vmatprep.subr.bf16.mxu0 0
    %738 = vmatpush1.bf16.msra.mxu0 0
    %739 = vmatprep.subr.bf16.mxu0 0
    %740 = vmatpush1.bf16.msra.mxu0 0
    %741 = vmatprep.subr.bf16.mxu0 0
    %742 = vmatpush1.bf16.msra.mxu0 0
    %743 = vmatprep.subr.bf16.mxu0 0
    %744 = vmatpush1.bf16.msra.mxu0 0
    %745 = vmatprep.subr.bf16.mxu0 0
    %746 = vmatpush1.bf16.msra.mxu0 0
    %747 = vmatprep.subr.bf16.mxu0 0
    %748 = vmatpush1.bf16.msra.mxu0 0
    %749 = vmatprep.mubr.bf16.mxu0 0
    %750 = vmatmul.mubr.bf16.gmra.mrb[0].mxu0 %v712
    %v751 = vpop.f32.mrb[0].mxu0
    %v752 = vadd.f32 0.0, %v751
    %v753 = vpop.f32.mrb[0].mxu0
    %v754 = vpop.f32.mrb[0].mxu0
    %v755 = vpop.f32.mrb[0].mxu0
    %756 = vdwg.mxu0
    %758 = vrot.lane.b32.xlu0 %v294, 124
    %v759 = vpop.permute.xlu0 %758
    %761 = vrot.lane.b32.xlu0 %v408, 124
    %v762 = vpop.permute.xlu0 %761
    %v764 = vsel %vm530, %v759, 0
    %v767 = vsel %vm530, %v762, 0
    %769 = vmatprep.subr.bf16.mxu0 0
    %770 = vmatpush1.bf16.xpose.msra.mxu0 %v767
    %771 = vmatprep.subr.bf16.mxu0 0
    %772 = vmatpush1.bf16.xpose.msra.mxu0 0
    %773 = vmatprep.subr.bf16.mxu0 0
    %774 = vmatpush1.bf16.xpose.msra.mxu0 0
    %775 = vmatprep.subr.bf16.mxu0 0
    %776 = vmatpush1.bf16.xpose.msra.mxu0 0
    %777 = vmatprep.subr.bf16.mxu0 0
    %778 = vmatpush1.bf16.xpose.msra.mxu0 0
    %779 = vmatprep.subr.bf16.mxu0 0
    %780 = vmatpush1.bf16.xpose.msra.mxu0 0
    %781 = vmatprep.subr.bf16.mxu0 0
    %782 = vmatpush1.bf16.xpose.msra.mxu0 0
    %783 = vmatprep.subr.bf16.mxu0 0
    %784 = vmatpush1.bf16.xpose.msra.mxu0 0
    %785 = vmatprep.subr.bf16.mxu0 0
    %786 = vmatpush1.bf16.xpose.msra.mxu0 0
    %787 = vmatprep.subr.bf16.mxu0 0
    %788 = vmatpush1.bf16.xpose.msra.mxu0 0
    %789 = vmatprep.subr.bf16.mxu0 0
    %790 = vmatpush1.bf16.xpose.msra.mxu0 0
    %791 = vmatprep.subr.bf16.mxu0 0
    %792 = vmatpush1.bf16.xpose.msra.mxu0 0
    %793 = vmatprep.subr.bf16.mxu0 0
    %794 = vmatpush1.bf16.xpose.msra.mxu0 0
    %795 = vmatprep.subr.bf16.mxu0 0
    %796 = vmatpush1.bf16.xpose.msra.mxu0 0
    %797 = vmatprep.subr.bf16.mxu0 0
    %798 = vmatpush1.bf16.xpose.msra.mxu0 0
    %799 = vmatprep.subr.bf16.mxu0 0
    %800 = vmatpush1.bf16.xpose.msra.mxu0 0
    %801 = vmatprep.mubr.bf16.mxu0 0
    %802 = vmatmul.mubr.bf16.gmra.mrb[0].mxu0 %v764
    %v803 = vpop.f32.mrb[0].mxu0
    %v804 = vadd.f32 0.0, %v803
    %v805 = vpop.f32.mrb[0].mxu0
    %v806 = vpop.f32.mrb[0].mxu0
    %v807 = vpop.f32.mrb[0].mxu0
    %808 = vdwg.mxu0
    %810 = vrot.lane.b32.xlu0 %v295, 124
    %v811 = vpop.permute.xlu0 %810
    %813 = vrot.lane.b32.xlu0 %v409, 124
    %v814 = vpop.permute.xlu0 %813
    %v816 = vsel %vm530, %v811, 0
    %v819 = vsel %vm530, %v814, 0
    %821 = vmatprep.subr.bf16.mxu0 0
    %822 = vmatpush1.bf16.xpose.msra.mxu0 %v819
    %823 = vmatprep.subr.bf16.mxu0 0
    %824 = vmatpush1.bf16.xpose.msra.mxu0 0
    %825 = vmatprep.subr.bf16.mxu0 0
    %826 = vmatpush1.bf16.xpose.msra.mxu0 0
    %827 = vmatprep.subr.bf16.mxu0 0
    %828 = vmatpush1.bf16.xpose.msra.mxu0 0
    %829 = vmatprep.subr.bf16.mxu0 0
    %830 = vmatpush1.bf16.xpose.msra.mxu0 0
    %831 = vmatprep.subr.bf16.mxu0 0
    %832 = vmatpush1.bf16.xpose.msra.mxu0 0
    %833 = vmatprep.subr.bf16.mxu0 0
    %834 = vmatpush1.bf16.xpose.msra.mxu0 0
    %835 = vmatprep.subr.bf16.mxu0 0
    %836 = vmatpush1.bf16.xpose.msra.mxu0 0
    %837 = vmatprep.subr.bf16.mxu0 0
    %838 = vmatpush1.bf16.xpose.msra.mxu0 0
    %839 = vmatprep.subr.bf16.mxu0 0
    %840 = vmatpush1.bf16.xpose.msra.mxu0 0
    %841 = vmatprep.subr.bf16.mxu0 0
    %842 = vmatpush1.bf16.xpose.msra.mxu0 0
    %843 = vmatprep.subr.bf16.mxu0 0
    %844 = vmatpush1.bf16.xpose.msra.mxu0 0
    %845 = vmatprep.subr.bf16.mxu0 0
    %846 = vmatpush1.bf16.xpose.msra.mxu0 0
    %847 = vmatprep.subr.bf16.mxu0 0
    %848 = vmatpush1.bf16.xpose.msra.mxu0 0
    %849 = vmatprep.subr.bf16.mxu0 0
    %850 = vmatpush1.bf16.xpose.msra.mxu0 0
    %851 = vmatprep.subr.bf16.mxu0 0
    %852 = vmatpush1.bf16.xpose.msra.mxu0 0
    %853 = vmatprep.mubr.bf16.mxu0 0
    %854 = vmatmul.mubr.bf16.gmra.mrb[0].mxu0 %v816
    %v855 = vpop.f32.mrb[0].mxu0
    %v856 = vadd.f32 0.0, %v855
    %v857 = vpop.f32.mrb[0].mxu0
    %v858 = vpop.f32.mrb[0].mxu0
    %v859 = vpop.f32.mrb[0].mxu0
    %860 = vdwg.mxu0
    %v861 = vmul.f32 %v804, 0.5
    %v862 = vmul.f32 %v856, 0.5
    %v863 = vadd.f32 %v861, %v630
    %v864 = vadd.f32 %v862, %v634
    %v865 = vsel %vm639, %v863, -inf
    %866 = vmax.xlane.f32.xlu0 %v865
    %v867 = vpop.xlane.xlu0 %866
    %v868 = vsel %vm639, %v864, -inf
    %869 = vmax.xlane.f32.xlu0 %v868
    %v870 = vpop.xlane.xlu0 %869
    %v871 = vsub.f32 %v863, %v867
    %v872 = vsub.f32 %v864, %v870
    %v873 = vmul.f32 %v871, 1.442695
    %v874 = vpow.pop %v873
    %v875 = vmul.f32 %v872, 1.442695
    %v876 = vpow.pop %v875
    %v877 = vsel %vm639, %v874, 0.0
    %878 = vadd.xlane.f32.xlu0 %v877
    %v879 = vpop.xlane.xlu0 %878
    %v880 = vsel %vm639, %v876, 0.0
    %881 = vadd.xlane.f32.xlu0 %v880
    %v882 = vpop.xlane.xlu0 %881
    %v883 = vrcp.pop %v879
    %v884 = vrcp.pop %v882
    %v885 = vmul.f32 %v874, %v883
    %v886 = vmul.f32 %v876, %v884
    %v887 = vpack.c.bf16 %v885, %v885
    %v888 = vpack.c.bf16 %v886, %v886
    %890 = vrot.lane.b32.xlu0 %v522, 124
    %v891 = vpop.permute.xlu0 %890
    %v893 = vsel %vm639, %v887, 0
    %v896 = vsel %vm667, %v891, 0
    %898 = vmatprep.subr.bf16.mxu0 0
    %899 = vmatpush1.bf16.msra.mxu0 %v896
    %900 = vmatprep.subr.bf16.mxu0 0
    %901 = vmatpush1.bf16.msra.mxu0 0
    %902 = vmatprep.subr.bf16.mxu0 0
    %903 = vmatpush1.bf16.msra.mxu0 0
    %904 = vmatprep.subr.bf16.mxu0 0
    %905 = vmatpush1.bf16.msra.mxu0 0
    %906 = vmatprep.subr.bf16.mxu0 0
    %907 = vmatpush1.bf16.msra.mxu0 0
    %908 = vmatprep.subr.bf16.mxu0 0
    %909 = vmatpush1.bf16.msra.mxu0 0
    %910 = vmatprep.subr.bf16.mxu0 0
    %911 = vmatpush1.bf16.msra.mxu0 0
    %912 = vmatprep.subr.bf16.mxu0 0
    %913 = vmatpush1.bf16.msra.mxu0 0
    %914 = vmatprep.subr.bf16.mxu0 0
    %915 = vmatpush1.bf16.msra.mxu0 0
    %916 = vmatprep.subr.bf16.mxu0 0
    %917 = vmatpush1.bf16.msra.mxu0 0
    %918 = vmatprep.subr.bf16.mxu0 0
    %919 = vmatpush1.bf16.msra.mxu0 0
    %920 = vmatprep.subr.bf16.mxu0 0
    %921 = vmatpush1.bf16.msra.mxu0 0
    %922 = vmatprep.subr.bf16.mxu0 0
    %923 = vmatpush1.bf16.msra.mxu0 0
    %924 = vmatprep.subr.bf16.mxu0 0
    %925 = vmatpush1.bf16.msra.mxu0 0
    %926 = vmatprep.subr.bf16.mxu0 0
    %927 = vmatpush1.bf16.msra.mxu0 0
    %928 = vmatprep.subr.bf16.mxu0 0
    %929 = vmatpush1.bf16.msra.mxu0 0
    %930 = vmatprep.mubr.bf16.mxu0 0
    %931 = vmatmul.mubr.bf16.gmra.mrb[0].mxu0 %v893
    %v932 = vpop.f32.mrb[0].mxu0
    %v933 = vadd.f32 0.0, %v932
    %v934 = vpop.f32.mrb[0].mxu0
    %v935 = vpop.f32.mrb[0].mxu0
    %v936 = vpop.f32.mrb[0].mxu0
    %937 = vdwg.mxu0
    %939 = vrot.lane.b32.xlu0 %v523, 124
    %v940 = vpop.permute.xlu0 %939
    %v942 = vsel %vm639, %v888, 0
    %v945 = vsel %vm667, %v940, 0
    %947 = vmatprep.subr.bf16.mxu0 0
    %948 = vmatpush1.bf16.msra.mxu0 %v945
    %949 = vmatprep.subr.bf16.mxu0 0
    %950 = vmatpush1.bf16.msra.mxu0 0
    %951 = vmatprep.subr.bf16.mxu0 0
    %952 = vmatpush1.bf16.msra.mxu0 0
    %953 = vmatprep.subr.bf16.mxu0 0
    %954 = vmatpush1.bf16.msra.mxu0 0
    %955 = vmatprep.subr.bf16.mxu0 0
    %956 = vmatpush1.bf16.msra.mxu0 0
    %957 = vmatprep.subr.bf16.mxu0 0
    %958 = vmatpush1.bf16.msra.mxu0 0
    %959 = vmatprep.subr.bf16.mxu0 0
    %960 = vmatpush1.bf16.msra.mxu0 0
    %961 = vmatprep.subr.bf16.mxu0 0
    %962 = vmatpush1.bf16.msra.mxu0 0
    %963 = vmatprep.subr.bf16.mxu0 0
    %964 = vmatpush1.bf16.msra.mxu0 0
    %965 = vmatprep.subr.bf16.mxu0 0
    %966 = vmatpush1.bf16.msra.mxu0 0
    %967 = vmatprep.subr.bf16.mxu0 0
    %968 = vmatpush1.bf16.msra.mxu0 0
    %969 = vmatprep.subr.bf16.mxu0 0
    %970 = vmatpush1.bf16.msra.mxu0 0
    %971 = vmatprep.subr.bf16.mxu0 0
    %972 = vmatpush1.bf16.msra.mxu0 0
    %973 = vmatprep.subr.bf16.mxu0 0
    %974 = vmatpush1.bf16.msra.mxu0 0
    %975 = vmatprep.subr.bf16.mxu0 0
    %976 = vmatpush1.bf16.msra.mxu0 0
    %977 = vmatprep.subr.bf16.mxu0 0
    %978 = vmatpush1.bf16.msra.mxu0 0
    %979 = vmatprep.mubr.bf16.mxu0 0
    %980 = vmatmul.mubr.bf16.gmra.mrb[0].mxu0 %v942
    %v981 = vpop.f32.mrb[0].mxu0
    %v982 = vadd.f32 0.0, %v981
    %v983 = vpop.f32.mrb[0].mxu0
    %v984 = vpop.f32.mrb[0].mxu0
    %v985 = vpop.f32.mrb[0].mxu0
    %986 = vdwg.mxu0
    %987 = vrot.lane.b32.xlu0 %v294, 120
    %v988 = vpop.permute.xlu0 %987
    %989 = vrot.lane.b32.xlu0 %v408, 120
    %v990 = vpop.permute.xlu0 %989
    %v992 = vsel %vm530, %v988, 0
    %v995 = vsel %vm530, %v990, 0
    %997 = vmatprep.subr.bf16.mxu0 0
    %998 = vmatpush1.bf16.xpose.msra.mxu0 %v995
    %999 = vmatprep.subr.bf16.mxu0 0
    %1000 = vmatpush1.bf16.xpose.msra.mxu0 0
    %1001 = vmatprep.subr.bf16.mxu0 0
    %1002 = vmatpush1.bf16.xpose.msra.mxu0 0
    %1003 = vmatprep.subr.bf16.mxu0 0
    %1004 = vmatpush1.bf16.xpose.msra.mxu0 0
    %1005 = vmatprep.subr.bf16.mxu0 0
    %1006 = vmatpush1.bf16.xpose.msra.mxu0 0
    %1007 = vmatprep.subr.bf16.mxu0 0
    %1008 = vmatpush1.bf16.xpose.msra.mxu0 0
    %1009 = vmatprep.subr.bf16.mxu0 0
    %1010 = vmatpush1.bf16.xpose.msra.mxu0 0
    %1011 = vmatprep.subr.bf16.mxu0 0
    %1012 = vmatpush1.bf16.xpose.msra.mxu0 0
    %1013 = vmatprep.subr.bf16.mxu0 0
    %1014 = vmatpush1.bf16.xpose.msra.mxu0 0
    %1015 = vmatprep.subr.bf16.mxu0 0
    %1016 = vmatpush1.bf16.xpose.msra.mxu0 0
    %1017 = vmatprep.subr.bf16.mxu0 0
    %1018 = vmatpush1.bf16.xpose.msra.mxu0 0
    %1019 = vmatprep.subr.bf16.mxu0 0
    %1020 = vmatpush1.bf16.xpose.msra.mxu0 0
    %1021 = vmatprep.subr.bf16.mxu0 0
    %1022 = vmatpush1.bf16.xpose.msra.mxu0 0
    %1023 = vmatprep.subr.bf16.mxu0 0
    %1024 = vmatpush1.bf16.xpose.msra.mxu0 0
    %1025 = vmatprep.subr.bf16.mxu0 0
    %1026 = vmatpush1.bf16.xpose.msra.mxu0 0
    %1027 = vmatprep.subr.bf16.mxu0 0
    %1028 = vmatpush1.bf16.xpose.msra.mxu0 0
    %1029 = vmatprep.mubr.bf16.mxu0 0
    %1030 = vmatmul.mubr.bf16.gmra.mrb[0].mxu0 %v992
    %v1031 = vpop.f32.mrb[0].mxu0
    %v1032 = vadd.f32 0.0, %v1031
    %v1033 = vpop.f32.mrb[0].mxu0
    %v1034 = vpop.f32.mrb[0].mxu0
    %v1035 = vpop.f32.mrb[0].mxu0
    %1036 = vdwg.mxu0
    %1037 = vrot.lane.b32.xlu0 %v295, 120
    %v1038 = vpop.permute.xlu0 %1037
    %1039 = vrot.lane.b32.xlu0 %v409, 120
    %v1040 = vpop.permute.xlu0 %1039
    %v1042 = vsel %vm530, %v1038, 0
    %v1045 = vsel %vm530, %v1040, 0
    %1047 = vmatprep.subr.bf16.mxu0 0
    %1048 = vmatpush1.bf16.xpose.msra.mxu0 %v1045
    %1049 = vmatprep.subr.bf16.mxu0 0
    %1050 = vmatpush1.bf16.xpose.msra.mxu0 0
    %1051 = vmatprep.subr.bf16.mxu0 0
    %1052 = vmatpush1.bf16.xpose.msra.mxu0 0
    %1053 = vmatprep.subr.bf16.mxu0 0
    %1054 = vmatpush1.bf16.xpose.msra.mxu0 0
    %1055 = vmatprep.subr.bf16.mxu0 0
    %1056 = vmatpush1.bf16.xpose.msra.mxu0 0
    %1057 = vmatprep.subr.bf16.mxu0 0
    %1058 = vmatpush1.bf16.xpose.msra.mxu0 0
    %1059 = vmatprep.subr.bf16.mxu0 0
    %1060 = vmatpush1.bf16.xpose.msra.mxu0 0
    %1061 = vmatprep.subr.bf16.mxu0 0
    %1062 = vmatpush1.bf16.xpose.msra.mxu0 0
    %1063 = vmatprep.subr.bf16.mxu0 0
    %1064 = vmatpush1.bf16.xpose.msra.mxu0 0
    %1065 = vmatprep.subr.bf16.mxu0 0
    %1066 = vmatpush1.bf16.xpose.msra.mxu0 0
    %1067 = vmatprep.subr.bf16.mxu0 0
    %1068 = vmatpush1.bf16.xpose.msra.mxu0 0
    %1069 = vmatprep.subr.bf16.mxu0 0
    %1070 = vmatpush1.bf16.xpose.msra.mxu0 0
    %1071 = vmatprep.subr.bf16.mxu0 0
    %1072 = vmatpush1.bf16.xpose.msra.mxu0 0
    %1073 = vmatprep.subr.bf16.mxu0 0
    %1074 = vmatpush1.bf16.xpose.msra.mxu0 0
    %1075 = vmatprep.subr.bf16.mxu0 0
    %1076 = vmatpush1.bf16.xpose.msra.mxu0 0
    %1077 = vmatprep.subr.bf16.mxu0 0
    %1078 = vmatpush1.bf16.xpose.msra.mxu0 0
    %1079 = vmatprep.mubr.bf16.mxu0 0
    %1080 = vmatmul.mubr.bf16.gmra.mrb[0].mxu0 %v1042
    %v1081 = vpop.f32.mrb[0].mxu0
    %v1082 = vadd.f32 0.0, %v1081
    %v1083 = vpop.f32.mrb[0].mxu0
    %v1084 = vpop.f32.mrb[0].mxu0
    %v1085 = vpop.f32.mrb[0].mxu0
    %1086 = vdwg.mxu0
    %v1087 = vmul.f32 %v1032, 0.5
    %v1088 = vmul.f32 %v1082, 0.5
    %v1089 = vadd.f32 %v1087, %v630
    %v1090 = vadd.f32 %v1088, %v634
    %v1091 = vsel %vm639, %v1089, -inf
    %1092 = vmax.xlane.f32.xlu0 %v1091
    %v1093 = vpop.xlane.xlu0 %1092
    %v1094 = vsel %vm639, %v1090, -inf
    %1095 = vmax.xlane.f32.xlu0 %v1094
    %v1096 = vpop.xlane.xlu0 %1095
    %v1097 = vsub.f32 %v1089, %v1093
    %v1098 = vsub.f32 %v1090, %v1096
    %v1099 = vmul.f32 %v1097, 1.442695
    %v1100 = vpow.pop %v1099
    %v1101 = vmul.f32 %v1098, 1.442695
    %v1102 = vpow.pop %v1101
    %v1103 = vsel %vm639, %v1100, 0.0
    %1104 = vadd.xlane.f32.xlu0 %v1103
    %v1105 = vpop.xlane.xlu0 %1104
    %v1106 = vsel %vm639, %v1102, 0.0
    %1107 = vadd.xlane.f32.xlu0 %v1106
    %v1108 = vpop.xlane.xlu0 %1107
    %v1109 = vrcp.pop %v1105
    %v1110 = vrcp.pop %v1108
    %v1111 = vmul.f32 %v1100, %v1109
    %v1112 = vmul.f32 %v1102, %v1110
    %v1113 = vpack.c.bf16 %v1111, %v1111
    %v1114 = vpack.c.bf16 %v1112, %v1112
    %1115 = vrot.lane.b32.xlu0 %v522, 120
    %v1116 = vpop.permute.xlu0 %1115
    %v1118 = vsel %vm639, %v1113, 0
    %v1121 = vsel %vm667, %v1116, 0
    %1123 = vmatprep.subr.bf16.mxu0 0
    %1124 = vmatpush1.bf16.msra.mxu0 %v1121
    %1125 = vmatprep.subr.bf16.mxu0 0
    %1126 = vmatpush1.bf16.msra.mxu0 0
    %1127 = vmatprep.subr.bf16.mxu0 0
    %1128 = vmatpush1.bf16.msra.mxu0 0
    %1129 = vmatprep.subr.bf16.mxu0 0
    %1130 = vmatpush1.bf16.msra.mxu0 0
    %1131 = vmatprep.subr.bf16.mxu0 0
    %1132 = vmatpush1.bf16.msra.mxu0 0
    %1133 = vmatprep.subr.bf16.mxu0 0
    %1134 = vmatpush1.bf16.msra.mxu0 0
    %1135 = vmatprep.subr.bf16.mxu0 0
    %1136 = vmatpush1.bf16.msra.mxu0 0
    %1137 = vmatprep.subr.bf16.mxu0 0
    %1138 = vmatpush1.bf16.msra.mxu0 0
    %1139 = vmatprep.subr.bf16.mxu0 0
    %1140 = vmatpush1.bf16.msra.mxu0 0
    %1141 = vmatprep.subr.bf16.mxu0 0
    %1142 = vmatpush1.bf16.msra.mxu0 0
    %1143 = vmatprep.subr.bf16.mxu0 0
    %1144 = vmatpush1.bf16.msra.mxu0 0
    %1145 = vmatprep.subr.bf16.mxu0 0
    %1146 = vmatpush1.bf16.msra.mxu0 0
    %1147 = vmatprep.subr.bf16.mxu0 0
    %1148 = vmatpush1.bf16.msra.mxu0 0
    %1149 = vmatprep.subr.bf16.mxu0 0
    %1150 = vmatpush1.bf16.msra.mxu0 0
    %1151 = vmatprep.subr.bf16.mxu0 0
    %1152 = vmatpush1.bf16.msra.mxu0 0
    %1153 = vmatprep.subr.bf16.mxu0 0
    %1154 = vmatpush1.bf16.msra.mxu0 0
    %1155 = vmatprep.mubr.bf16.mxu0 0
    %1156 = vmatmul.mubr.bf16.gmra.mrb[0].mxu0 %v1118
    %v1157 = vpop.f32.mrb[0].mxu0
    %v1158 = vadd.f32 0.0, %v1157
    %v1159 = vpop.f32.mrb[0].mxu0
    %v1160 = vpop.f32.mrb[0].mxu0
    %v1161 = vpop.f32.mrb[0].mxu0
    %1162 = vdwg.mxu0
    %1163 = vrot.lane.b32.xlu0 %v523, 120
    %v1164 = vpop.permute.xlu0 %1163
    %v1166 = vsel %vm639, %v1114, 0
    %v1169 = vsel %vm667, %v1164, 0
    %1171 = vmatprep.subr.bf16.mxu0 0
    %1172 = vmatpush1.bf16.msra.mxu0 %v1169
    %1173 = vmatprep.subr.bf16.mxu0 0
    %1174 = vmatpush1.bf16.msra.mxu0 0
    %1175 = vmatprep.subr.bf16.mxu0 0
    %1176 = vmatpush1.bf16.msra.mxu0 0
    %1177 = vmatprep.subr.bf16.mxu0 0
    %1178 = vmatpush1.bf16.msra.mxu0 0
    %1179 = vmatprep.subr.bf16.mxu0 0
    %1180 = vmatpush1.bf16.msra.mxu0 0
    %1181 = vmatprep.subr.bf16.mxu0 0
    %1182 = vmatpush1.bf16.msra.mxu0 0
    %1183 = vmatprep.subr.bf16.mxu0 0
    %1184 = vmatpush1.bf16.msra.mxu0 0
    %1185 = vmatprep.subr.bf16.mxu0 0
    %1186 = vmatpush1.bf16.msra.mxu0 0
    %1187 = vmatprep.subr.bf16.mxu0 0
    %1188 = vmatpush1.bf16.msra.mxu0 0
    %1189 = vmatprep.subr.bf16.mxu0 0
    %1190 = vmatpush1.bf16.msra.mxu0 0
    %1191 = vmatprep.subr.bf16.mxu0 0
    %1192 = vmatpush1.bf16.msra.mxu0 0
    %1193 = vmatprep.subr.bf16.mxu0 0
    %1194 = vmatpush1.bf16.msra.mxu0 0
    %1195 = vmatprep.subr.bf16.mxu0 0
    %1196 = vmatpush1.bf16.msra.mxu0 0
    %1197 = vmatprep.subr.bf16.mxu0 0
    %1198 = vmatpush1.bf16.msra.mxu0 0
    %1199 = vmatprep.subr.bf16.mxu0 0
    %1200 = vmatpush1.bf16.msra.mxu0 0
    %1201 = vmatprep.subr.bf16.mxu0 0
    %1202 = vmatpush1.bf16.msra.mxu0 0
    %1203 = vmatprep.mubr.bf16.mxu0 0
    %1204 = vmatmul.mubr.bf16.gmra.mrb[0].mxu0 %v1166
    %v1205 = vpop.f32.mrb[0].mxu0
    %v1206 = vadd.f32 0.0, %v1205
    %v1207 = vpop.f32.mrb[0].mxu0
    %v1208 = vpop.f32.mrb[0].mxu0
    %v1209 = vpop.f32.mrb[0].mxu0
    %1210 = vdwg.mxu0
    %1211 = vrot.lane.b32.xlu0 %v294, 116
    %v1212 = vpop.permute.xlu0 %1211
    %1213 = vrot.lane.b32.xlu0 %v408, 116
    %v1214 = vpop.permute.xlu0 %1213
    %v1216 = vsel %vm530, %v1212, 0
    %v1219 = vsel %vm530, %v1214, 0
    %1221 = vmatprep.subr.bf16.mxu0 0
    %1222 = vmatpush1.bf16.xpose.msra.mxu0 %v1219
    %1223 = vmatprep.subr.bf16.mxu0 0
    %1224 = vmatpush1.bf16.xpose.msra.mxu0 0
    %1225 = vmatprep.subr.bf16.mxu0 0
    %1226 = vmatpush1.bf16.xpose.msra.mxu0 0
    %1227 = vmatprep.subr.bf16.mxu0 0
    %1228 = vmatpush1.bf16.xpose.msra.mxu0 0
    %1229 = vmatprep.subr.bf16.mxu0 0
    %1230 = vmatpush1.bf16.xpose.msra.mxu0 0
    %1231 = vmatprep.subr.bf16.mxu0 0
    %1232 = vmatpush1.bf16.xpose.msra.mxu0 0
    %1233 = vmatprep.subr.bf16.mxu0 0
    %1234 = vmatpush1.bf16.xpose.msra.mxu0 0
    %1235 = vmatprep.subr.bf16.mxu0 0
    %1236 = vmatpush1.bf16.xpose.msra.mxu0 0
    %1237 = vmatprep.subr.bf16.mxu0 0
    %1238 = vmatpush1.bf16.xpose.msra.mxu0 0
    %1239 = vmatprep.subr.bf16.mxu0 0
    %1240 = vmatpush1.bf16.xpose.msra.mxu0 0
    %1241 = vmatprep.subr.bf16.mxu0 0
    %1242 = vmatpush1.bf16.xpose.msra.mxu0 0
    %1243 = vmatprep.subr.bf16.mxu0 0
    %1244 = vmatpush1.bf16.xpose.msra.mxu0 0
    %1245 = vmatprep.subr.bf16.mxu0 0
    %1246 = vmatpush1.bf16.xpose.msra.mxu0 0
    %1247 = vmatprep.subr.bf16.mxu0 0
    %1248 = vmatpush1.bf16.xpose.msra.mxu0 0
    %1249 = vmatprep.subr.bf16.mxu0 0
    %1250 = vmatpush1.bf16.xpose.msra.mxu0 0
    %1251 = vmatprep.subr.bf16.mxu0 0
    %1252 = vmatpush1.bf16.xpose.msra.mxu0 0
    %1253 = vmatprep.mubr.bf16.mxu0 0
    %1254 = vmatmul.mubr.bf16.gmra.mrb[0].mxu0 %v1216
    %v1255 = vpop.f32.mrb[0].mxu0
    %v1256 = vadd.f32 0.0, %v1255
    %v1257 = vpop.f32.mrb[0].mxu0
    %v1258 = vpop.f32.mrb[0].mxu0
    %v1259 = vpop.f32.mrb[0].mxu0
    %1260 = vdwg.mxu0
    %1261 = vrot.lane.b32.xlu0 %v295, 116
    %v1262 = vpop.permute.xlu0 %1261
    %1263 = vrot.lane.b32.xlu0 %v409, 116
    %v1264 = vpop.permute.xlu0 %1263
    %v1266 = vsel %vm530, %v1262, 0
    %v1269 = vsel %vm530, %v1264, 0
    %1271 = vmatprep.subr.bf16.mxu0 0
    %1272 = vmatpush1.bf16.xpose.msra.mxu0 %v1269
    %1273 = vmatprep.subr.bf16.mxu0 0
    %1274 = vmatpush1.bf16.xpose.msra.mxu0 0
    %1275 = vmatprep.subr.bf16.mxu0 0
    %1276 = vmatpush1.bf16.xpose.msra.mxu0 0
    %1277 = vmatprep.subr.bf16.mxu0 0
    %1278 = vmatpush1.bf16.xpose.msra.mxu0 0
    %1279 = vmatprep.subr.bf16.mxu0 0
    %1280 = vmatpush1.bf16.xpose.msra.mxu0 0
    %1281 = vmatprep.subr.bf16.mxu0 0
    %1282 = vmatpush1.bf16.xpose.msra.mxu0 0
    %1283 = vmatprep.subr.bf16.mxu0 0
    %1284 = vmatpush1.bf16.xpose.msra.mxu0 0
    %1285 = vmatprep.subr.bf16.mxu0 0
    %1286 = vmatpush1.bf16.xpose.msra.mxu0 0
    %1287 = vmatprep.subr.bf16.mxu0 0
    %1288 = vmatpush1.bf16.xpose.msra.mxu0 0
    %1289 = vmatprep.subr.bf16.mxu0 0
    %1290 = vmatpush1.bf16.xpose.msra.mxu0 0
    %1291 = vmatprep.subr.bf16.mxu0 0
    %1292 = vmatpush1.bf16.xpose.msra.mxu0 0
    %1293 = vmatprep.subr.bf16.mxu0 0
    %1294 = vmatpush1.bf16.xpose.msra.mxu0 0
    %1295 = vmatprep.subr.bf16.mxu0 0
    %1296 = vmatpush1.bf16.xpose.msra.mxu0 0
    %1297 = vmatprep.subr.bf16.mxu0 0
    %1298 = vmatpush1.bf16.xpose.msra.mxu0 0
    %1299 = vmatprep.subr.bf16.mxu0 0
    %1300 = vmatpush1.bf16.xpose.msra.mxu0 0
    %1301 = vmatprep.subr.bf16.mxu0 0
    %1302 = vmatpush1.bf16.xpose.msra.mxu0 0
    %1303 = vmatprep.mubr.bf16.mxu0 0
    %1304 = vmatmul.mubr.bf16.gmra.mrb[0].mxu0 %v1266
    %v1305 = vpop.f32.mrb[0].mxu0
    %v1306 = vadd.f32 0.0, %v1305
    %v1307 = vpop.f32.mrb[0].mxu0
    %v1308 = vpop.f32.mrb[0].mxu0
    %v1309 = vpop.f32.mrb[0].mxu0
    %1310 = vdwg.mxu0
    %v1311 = vmul.f32 %v1256, 0.5
    %v1312 = vmul.f32 %v1306, 0.5
    %v1313 = vadd.f32 %v1311, %v630
    %v1314 = vadd.f32 %v1312, %v634
    %v1315 = vsel %vm639, %v1313, -inf
    %1316 = vmax.xlane.f32.xlu0 %v1315
    %v1317 = vpop.xlane.xlu0 %1316
    %v1318 = vsel %vm639, %v1314, -inf
    %1319 = vmax.xlane.f32.xlu0 %v1318
    %v1320 = vpop.xlane.xlu0 %1319
    %v1321 = vsub.f32 %v1313, %v1317
    %v1322 = vsub.f32 %v1314, %v1320
    %v1323 = vmul.f32 %v1321, 1.442695
    %v1324 = vpow.pop %v1323
    %v1325 = vmul.f32 %v1322, 1.442695
    %v1326 = vpow.pop %v1325
    %v1327 = vsel %vm639, %v1324, 0.0
    %1328 = vadd.xlane.f32.xlu0 %v1327
    %v1329 = vpop.xlane.xlu0 %1328
    %v1330 = vsel %vm639, %v1326, 0.0
    %1331 = vadd.xlane.f32.xlu0 %v1330
    %v1332 = vpop.xlane.xlu0 %1331
    %v1333 = vrcp.pop %v1329
    %v1334 = vrcp.pop %v1332
    %v1335 = vmul.f32 %v1324, %v1333
    %v1336 = vmul.f32 %v1326, %v1334
    %v1337 = vpack.c.bf16 %v1335, %v1335
    %v1338 = vpack.c.bf16 %v1336, %v1336
    %1339 = vrot.lane.b32.xlu0 %v522, 116
    %v1340 = vpop.permute.xlu0 %1339
    %v1342 = vsel %vm639, %v1337, 0
    %v1345 = vsel %vm667, %v1340, 0
    %1347 = vmatprep.subr.bf16.mxu0 0
    %1348 = vmatpush1.bf16.msra.mxu0 %v1345
    %1349 = vmatprep.subr.bf16.mxu0 0
    %1350 = vmatpush1.bf16.msra.mxu0 0
    %1351 = vmatprep.subr.bf16.mxu0 0
    %1352 = vmatpush1.bf16.msra.mxu0 0
    %1353 = vmatprep.subr.bf16.mxu0 0
    %1354 = vmatpush1.bf16.msra.mxu0 0
    %1355 = vmatprep.subr.bf16.mxu0 0
    %1356 = vmatpush1.bf16.msra.mxu0 0
    %1357 = vmatprep.subr.bf16.mxu0 0
    %1358 = vmatpush1.bf16.msra.mxu0 0
    %1359 = vmatprep.subr.bf16.mxu0 0
    %1360 = vmatpush1.bf16.msra.mxu0 0
    %1361 = vmatprep.subr.bf16.mxu0 0
    %1362 = vmatpush1.bf16.msra.mxu0 0
    %1363 = vmatprep.subr.bf16.mxu0 0
    %1364 = vmatpush1.bf16.msra.mxu0 0
    %1365 = vmatprep.subr.bf16.mxu0 0
    %1366 = vmatpush1.bf16.msra.mxu0 0
    %1367 = vmatprep.subr.bf16.mxu0 0
    %1368 = vmatpush1.bf16.msra.mxu0 0
    %1369 = vmatprep.subr.bf16.mxu0 0
    %1370 = vmatpush1.bf16.msra.mxu0 0
    %1371 = vmatprep.subr.bf16.mxu0 0
    %1372 = vmatpush1.bf16.msra.mxu0 0
    %1373 = vmatprep.subr.bf16.mxu0 0
    %1374 = vmatpush1.bf16.msra.mxu0 0
    %1375 = vmatprep.subr.bf16.mxu0 0
    %1376 = vmatpush1.bf16.msra.mxu0 0
    %1377 = vmatprep.subr.bf16.mxu0 0
    %1378 = vmatpush1.bf16.msra.mxu0 0
    %1379 = vmatprep.mubr.bf16.mxu0 0
    %1380 = vmatmul.mubr.bf16.gmra.mrb[0].mxu0 %v1342
    %v1381 = vpop.f32.mrb[0].mxu0
    %v1382 = vadd.f32 0.0, %v1381
    %v1383 = vpop.f32.mrb[0].mxu0
    %v1384 = vpop.f32.mrb[0].mxu0
    %v1385 = vpop.f32.mrb[0].mxu0
    %1386 = vdwg.mxu0
    %1387 = vrot.lane.b32.xlu0 %v523, 116
    %v1388 = vpop.permute.xlu0 %1387
    %v1390 = vsel %vm639, %v1338, 0
    %v1393 = vsel %vm667, %v1388, 0
    %1395 = vmatprep.subr.bf16.mxu0 0
    %1396 = vmatpush1.bf16.msra.mxu0 %v1393
    %1397 = vmatprep.subr.bf16.mxu0 0
    %1398 = vmatpush1.bf16.msra.mxu0 0
    %1399 = vmatprep.subr.bf16.mxu0 0
    %1400 = vmatpush1.bf16.msra.mxu0 0
    %1401 = vmatprep.subr.bf16.mxu0 0
    %1402 = vmatpush1.bf16.msra.mxu0 0
    %1403 = vmatprep.subr.bf16.mxu0 0
    %1404 = vmatpush1.bf16.msra.mxu0 0
    %1405 = vmatprep.subr.bf16.mxu0 0
    %1406 = vmatpush1.bf16.msra.mxu0 0
    %1407 = vmatprep.subr.bf16.mxu0 0
    %1408 = vmatpush1.bf16.msra.mxu0 0
    %1409 = vmatprep.subr.bf16.mxu0 0
    %1410 = vmatpush1.bf16.msra.mxu0 0
    %1411 = vmatprep.subr.bf16.mxu0 0
    %1412 = vmatpush1.bf16.msra.mxu0 0
    %1413 = vmatprep.subr.bf16.mxu0 0
    %1414 = vmatpush1.bf16.msra.mxu0 0
    %1415 = vmatprep.subr.bf16.mxu0 0
    %1416 = vmatpush1.bf16.msra.mxu0 0
    %1417 = vmatprep.subr.bf16.mxu0 0
    %1418 = vmatpush1.bf16.msra.mxu0 0
    %1419 = vmatprep.subr.bf16.mxu0 0
    %1420 = vmatpush1.bf16.msra.mxu0 0
    %1421 = vmatprep.subr.bf16.mxu0 0
    %1422 = vmatpush1.bf16.msra.mxu0 0
    %1423 = vmatprep.subr.bf16.mxu0 0
    %1424 = vmatpush1.bf16.msra.mxu0 0
    %1425 = vmatprep.subr.bf16.mxu0 0
    %1426 = vmatpush1.bf16.msra.mxu0 0
    %1427 = vmatprep.mubr.bf16.mxu0 0
    %1428 = vmatmul.mubr.bf16.gmra.mrb[0].mxu0 %v1390
    %v1429 = vpop.f32.mrb[0].mxu0
    %v1430 = vadd.f32 0.0, %v1429
    %v1431 = vpop.f32.mrb[0].mxu0
    %v1432 = vpop.f32.mrb[0].mxu0
    %v1433 = vpop.f32.mrb[0].mxu0
    %1434 = vdwg.mxu0
    %1435 = vrot.lane.b32.xlu0 %v294, 112
    %v1436 = vpop.permute.xlu0 %1435
    %1437 = vrot.lane.b32.xlu0 %v408, 112
    %v1438 = vpop.permute.xlu0 %1437
    %v1440 = vsel %vm530, %v1436, 0
    %v1443 = vsel %vm530, %v1438, 0
    %1445 = vmatprep.subr.bf16.mxu0 0
    %1446 = vmatpush1.bf16.xpose.msra.mxu0 %v1443
    %1447 = vmatprep.subr.bf16.mxu0 0
    %1448 = vmatpush1.bf16.xpose.msra.mxu0 0
    %1449 = vmatprep.subr.bf16.mxu0 0
    %1450 = vmatpush1.bf16.xpose.msra.mxu0 0
    %1451 = vmatprep.subr.bf16.mxu0 0
    %1452 = vmatpush1.bf16.xpose.msra.mxu0 0
    %1453 = vmatprep.subr.bf16.mxu0 0
    %1454 = vmatpush1.bf16.xpose.msra.mxu0 0
    %1455 = vmatprep.subr.bf16.mxu0 0
    %1456 = vmatpush1.bf16.xpose.msra.mxu0 0
    %1457 = vmatprep.subr.bf16.mxu0 0
    %1458 = vmatpush1.bf16.xpose.msra.mxu0 0
    %1459 = vmatprep.subr.bf16.mxu0 0
    %1460 = vmatpush1.bf16.xpose.msra.mxu0 0
    %1461 = vmatprep.subr.bf16.mxu0 0
    %1462 = vmatpush1.bf16.xpose.msra.mxu0 0
    %1463 = vmatprep.subr.bf16.mxu0 0
    %1464 = vmatpush1.bf16.xpose.msra.mxu0 0
    %1465 = vmatprep.subr.bf16.mxu0 0
    %1466 = vmatpush1.bf16.xpose.msra.mxu0 0
    %1467 = vmatprep.subr.bf16.mxu0 0
    %1468 = vmatpush1.bf16.xpose.msra.mxu0 0
    %1469 = vmatprep.subr.bf16.mxu0 0
    %1470 = vmatpush1.bf16.xpose.msra.mxu0 0
    %1471 = vmatprep.subr.bf16.mxu0 0
    %1472 = vmatpush1.bf16.xpose.msra.mxu0 0
    %1473 = vmatprep.subr.bf16.mxu0 0
    %1474 = vmatpush1.bf16.xpose.msra.mxu0 0
    %1475 = vmatprep.subr.bf16.mxu0 0
    %1476 = vmatpush1.bf16.xpose.msra.mxu0 0
    %1477 = vmatprep.mubr.bf16.mxu0 0
    %1478 = vmatmul.mubr.bf16.gmra.mrb[0].mxu0 %v1440
    %v1479 = vpop.f32.mrb[0].mxu0
    %v1480 = vadd.f32 0.0, %v1479
    %v1481 = vpop.f32.mrb[0].mxu0
    %v1482 = vpop.f32.mrb[0].mxu0
    %v1483 = vpop.f32.mrb[0].mxu0
    %1484 = vdwg.mxu0
    %1485 = vrot.lane.b32.xlu0 %v295, 112
    %v1486 = vpop.permute.xlu0 %1485
    %1487 = vrot.lane.b32.xlu0 %v409, 112
    %v1488 = vpop.permute.xlu0 %1487
    %v1490 = vsel %vm530, %v1486, 0
    %v1493 = vsel %vm530, %v1488, 0
    %1495 = vmatprep.subr.bf16.mxu0 0
    %1496 = vmatpush1.bf16.xpose.msra.mxu0 %v1493
    %1497 = vmatprep.subr.bf16.mxu0 0
    %1498 = vmatpush1.bf16.xpose.msra.mxu0 0
    %1499 = vmatprep.subr.bf16.mxu0 0
    %1500 = vmatpush1.bf16.xpose.msra.mxu0 0
    %1501 = vmatprep.subr.bf16.mxu0 0
    %1502 = vmatpush1.bf16.xpose.msra.mxu0 0
    %1503 = vmatprep.subr.bf16.mxu0 0
    %1504 = vmatpush1.bf16.xpose.msra.mxu0 0
    %1505 = vmatprep.subr.bf16.mxu0 0
    %1506 = vmatpush1.bf16.xpose.msra.mxu0 0
    %1507 = vmatprep.subr.bf16.mxu0 0
    %1508 = vmatpush1.bf16.xpose.msra.mxu0 0
    %1509 = vmatprep.subr.bf16.mxu0 0
    %1510 = vmatpush1.bf16.xpose.msra.mxu0 0
    %1511 = vmatprep.subr.bf16.mxu0 0
    %1512 = vmatpush1.bf16.xpose.msra.mxu0 0
    %1513 = vmatprep.subr.bf16.mxu0 0
    %1514 = vmatpush1.bf16.xpose.msra.mxu0 0
    %1515 = vmatprep.subr.bf16.mxu0 0
    %1516 = vmatpush1.bf16.xpose.msra.mxu0 0
    %1517 = vmatprep.subr.bf16.mxu0 0
    %1518 = vmatpush1.bf16.xpose.msra.mxu0 0
    %1519 = vmatprep.subr.bf16.mxu0 0
    %1520 = vmatpush1.bf16.xpose.msra.mxu0 0
    %1521 = vmatprep.subr.bf16.mxu0 0
    %1522 = vmatpush1.bf16.xpose.msra.mxu0 0
    %1523 = vmatprep.subr.bf16.mxu0 0
    %1524 = vmatpush1.bf16.xpose.msra.mxu0 0
    %1525 = vmatprep.subr.bf16.mxu0 0
    %1526 = vmatpush1.bf16.xpose.msra.mxu0 0
    %1527 = vmatprep.mubr.bf16.mxu0 0
    %1528 = vmatmul.mubr.bf16.gmra.mrb[0].mxu0 %v1490
    %v1529 = vpop.f32.mrb[0].mxu0
    %v1530 = vadd.f32 0.0, %v1529
    %v1531 = vpop.f32.mrb[0].mxu0
    %v1532 = vpop.f32.mrb[0].mxu0
    %v1533 = vpop.f32.mrb[0].mxu0
    %1534 = vdwg.mxu0
    %v1535 = vmul.f32 %v1480, 0.5
    %v1536 = vmul.f32 %v1530, 0.5
    %v1537 = vadd.f32 %v1535, %v630
    %v1538 = vadd.f32 %v1536, %v634
    %v1539 = vsel %vm639, %v1537, -inf
    %1540 = vmax.xlane.f32.xlu0 %v1539
    %v1541 = vpop.xlane.xlu0 %1540
    %v1542 = vsel %vm639, %v1538, -inf
    %1543 = vmax.xlane.f32.xlu0 %v1542
    %v1544 = vpop.xlane.xlu0 %1543
    %v1545 = vsub.f32 %v1537, %v1541
    %v1546 = vsub.f32 %v1538, %v1544
    %v1547 = vmul.f32 %v1545, 1.442695
    %v1548 = vpow.pop %v1547
    %v1549 = vmul.f32 %v1546, 1.442695
    %v1550 = vpow.pop %v1549
    %v1551 = vsel %vm639, %v1548, 0.0
    %1552 = vadd.xlane.f32.xlu0 %v1551
    %v1553 = vpop.xlane.xlu0 %1552
    %v1554 = vsel %vm639, %v1550, 0.0
    %1555 = vadd.xlane.f32.xlu0 %v1554
    %v1556 = vpop.xlane.xlu0 %1555
    %v1557 = vrcp.pop %v1553
    %v1558 = vrcp.pop %v1556
    %v1559 = vmul.f32 %v1548, %v1557
    %v1560 = vmul.f32 %v1550, %v1558
    %v1561 = vpack.c.bf16 %v1559, %v1559
    %v1562 = vpack.c.bf16 %v1560, %v1560
    %1563 = vrot.lane.b32.xlu0 %v522, 112
    %v1564 = vpop.permute.xlu0 %1563
    %v1566 = vsel %vm639, %v1561, 0
    %v1569 = vsel %vm667, %v1564, 0
    %1571 = vmatprep.subr.bf16.mxu0 0
    %1572 = vmatpush1.bf16.msra.mxu0 %v1569
    %1573 = vmatprep.subr.bf16.mxu0 0
    %1574 = vmatpush1.bf16.msra.mxu0 0
    %1575 = vmatprep.subr.bf16.mxu0 0
    %1576 = vmatpush1.bf16.msra.mxu0 0
    %1577 = vmatprep.subr.bf16.mxu0 0
    %1578 = vmatpush1.bf16.msra.mxu0 0
    %1579 = vmatprep.subr.bf16.mxu0 0
    %1580 = vmatpush1.bf16.msra.mxu0 0
    %1581 = vmatprep.subr.bf16.mxu0 0
    %1582 = vmatpush1.bf16.msra.mxu0 0
    %1583 = vmatprep.subr.bf16.mxu0 0
    %1584 = vmatpush1.bf16.msra.mxu0 0
    %1585 = vmatprep.subr.bf16.mxu0 0
    %1586 = vmatpush1.bf16.msra.mxu0 0
    %1587 = vmatprep.subr.bf16.mxu0 0
    %1588 = vmatpush1.bf16.msra.mxu0 0
    %1589 = vmatprep.subr.bf16.mxu0 0
    %1590 = vmatpush1.bf16.msra.mxu0 0
    %1591 = vmatprep.subr.bf16.mxu0 0
    %1592 = vmatpush1.bf16.msra.mxu0 0
    %1593 = vmatprep.subr.bf16.mxu0 0
    %1594 = vmatpush1.bf16.msra.mxu0 0
    %1595 = vmatprep.subr.bf16.mxu0 0
    %1596 = vmatpush1.bf16.msra.mxu0 0
    %1597 = vmatprep.subr.bf16.mxu0 0
    %1598 = vmatpush1.bf16.msra.mxu0 0
    %1599 = vmatprep.subr.bf16.mxu0 0
    %1600 = vmatpush1.bf16.msra.mxu0 0
    %1601 = vmatprep.subr.bf16.mxu0 0
    %1602 = vmatpush1.bf16.msra.mxu0 0
    %1603 = vmatprep.mubr.bf16.mxu0 0
    %1604 = vmatmul.mubr.bf16.gmra.mrb[0].mxu0 %v1566
    %v1605 = vpop.f32.mrb[0].mxu0
    %v1606 = vadd.f32 0.0, %v1605
    %v1607 = vpop.f32.mrb[0].mxu0
    %v1608 = vpop.f32.mrb[0].mxu0
    %v1609 = vpop.f32.mrb[0].mxu0
    %1610 = vdwg.mxu0
    %1611 = vrot.lane.b32.xlu0 %v523, 112
    %v1612 = vpop.permute.xlu0 %1611
    %v1614 = vsel %vm639, %v1562, 0
    %v1617 = vsel %vm667, %v1612, 0
    %1619 = vmatprep.subr.bf16.mxu0 0
    %1620 = vmatpush1.bf16.msra.mxu0 %v1617
    %1621 = vmatprep.subr.bf16.mxu0 0
    %1622 = vmatpush1.bf16.msra.mxu0 0
    %1623 = vmatprep.subr.bf16.mxu0 0
    %1624 = vmatpush1.bf16.msra.mxu0 0
    %1625 = vmatprep.subr.bf16.mxu0 0
    %1626 = vmatpush1.bf16.msra.mxu0 0
    %1627 = vmatprep.subr.bf16.mxu0 0
    %1628 = vmatpush1.bf16.msra.mxu0 0
    %1629 = vmatprep.subr.bf16.mxu0 0
    %1630 = vmatpush1.bf16.msra.mxu0 0
    %1631 = vmatprep.subr.bf16.mxu0 0
    %1632 = vmatpush1.bf16.msra.mxu0 0
    %1633 = vmatprep.subr.bf16.mxu0 0
    %1634 = vmatpush1.bf16.msra.mxu0 0
    %1635 = vmatprep.subr.bf16.mxu0 0
    %1636 = vmatpush1.bf16.msra.mxu0 0
    %1637 = vmatprep.subr.bf16.mxu0 0
    %1638 = vmatpush1.bf16.msra.mxu0 0
    %1639 = vmatprep.subr.bf16.mxu0 0
    %1640 = vmatpush1.bf16.msra.mxu0 0
    %1641 = vmatprep.subr.bf16.mxu0 0
    %1642 = vmatpush1.bf16.msra.mxu0 0
    %1643 = vmatprep.subr.bf16.mxu0 0
    %1644 = vmatpush1.bf16.msra.mxu0 0
    %1645 = vmatprep.subr.bf16.mxu0 0
    %1646 = vmatpush1.bf16.msra.mxu0 0
    %1647 = vmatprep.subr.bf16.mxu0 0
    %1648 = vmatpush1.bf16.msra.mxu0 0
    %1649 = vmatprep.subr.bf16.mxu0 0
    %1650 = vmatpush1.bf16.msra.mxu0 0
    %1651 = vmatprep.mubr.bf16.mxu0 0
    %1652 = vmatmul.mubr.bf16.gmra.mrb[0].mxu0 %v1614
    %v1653 = vpop.f32.mrb[0].mxu0
    %v1654 = vadd.f32 0.0, %v1653
    %v1655 = vpop.f32.mrb[0].mxu0
    %v1656 = vpop.f32.mrb[0].mxu0
    %v1657 = vpop.f32.mrb[0].mxu0
    %1658 = vdwg.mxu0
    %1659 = vrot.lane.b32.xlu0 %v294, 108
    %v1660 = vpop.permute.xlu0 %1659
    %1661 = vrot.lane.b32.xlu0 %v408, 108
    %v1662 = vpop.permute.xlu0 %1661
    %v1664 = vsel %vm530, %v1660, 0
    %v1667 = vsel %vm530, %v1662, 0
    %1669 = vmatprep.subr.bf16.mxu0 0
    %1670 = vmatpush1.bf16.xpose.msra.mxu0 %v1667
    %1671 = vmatprep.subr.bf16.mxu0 0
    %1672 = vmatpush1.bf16.xpose.msra.mxu0 0
    %1673 = vmatprep.subr.bf16.mxu0 0
    %1674 = vmatpush1.bf16.xpose.msra.mxu0 0
    %1675 = vmatprep.subr.bf16.mxu0 0
    %1676 = vmatpush1.bf16.xpose.msra.mxu0 0
    %1677 = vmatprep.subr.bf16.mxu0 0
    %1678 = vmatpush1.bf16.xpose.msra.mxu0 0
    %1679 = vmatprep.subr.bf16.mxu0 0
    %1680 = vmatpush1.bf16.xpose.msra.mxu0 0
    %1681 = vmatprep.subr.bf16.mxu0 0
    %1682 = vmatpush1.bf16.xpose.msra.mxu0 0
    %1683 = vmatprep.subr.bf16.mxu0 0
    %1684 = vmatpush1.bf16.xpose.msra.mxu0 0
    %1685 = vmatprep.subr.bf16.mxu0 0
    %1686 = vmatpush1.bf16.xpose.msra.mxu0 0
    %1687 = vmatprep.subr.bf16.mxu0 0
    %1688 = vmatpush1.bf16.xpose.msra.mxu0 0
    %1689 = vmatprep.subr.bf16.mxu0 0
    %1690 = vmatpush1.bf16.xpose.msra.mxu0 0
    %1691 = vmatprep.subr.bf16.mxu0 0
    %1692 = vmatpush1.bf16.xpose.msra.mxu0 0
    %1693 = vmatprep.subr.bf16.mxu0 0
    %1694 = vmatpush1.bf16.xpose.msra.mxu0 0
    %1695 = vmatprep.subr.bf16.mxu0 0
    %1696 = vmatpush1.bf16.xpose.msra.mxu0 0
    %1697 = vmatprep.subr.bf16.mxu0 0
    %1698 = vmatpush1.bf16.xpose.msra.mxu0 0
    %1699 = vmatprep.subr.bf16.mxu0 0
    %1700 = vmatpush1.bf16.xpose.msra.mxu0 0
    %1701 = vmatprep.mubr.bf16.mxu0 0
    %1702 = vmatmul.mubr.bf16.gmra.mrb[0].mxu0 %v1664
    %v1703 = vpop.f32.mrb[0].mxu0
    %v1704 = vadd.f32 0.0, %v1703
    %v1705 = vpop.f32.mrb[0].mxu0
    %v1706 = vpop.f32.mrb[0].mxu0
    %v1707 = vpop.f32.mrb[0].mxu0
    %1708 = vdwg.mxu0
    %1709 = vrot.lane.b32.xlu0 %v295, 108
    %v1710 = vpop.permute.xlu0 %1709
    %1711 = vrot.lane.b32.xlu0 %v409, 108
    %v1712 = vpop.permute.xlu0 %1711
    %v1714 = vsel %vm530, %v1710, 0
    %v1717 = vsel %vm530, %v1712, 0
    %1719 = vmatprep.subr.bf16.mxu0 0
    %1720 = vmatpush1.bf16.xpose.msra.mxu0 %v1717
    %1721 = vmatprep.subr.bf16.mxu0 0
    %1722 = vmatpush1.bf16.xpose.msra.mxu0 0
    %1723 = vmatprep.subr.bf16.mxu0 0
    %1724 = vmatpush1.bf16.xpose.msra.mxu0 0
    %1725 = vmatprep.subr.bf16.mxu0 0
    %1726 = vmatpush1.bf16.xpose.msra.mxu0 0
    %1727 = vmatprep.subr.bf16.mxu0 0
    %1728 = vmatpush1.bf16.xpose.msra.mxu0 0
    %1729 = vmatprep.subr.bf16.mxu0 0
    %1730 = vmatpush1.bf16.xpose.msra.mxu0 0
    %1731 = vmatprep.subr.bf16.mxu0 0
    %1732 = vmatpush1.bf16.xpose.msra.mxu0 0
    %1733 = vmatprep.subr.bf16.mxu0 0
    %1734 = vmatpush1.bf16.xpose.msra.mxu0 0
    %1735 = vmatprep.subr.bf16.mxu0 0
    %1736 = vmatpush1.bf16.xpose.msra.mxu0 0
    %1737 = vmatprep.subr.bf16.mxu0 0
    %1738 = vmatpush1.bf16.xpose.msra.mxu0 0
    %1739 = vmatprep.subr.bf16.mxu0 0
    %1740 = vmatpush1.bf16.xpose.msra.mxu0 0
    %1741 = vmatprep.subr.bf16.mxu0 0
    %1742 = vmatpush1.bf16.xpose.msra.mxu0 0
    %1743 = vmatprep.subr.bf16.mxu0 0
    %1744 = vmatpush1.bf16.xpose.msra.mxu0 0
    %1745 = vmatprep.subr.bf16.mxu0 0
    %1746 = vmatpush1.bf16.xpose.msra.mxu0 0
    %1747 = vmatprep.subr.bf16.mxu0 0
    %1748 = vmatpush1.bf16.xpose.msra.mxu0 0
    %1749 = vmatprep.subr.bf16.mxu0 0
    %1750 = vmatpush1.bf16.xpose.msra.mxu0 0
    %1751 = vmatprep.mubr.bf16.mxu0 0
    %1752 = vmatmul.mubr.bf16.gmra.mrb[0].mxu0 %v1714
    %v1753 = vpop.f32.mrb[0].mxu0
    %v1754 = vadd.f32 0.0, %v1753
    %v1755 = vpop.f32.mrb[0].mxu0
    %v1756 = vpop.f32.mrb[0].mxu0
    %v1757 = vpop.f32.mrb[0].mxu0
    %1758 = vdwg.mxu0
    %v1759 = vmul.f32 %v1704, 0.5
    %v1760 = vmul.f32 %v1754, 0.5
    %v1761 = vadd.f32 %v1759, %v630
    %v1762 = vadd.f32 %v1760, %v634
    %v1763 = vsel %vm639, %v1761, -inf
    %1764 = vmax.xlane.f32.xlu0 %v1763
    %v1765 = vpop.xlane.xlu0 %1764
    %v1766 = vsel %vm639, %v1762, -inf
    %1767 = vmax.xlane.f32.xlu0 %v1766
    %v1768 = vpop.xlane.xlu0 %1767
    %v1769 = vsub.f32 %v1761, %v1765
    %v1770 = vsub.f32 %v1762, %v1768
    %v1771 = vmul.f32 %v1769, 1.442695
    %v1772 = vpow.pop %v1771
    %v1773 = vmul.f32 %v1770, 1.442695
    %v1774 = vpow.pop %v1773
    %v1775 = vsel %vm639, %v1772, 0.0
    %1776 = vadd.xlane.f32.xlu0 %v1775
    %v1777 = vpop.xlane.xlu0 %1776
    %v1778 = vsel %vm639, %v1774, 0.0
    %1779 = vadd.xlane.f32.xlu0 %v1778
    %v1780 = vpop.xlane.xlu0 %1779
    %v1781 = vrcp.pop %v1777
    %v1782 = vrcp.pop %v1780
    %v1783 = vmul.f32 %v1772, %v1781
    %v1784 = vmul.f32 %v1774, %v1782
    %v1785 = vpack.c.bf16 %v1783, %v1783
    %v1786 = vpack.c.bf16 %v1784, %v1784
    %1787 = vrot.lane.b32.xlu0 %v522, 108
    %v1788 = vpop.permute.xlu0 %1787
    %v1790 = vsel %vm639, %v1785, 0
    %v1793 = vsel %vm667, %v1788, 0
    %1795 = vmatprep.subr.bf16.mxu0 0
    %1796 = vmatpush1.bf16.msra.mxu0 %v1793
    %1797 = vmatprep.subr.bf16.mxu0 0
    %1798 = vmatpush1.bf16.msra.mxu0 0
    %1799 = vmatprep.subr.bf16.mxu0 0
    %1800 = vmatpush1.bf16.msra.mxu0 0
    %1801 = vmatprep.subr.bf16.mxu0 0
    %1802 = vmatpush1.bf16.msra.mxu0 0
    %1803 = vmatprep.subr.bf16.mxu0 0
    %1804 = vmatpush1.bf16.msra.mxu0 0
    %1805 = vmatprep.subr.bf16.mxu0 0
    %1806 = vmatpush1.bf16.msra.mxu0 0
    %1807 = vmatprep.subr.bf16.mxu0 0
    %1808 = vmatpush1.bf16.msra.mxu0 0
    %1809 = vmatprep.subr.bf16.mxu0 0
    %1810 = vmatpush1.bf16.msra.mxu0 0
    %1811 = vmatprep.subr.bf16.mxu0 0
    %1812 = vmatpush1.bf16.msra.mxu0 0
    %1813 = vmatprep.subr.bf16.mxu0 0
    %1814 = vmatpush1.bf16.msra.mxu0 0
    %1815 = vmatprep.subr.bf16.mxu0 0
    %1816 = vmatpush1.bf16.msra.mxu0 0
    %1817 = vmatprep.subr.bf16.mxu0 0
    %1818 = vmatpush1.bf16.msra.mxu0 0
    %1819 = vmatprep.subr.bf16.mxu0 0
    %1820 = vmatpush1.bf16.msra.mxu0 0
    %1821 = vmatprep.subr.bf16.mxu0 0
    %1822 = vmatpush1.bf16.msra.mxu0 0
    %1823 = vmatprep.subr.bf16.mxu0 0
    %1824 = vmatpush1.bf16.msra.mxu0 0
    %1825 = vmatprep.subr.bf16.mxu0 0
    %1826 = vmatpush1.bf16.msra.mxu0 0
    %1827 = vmatprep.mubr.bf16.mxu0 0
    %1828 = vmatmul.mubr.bf16.gmra.mrb[0].mxu0 %v1790
    %v1829 = vpop.f32.mrb[0].mxu0
    %v1830 = vadd.f32 0.0, %v1829
    %v1831 = vpop.f32.mrb[0].mxu0
    %v1832 = vpop.f32.mrb[0].mxu0
    %v1833 = vpop.f32.mrb[0].mxu0
    %1834 = vdwg.mxu0
    %1835 = vrot.lane.b32.xlu0 %v523, 108
    %v1836 = vpop.permute.xlu0 %1835
    %v1838 = vsel %vm639, %v1786, 0
    %v1841 = vsel %vm667, %v1836, 0
    %1843 = vmatprep.subr.bf16.mxu0 0
    %1844 = vmatpush1.bf16.msra.mxu0 %v1841
    %1845 = vmatprep.subr.bf16.mxu0 0
    %1846 = vmatpush1.bf16.msra.mxu0 0
    %1847 = vmatprep.subr.bf16.mxu0 0
    %1848 = vmatpush1.bf16.msra.mxu0 0
    %1849 = vmatprep.subr.bf16.mxu0 0
    %1850 = vmatpush1.bf16.msra.mxu0 0
    %1851 = vmatprep.subr.bf16.mxu0 0
    %1852 = vmatpush1.bf16.msra.mxu0 0
    %1853 = vmatprep.subr.bf16.mxu0 0
    %1854 = vmatpush1.bf16.msra.mxu0 0
    %1855 = vmatprep.subr.bf16.mxu0 0
    %1856 = vmatpush1.bf16.msra.mxu0 0
    %1857 = vmatprep.subr.bf16.mxu0 0
    %1858 = vmatpush1.bf16.msra.mxu0 0
    %1859 = vmatprep.subr.bf16.mxu0 0
    %1860 = vmatpush1.bf16.msra.mxu0 0
    %1861 = vmatprep.subr.bf16.mxu0 0
    %1862 = vmatpush1.bf16.msra.mxu0 0
    %1863 = vmatprep.subr.bf16.mxu0 0
    %1864 = vmatpush1.bf16.msra.mxu0 0
    %1865 = vmatprep.subr.bf16.mxu0 0
    %1866 = vmatpush1.bf16.msra.mxu0 0
    %1867 = vmatprep.subr.bf16.mxu0 0
    %1868 = vmatpush1.bf16.msra.mxu0 0
    %1869 = vmatprep.subr.bf16.mxu0 0
    %1870 = vmatpush1.bf16.msra.mxu0 0
    %1871 = vmatprep.subr.bf16.mxu0 0
    %1872 = vmatpush1.bf16.msra.mxu0 0
    %1873 = vmatprep.subr.bf16.mxu0 0
    %1874 = vmatpush1.bf16.msra.mxu0 0
    %1875 = vmatprep.mubr.bf16.mxu0 0
    %1876 = vmatmul.mubr.bf16.gmra.mrb[0].mxu0 %v1838
    %v1877 = vpop.f32.mrb[0].mxu0
    %v1878 = vadd.f32 0.0, %v1877
    %v1879 = vpop.f32.mrb[0].mxu0
    %v1880 = vpop.f32.mrb[0].mxu0
    %v1881 = vpop.f32.mrb[0].mxu0
    %1882 = vdwg.mxu0
    %1883 = vrot.lane.b32.xlu0 %v294, 104
    %v1884 = vpop.permute.xlu0 %1883
    %1885 = vrot.lane.b32.xlu0 %v408, 104
    %v1886 = vpop.permute.xlu0 %1885
    %v1888 = vsel %vm530, %v1884, 0
    %v1891 = vsel %vm530, %v1886, 0
    %1893 = vmatprep.subr.bf16.mxu0 0
    %1894 = vmatpush1.bf16.xpose.msra.mxu0 %v1891
    %1895 = vmatprep.subr.bf16.mxu0 0
    %1896 = vmatpush1.bf16.xpose.msra.mxu0 0
    %1897 = vmatprep.subr.bf16.mxu0 0
    %1898 = vmatpush1.bf16.xpose.msra.mxu0 0
    %1899 = vmatprep.subr.bf16.mxu0 0
    %1900 = vmatpush1.bf16.xpose.msra.mxu0 0
    %1901 = vmatprep.subr.bf16.mxu0 0
    %1902 = vmatpush1.bf16.xpose.msra.mxu0 0
    %1903 = vmatprep.subr.bf16.mxu0 0
    %1904 = vmatpush1.bf16.xpose.msra.mxu0 0
    %1905 = vmatprep.subr.bf16.mxu0 0
    %1906 = vmatpush1.bf16.xpose.msra.mxu0 0
    %1907 = vmatprep.subr.bf16.mxu0 0
    %1908 = vmatpush1.bf16.xpose.msra.mxu0 0
    %1909 = vmatprep.subr.bf16.mxu0 0
    %1910 = vmatpush1.bf16.xpose.msra.mxu0 0
    %1911 = vmatprep.subr.bf16.mxu0 0
    %1912 = vmatpush1.bf16.xpose.msra.mxu0 0
    %1913 = vmatprep.subr.bf16.mxu0 0
    %1914 = vmatpush1.bf16.xpose.msra.mxu0 0
    %1915 = vmatprep.subr.bf16.mxu0 0
    %1916 = vmatpush1.bf16.xpose.msra.mxu0 0
    %1917 = vmatprep.subr.bf16.mxu0 0
    %1918 = vmatpush1.bf16.xpose.msra.mxu0 0
    %1919 = vmatprep.subr.bf16.mxu0 0
    %1920 = vmatpush1.bf16.xpose.msra.mxu0 0
    %1921 = vmatprep.subr.bf16.mxu0 0
    %1922 = vmatpush1.bf16.xpose.msra.mxu0 0
    %1923 = vmatprep.subr.bf16.mxu0 0
    %1924 = vmatpush1.bf16.xpose.msra.mxu0 0
    %1925 = vmatprep.mubr.bf16.mxu0 0
    %1926 = vmatmul.mubr.bf16.gmra.mrb[0].mxu0 %v1888
    %v1927 = vpop.f32.mrb[0].mxu0
    %v1928 = vadd.f32 0.0, %v1927
    %v1929 = vpop.f32.mrb[0].mxu0
    %v1930 = vpop.f32.mrb[0].mxu0
    %v1931 = vpop.f32.mrb[0].mxu0
    %1932 = vdwg.mxu0
    %1933 = vrot.lane.b32.xlu0 %v295, 104
    %v1934 = vpop.permute.xlu0 %1933
    %1935 = vrot.lane.b32.xlu0 %v409, 104
    %v1936 = vpop.permute.xlu0 %1935
    %v1938 = vsel %vm530, %v1934, 0
    %v1941 = vsel %vm530, %v1936, 0
    %1943 = vmatprep.subr.bf16.mxu0 0
    %1944 = vmatpush1.bf16.xpose.msra.mxu0 %v1941
    %1945 = vmatprep.subr.bf16.mxu0 0
    %1946 = vmatpush1.bf16.xpose.msra.mxu0 0
    %1947 = vmatprep.subr.bf16.mxu0 0
    %1948 = vmatpush1.bf16.xpose.msra.mxu0 0
    %1949 = vmatprep.subr.bf16.mxu0 0
    %1950 = vmatpush1.bf16.xpose.msra.mxu0 0
    %1951 = vmatprep.subr.bf16.mxu0 0
    %1952 = vmatpush1.bf16.xpose.msra.mxu0 0
    %1953 = vmatprep.subr.bf16.mxu0 0
    %1954 = vmatpush1.bf16.xpose.msra.mxu0 0
    %1955 = vmatprep.subr.bf16.mxu0 0
    %1956 = vmatpush1.bf16.xpose.msra.mxu0 0
    %1957 = vmatprep.subr.bf16.mxu0 0
    %1958 = vmatpush1.bf16.xpose.msra.mxu0 0
    %1959 = vmatprep.subr.bf16.mxu0 0
    %1960 = vmatpush1.bf16.xpose.msra.mxu0 0
    %1961 = vmatprep.subr.bf16.mxu0 0
    %1962 = vmatpush1.bf16.xpose.msra.mxu0 0
    %1963 = vmatprep.subr.bf16.mxu0 0
    %1964 = vmatpush1.bf16.xpose.msra.mxu0 0
    %1965 = vmatprep.subr.bf16.mxu0 0
    %1966 = vmatpush1.bf16.xpose.msra.mxu0 0
    %1967 = vmatprep.subr.bf16.mxu0 0
    %1968 = vmatpush1.bf16.xpose.msra.mxu0 0
    %1969 = vmatprep.subr.bf16.mxu0 0
    %1970 = vmatpush1.bf16.xpose.msra.mxu0 0
    %1971 = vmatprep.subr.bf16.mxu0 0
    %1972 = vmatpush1.bf16.xpose.msra.mxu0 0
    %1973 = vmatprep.subr.bf16.mxu0 0
    %1974 = vmatpush1.bf16.xpose.msra.mxu0 0
    %1975 = vmatprep.mubr.bf16.mxu0 0
    %1976 = vmatmul.mubr.bf16.gmra.mrb[0].mxu0 %v1938
    %v1977 = vpop.f32.mrb[0].mxu0
    %v1978 = vadd.f32 0.0, %v1977
    %v1979 = vpop.f32.mrb[0].mxu0
    %v1980 = vpop.f32.mrb[0].mxu0
    %v1981 = vpop.f32.mrb[0].mxu0
    %1982 = vdwg.mxu0
    %v1983 = vmul.f32 %v1928, 0.5
    %v1984 = vmul.f32 %v1978, 0.5
    %v1985 = vadd.f32 %v1983, %v630
    %v1986 = vadd.f32 %v1984, %v634
    %v1987 = vsel %vm639, %v1985, -inf
    %1988 = vmax.xlane.f32.xlu0 %v1987
    %v1989 = vpop.xlane.xlu0 %1988
    %v1990 = vsel %vm639, %v1986, -inf
    %1991 = vmax.xlane.f32.xlu0 %v1990
    %v1992 = vpop.xlane.xlu0 %1991
    %v1993 = vsub.f32 %v1985, %v1989
    %v1994 = vsub.f32 %v1986, %v1992
    %v1995 = vmul.f32 %v1993, 1.442695
    %v1996 = vpow.pop %v1995
    %v1997 = vmul.f32 %v1994, 1.442695
    %v1998 = vpow.pop %v1997
    %v1999 = vsel %vm639, %v1996, 0.0
    %2000 = vadd.xlane.f32.xlu0 %v1999
    %v2001 = vpop.xlane.xlu0 %2000
    %v2002 = vsel %vm639, %v1998, 0.0
    %2003 = vadd.xlane.f32.xlu0 %v2002
    %v2004 = vpop.xlane.xlu0 %2003
    %v2005 = vrcp.pop %v2001
    %v2006 = vrcp.pop %v2004
    %v2007 = vmul.f32 %v1996, %v2005
    %v2008 = vmul.f32 %v1998, %v2006
    %v2009 = vpack.c.bf16 %v2007, %v2007
    %v2010 = vpack.c.bf16 %v2008, %v2008
    %2011 = vrot.lane.b32.xlu0 %v522, 104
    %v2012 = vpop.permute.xlu0 %2011
    %v2014 = vsel %vm639, %v2009, 0
    %v2017 = vsel %vm667, %v2012, 0
    %2019 = vmatprep.subr.bf16.mxu0 0
    %2020 = vmatpush1.bf16.msra.mxu0 %v2017
    %2021 = vmatprep.subr.bf16.mxu0 0
    %2022 = vmatpush1.bf16.msra.mxu0 0
    %2023 = vmatprep.subr.bf16.mxu0 0
    %2024 = vmatpush1.bf16.msra.mxu0 0
    %2025 = vmatprep.subr.bf16.mxu0 0
    %2026 = vmatpush1.bf16.msra.mxu0 0
    %2027 = vmatprep.subr.bf16.mxu0 0
    %2028 = vmatpush1.bf16.msra.mxu0 0
    %2029 = vmatprep.subr.bf16.mxu0 0
    %2030 = vmatpush1.bf16.msra.mxu0 0
    %2031 = vmatprep.subr.bf16.mxu0 0
    %2032 = vmatpush1.bf16.msra.mxu0 0
    %2033 = vmatprep.subr.bf16.mxu0 0
    %2034 = vmatpush1.bf16.msra.mxu0 0
    %2035 = vmatprep.subr.bf16.mxu0 0
    %2036 = vmatpush1.bf16.msra.mxu0 0
    %2037 = vmatprep.subr.bf16.mxu0 0
    %2038 = vmatpush1.bf16.msra.mxu0 0
    %2039 = vmatprep.subr.bf16.mxu0 0
    %2040 = vmatpush1.bf16.msra.mxu0 0
    %2041 = vmatprep.subr.bf16.mxu0 0
    %2042 = vmatpush1.bf16.msra.mxu0 0
    %2043 = vmatprep.subr.bf16.mxu0 0
    %2044 = vmatpush1.bf16.msra.mxu0 0
    %2045 = vmatprep.subr.bf16.mxu0 0
    %2046 = vmatpush1.bf16.msra.mxu0 0
    %2047 = vmatprep.subr.bf16.mxu0 0
    %2048 = vmatpush1.bf16.msra.mxu0 0
    %2049 = vmatprep.subr.bf16.mxu0 0
    %2050 = vmatpush1.bf16.msra.mxu0 0
    %2051 = vmatprep.mubr.bf16.mxu0 0
    %2052 = vmatmul.mubr.bf16.gmra.mrb[0].mxu0 %v2014
    %v2053 = vpop.f32.mrb[0].mxu0
    %v2054 = vadd.f32 0.0, %v2053
    %v2055 = vpop.f32.mrb[0].mxu0
    %v2056 = vpop.f32.mrb[0].mxu0
    %v2057 = vpop.f32.mrb[0].mxu0
    %2058 = vdwg.mxu0
    %2059 = vrot.lane.b32.xlu0 %v523, 104
    %v2060 = vpop.permute.xlu0 %2059
    %v2062 = vsel %vm639, %v2010, 0
    %v2065 = vsel %vm667, %v2060, 0
    %2067 = vmatprep.subr.bf16.mxu0 0
    %2068 = vmatpush1.bf16.msra.mxu0 %v2065
    %2069 = vmatprep.subr.bf16.mxu0 0
    %2070 = vmatpush1.bf16.msra.mxu0 0
    %2071 = vmatprep.subr.bf16.mxu0 0
    %2072 = vmatpush1.bf16.msra.mxu0 0
    %2073 = vmatprep.subr.bf16.mxu0 0
    %2074 = vmatpush1.bf16.msra.mxu0 0
    %2075 = vmatprep.subr.bf16.mxu0 0
    %2076 = vmatpush1.bf16.msra.mxu0 0
    %2077 = vmatprep.subr.bf16.mxu0 0
    %2078 = vmatpush1.bf16.msra.mxu0 0
    %2079 = vmatprep.subr.bf16.mxu0 0
    %2080 = vmatpush1.bf16.msra.mxu0 0
    %2081 = vmatprep.subr.bf16.mxu0 0
    %2082 = vmatpush1.bf16.msra.mxu0 0
    %2083 = vmatprep.subr.bf16.mxu0 0
    %2084 = vmatpush1.bf16.msra.mxu0 0
    %2085 = vmatprep.subr.bf16.mxu0 0
    %2086 = vmatpush1.bf16.msra.mxu0 0
    %2087 = vmatprep.subr.bf16.mxu0 0
    %2088 = vmatpush1.bf16.msra.mxu0 0
    %2089 = vmatprep.subr.bf16.mxu0 0
    %2090 = vmatpush1.bf16.msra.mxu0 0
    %2091 = vmatprep.subr.bf16.mxu0 0
    %2092 = vmatpush1.bf16.msra.mxu0 0
    %2093 = vmatprep.subr.bf16.mxu0 0
    %2094 = vmatpush1.bf16.msra.mxu0 0
    %2095 = vmatprep.subr.bf16.mxu0 0
    %2096 = vmatpush1.bf16.msra.mxu0 0
    %2097 = vmatprep.subr.bf16.mxu0 0
    %2098 = vmatpush1.bf16.msra.mxu0 0
    %2099 = vmatprep.mubr.bf16.mxu0 0
    %2100 = vmatmul.mubr.bf16.gmra.mrb[0].mxu0 %v2062
    %v2101 = vpop.f32.mrb[0].mxu0
    %v2102 = vadd.f32 0.0, %v2101
    %v2103 = vpop.f32.mrb[0].mxu0
    %v2104 = vpop.f32.mrb[0].mxu0
    %v2105 = vpop.f32.mrb[0].mxu0
    %2106 = vdwg.mxu0
    %2107 = vrot.lane.b32.xlu0 %v294, 100
    %v2108 = vpop.permute.xlu0 %2107
    %2109 = vrot.lane.b32.xlu0 %v408, 100
    %v2110 = vpop.permute.xlu0 %2109
    %v2112 = vsel %vm530, %v2108, 0
    %v2115 = vsel %vm530, %v2110, 0
    %2117 = vmatprep.subr.bf16.mxu0 0
    %2118 = vmatpush1.bf16.xpose.msra.mxu0 %v2115
    %2119 = vmatprep.subr.bf16.mxu0 0
    %2120 = vmatpush1.bf16.xpose.msra.mxu0 0
    %2121 = vmatprep.subr.bf16.mxu0 0
    %2122 = vmatpush1.bf16.xpose.msra.mxu0 0
    %2123 = vmatprep.subr.bf16.mxu0 0
    %2124 = vmatpush1.bf16.xpose.msra.mxu0 0
    %2125 = vmatprep.subr.bf16.mxu0 0
    %2126 = vmatpush1.bf16.xpose.msra.mxu0 0
    %2127 = vmatprep.subr.bf16.mxu0 0
    %2128 = vmatpush1.bf16.xpose.msra.mxu0 0
    %2129 = vmatprep.subr.bf16.mxu0 0
    %2130 = vmatpush1.bf16.xpose.msra.mxu0 0
    %2131 = vmatprep.subr.bf16.mxu0 0
    %2132 = vmatpush1.bf16.xpose.msra.mxu0 0
    %2133 = vmatprep.subr.bf16.mxu0 0
    %2134 = vmatpush1.bf16.xpose.msra.mxu0 0
    %2135 = vmatprep.subr.bf16.mxu0 0
    %2136 = vmatpush1.bf16.xpose.msra.mxu0 0
    %2137 = vmatprep.subr.bf16.mxu0 0
    %2138 = vmatpush1.bf16.xpose.msra.mxu0 0
    %2139 = vmatprep.subr.bf16.mxu0 0
    %2140 = vmatpush1.bf16.xpose.msra.mxu0 0
    %2141 = vmatprep.subr.bf16.mxu0 0
    %2142 = vmatpush1.bf16.xpose.msra.mxu0 0
    %2143 = vmatprep.subr.bf16.mxu0 0
    %2144 = vmatpush1.bf16.xpose.msra.mxu0 0
    %2145 = vmatprep.subr.bf16.mxu0 0
    %2146 = vmatpush1.bf16.xpose.msra.mxu0 0
    %2147 = vmatprep.subr.bf16.mxu0 0
    %2148 = vmatpush1.bf16.xpose.msra.mxu0 0
    %2149 = vmatprep.mubr.bf16.mxu0 0
    %2150 = vmatmul.mubr.bf16.gmra.mrb[0].mxu0 %v2112
    %v2151 = vpop.f32.mrb[0].mxu0
    %v2152 = vadd.f32 0.0, %v2151
    %v2153 = vpop.f32.mrb[0].mxu0
    %v2154 = vpop.f32.mrb[0].mxu0
    %v2155 = vpop.f32.mrb[0].mxu0
    %2156 = vdwg.mxu0
    %2157 = vrot.lane.b32.xlu0 %v295, 100
    %v2158 = vpop.permute.xlu0 %2157
    %2159 = vrot.lane.b32.xlu0 %v409, 100
    %v2160 = vpop.permute.xlu0 %2159
    %v2162 = vsel %vm530, %v2158, 0
    %v2165 = vsel %vm530, %v2160, 0
    %2167 = vmatprep.subr.bf16.mxu0 0
    %2168 = vmatpush1.bf16.xpose.msra.mxu0 %v2165
    %2169 = vmatprep.subr.bf16.mxu0 0
    %2170 = vmatpush1.bf16.xpose.msra.mxu0 0
    %2171 = vmatprep.subr.bf16.mxu0 0
    %2172 = vmatpush1.bf16.xpose.msra.mxu0 0
    %2173 = vmatprep.subr.bf16.mxu0 0
    %2174 = vmatpush1.bf16.xpose.msra.mxu0 0
    %2175 = vmatprep.subr.bf16.mxu0 0
    %2176 = vmatpush1.bf16.xpose.msra.mxu0 0
    %2177 = vmatprep.subr.bf16.mxu0 0
    %2178 = vmatpush1.bf16.xpose.msra.mxu0 0
    %2179 = vmatprep.subr.bf16.mxu0 0
    %2180 = vmatpush1.bf16.xpose.msra.mxu0 0
    %2181 = vmatprep.subr.bf16.mxu0 0
    %2182 = vmatpush1.bf16.xpose.msra.mxu0 0
    %2183 = vmatprep.subr.bf16.mxu0 0
    %2184 = vmatpush1.bf16.xpose.msra.mxu0 0
    %2185 = vmatprep.subr.bf16.mxu0 0
    %2186 = vmatpush1.bf16.xpose.msra.mxu0 0
    %2187 = vmatprep.subr.bf16.mxu0 0
    %2188 = vmatpush1.bf16.xpose.msra.mxu0 0
    %2189 = vmatprep.subr.bf16.mxu0 0
    %2190 = vmatpush1.bf16.xpose.msra.mxu0 0
    %2191 = vmatprep.subr.bf16.mxu0 0
    %2192 = vmatpush1.bf16.xpose.msra.mxu0 0
    %2193 = vmatprep.subr.bf16.mxu0 0
    %2194 = vmatpush1.bf16.xpose.msra.mxu0 0
    %2195 = vmatprep.subr.bf16.mxu0 0
    %2196 = vmatpush1.bf16.xpose.msra.mxu0 0
    %2197 = vmatprep.subr.bf16.mxu0 0
    %2198 = vmatpush1.bf16.xpose.msra.mxu0 0
    %2199 = vmatprep.mubr.bf16.mxu0 0
    %2200 = vmatmul.mubr.bf16.gmra.mrb[0].mxu0 %v2162
    %v2201 = vpop.f32.mrb[0].mxu0
    %v2202 = vadd.f32 0.0, %v2201
    %v2203 = vpop.f32.mrb[0].mxu0
    %v2204 = vpop.f32.mrb[0].mxu0
    %v2205 = vpop.f32.mrb[0].mxu0
    %2206 = vdwg.mxu0
    %v2207 = vmul.f32 %v2152, 0.5
    %v2208 = vmul.f32 %v2202, 0.5
    %v2209 = vadd.f32 %v2207, %v630
    %v2210 = vadd.f32 %v2208, %v634
    %v2211 = vsel %vm639, %v2209, -inf
    %2212 = vmax.xlane.f32.xlu0 %v2211
    %v2213 = vpop.xlane.xlu0 %2212
    %v2214 = vsel %vm639, %v2210, -inf
    %2215 = vmax.xlane.f32.xlu0 %v2214
    %v2216 = vpop.xlane.xlu0 %2215
    %v2217 = vsub.f32 %v2209, %v2213
    %v2218 = vsub.f32 %v2210, %v2216
    %v2219 = vmul.f32 %v2217, 1.442695
    %v2220 = vpow.pop %v2219
    %v2221 = vmul.f32 %v2218, 1.442695
    %v2222 = vpow.pop %v2221
    %v2223 = vsel %vm639, %v2220, 0.0
    %2224 = vadd.xlane.f32.xlu0 %v2223
    %v2225 = vpop.xlane.xlu0 %2224
    %v2226 = vsel %vm639, %v2222, 0.0
    %2227 = vadd.xlane.f32.xlu0 %v2226
    %v2228 = vpop.xlane.xlu0 %2227
    %v2229 = vrcp.pop %v2225
    %v2230 = vrcp.pop %v2228
    %v2231 = vmul.f32 %v2220, %v2229
    %v2232 = vmul.f32 %v2222, %v2230
    %v2233 = vpack.c.bf16 %v2231, %v2231
    %v2234 = vpack.c.bf16 %v2232, %v2232
    %2235 = vrot.lane.b32.xlu0 %v522, 100
    %v2236 = vpop.permute.xlu0 %2235
    %v2238 = vsel %vm639, %v2233, 0
    %v2241 = vsel %vm667, %v2236, 0
    %2243 = vmatprep.subr.bf16.mxu0 0
    %2244 = vmatpush1.bf16.msra.mxu0 %v2241
    %2245 = vmatprep.subr.bf16.mxu0 0
    %2246 = vmatpush1.bf16.msra.mxu0 0
    %2247 = vmatprep.subr.bf16.mxu0 0
    %2248 = vmatpush1.bf16.msra.mxu0 0
    %2249 = vmatprep.subr.bf16.mxu0 0
    %2250 = vmatpush1.bf16.msra.mxu0 0
    %2251 = vmatprep.subr.bf16.mxu0 0
    %2252 = vmatpush1.bf16.msra.mxu0 0
    %2253 = vmatprep.subr.bf16.mxu0 0
    %2254 = vmatpush1.bf16.msra.mxu0 0
    %2255 = vmatprep.subr.bf16.mxu0 0
    %2256 = vmatpush1.bf16.msra.mxu0 0
    %2257 = vmatprep.subr.bf16.mxu0 0
    %2258 = vmatpush1.bf16.msra.mxu0 0
    %2259 = vmatprep.subr.bf16.mxu0 0
    %2260 = vmatpush1.bf16.msra.mxu0 0
    %2261 = vmatprep.subr.bf16.mxu0 0
    %2262 = vmatpush1.bf16.msra.mxu0 0
    %2263 = vmatprep.subr.bf16.mxu0 0
    %2264 = vmatpush1.bf16.msra.mxu0 0
    %2265 = vmatprep.subr.bf16.mxu0 0
    %2266 = vmatpush1.bf16.msra.mxu0 0
    %2267 = vmatprep.subr.bf16.mxu0 0
    %2268 = vmatpush1.bf16.msra.mxu0 0
    %2269 = vmatprep.subr.bf16.mxu0 0
    %2270 = vmatpush1.bf16.msra.mxu0 0
    %2271 = vmatprep.subr.bf16.mxu0 0
    %2272 = vmatpush1.bf16.msra.mxu0 0
    %2273 = vmatprep.subr.bf16.mxu0 0
    %2274 = vmatpush1.bf16.msra.mxu0 0
    %2275 = vmatprep.mubr.bf16.mxu0 0
    %2276 = vmatmul.mubr.bf16.gmra.mrb[0].mxu0 %v2238
    %v2277 = vpop.f32.mrb[0].mxu0
    %v2278 = vadd.f32 0.0, %v2277
    %v2279 = vpop.f32.mrb[0].mxu0
    %v2280 = vpop.f32.mrb[0].mxu0
    %v2281 = vpop.f32.mrb[0].mxu0
    %2282 = vdwg.mxu0
    %2283 = vrot.lane.b32.xlu0 %v523, 100
    %v2284 = vpop.permute.xlu0 %2283
    %v2286 = vsel %vm639, %v2234, 0
    %v2289 = vsel %vm667, %v2284, 0
    %2291 = vmatprep.subr.bf16.mxu0 0
    %2292 = vmatpush1.bf16.msra.mxu0 %v2289
    %2293 = vmatprep.subr.bf16.mxu0 0
    %2294 = vmatpush1.bf16.msra.mxu0 0
    %2295 = vmatprep.subr.bf16.mxu0 0
    %2296 = vmatpush1.bf16.msra.mxu0 0
    %2297 = vmatprep.subr.bf16.mxu0 0
    %2298 = vmatpush1.bf16.msra.mxu0 0
    %2299 = vmatprep.subr.bf16.mxu0 0
    %2300 = vmatpush1.bf16.msra.mxu0 0
    %2301 = vmatprep.subr.bf16.mxu0 0
    %2302 = vmatpush1.bf16.msra.mxu0 0
    %2303 = vmatprep.subr.bf16.mxu0 0
    %2304 = vmatpush1.bf16.msra.mxu0 0
    %2305 = vmatprep.subr.bf16.mxu0 0
    %2306 = vmatpush1.bf16.msra.mxu0 0
    %2307 = vmatprep.subr.bf16.mxu0 0
    %2308 = vmatpush1.bf16.msra.mxu0 0
    %2309 = vmatprep.subr.bf16.mxu0 0
    %2310 = vmatpush1.bf16.msra.mxu0 0
    %2311 = vmatprep.subr.bf16.mxu0 0
    %2312 = vmatpush1.bf16.msra.mxu0 0
    %2313 = vmatprep.subr.bf16.mxu0 0
    %2314 = vmatpush1.bf16.msra.mxu0 0
    %2315 = vmatprep.subr.bf16.mxu0 0
    %2316 = vmatpush1.bf16.msra.mxu0 0
    %2317 = vmatprep.subr.bf16.mxu0 0
    %2318 = vmatpush1.bf16.msra.mxu0 0
    %2319 = vmatprep.subr.bf16.mxu0 0
    %2320 = vmatpush1.bf16.msra.mxu0 0
    %2321 = vmatprep.subr.bf16.mxu0 0
    %2322 = vmatpush1.bf16.msra.mxu0 0
    %2323 = vmatprep.mubr.bf16.mxu0 0
    %2324 = vmatmul.mubr.bf16.gmra.mrb[0].mxu0 %v2286
    %v2325 = vpop.f32.mrb[0].mxu0
    %v2326 = vadd.f32 0.0, %v2325
    %v2327 = vpop.f32.mrb[0].mxu0
    %v2328 = vpop.f32.mrb[0].mxu0
    %v2329 = vpop.f32.mrb[0].mxu0
    %2330 = vdwg.mxu0
    %2333 = vrot.lane.b32.xlu0 %v933, 4
    %v2334 = vpop.permute.xlu0 %2333
    %2335 = vrot.lane.b32.xlu0 %v982, 4
    %v2336 = vpop.permute.xlu0 %2335
    %2341 = vrot.lane.b32.xlu0 %v1158, 8
    %v2342 = vpop.permute.xlu0 %2341
    %2343 = vrot.lane.b32.xlu0 %v1206, 8
    %v2344 = vpop.permute.xlu0 %2343
    %2349 = vrot.lane.b32.xlu0 %v1382, 12
    %v2350 = vpop.permute.xlu0 %2349
    %2351 = vrot.lane.b32.xlu0 %v1430, 12
    %v2352 = vpop.permute.xlu0 %2351
    %2357 = vrot.lane.b32.xlu0 %v1606, 16
    %v2358 = vpop.permute.xlu0 %2357
    %2359 = vrot.lane.b32.xlu0 %v1654, 16
    %v2360 = vpop.permute.xlu0 %2359
    %2365 = vrot.lane.b32.xlu0 %v1830, 20
    %v2366 = vpop.permute.xlu0 %2365
    %2367 = vrot.lane.b32.xlu0 %v1878, 20
    %v2368 = vpop.permute.xlu0 %2367
    %2373 = vrot.lane.b32.xlu0 %v2054, 24
    %v2374 = vpop.permute.xlu0 %2373
    %2375 = vrot.lane.b32.xlu0 %v2102, 24
    %v2376 = vpop.permute.xlu0 %2375
    %2381 = vrot.lane.b32.xlu0 %v2278, 28
    %v2382 = vpop.permute.xlu0 %2381
    %2383 = vrot.lane.b32.xlu0 %v2326, 28
    %v2384 = vpop.permute.xlu0 %2383
    %v2387 = vsel %vm530, %v706, %v2334
    %v2388 = vsel %vm530, %v752, %v2336
    %v2389 = vsel %vm639, %v2387, %v2342
    %v2390 = vsel %vm639, %v2388, %v2344
    %vm2391 = vcmask 97280
    %v2392 = vsel %vm2391, %v2389, %v2350
    %v2393 = vsel %vm2391, %v2390, %v2352
    %vm2394 = vcmask 130048
    %v2395 = vsel %vm2394, %v2392, %v2358
    %v2396 = vsel %vm2394, %v2393, %v2360
    %vm2397 = vcmask 162816
    %v2398 = vsel %vm2397, %v2395, %v2366
    %v2399 = vsel %vm2397, %v2396, %v2368
    %vm2400 = vcmask 195584
    %v2401 = vsel %vm2400, %v2398, %v2374
    %v2402 = vsel %vm2400, %v2399, %v2376
    %vm2403 = vcmask 228352
    %v2404 = vsel %vm2403, %v2401, %v2382
    %v2405 = vsel %vm2403, %v2402, %v2384
    %v2406 = vld [vmem:[#allocation11] sm:$0xf]
    %v2407 = vld [vmem:[#allocation11 + $0x4] sm:$0xf]
    %v2408 = vld [vmem:[#allocation11 + $0x8] sm:$0xf]
    %v2409 = vld [vmem:[#allocation11 + $0xc] sm:$0xf]
    %v2410 = vpack.c.bf16 %v2405, %v2404
    %v2411 = vld [vmem:[%s10] sm:$0x1]
    %v2413 = vlaneseq
    %v2414 = vshrl.u32 %v2413, 7
    %v2415 = vsub.s32 0, %v2414
    %v2416 = vrot.slane %v2411, %v2415
    %v2422 = vunpack.c.l.b16 %v2406
    %v2423 = vunpack.c.l.b16 %v2407
    %v2424 = vunpack.c.l.b16 %v2408
    %v2425 = vunpack.c.l.b16 %v2409
    %v2426 = vpack.c.b16 %v2423, %v2422
    %v2427 = vpack.c.b16 %v2425, %v2424
    %vm2430 = vcmask 261120
    %v2432 = vsel %vm2430, %v2410, 0
    %2434 = vmatprep.subr.bf16.mxu0 0
    %2435 = vmatpush1.bf16.msra.mxu0 %v2426
    %2436 = vmatprep.subr.bf16.mxu0 0
    %2437 = vmatpush1.bf16.msra.mxu0 %v2427
    %2438 = vmatprep.subr.bf16.mxu0 0
    %2439 = vmatpush1.bf16.msra.mxu0 0
    %2440 = vmatprep.subr.bf16.mxu0 0
    %2441 = vmatpush1.bf16.msra.mxu0 0
    %2442 = vmatprep.subr.bf16.mxu0 0
    %2443 = vmatpush1.bf16.msra.mxu0 0
    %2444 = vmatprep.subr.bf16.mxu0 0
    %2445 = vmatpush1.bf16.msra.mxu0 0
    %2446 = vmatprep.subr.bf16.mxu0 0
    %2447 = vmatpush1.bf16.msra.mxu0 0
    %2448 = vmatprep.subr.bf16.mxu0 0
    %2449 = vmatpush1.bf16.msra.mxu0 0
    %2450 = vmatprep.subr.bf16.mxu0 0
    %2451 = vmatpush1.bf16.msra.mxu0 0
    %2452 = vmatprep.subr.bf16.mxu0 0
    %2453 = vmatpush1.bf16.msra.mxu0 0
    %2454 = vmatprep.subr.bf16.mxu0 0
    %2455 = vmatpush1.bf16.msra.mxu0 0
    %2456 = vmatprep.subr.bf16.mxu0 0
    %2457 = vmatpush1.bf16.msra.mxu0 0
    %2458 = vmatprep.subr.bf16.mxu0 0
    %2459 = vmatpush1.bf16.msra.mxu0 0
    %2460 = vmatprep.subr.bf16.mxu0 0
    %2461 = vmatpush1.bf16.msra.mxu0 0
    %2462 = vmatprep.subr.bf16.mxu0 0
    %2463 = vmatpush1.bf16.msra.mxu0 0
    %2464 = vmatprep.subr.bf16.mxu0 0
    %2465 = vmatpush1.bf16.msra.mxu0 0
    %2466 = vmatprep.mubr.bf16.mxu0 0
    %2467 = vmatmul.mubr.bf16.gmra.mrb[0].mxu0 %v2432
    %v2468 = vpop.f32.mrb[0].mxu0
    %v2469 = vadd.f32 %v2416, %v2468
    %v2470 = vpop.f32.mrb[0].mxu0
    %v2471 = vpop.f32.mrb[0].mxu0
    %v2472 = vadd.f32 %v2416, %v2471
    %v2473 = vpop.f32.mrb[0].mxu0
    %2474 = vdwg.mxu0
    %v2475 = vadd.f32 %v2469, %v179
    %v2476 = vadd.f32 %v2472, %v180
    %v2477 = vld [vmem:[%s11] sm:$0x1]
    %v2478 = vld [vmem:[%s12] sm:$0x1]
    %v2479 = vmul.f32 %v2475, %v175
    %v2480 = vmul.f32 %v2476, %v175
    %2481 = vadd.xlane.f32.xlu0 %v2479
    %v2482 = vpop.xlane.xlu0 %2481
    %2483 = vadd.xlane.f32.xlu0 %v2480
    %v2484 = vpop.xlane.xlu0 %2483
    %v2485 = vmul.f32 %v2482, 0.03125
    %v2486 = vmul.f32 %v2484, 0.03125
    %v2487 = vsub.f32 %v2475, %v2485
    %v2488 = vsub.f32 %v2476, %v2486
    %v2489 = vmul.f32 %v2487, %v175
    %v2490 = vmul.f32 %v2488, %v175
    %v2491 = vmul.f32 %v2489, %v2489
    %v2492 = vmul.f32 %v2490, %v2490
    %2493 = vadd.xlane.f32.xlu0 %v2491
    %v2494 = vpop.xlane.xlu0 %2493
    %2495 = vadd.xlane.f32.xlu0 %v2492
    %v2496 = vpop.xlane.xlu0 %2495
    %v2497 = vmul.f32 %v2494, 0.03125
    %v2498 = vmul.f32 %v2496, 0.03125
    %v2499 = vrsqrt.pop %v2497
    %v2500 = vmul.f32 %v2497, %v2499
    %vm2501 = vcmp.eq.f32.partialorder %v2497, inf
    %v2502 = vsel %vm2501, %v2497, %v2500
    %vm2503 = vcmp.eq.f32.partialorder %v2497, 0.0
    %v2504 = vand.u32 %v2497, 2147483648
    %v2505 = vsel %vm2503, %v2504, %v2502
    %v2506 = vrsqrt.pop %v2498
    %v2507 = vmul.f32 %v2498, %v2506
    %vm2508 = vcmp.eq.f32.partialorder %v2498, inf
    %v2509 = vsel %vm2508, %v2498, %v2507
    %vm2510 = vcmp.eq.f32.partialorder %v2498, 0.0
    %v2511 = vand.u32 %v2498, 2147483648
    %v2512 = vsel %vm2510, %v2511, %v2509
    %v2513 = vadd.f32 %v2505, 1e-06
    %v2514 = vadd.f32 %v2512, 1e-06
    %v2515 = vrcp.pop %v2513
    %v2516 = vrcp.pop %v2514
    %v2518 = vlaneseq
    %v2519 = vshrl.u32 %v2518, 7
    %v2520 = vsub.s32 0, %v2519
    %v2521 = vrot.slane %v2477, %v2520
    %v2523 = vmul.f32 %v2521, %v2489
    %v2524 = vmul.f32 %v2521, %v2490
    %v2525 = vmul.f32 %v2523, %v2515
    %v2526 = vmul.f32 %v2524, %v2516
    %v2528 = vlaneseq
    %v2529 = vshrl.u32 %v2528, 7
    %v2530 = vsub.s32 0, %v2529
    %v2531 = vrot.slane %v2478, %v2530
    %v2533 = vadd.f32 %v2525, %v2531
    %v2534 = vadd.f32 %v2526, %v2531
    %v2535 = vpack.c.bf16 %v2534, %v2533
    %v2536 = vld [vmem:[#allocation13] sm:$0xf]
    %v2537 = vld [vmem:[#allocation13 + $0x4] sm:$0xf]
    %v2538 = vld [vmem:[#allocation13 + $0x8] sm:$0xf]
    %v2539 = vld [vmem:[#allocation13 + $0xc] sm:$0xf]
    %v2540 = vld [vmem:[#allocation13 + $0x10] sm:$0xf]
    %v2541 = vld [vmem:[#allocation13 + $0x14] sm:$0xf]
    %v2542 = vld [vmem:[#allocation13 + $0x18] sm:$0xf]
    %v2543 = vld [vmem:[#allocation13 + $0x1c] sm:$0xf]
    %v2544 = vld [vmem:[#allocation13 + $0x20] sm:$0xf]
    %v2545 = vld [vmem:[#allocation13 + $0x24] sm:$0xf]
    %v2546 = vld [vmem:[#allocation13 + $0x28] sm:$0xf]
    %v2547 = vld [vmem:[#allocation13 + $0x2c] sm:$0xf]
    %v2548 = vld [vmem:[#allocation13 + $0x30] sm:$0xf]
    %v2549 = vld [vmem:[#allocation13 + $0x34] sm:$0xf]
    %v2550 = vld [vmem:[#allocation13 + $0x38] sm:$0xf]
    %v2551 = vld [vmem:[#allocation13 + $0x3c] sm:$0xf]
    %v2552 = vld [vmem:[%s14] sm:$0x1]
    %v2554 = vlaneseq
    %v2555 = vshrl.u32 %v2554, 7
    %v2556 = vsub.s32 0, %v2555
    %v2557 = vrot.slane %v2552, %v2556
    %v2575 = vunpack.c.l.b16 %v2536
    %v2576 = vunpack.c.l.b16 %v2537
    %v2577 = vunpack.c.l.b16 %v2538
    %v2578 = vunpack.c.l.b16 %v2539
    %v2579 = vunpack.c.l.b16 %v2540
    %v2580 = vunpack.c.l.b16 %v2541
    %v2581 = vunpack.c.l.b16 %v2542
    %v2582 = vunpack.c.l.b16 %v2543
    %v2583 = vunpack.c.l.b16 %v2544
    %v2584 = vunpack.c.l.b16 %v2545
    %v2585 = vunpack.c.l.b16 %v2546
    %v2586 = vunpack.c.l.b16 %v2547
    %v2587 = vunpack.c.l.b16 %v2548
    %v2588 = vunpack.c.l.b16 %v2549
    %v2589 = vunpack.c.l.b16 %v2550
    %v2590 = vunpack.c.l.b16 %v2551
    %v2591 = vpack.c.b16 %v2576, %v2575
    %v2592 = vpack.c.b16 %v2578, %v2577
    %v2593 = vpack.c.b16 %v2580, %v2579
    %v2594 = vpack.c.b16 %v2582, %v2581
    %v2595 = vpack.c.b16 %v2584, %v2583
    %v2596 = vpack.c.b16 %v2586, %v2585
    %v2597 = vpack.c.b16 %v2588, %v2587
    %v2598 = vpack.c.b16 %v2590, %v2589
    %2607 = vmatprep.subr.bf16.mxu0 0
    %2608 = vmatpush1.bf16.msra.mxu0 %v2591
    %2609 = vmatprep.subr.bf16.mxu0 0
    %2610 = vmatpush1.bf16.msra.mxu0 %v2592
    %2611 = vmatprep.subr.bf16.mxu0 0
    %2612 = vmatpush1.bf16.msra.mxu0 %v2593
    %2613 = vmatprep.subr.bf16.mxu0 0
    %2614 = vmatpush1.bf16.msra.mxu0 %v2594
    %2615 = vmatprep.subr.bf16.mxu0 0
    %2616 = vmatpush1.bf16.msra.mxu0 %v2595
    %2617 = vmatprep.subr.bf16.mxu0 0
    %2618 = vmatpush1.bf16.msra.mxu0 %v2596
    %2619 = vmatprep.subr.bf16.mxu0 0
    %2620 = vmatpush1.bf16.msra.mxu0 %v2597
    %2621 = vmatprep.subr.bf16.mxu0 0
    %2622 = vmatpush1.bf16.msra.mxu0 %v2598
    %2623 = vmatprep.subr.bf16.mxu0 0
    %2624 = vmatpush1.bf16.msra.mxu0 0
    %2625 = vmatprep.subr.bf16.mxu0 0
    %2626 = vmatpush1.bf16.msra.mxu0 0
    %2627 = vmatprep.subr.bf16.mxu0 0
    %2628 = vmatpush1.bf16.msra.mxu0 0
    %2629 = vmatprep.subr.bf16.mxu0 0
    %2630 = vmatpush1.bf16.msra.mxu0 0
    %2631 = vmatprep.subr.bf16.mxu0 0
    %2632 = vmatpush1.bf16.msra.mxu0 0
    %2633 = vmatprep.subr.bf16.mxu0 0
    %2634 = vmatpush1.bf16.msra.mxu0 0
    %2635 = vmatprep.subr.bf16.mxu0 0
    %2636 = vmatpush1.bf16.msra.mxu0 0
    %2637 = vmatprep.subr.bf16.mxu0 0
    %2638 = vmatpush1.bf16.msra.mxu0 0
    %2639 = vmatprep.mubr.bf16.mxu0 0
    %2640 = vmatmul.mubr.bf16.gmra.mrb[0].mxu0 %v2535
    %v2641 = vpop.f32.mrb[0].mxu0
    %v2642 = vadd.f32 %v2557, %v2641
    %v2643 = vpop.f32.mrb[0].mxu0
    %v2644 = vpop.f32.mrb[0].mxu0
    %v2645 = vadd.f32 %v2557, %v2644
    %v2646 = vpop.f32.mrb[0].mxu0
    %2647 = vdwg.mxu0
    %v2648 = vmax.f32 %v2642, 0.0
    %v2649 = vmax.f32 %v2645, 0.0
    %v2650 = vpack.c.bf16 %v2649, %v2648
    %v2651 = vld [vmem:[#allocation14] sm:$0xf]
    %v2652 = vld [vmem:[#allocation14 + $0x4] sm:$0xf]
    %v2653 = vld [vmem:[#allocation14 + $0x8] sm:$0xf]
    %v2654 = vld [vmem:[#allocation14 + $0xc] sm:$0xf]
    %v2655 = vld [vmem:[#allocation14 + $0x10] sm:$0xf]
    %v2656 = vld [vmem:[#allocation14 + $0x14] sm:$0xf]
    %v2657 = vld [vmem:[#allocation14 + $0x18] sm:$0xf]
    %v2658 = vld [vmem:[#allocation14 + $0x1c] sm:$0xf]
    %v2659 = vld [vmem:[#allocation14 + $0x20] sm:$0xf]
    %v2660 = vld [vmem:[#allocation14 + $0x24] sm:$0xf]
    %v2661 = vld [vmem:[#allocation14 + $0x28] sm:$0xf]
    %v2662 = vld [vmem:[#allocation14 + $0x2c] sm:$0xf]
    %v2663 = vld [vmem:[#allocation14 + $0x30] sm:$0xf]
    %v2664 = vld [vmem:[#allocation14 + $0x34] sm:$0xf]
    %v2665 = vld [vmem:[#allocation14 + $0x38] sm:$0xf]
    %v2666 = vld [vmem:[#allocation14 + $0x3c] sm:$0xf]
    %v2667 = vld [vmem:[%s16] sm:$0x1]
    %v2669 = vlaneseq
    %v2670 = vshrl.u32 %v2669, 7
    %v2671 = vsub.s32 0, %v2670
    %v2672 = vrot.slane %v2667, %v2671
    %v2690 = vunpack.c.l.b16 %v2651
    %v2691 = vunpack.c.l.b16 %v2652
    %v2692 = vunpack.c.l.b16 %v2653
    %v2693 = vunpack.c.l.b16 %v2654
    %v2694 = vunpack.c.l.b16 %v2655
    %v2695 = vunpack.c.l.b16 %v2656
    %v2696 = vunpack.c.l.b16 %v2657
    %v2697 = vunpack.c.l.b16 %v2658
    %v2698 = vunpack.c.l.b16 %v2659
    %v2699 = vunpack.c.l.b16 %v2660
    %v2700 = vunpack.c.l.b16 %v2661
    %v2701 = vunpack.c.l.b16 %v2662
    %v2702 = vunpack.c.l.b16 %v2663
    %v2703 = vunpack.c.l.b16 %v2664
    %v2704 = vunpack.c.l.b16 %v2665
    %v2705 = vunpack.c.l.b16 %v2666
    %v2706 = vpack.c.b16 %v2691, %v2690
    %v2707 = vpack.c.b16 %v2693, %v2692
    %v2708 = vpack.c.b16 %v2695, %v2694
    %v2709 = vpack.c.b16 %v2697, %v2696
    %v2710 = vpack.c.b16 %v2699, %v2698
    %v2711 = vpack.c.b16 %v2701, %v2700
    %v2712 = vpack.c.b16 %v2703, %v2702
    %v2713 = vpack.c.b16 %v2705, %v2704
    %2722 = vmatprep.subr.bf16.mxu0 0
    %2723 = vmatpush1.bf16.msra.mxu0 %v2706
    %2724 = vmatprep.subr.bf16.mxu0 0
    %2725 = vmatpush1.bf16.msra.mxu0 %v2707
    %2726 = vmatprep.subr.bf16.mxu0 0
    %2727 = vmatpush1.bf16.msra.mxu0 %v2708
    %2728 = vmatprep.subr.bf16.mxu0 0
    %2729 = vmatpush1.bf16.msra.mxu0 %v2709
    %2730 = vmatprep.subr.bf16.mxu0 0
    %2731 = vmatpush1.bf16.msra.mxu0 %v2710
    %2732 = vmatprep.subr.bf16.mxu0 0
    %2733 = vmatpush1.bf16.msra.mxu0 %v2711
    %2734 = vmatprep.subr.bf16.mxu0 0
    %2735 = vmatpush1.bf16.msra.mxu0 %v2712
    %2736 = vmatprep.subr.bf16.mxu0 0
    %2737 = vmatpush1.bf16.msra.mxu0 %v2713
    %2738 = vmatprep.subr.bf16.mxu0 0
    %2739 = vmatpush1.bf16.msra.mxu0 0
    %2740 = vmatprep.subr.bf16.mxu0 0
    %2741 = vmatpush1.bf16.msra.mxu0 0
    %2742 = vmatprep.subr.bf16.mxu0 0
    %2743 = vmatpush1.bf16.msra.mxu0 0
    %2744 = vmatprep.subr.bf16.mxu0 0
    %2745 = vmatpush1.bf16.msra.mxu0 0
    %2746 = vmatprep.subr.bf16.mxu0 0
    %2747 = vmatpush1.bf16.msra.mxu0 0
    %2748 = vmatprep.subr.bf16.mxu0 0
    %2749 = vmatpush1.bf16.msra.mxu0 0
    %2750 = vmatprep.subr.bf16.mxu0 0
    %2751 = vmatpush1.bf16.msra.mxu0 0
    %2752 = vmatprep.subr.bf16.mxu0 0
    %2753 = vmatpush1.bf16.msra.mxu0 0
    %2754 = vmatprep.mubr.bf16.mxu0 0
    %2755 = vmatmul.mubr.bf16.gmra.mrb[0].mxu0 %v2650
    %v2756 = vpop.f32.mrb[0].mxu0
    %v2757 = vadd.f32 %v2672, %v2756
    %v2758 = vpop.f32.mrb[0].mxu0
    %v2759 = vpop.f32.mrb[0].mxu0
    %v2760 = vadd.f32 %v2672, %v2759
    %v2761 = vpop.f32.mrb[0].mxu0
    %2762 = vdwg.mxu0
    %v2763 = vadd.f32 %v2757, %v2533
    %v2764 = vadd.f32 %v2760, %v2534
    %v2765 = vld [vmem:[%s17] sm:$0x1]
    %v2766 = vld [vmem:[%s18] sm:$0x1]
    %v2767 = vmul.f32 %v2763, %v175
    %v2768 = vmul.f32 %v2764, %v175
    %2769 = vadd.xlane.f32.xlu0 %v2767
    %v2770 = vpop.xlane.xlu0 %2769
    %2771 = vadd.xlane.f32.xlu0 %v2768
    %v2772 = vpop.xlane.xlu0 %2771
    %v2773 = vmul.f32 %v2770, 0.03125
    %v2774 = vmul.f32 %v2772, 0.03125
    %v2775 = vsub.f32 %v2763, %v2773
    %v2776 = vsub.f32 %v2764, %v2774
    %v2777 = vmul.f32 %v2775, %v175
    %v2778 = vmul.f32 %v2776, %v175
    %v2779 = vmul.f32 %v2777, %v2777
    %v2780 = vmul.f32 %v2778, %v2778
    %2781 = vadd.xlane.f32.xlu0 %v2779
    %v2782 = vpop.xlane.xlu0 %2781
    %2783 = vadd.xlane.f32.xlu0 %v2780
    %v2784 = vpop.xlane.xlu0 %2783
    %v2785 = vmul.f32 %v2782, 0.03125
    %v2786 = vmul.f32 %v2784, 0.03125
    %v2787 = vrsqrt.pop %v2785
    %v2788 = vmul.f32 %v2785, %v2787
    %vm2789 = vcmp.eq.f32.partialorder %v2785, inf
    %v2790 = vsel %vm2789, %v2785, %v2788
    %vm2791 = vcmp.eq.f32.partialorder %v2785, 0.0
    %v2792 = vand.u32 %v2785, 2147483648
    %v2793 = vsel %vm2791, %v2792, %v2790
    %v2794 = vrsqrt.pop %v2786
    %v2795 = vmul.f32 %v2786, %v2794
    %vm2796 = vcmp.eq.f32.partialorder %v2786, inf
    %v2797 = vsel %vm2796, %v2786, %v2795
    %vm2798 = vcmp.eq.f32.partialorder %v2786, 0.0
    %v2799 = vand.u32 %v2786, 2147483648
    %v2800 = vsel %vm2798, %v2799, %v2797
    %v2801 = vadd.f32 %v2793, 1e-06
    %v2802 = vadd.f32 %v2800, 1e-06
    %v2803 = vrcp.pop %v2801
    %v2804 = vrcp.pop %v2802
    %v2806 = vlaneseq
    %v2807 = vshrl.u32 %v2806, 7
    %v2808 = vsub.s32 0, %v2807
    %v2809 = vrot.slane %v2765, %v2808
    %v2811 = vmul.f32 %v2809, %v2777
    %v2812 = vmul.f32 %v2809, %v2778
    %v2813 = vmul.f32 %v2811, %v2803
    %v2814 = vmul.f32 %v2812, %v2804
    %v2816 = vlaneseq
    %v2817 = vshrl.u32 %v2816, 7
    %v2818 = vsub.s32 0, %v2817
    %v2819 = vrot.slane %v2766, %v2818
    %v2821 = vadd.f32 %v2813, %v2819
    %v2822 = vadd.f32 %v2814, %v2819
    %2823 = vst [vmem:[#allocation16] sm:$0xff] %v2821
    %2824 = vst [vmem:[#allocation16 + $0x8] sm:$0xff] %v2822
    // Predicated region
    $region110: #{tpu_custom_call.1} parent=1 // pred_check
      _
    $region111: #{tpu_custom_call.1} parent=1 // pred_check_branch
      %2826 = sbr.rel (0) target = $region113
    $region112: #{tpu_custom_call.1} parent=1 // pred_region
      %s2828 = ssub.s32 256, 256
      %2829 = vsyncadd [#allocation4], %s2828
      %s2830 = sshll.u32 [#allocation16], 4
      %s2831 = int_to_ptr.vmem [resolvable:$true] %s2830
      %2836 = dma.vmem_to_hbm [thread:$0]  %s2831, 256, %s19, [#allocation4], 128, 128, 8
    $region113: #{tpu_custom_call.1} parent=1 // pred_fallthru
      _
    // Predicated region
    $region114: #{tpu_custom_call.1} parent=1 // pred_check
      _
    $region115: #{tpu_custom_call.1} parent=1 // pred_check_branch
      %2838 = sbr.rel (0) target = $region117
    $region116: #{tpu_custom_call.1} parent=1 // pred_region
      %2839 = dma.done [#allocation4], 256
    $region117: #{tpu_custom_call.1} parent=1 // pred_fallthru
      _
    %2840 = vsyncpa [#allocation3], 1
    %2841 = vsyncpa [#allocation6], 1
    %2842 = vsyncpa [#allocation9], 1
    %2843 = vsyncpa [#allocation12], 1
    %2844 = vsyncpa [#allocation15], 1
    %2845 = vsyncpa [#allocation4], 1

</llo_original>
